<compile_context>
chip_gen: v7x
topology: tpu7x:2x2x1
jax: 0.10.0
libtpu: 0.0.40
codegen_flags: <defaults>
</compile_context>

<pallas_src>
import functools

import jax
import jax.numpy as jnp
from jax import lax
from jax.experimental import pallas as pl
from jax.experimental.pallas import tpu as pltpu

LANE = 128


def _round_up(x, m):
    return (x + m - 1) // m * m


# ----------------------------------------------------------------------------
# Pallas kernels: tiled matmul + bias (+ residual add) (+ ReLU)
# ----------------------------------------------------------------------------
def _mm_bias_kernel(a_ref, b_ref, bias_ref, o_ref, *, relu):
    acc = jnp.dot(a_ref[...], b_ref[...], preferred_element_type=jnp.float32)
    acc = acc + bias_ref[...]
    if relu:
        acc = jnp.maximum(acc, 0.0)
    o_ref[...] = acc.astype(o_ref.dtype)


def _mm_bias_add_kernel(a_ref, b_ref, bias_ref, r_ref, o_ref, *, relu):
    acc = jnp.dot(a_ref[...], b_ref[...], preferred_element_type=jnp.float32)
    acc = acc + bias_ref[...] + r_ref[...].astype(jnp.float32)
    if relu:
        acc = jnp.maximum(acc, 0.0)
    o_ref[...] = acc.astype(o_ref.dtype)


def matmul_bias(a, b, bias, residual=None, relu=False,
                out_dtype=jnp.bfloat16, tm=256):
    """a:(M,K) -> bf16, b:(K,N) bf16, bias:(1,N) f32, residual:(M,N) -> (M,N).

    Tiled over (M, N); K kept as a single (full) block since K <= ~1.2k here,
    so no reduction axis / scratch accumulator is needed.
    """
    M, K = a.shape
    K2, N = b.shape
    assert K == K2 and bias.shape == (1, N)
    tn = N if N <= LANE else LANE
    assert N % tn == 0, f"Cout={N} must be <= {LANE} or a multiple of {LANE}"
    tm_eff = min(tm, _round_up(M, 8))
    grid = (pl.cdiv(M, tm_eff), N // tn)

    in_specs = [
        pl.BlockSpec((tm_eff, K), lambda i, j: (i, 0)),
        pl.BlockSpec((K, tn), lambda i, j: (0, j)),
        pl.BlockSpec((1, tn), lambda i, j: (0, j)),
    ]
    operands = [a.astype(jnp.bfloat16), b.astype(jnp.bfloat16),
                bias.astype(jnp.float32)]
    if residual is not None:
        assert residual.shape == (M, N)
        in_specs.append(pl.BlockSpec((tm_eff, tn), lambda i, j: (i, j)))
        operands.append(residual)
        kernel = functools.partial(_mm_bias_add_kernel, relu=relu)
    else:
        kernel = functools.partial(_mm_bias_kernel, relu=relu)

    return pl.pallas_call(
        kernel,
        out_shape=jax.ShapeDtypeStruct((M, N), out_dtype),
        grid=grid,
        in_specs=in_specs,
        out_specs=pl.BlockSpec((tm_eff, tn), lambda i, j: (i, j)),
        compiler_params=pltpu.CompilerParams(
            dimension_semantics=("parallel", "parallel"),
            vmem_limit_bytes=32 * 1024 * 1024,
        ),
    )(*operands)


# ----------------------------------------------------------------------------
# Convolution wrappers: XLA patch extraction + Pallas matmul (hot path)
# ----------------------------------------------------------------------------
def _patches3x3(x, stride):
    # (N,H,W,C) -> (N,Ho,Wo, C*9), channel-major patch ordering (c, kh, kw).
    # TODO(synk): move the 9-tap accumulation fully inside the Pallas kernel to
    # avoid materializing the patches tensor in HBM at large resolutions.
    return lax.conv_general_dilated_patches(
        x, (3, 3), (stride, stride), [(1, 1), (1, 1)],
        dimension_numbers=("NHWC", "HWIO", "NHWC"))


def conv3x3(x, wmat, bias, stride=1, relu=False, residual=None,
            out_dtype=jnp.bfloat16):
    n, h, w, c = x.shape
    p = _patches3x3(x, stride)
    ho, wo = p.shape[1], p.shape[2]
    a = p.reshape(n * ho * wo, 9 * c)
    r = residual.reshape(n * ho * wo, -1) if residual is not None else None
    out = matmul_bias(a, wmat, bias, residual=r, relu=relu, out_dtype=out_dtype)
    return out.reshape(n, ho, wo, -1)


def conv1x1(x, wmat, bias, relu=False, residual=None, out_dtype=jnp.bfloat16):
    n, h, w, c = x.shape
    a = x.reshape(n * h * w, c)
    r = residual.reshape(n * h * w, -1) if residual is not None else None
    out = matmul_bias(a, wmat, bias, residual=r, relu=relu, out_dtype=out_dtype)
    return out.reshape(n, h, w, -1)


def conv3x3_multilevel(fms, wmat, bias, relu=False, out_dtype=jnp.bfloat16):
    """Weight-shared 3x3 conv applied to all pyramid levels with ONE matmul."""
    rows, shapes = [], []
    for fm in fms:
        n, h, w, c = fm.shape
        p = _patches3x3(fm, 1)
        rows.append(p.reshape(n * h * w, 9 * c))
        shapes.append((n, h, w))
    a = jnp.concatenate(rows, axis=0)
    out = matmul_bias(a, wmat, bias, relu=relu, out_dtype=out_dtype)
    cout = wmat.shape[1]
    outs, off = [], 0
    for (n, h, w) in shapes:
        m = n * h * w
        outs.append(out[off:off + m].reshape(n, h, w, cout))
        off += m
    return outs


def upsample2x(x):
    # TODO(synk): fold nearest-2x upsample into the consumer's index_map instead
    # of materializing it (pure HBM-bandwidth glue for now).
    return jnp.repeat(jnp.repeat(x, 2, axis=1), 2, axis=2)


# ----------------------------------------------------------------------------
# Parameter construction (deterministic, synthetic) and one-time prep
# ----------------------------------------------------------------------------
def _conv_init(key, kh, kw, cin, cout, scale=0.05):
    w = scale * jax.random.normal(key, (kh, kw, cin, cout), dtype=jnp.float32)
    b = jnp.zeros((cout,), dtype=jnp.float32)
    return w, b


def build_retinanet_params(key, in_ch, num_anchors, num_classes,
                           bb_channels=(64, 64, 128, 128), fpn_c=64, head_c=64):
    keys = iter(jax.random.split(key, 32))
    p = {}
    bb, c_prev = [], in_ch
    for c in bb_channels:
        bb.append(_conv_init(next(keys), 3, 3, c_prev, c))
        c_prev = c
    p["backbone"] = bb
    p["lat"] = [_conv_init(next(keys), 1, 1, bb_channels[1], fpn_c),
                _conv_init(next(keys), 1, 1, bb_channels[2], fpn_c),
                _conv_init(next(keys), 1, 1, bb_channels[3], fpn_c)]
    p["smooth"] = [_conv_init(next(keys), 3, 3, fpn_c, fpn_c) for _ in range(3)]

    def head(planes):
        convs = [_conv_init(next(keys), 3, 3, fpn_c if i == 0 else head_c, head_c)
                 for i in range(2)]
        final = _conv_init(next(keys), 3, 3, head_c, planes)
        return {"convs": convs, "final": final}

    p["loc_head"] = head(num_anchors * 4)
    p["cls_head"] = head(num_anchors * num_classes)
    return p, dict(head_c=head_c)


def _prep(w, b, pad_out_to=None):
    """HWIO weight -> (Cin*KH*KW, Cout) bf16 matrix whose row order matches
    conv_general_dilated_patches' channel-major patch layout; bias -> (1,Cout) f32.
    Optionally zero-pad Cout up to a lane multiple (lane-dense stores)."""
    kh, kw, cin, cout = w.shape
    wmat = jnp.transpose(w, (2, 0, 1, 3)).reshape(cin * kh * kw, cout)
    bias = b.reshape(1, cout)
    if pad_out_to is not None and pad_out_to > cout:
        wmat = jnp.pad(wmat, ((0, 0), (0, pad_out_to - cout)))
        bias = jnp.pad(bias, ((0, 0), (0, pad_out_to - cout)))
    return wmat.astype(jnp.bfloat16), bias.astype(jnp.float32)


def prep_retinanet_params(params, head_c, num_anchors, num_classes):
    """One-time (eager) weight prep: reorder, fuse loc+cls towers, pad, cast."""
    pp = {"backbone": [_prep(w, b) for (w, b) in params["backbone"]],
          "lat": [_prep(w, b) for (w, b) in params["lat"]],
          "smooth": [_prep(w, b) for (w, b) in params["smooth"]]}

    lw1, lb1 = params["loc_head"]["convs"][0]
    cw1, cb1 = params["cls_head"]["convs"][0]
    lw2, lb2 = params["loc_head"]["convs"][1]
    cw2, cb2 = params["cls_head"]["convs"][1]
    lwf, lbf = params["loc_head"]["final"]
    cwf, cbf = params["cls_head"]["final"]

    # conv1: shared input -> loc-branch channels then cls-branch channels.
    w1 = jnp.concatenate([lw1, cw1], axis=3)
    b1 = jnp.concatenate([lb1, cb1], axis=0)
    # conv2: block-diagonal so the two branches stay independent.
    w2 = jnp.zeros((3, 3, 2 * head_c, 2 * head_c), jnp.float32)
    w2 = w2.at[:, :, :head_c, :head_c].set(lw2)
    w2 = w2.at[:, :, head_c:, head_c:].set(cw2)
    b2 = jnp.concatenate([lb2, cb2], axis=0)
    # final: loc outputs (A*4) then cls outputs (A*C), zero-padded to 128 lanes.
    n_loc, n_cls = num_anchors * 4, num_anchors * num_classes
    wf = jnp.zeros((3, 3, 2 * head_c, n_loc + n_cls), jnp.float32)
    wf = wf.at[:, :, :head_c, :n_loc].set(lwf)
    wf = wf.at[:, :, head_c:, n_loc:].set(cwf)
    bf = jnp.concatenate([lbf, cbf], axis=0)

    pp["head"] = {"conv1": _prep(w1, b1),
                  "conv2": _prep(w2, b2),
                  "final": _prep(wf, bf, pad_out_to=_round_up(n_loc + n_cls, LANE))}
    return pp


# ----------------------------------------------------------------------------
# Forward pass (mirrors RetinaNet.forward)
# ----------------------------------------------------------------------------
def retinanet_forward(params, x_nchw, num_anchors, num_classes):
    n = x_nchw.shape[0]
    x = jnp.transpose(x_nchw, (0, 2, 3, 1)).astype(jnp.bfloat16)  # NCHW -> NHWC

    # backbone: 4 strided 3x3 convs + ReLU
    feats, h = [], x
    for wmat, bias in params["backbone"]:
        h = conv3x3(h, wmat, bias, stride=2, relu=True)
        feats.append(h)
    l1, l2, l3, l4 = feats

    # FPN: 1x1 laterals; top-down upsample-add fused into the lateral matmul
    (lat2w, lat2b), (lat3w, lat3b), (lat4w, lat4b) = params["lat"]
    p5 = conv1x1(l4, lat4w, lat4b)
    p4 = conv1x1(l3, lat3w, lat3b, residual=upsample2x(p5))
    p3 = conv1x1(l2, lat2w, lat2b, residual=upsample2x(p4))
    sm = params["smooth"]
    p3 = conv3x3(p3, sm[0][0], sm[0][1])
    p4 = conv3x3(p4, sm[1][0], sm[1][1])
    p5 = conv3x3(p5, sm[2][0], sm[2][1])
    fms = [p3, p4, p5]

    # fused loc+cls head tower, all pyramid levels batched per layer
    head = params["head"]
    hs = conv3x3_multilevel(fms, *head["conv1"], relu=True)
    hs = conv3x3_multilevel(hs, *head["conv2"], relu=True)
    outs = conv3x3_multilevel(hs, *head["final"], relu=False,
                              out_dtype=jnp.float32)

    n_loc = num_anchors * 4
    n_cls = num_anchors * num_classes
    loc_pres, cls_pres = [], []
    for o in outs:  # o: (N, H, W, 128); [:n_loc] = loc, [n_loc:n_loc+n_cls] = cls
        loc_pres.append(o[..., :n_loc].reshape(n, -1, 4))
        cls_pres.append(o[..., n_loc:n_loc + n_cls].reshape(n, -1, num_classes))
    loc_pre = jnp.concatenate(loc_pres, axis=1)
    cls_pre = jnp.concatenate(cls_pres, axis=1)
    return loc_pre, cls_pre


# ----------------------------------------------------------------------------
if __name__ == "__main__":
    NUM_ANCHORS = 9
    NUM_CLASSES = 5
    key = jax.random.PRNGKey(0)
    k_param, k_input = jax.random.split(key)

    # small input consistent with a detection backbone: NCHW (2, 3, 32, 32)
    x = jax.random.normal(k_input, (2, 3, 32, 32), dtype=jnp.float32)
    raw_params, cfg = build_retinanet_params(
        k_param, in_ch=3, num_anchors=NUM_ANCHORS, num_classes=NUM_CLASSES)
    # one-time weight prep (reorder / fuse / pad / cast) outside the jitted path
    params = prep_retinanet_params(raw_params, cfg["head_c"],
                                   NUM_ANCHORS, NUM_CLASSES)

    fwd = jax.jit(functools.partial(retinanet_forward,
                                    num_anchors=NUM_ANCHORS,
                                    num_classes=NUM_CLASSES))
    loc_pre, cls_pre = fwd(params, x)
    jax.block_until_ready((loc_pre, cls_pre))

    # pyramid anchors: 9 * (8*8 + 4*4 + 2*2) = 756
    assert loc_pre.shape == (2, 756, 4), loc_pre.shape
    assert cls_pre.shape == (2, 756, NUM_CLASSES), cls_pre.shape
    print("KERNEL_OK")
</pallas_src>

<mosaic_0001>
module attributes {stable_mosaic.version = 11 : i64} {
  func.func @_mm_bias_kernel(%arg0: i32, %arg1: i32, %arg2: memref<256x27xbf16, #tpu.memory_space<vmem>>, %arg3: memref<27x64xbf16, #tpu.memory_space<vmem>>, %arg4: memref<1x64xf32, #tpu.memory_space<vmem>>, %arg5: memref<256x64xbf16, #tpu.memory_space<vmem>>) attributes {dimension_semantics = [#tpu.dimension_semantics<parallel>, #tpu.dimension_semantics<parallel>], iteration_bounds = array<i64: 2, 1>, scalar_prefetch = 0 : i64, scratch_operands = 0 : i64, tpu.core_type = #tpu.core_type<tc>, window_params = [{transform_indices = @transform_0, window_bounds = array<i64: 256, 27>}, {transform_indices = @transform_1, window_bounds = array<i64: 27, 64>}, {transform_indices = @transform_2, window_bounds = array<i64: 1, 64>}, {transform_indices = @transform_3, window_bounds = array<i64: 256, 64>}]} {
    %c0 = arith.constant 0 : index
    %c0_0 = arith.constant 0 : index
    %0 = vector.load %arg2[%c0, %c0_0] : memref<256x27xbf16, #tpu.memory_space<vmem>>, vector<256x27xbf16>
    %c0_1 = arith.constant 0 : index
    %c0_2 = arith.constant 0 : index
    %1 = vector.load %arg3[%c0_1, %c0_2] : memref<27x64xbf16, #tpu.memory_space<vmem>>, vector<27x64xbf16>
    %cst = arith.constant dense<0.000000e+00> : vector<256x64xf32>
    %2 = tpu.matmul %0, %1, %cst {dimension_numbers = #tpu.dot_dimension_numbers<[1], [0], [0], [1], [0, 0, 1, 1], [], []>} : vector<256x27xbf16>, vector<27x64xbf16>, vector<256x64xf32> -> vector<256x64xf32>
    %c0_3 = arith.constant 0 : index
    %c0_4 = arith.constant 0 : index
    %3 = vector.load %arg4[%c0_3, %c0_4] : memref<1x64xf32, #tpu.memory_space<vmem>>, vector<1x64xf32>
    %4 = vector.broadcast %3 : vector<1x64xf32> to vector<256x64xf32>
    %5 = arith.addf %2, %4 : vector<256x64xf32>
    %cst_5 = arith.constant 0.000000e+00 : f32
    %6 = vector.broadcast %cst_5 : f32 to vector<256x64xf32>
    %7 = arith.maximumf %5, %6 : vector<256x64xf32>
    %8 = arith.truncf %7 : vector<256x64xf32> to vector<256x64xbf16>
    %c0_6 = arith.constant 0 : index
    %c0_7 = arith.constant 0 : index
    %9 = vector.load %arg5[%c0_6, %c0_7] : memref<256x64xbf16, #tpu.memory_space<vmem>>, vector<256x64xbf16>
    tpu.vector_store %arg5[%c0_6, %c0_7], %8 {strides = array<i32>} : memref<256x64xbf16, #tpu.memory_space<vmem>>, vector<256x64xbf16>,
    return
  }
  func.func @transform_0(%arg0: i32, %arg1: i32) -> (i32, i32) {
    %c0_i32 = arith.constant 0 : i32
    %c0_i32_0 = arith.constant 0 : i32
    return %arg0, %c0_i32 : i32, i32
  }
  func.func @transform_1(%arg0: i32, %arg1: i32) -> (i32, i32) {
    %c0_i32 = arith.constant 0 : i32
    %c0_i32_0 = arith.constant 0 : i32
    return %c0_i32, %arg1 : i32, i32
  }
  func.func @transform_2(%arg0: i32, %arg1: i32) -> (i32, i32) {
    %c0_i32 = arith.constant 0 : i32
    %c0_i32_0 = arith.constant 0 : i32
    return %c0_i32, %arg1 : i32, i32
  }
  func.func @transform_3(%arg0: i32, %arg1: i32) -> (i32, i32) {
    %c0_i32 = arith.constant 0 : i32
    return %arg0, %arg1 : i32, i32
  }
}

module attributes {stable_mosaic.version = 11 : i64} {
  func.func @_mm_bias_kernel(%arg0: i32, %arg1: i32, %arg2: memref<128x576xbf16, #tpu.memory_space<vmem>>, %arg3: memref<576x64xbf16, #tpu.memory_space<vmem>>, %arg4: memref<1x64xf32, #tpu.memory_space<vmem>>, %arg5: memref<128x64xbf16, #tpu.memory_space<vmem>>) attributes {dimension_semantics = [#tpu.dimension_semantics<parallel>, #tpu.dimension_semantics<parallel>], iteration_bounds = array<i64: 1, 1>, scalar_prefetch = 0 : i64, scratch_operands = 0 : i64, tpu.core_type = #tpu.core_type<tc>, window_params = [{transform_indices = @transform_0, window_bounds = array<i64: 128, 576>}, {transform_indices = @transform_1, window_bounds = array<i64: 576, 64>}, {transform_indices = @transform_2, window_bounds = array<i64: 1, 64>}, {transform_indices = @transform_3, window_bounds = array<i64: 128, 64>}]} {
    %c0 = arith.constant 0 : index
    %c0_0 = arith.constant 0 : index
    %0 = vector.load %arg2[%c0, %c0_0] : memref<128x576xbf16, #tpu.memory_space<vmem>>, vector<128x576xbf16>
    %c0_1 = arith.constant 0 : index
    %c0_2 = arith.constant 0 : index
    %1 = vector.load %arg3[%c0_1, %c0_2] : memref<576x64xbf16, #tpu.memory_space<vmem>>, vector<576x64xbf16>
    %cst = arith.constant dense<0.000000e+00> : vector<128x64xf32>
    %2 = tpu.matmul %0, %1, %cst {dimension_numbers = #tpu.dot_dimension_numbers<[1], [0], [0], [1], [0, 0, 1, 1], [], []>} : vector<128x576xbf16>, vector<576x64xbf16>, vector<128x64xf32> -> vector<128x64xf32>
    %c0_3 = arith.constant 0 : index
    %c0_4 = arith.constant 0 : index
    %3 = vector.load %arg4[%c0_3, %c0_4] : memref<1x64xf32, #tpu.memory_space<vmem>>, vector<1x64xf32>
    %4 = vector.broadcast %3 : vector<1x64xf32> to vector<128x64xf32>
    %5 = arith.addf %2, %4 : vector<128x64xf32>
    %cst_5 = arith.constant 0.000000e+00 : f32
    %6 = vector.broadcast %cst_5 : f32 to vector<128x64xf32>
    %7 = arith.maximumf %5, %6 : vector<128x64xf32>
    %8 = arith.truncf %7 : vector<128x64xf32> to vector<128x64xbf16>
    %c0_6 = arith.constant 0 : index
    %c0_7 = arith.constant 0 : index
    %9 = vector.load %arg5[%c0_6, %c0_7] : memref<128x64xbf16, #tpu.memory_space<vmem>>, vector<128x64xbf16>
    tpu.vector_store %arg5[%c0_6, %c0_7], %8 {strides = array<i32>} : memref<128x64xbf16, #tpu.memory_space<vmem>>, vector<128x64xbf16>,
    return
  }
  func.func @transform_0(%arg0: i32, %arg1: i32) -> (i32, i32) {
    %c0_i32 = arith.constant 0 : i32
    %c0_i32_0 = arith.constant 0 : i32
    return %arg0, %c0_i32 : i32, i32
  }
  func.func @transform_1(%arg0: i32, %arg1: i32) -> (i32, i32) {
    %c0_i32 = arith.constant 0 : i32
    %c0_i32_0 = arith.constant 0 : i32
    return %c0_i32, %arg1 : i32, i32
  }
  func.func @transform_2(%arg0: i32, %arg1: i32) -> (i32, i32) {
    %c0_i32 = arith.constant 0 : i32
    %c0_i32_0 = arith.constant 0 : i32
    return %c0_i32, %arg1 : i32, i32
  }
  func.func @transform_3(%arg0: i32, %arg1: i32) -> (i32, i32) {
    %c0_i32 = arith.constant 0 : i32
    return %arg0, %arg1 : i32, i32
  }
}

module attributes {stable_mosaic.version = 11 : i64} {
  func.func @_mm_bias_kernel(%arg0: i32, %arg1: i32, %arg2: memref<32x576xbf16, #tpu.memory_space<vmem>>, %arg3: memref<576x128xbf16, #tpu.memory_space<vmem>>, %arg4: memref<1x128xf32, #tpu.memory_space<vmem>>, %arg5: memref<32x128xbf16, #tpu.memory_space<vmem>>) attributes {dimension_semantics = [#tpu.dimension_semantics<parallel>, #tpu.dimension_semantics<parallel>], iteration_bounds = array<i64: 1, 1>, scalar_prefetch = 0 : i64, scratch_operands = 0 : i64, tpu.core_type = #tpu.core_type<tc>, window_params = [{transform_indices = @transform_0, window_bounds = array<i64: 32, 576>}, {transform_indices = @transform_1, window_bounds = array<i64: 576, 128>}, {transform_indices = @transform_2, window_bounds = array<i64: 1, 128>}, {transform_indices = @transform_3, window_bounds = array<i64: 32, 128>}]} {
    %c0 = arith.constant 0 : index
    %c0_0 = arith.constant 0 : index
    %0 = vector.load %arg2[%c0, %c0_0] : memref<32x576xbf16, #tpu.memory_space<vmem>>, vector<32x576xbf16>
    %c0_1 = arith.constant 0 : index
    %c0_2 = arith.constant 0 : index
    %1 = vector.load %arg3[%c0_1, %c0_2] : memref<576x128xbf16, #tpu.memory_space<vmem>>, vector<576x128xbf16>
    %cst = arith.constant dense<0.000000e+00> : vector<32x128xf32>
    %2 = tpu.matmul %0, %1, %cst {dimension_numbers = #tpu.dot_dimension_numbers<[1], [0], [0], [1], [0, 0, 1, 1], [], []>} : vector<32x576xbf16>, vector<576x128xbf16>, vector<32x128xf32> -> vector<32x128xf32>
    %c0_3 = arith.constant 0 : index
    %c0_4 = arith.constant 0 : index
    %3 = vector.load %arg4[%c0_3, %c0_4] : memref<1x128xf32, #tpu.memory_space<vmem>>, vector<1x128xf32>
    %4 = vector.broadcast %3 : vector<1x128xf32> to vector<32x128xf32>
    %5 = arith.addf %2, %4 : vector<32x128xf32>
    %cst_5 = arith.constant 0.000000e+00 : f32
    %6 = vector.broadcast %cst_5 : f32 to vector<32x128xf32>
    %7 = arith.maximumf %5, %6 : vector<32x128xf32>
    %8 = arith.truncf %7 : vector<32x128xf32> to vector<32x128xbf16>
    %c0_6 = arith.constant 0 : index
    %c0_7 = arith.constant 0 : index
    %9 = vector.load %arg5[%c0_6, %c0_7] : memref<32x128xbf16, #tpu.memory_space<vmem>>, vector<32x128xbf16>
    tpu.vector_store %arg5[%c0_6, %c0_7], %8 {strides = array<i32>} : memref<32x128xbf16, #tpu.memory_space<vmem>>, vector<32x128xbf16>,
    return
  }
  func.func @transform_0(%arg0: i32, %arg1: i32) -> (i32, i32) {
    %c0_i32 = arith.constant 0 : i32
    %c0_i32_0 = arith.constant 0 : i32
    return %arg0, %c0_i32 : i32, i32
  }
  func.func @transform_1(%arg0: i32, %arg1: i32) -> (i32, i32) {
    %c0_i32 = arith.constant 0 : i32
    %c0_i32_0 = arith.constant 0 : i32
    return %c0_i32, %arg1 : i32, i32
  }
  func.func @transform_2(%arg0: i32, %arg1: i32) -> (i32, i32) {
    %c0_i32 = arith.constant 0 : i32
    %c0_i32_0 = arith.constant 0 : i32
    return %c0_i32, %arg1 : i32, i32
  }
  func.func @transform_3(%arg0: i32, %arg1: i32) -> (i32, i32) {
    %c0_i32 = arith.constant 0 : i32
    return %arg0, %arg1 : i32, i32
  }
}

module attributes {stable_mosaic.version = 11 : i64} {
  func.func @_mm_bias_kernel(%arg0: i32, %arg1: i32, %arg2: memref<8x128xbf16, #tpu.memory_space<vmem>>, %arg3: memref<128x64xbf16, #tpu.memory_space<vmem>>, %arg4: memref<1x64xf32, #tpu.memory_space<vmem>>, %arg5: memref<8x64xbf16, #tpu.memory_space<vmem>>) attributes {dimension_semantics = [#tpu.dimension_semantics<parallel>, #tpu.dimension_semantics<parallel>], iteration_bounds = array<i64: 1, 1>, scalar_prefetch = 0 : i64, scratch_operands = 0 : i64, tpu.core_type = #tpu.core_type<tc>, window_params = [{transform_indices = @transform_0, window_bounds = array<i64: 8, 128>}, {transform_indices = @transform_1, window_bounds = array<i64: 128, 64>}, {transform_indices = @transform_2, window_bounds = array<i64: 1, 64>}, {transform_indices = @transform_3, window_bounds = array<i64: 8, 64>}]} {
    %c0 = arith.constant 0 : index
    %c0_0 = arith.constant 0 : index
    %0 = vector.load %arg2[%c0, %c0_0] : memref<8x128xbf16, #tpu.memory_space<vmem>>, vector<8x128xbf16>
    %c0_1 = arith.constant 0 : index
    %c0_2 = arith.constant 0 : index
    %1 = vector.load %arg3[%c0_1, %c0_2] : memref<128x64xbf16, #tpu.memory_space<vmem>>, vector<128x64xbf16>
    %cst = arith.constant dense<0.000000e+00> : vector<8x64xf32>
    %2 = tpu.matmul %0, %1, %cst {dimension_numbers = #tpu.dot_dimension_numbers<[1], [0], [0], [1], [0, 0, 1, 1], [], []>} : vector<8x128xbf16>, vector<128x64xbf16>, vector<8x64xf32> -> vector<8x64xf32>
    %c0_3 = arith.constant 0 : index
    %c0_4 = arith.constant 0 : index
    %3 = vector.load %arg4[%c0_3, %c0_4] : memref<1x64xf32, #tpu.memory_space<vmem>>, vector<1x64xf32>
    %4 = vector.broadcast %3 : vector<1x64xf32> to vector<8x64xf32>
    %5 = arith.addf %2, %4 : vector<8x64xf32>
    %6 = arith.truncf %5 : vector<8x64xf32> to vector<8x64xbf16>
    %c0_5 = arith.constant 0 : index
    %c0_6 = arith.constant 0 : index
    %7 = vector.load %arg5[%c0_5, %c0_6] : memref<8x64xbf16, #tpu.memory_space<vmem>>, vector<8x64xbf16>
    tpu.vector_store %arg5[%c0_5, %c0_6], %6 {strides = array<i32>} : memref<8x64xbf16, #tpu.memory_space<vmem>>, vector<8x64xbf16>,
    return
  }
  func.func @transform_0(%arg0: i32, %arg1: i32) -> (i32, i32) {
    %c0_i32 = arith.constant 0 : i32
    %c0_i32_0 = arith.constant 0 : i32
    return %arg0, %c0_i32 : i32, i32
  }
  func.func @transform_1(%arg0: i32, %arg1: i32) -> (i32, i32) {
    %c0_i32 = arith.constant 0 : i32
    %c0_i32_0 = arith.constant 0 : i32
    return %c0_i32, %arg1 : i32, i32
  }
  func.func @transform_2(%arg0: i32, %arg1: i32) -> (i32, i32) {
    %c0_i32 = arith.constant 0 : i32
    %c0_i32_0 = arith.constant 0 : i32
    return %c0_i32, %arg1 : i32, i32
  }
  func.func @transform_3(%arg0: i32, %arg1: i32) -> (i32, i32) {
    %c0_i32 = arith.constant 0 : i32
    return %arg0, %arg1 : i32, i32
  }
}

module attributes {stable_mosaic.version = 11 : i64} {
  func.func @_mm_bias_kernel(%arg0: i32, %arg1: i32, %arg2: memref<8x1152xbf16, #tpu.memory_space<vmem>>, %arg3: memref<1152x128xbf16, #tpu.memory_space<vmem>>, %arg4: memref<1x128xf32, #tpu.memory_space<vmem>>, %arg5: memref<8x128xbf16, #tpu.memory_space<vmem>>) attributes {dimension_semantics = [#tpu.dimension_semantics<parallel>, #tpu.dimension_semantics<parallel>], iteration_bounds = array<i64: 1, 1>, scalar_prefetch = 0 : i64, scratch_operands = 0 : i64, tpu.core_type = #tpu.core_type<tc>, window_params = [{transform_indices = @transform_0, window_bounds = array<i64: 8, 1152>}, {transform_indices = @transform_1, window_bounds = array<i64: 1152, 128>}, {transform_indices = @transform_2, window_bounds = array<i64: 1, 128>}, {transform_indices = @transform_3, window_bounds = array<i64: 8, 128>}]} {
    %c0 = arith.constant 0 : index
    %c0_0 = arith.constant 0 : index
    %0 = vector.load %arg2[%c0, %c0_0] : memref<8x1152xbf16, #tpu.memory_space<vmem>>, vector<8x1152xbf16>
    %c0_1 = arith.constant 0 : index
    %c0_2 = arith.constant 0 : index
    %1 = vector.load %arg3[%c0_1, %c0_2] : memref<1152x128xbf16, #tpu.memory_space<vmem>>, vector<1152x128xbf16>
    %cst = arith.constant dense<0.000000e+00> : vector<8x128xf32>
    %2 = tpu.matmul %0, %1, %cst {dimension_numbers = #tpu.dot_dimension_numbers<[1], [0], [0], [1], [0, 0, 1, 1], [], []>} : vector<8x1152xbf16>, vector<1152x128xbf16>, vector<8x128xf32> -> vector<8x128xf32>
    %c0_3 = arith.constant 0 : index
    %c0_4 = arith.constant 0 : index
    %3 = vector.load %arg4[%c0_3, %c0_4] : memref<1x128xf32, #tpu.memory_space<vmem>>, vector<1x128xf32>
    %4 = vector.broadcast %3 : vector<1x128xf32> to vector<8x128xf32>
    %5 = arith.addf %2, %4 : vector<8x128xf32>
    %cst_5 = arith.constant 0.000000e+00 : f32
    %6 = vector.broadcast %cst_5 : f32 to vector<8x128xf32>
    %7 = arith.maximumf %5, %6 : vector<8x128xf32>
    %8 = arith.truncf %7 : vector<8x128xf32> to vector<8x128xbf16>
    %c0_6 = arith.constant 0 : index
    %c0_7 = arith.constant 0 : index
    %9 = vector.load %arg5[%c0_6, %c0_7] : memref<8x128xbf16, #tpu.memory_space<vmem>>, vector<8x128xbf16>
    tpu.vector_store %arg5[%c0_6, %c0_7], %8 {strides = array<i32>} : memref<8x128xbf16, #tpu.memory_space<vmem>>, vector<8x128xbf16>,
    return
  }
  func.func @transform_0(%arg0: i32, %arg1: i32) -> (i32, i32) {
    %c0_i32 = arith.constant 0 : i32
    %c0_i32_0 = arith.constant 0 : i32
    return %arg0, %c0_i32 : i32, i32
  }
  func.func @transform_1(%arg0: i32, %arg1: i32) -> (i32, i32) {
    %c0_i32 = arith.constant 0 : i32
    %c0_i32_0 = arith.constant 0 : i32
    return %c0_i32, %arg1 : i32, i32
  }
  func.func @transform_2(%arg0: i32, %arg1: i32) -> (i32, i32) {
    %c0_i32 = arith.constant 0 : i32
    %c0_i32_0 = arith.constant 0 : i32
    return %c0_i32, %arg1 : i32, i32
  }
  func.func @transform_3(%arg0: i32, %arg1: i32) -> (i32, i32) {
    %c0_i32 = arith.constant 0 : i32
    return %arg0, %arg1 : i32, i32
  }
}

module attributes {stable_mosaic.version = 11 : i64} {
  func.func @_mm_bias_add_kernel(%arg0: i32, %arg1: i32, %arg2: memref<32x128xbf16, #tpu.memory_space<vmem>>, %arg3: memref<128x64xbf16, #tpu.memory_space<vmem>>, %arg4: memref<1x64xf32, #tpu.memory_space<vmem>>, %arg5: memref<32x64xbf16, #tpu.memory_space<vmem>>, %arg6: memref<32x64xbf16, #tpu.memory_space<vmem>>) attributes {dimension_semantics = [#tpu.dimension_semantics<parallel>, #tpu.dimension_semantics<parallel>], iteration_bounds = array<i64: 1, 1>, scalar_prefetch = 0 : i64, scratch_operands = 0 : i64, tpu.core_type = #tpu.core_type<tc>, window_params = [{transform_indices = @transform_0, window_bounds = array<i64: 32, 128>}, {transform_indices = @transform_1, window_bounds = array<i64: 128, 64>}, {transform_indices = @transform_2, window_bounds = array<i64: 1, 64>}, {transform_indices = @transform_3, window_bounds = array<i64: 32, 64>}, {transform_indices = @transform_4, window_bounds = array<i64: 32, 64>}]} {
    %c0 = arith.constant 0 : index
    %c0_0 = arith.constant 0 : index
    %0 = vector.load %arg2[%c0, %c0_0] : memref<32x128xbf16, #tpu.memory_space<vmem>>, vector<32x128xbf16>
    %c0_1 = arith.constant 0 : index
    %c0_2 = arith.constant 0 : index
    %1 = vector.load %arg3[%c0_1, %c0_2] : memref<128x64xbf16, #tpu.memory_space<vmem>>, vector<128x64xbf16>
    %cst = arith.constant dense<0.000000e+00> : vector<32x64xf32>
    %2 = tpu.matmul %0, %1, %cst {dimension_numbers = #tpu.dot_dimension_numbers<[1], [0], [0], [1], [0, 0, 1, 1], [], []>} : vector<32x128xbf16>, vector<128x64xbf16>, vector<32x64xf32> -> vector<32x64xf32>
    %c0_3 = arith.constant 0 : index
    %c0_4 = arith.constant 0 : index
    %3 = vector.load %arg4[%c0_3, %c0_4] : memref<1x64xf32, #tpu.memory_space<vmem>>, vector<1x64xf32>
    %4 = vector.broadcast %3 : vector<1x64xf32> to vector<32x64xf32>
    %5 = arith.addf %2, %4 : vector<32x64xf32>
    %c0_5 = arith.constant 0 : index
    %c0_6 = arith.constant 0 : index
    %6 = vector.load %arg5[%c0_5, %c0_6] : memref<32x64xbf16, #tpu.memory_space<vmem>>, vector<32x64xbf16>
    %7 = arith.extf %6 : vector<32x64xbf16> to vector<32x64xf32>
    %8 = arith.addf %5, %7 : vector<32x64xf32>
    %9 = arith.truncf %8 : vector<32x64xf32> to vector<32x64xbf16>
    %c0_7 = arith.constant 0 : index
    %c0_8 = arith.constant 0 : index
    %10 = vector.load %arg6[%c0_7, %c0_8] : memref<32x64xbf16, #tpu.memory_space<vmem>>, vector<32x64xbf16>
    tpu.vector_store %arg6[%c0_7, %c0_8], %9 {strides = array<i32>} : memref<32x64xbf16, #tpu.memory_space<vmem>>, vector<32x64xbf16>,
    return
  }
  func.func @transform_0(%arg0: i32, %arg1: i32) -> (i32, i32) {
    %c0_i32 = arith.constant 0 : i32
    %c0_i32_0 = arith.constant 0 : i32
    return %arg0, %c0_i32 : i32, i32
  }
  func.func @transform_1(%arg0: i32, %arg1: i32) -> (i32, i32) {
    %c0_i32 = arith.constant 0 : i32
    %c0_i32_0 = arith.constant 0 : i32
    return %c0_i32, %arg1 : i32, i32
  }
  func.func @transform_2(%arg0: i32, %arg1: i32) -> (i32, i32) {
    %c0_i32 = arith.constant 0 : i32
    %c0_i32_0 = arith.constant 0 : i32
    return %c0_i32, %arg1 : i32, i32
  }
  func.func @transform_3(%arg0: i32, %arg1: i32) -> (i32, i32) {
    %c0_i32 = arith.constant 0 : i32
    return %arg0, %arg1 : i32, i32
  }
  func.func @transform_4(%arg0: i32, %arg1: i32) -> (i32, i32) {
    %c0_i32 = arith.constant 0 : i32
    return %arg0, %arg1 : i32, i32
  }
}

module attributes {stable_mosaic.version = 11 : i64} {
  func.func @_mm_bias_add_kernel(%arg0: i32, %arg1: i32, %arg2: memref<128x64xbf16, #tpu.memory_space<vmem>>, %arg3: memref<64x64xbf16, #tpu.memory_space<vmem>>, %arg4: memref<1x64xf32, #tpu.memory_space<vmem>>, %arg5: memref<128x64xbf16, #tpu.memory_space<vmem>>, %arg6: memref<128x64xbf16, #tpu.memory_space<vmem>>) attributes {dimension_semantics = [#tpu.dimension_semantics<parallel>, #tpu.dimension_semantics<parallel>], iteration_bounds = array<i64: 1, 1>, scalar_prefetch = 0 : i64, scratch_operands = 0 : i64, tpu.core_type = #tpu.core_type<tc>, window_params = [{transform_indices = @transform_0, window_bounds = array<i64: 128, 64>}, {transform_indices = @transform_1, window_bounds = array<i64: 64, 64>}, {transform_indices = @transform_2, window_bounds = array<i64: 1, 64>}, {transform_indices = @transform_3, window_bounds = array<i64: 128, 64>}, {transform_indices = @transform_4, window_bounds = array<i64: 128, 64>}]} {
    %c0 = arith.constant 0 : index
    %c0_0 = arith.constant 0 : index
    %0 = vector.load %arg2[%c0, %c0_0] : memref<128x64xbf16, #tpu.memory_space<vmem>>, vector<128x64xbf16>
    %c0_1 = arith.constant 0 : index
    %c0_2 = arith.constant 0 : index
    %1 = vector.load %arg3[%c0_1, %c0_2] : memref<64x64xbf16, #tpu.memory_space<vmem>>, vector<64x64xbf16>
    %cst = arith.constant dense<0.000000e+00> : vector<128x64xf32>
    %2 = tpu.matmul %0, %1, %cst {dimension_numbers = #tpu.dot_dimension_numbers<[1], [0], [0], [1], [0, 0, 1, 1], [], []>} : vector<128x64xbf16>, vector<64x64xbf16>, vector<128x64xf32> -> vector<128x64xf32>
    %c0_3 = arith.constant 0 : index
    %c0_4 = arith.constant 0 : index
    %3 = vector.load %arg4[%c0_3, %c0_4] : memref<1x64xf32, #tpu.memory_space<vmem>>, vector<1x64xf32>
    %4 = vector.broadcast %3 : vector<1x64xf32> to vector<128x64xf32>
    %5 = arith.addf %2, %4 : vector<128x64xf32>
    %c0_5 = arith.constant 0 : index
    %c0_6 = arith.constant 0 : index
    %6 = vector.load %arg5[%c0_5, %c0_6] : memref<128x64xbf16, #tpu.memory_space<vmem>>, vector<128x64xbf16>
    %7 = arith.extf %6 : vector<128x64xbf16> to vector<128x64xf32>
    %8 = arith.addf %5, %7 : vector<128x64xf32>
    %9 = arith.truncf %8 : vector<128x64xf32> to vector<128x64xbf16>
    %c0_7 = arith.constant 0 : index
    %c0_8 = arith.constant 0 : index
    %10 = vector.load %arg6[%c0_7, %c0_8] : memref<128x64xbf16, #tpu.memory_space<vmem>>, vector<128x64xbf16>
    tpu.vector_store %arg6[%c0_7, %c0_8], %9 {strides = array<i32>} : memref<128x64xbf16, #tpu.memory_space<vmem>>, vector<128x64xbf16>,
    return
  }
  func.func @transform_0(%arg0: i32, %arg1: i32) -> (i32, i32) {
    %c0_i32 = arith.constant 0 : i32
    %c0_i32_0 = arith.constant 0 : i32
    return %arg0, %c0_i32 : i32, i32
  }
  func.func @transform_1(%arg0: i32, %arg1: i32) -> (i32, i32) {
    %c0_i32 = arith.constant 0 : i32
    %c0_i32_0 = arith.constant 0 : i32
    return %c0_i32, %arg1 : i32, i32
  }
  func.func @transform_2(%arg0: i32, %arg1: i32) -> (i32, i32) {
    %c0_i32 = arith.constant 0 : i32
    %c0_i32_0 = arith.constant 0 : i32
    return %c0_i32, %arg1 : i32, i32
  }
  func.func @transform_3(%arg0: i32, %arg1: i32) -> (i32, i32) {
    %c0_i32 = arith.constant 0 : i32
    return %arg0, %arg1 : i32, i32
  }
  func.func @transform_4(%arg0: i32, %arg1: i32) -> (i32, i32) {
    %c0_i32 = arith.constant 0 : i32
    return %arg0, %arg1 : i32, i32
  }
}

module attributes {stable_mosaic.version = 11 : i64} {
  func.func @_mm_bias_kernel(%arg0: i32, %arg1: i32, %arg2: memref<128x576xbf16, #tpu.memory_space<vmem>>, %arg3: memref<576x64xbf16, #tpu.memory_space<vmem>>, %arg4: memref<1x64xf32, #tpu.memory_space<vmem>>, %arg5: memref<128x64xbf16, #tpu.memory_space<vmem>>) attributes {dimension_semantics = [#tpu.dimension_semantics<parallel>, #tpu.dimension_semantics<parallel>], iteration_bounds = array<i64: 1, 1>, scalar_prefetch = 0 : i64, scratch_operands = 0 : i64, tpu.core_type = #tpu.core_type<tc>, window_params = [{transform_indices = @transform_0, window_bounds = array<i64: 128, 576>}, {transform_indices = @transform_1, window_bounds = array<i64: 576, 64>}, {transform_indices = @transform_2, window_bounds = array<i64: 1, 64>}, {transform_indices = @transform_3, window_bounds = array<i64: 128, 64>}]} {
    %c0 = arith.constant 0 : index
    %c0_0 = arith.constant 0 : index
    %0 = vector.load %arg2[%c0, %c0_0] : memref<128x576xbf16, #tpu.memory_space<vmem>>, vector<128x576xbf16>
    %c0_1 = arith.constant 0 : index
    %c0_2 = arith.constant 0 : index
    %1 = vector.load %arg3[%c0_1, %c0_2] : memref<576x64xbf16, #tpu.memory_space<vmem>>, vector<576x64xbf16>
    %cst = arith.constant dense<0.000000e+00> : vector<128x64xf32>
    %2 = tpu.matmul %0, %1, %cst {dimension_numbers = #tpu.dot_dimension_numbers<[1], [0], [0], [1], [0, 0, 1, 1], [], []>} : vector<128x576xbf16>, vector<576x64xbf16>, vector<128x64xf32> -> vector<128x64xf32>
    %c0_3 = arith.constant 0 : index
    %c0_4 = arith.constant 0 : index
    %3 = vector.load %arg4[%c0_3, %c0_4] : memref<1x64xf32, #tpu.memory_space<vmem>>, vector<1x64xf32>
    %4 = vector.broadcast %3 : vector<1x64xf32> to vector<128x64xf32>
    %5 = arith.addf %2, %4 : vector<128x64xf32>
    %6 = arith.truncf %5 : vector<128x64xf32> to vector<128x64xbf16>
    %c0_5 = arith.constant 0 : index
    %c0_6 = arith.constant 0 : index
    %7 = vector.load %arg5[%c0_5, %c0_6] : memref<128x64xbf16, #tpu.memory_space<vmem>>, vector<128x64xbf16>
    tpu.vector_store %arg5[%c0_5, %c0_6], %6 {strides = array<i32>} : memref<128x64xbf16, #tpu.memory_space<vmem>>, vector<128x64xbf16>,
    return
  }
  func.func @transform_0(%arg0: i32, %arg1: i32) -> (i32, i32) {
    %c0_i32 = arith.constant 0 : i32
    %c0_i32_0 = arith.constant 0 : i32
    return %arg0, %c0_i32 : i32, i32
  }
  func.func @transform_1(%arg0: i32, %arg1: i32) -> (i32, i32) {
    %c0_i32 = arith.constant 0 : i32
    %c0_i32_0 = arith.constant 0 : i32
    return %c0_i32, %arg1 : i32, i32
  }
  func.func @transform_2(%arg0: i32, %arg1: i32) -> (i32, i32) {
    %c0_i32 = arith.constant 0 : i32
    %c0_i32_0 = arith.constant 0 : i32
    return %c0_i32, %arg1 : i32, i32
  }
  func.func @transform_3(%arg0: i32, %arg1: i32) -> (i32, i32) {
    %c0_i32 = arith.constant 0 : i32
    return %arg0, %arg1 : i32, i32
  }
}

module attributes {stable_mosaic.version = 11 : i64} {
  func.func @_mm_bias_kernel(%arg0: i32, %arg1: i32, %arg2: memref<32x576xbf16, #tpu.memory_space<vmem>>, %arg3: memref<576x64xbf16, #tpu.memory_space<vmem>>, %arg4: memref<1x64xf32, #tpu.memory_space<vmem>>, %arg5: memref<32x64xbf16, #tpu.memory_space<vmem>>) attributes {dimension_semantics = [#tpu.dimension_semantics<parallel>, #tpu.dimension_semantics<parallel>], iteration_bounds = array<i64: 1, 1>, scalar_prefetch = 0 : i64, scratch_operands = 0 : i64, tpu.core_type = #tpu.core_type<tc>, window_params = [{transform_indices = @transform_0, window_bounds = array<i64: 32, 576>}, {transform_indices = @transform_1, window_bounds = array<i64: 576, 64>}, {transform_indices = @transform_2, window_bounds = array<i64: 1, 64>}, {transform_indices = @transform_3, window_bounds = array<i64: 32, 64>}]} {
    %c0 = arith.constant 0 : index
    %c0_0 = arith.constant 0 : index
    %0 = vector.load %arg2[%c0, %c0_0] : memref<32x576xbf16, #tpu.memory_space<vmem>>, vector<32x576xbf16>
    %c0_1 = arith.constant 0 : index
    %c0_2 = arith.constant 0 : index
    %1 = vector.load %arg3[%c0_1, %c0_2] : memref<576x64xbf16, #tpu.memory_space<vmem>>, vector<576x64xbf16>
    %cst = arith.constant dense<0.000000e+00> : vector<32x64xf32>
    %2 = tpu.matmul %0, %1, %cst {dimension_numbers = #tpu.dot_dimension_numbers<[1], [0], [0], [1], [0, 0, 1, 1], [], []>} : vector<32x576xbf16>, vector<576x64xbf16>, vector<32x64xf32> -> vector<32x64xf32>
    %c0_3 = arith.constant 0 : index
    %c0_4 = arith.constant 0 : index
    %3 = vector.load %arg4[%c0_3, %c0_4] : memref<1x64xf32, #tpu.memory_space<vmem>>, vector<1x64xf32>
    %4 = vector.broadcast %3 : vector<1x64xf32> to vector<32x64xf32>
    %5 = arith.addf %2, %4 : vector<32x64xf32>
    %6 = arith.truncf %5 : vector<32x64xf32> to vector<32x64xbf16>
    %c0_5 = arith.constant 0 : index
    %c0_6 = arith.constant 0 : index
    %7 = vector.load %arg5[%c0_5, %c0_6] : memref<32x64xbf16, #tpu.memory_space<vmem>>, vector<32x64xbf16>
    tpu.vector_store %arg5[%c0_5, %c0_6], %6 {strides = array<i32>} : memref<32x64xbf16, #tpu.memory_space<vmem>>, vector<32x64xbf16>,
    return
  }
  func.func @transform_0(%arg0: i32, %arg1: i32) -> (i32, i32) {
    %c0_i32 = arith.constant 0 : i32
    %c0_i32_0 = arith.constant 0 : i32
    return %arg0, %c0_i32 : i32, i32
  }
  func.func @transform_1(%arg0: i32, %arg1: i32) -> (i32, i32) {
    %c0_i32 = arith.constant 0 : i32
    %c0_i32_0 = arith.constant 0 : i32
    return %c0_i32, %arg1 : i32, i32
  }
  func.func @transform_2(%arg0: i32, %arg1: i32) -> (i32, i32) {
    %c0_i32 = arith.constant 0 : i32
    %c0_i32_0 = arith.constant 0 : i32
    return %c0_i32, %arg1 : i32, i32
  }
  func.func @transform_3(%arg0: i32, %arg1: i32) -> (i32, i32) {
    %c0_i32 = arith.constant 0 : i32
    return %arg0, %arg1 : i32, i32
  }
}

module attributes {stable_mosaic.version = 11 : i64} {
  func.func @_mm_bias_kernel(%arg0: i32, %arg1: i32, %arg2: memref<8x576xbf16, #tpu.memory_space<vmem>>, %arg3: memref<576x64xbf16, #tpu.memory_space<vmem>>, %arg4: memref<1x64xf32, #tpu.memory_space<vmem>>, %arg5: memref<8x64xbf16, #tpu.memory_space<vmem>>) attributes {dimension_semantics = [#tpu.dimension_semantics<parallel>, #tpu.dimension_semantics<parallel>], iteration_bounds = array<i64: 1, 1>, scalar_prefetch = 0 : i64, scratch_operands = 0 : i64, tpu.core_type = #tpu.core_type<tc>, window_params = [{transform_indices = @transform_0, window_bounds = array<i64: 8, 576>}, {transform_indices = @transform_1, window_bounds = array<i64: 576, 64>}, {transform_indices = @transform_2, window_bounds = array<i64: 1, 64>}, {transform_indices = @transform_3, window_bounds = array<i64: 8, 64>}]} {
    %c0 = arith.constant 0 : index
    %c0_0 = arith.constant 0 : index
    %0 = vector.load %arg2[%c0, %c0_0] : memref<8x576xbf16, #tpu.memory_space<vmem>>, vector<8x576xbf16>
    %c0_1 = arith.constant 0 : index
    %c0_2 = arith.constant 0 : index
    %1 = vector.load %arg3[%c0_1, %c0_2] : memref<576x64xbf16, #tpu.memory_space<vmem>>, vector<576x64xbf16>
    %cst = arith.constant dense<0.000000e+00> : vector<8x64xf32>
    %2 = tpu.matmul %0, %1, %cst {dimension_numbers = #tpu.dot_dimension_numbers<[1], [0], [0], [1], [0, 0, 1, 1], [], []>} : vector<8x576xbf16>, vector<576x64xbf16>, vector<8x64xf32> -> vector<8x64xf32>
    %c0_3 = arith.constant 0 : index
    %c0_4 = arith.constant 0 : index
    %3 = vector.load %arg4[%c0_3, %c0_4] : memref<1x64xf32, #tpu.memory_space<vmem>>, vector<1x64xf32>
    %4 = vector.broadcast %3 : vector<1x64xf32> to vector<8x64xf32>
    %5 = arith.addf %2, %4 : vector<8x64xf32>
    %6 = arith.truncf %5 : vector<8x64xf32> to vector<8x64xbf16>
    %c0_5 = arith.constant 0 : index
    %c0_6 = arith.constant 0 : index
    %7 = vector.load %arg5[%c0_5, %c0_6] : memref<8x64xbf16, #tpu.memory_space<vmem>>, vector<8x64xbf16>
    tpu.vector_store %arg5[%c0_5, %c0_6], %6 {strides = array<i32>} : memref<8x64xbf16, #tpu.memory_space<vmem>>, vector<8x64xbf16>,
    return
  }
  func.func @transform_0(%arg0: i32, %arg1: i32) -> (i32, i32) {
    %c0_i32 = arith.constant 0 : i32
    %c0_i32_0 = arith.constant 0 : i32
    return %arg0, %c0_i32 : i32, i32
  }
  func.func @transform_1(%arg0: i32, %arg1: i32) -> (i32, i32) {
    %c0_i32 = arith.constant 0 : i32
    %c0_i32_0 = arith.constant 0 : i32
    return %c0_i32, %arg1 : i32, i32
  }
  func.func @transform_2(%arg0: i32, %arg1: i32) -> (i32, i32) {
    %c0_i32 = arith.constant 0 : i32
    %c0_i32_0 = arith.constant 0 : i32
    return %c0_i32, %arg1 : i32, i32
  }
  func.func @transform_3(%arg0: i32, %arg1: i32) -> (i32, i32) {
    %c0_i32 = arith.constant 0 : i32
    return %arg0, %arg1 : i32, i32
  }
}

module attributes {stable_mosaic.version = 11 : i64} {
  func.func @_mm_bias_kernel(%arg0: i32, %arg1: i32, %arg2: memref<168x576xbf16, #tpu.memory_space<vmem>>, %arg3: memref<576x128xbf16, #tpu.memory_space<vmem>>, %arg4: memref<1x128xf32, #tpu.memory_space<vmem>>, %arg5: memref<168x128xbf16, #tpu.memory_space<vmem>>) attributes {dimension_semantics = [#tpu.dimension_semantics<parallel>, #tpu.dimension_semantics<parallel>], iteration_bounds = array<i64: 1, 1>, scalar_prefetch = 0 : i64, scratch_operands = 0 : i64, tpu.core_type = #tpu.core_type<tc>, window_params = [{transform_indices = @transform_0, window_bounds = array<i64: 168, 576>}, {transform_indices = @transform_1, window_bounds = array<i64: 576, 128>}, {transform_indices = @transform_2, window_bounds = array<i64: 1, 128>}, {transform_indices = @transform_3, window_bounds = array<i64: 168, 128>}]} {
    %c0 = arith.constant 0 : index
    %c0_0 = arith.constant 0 : index
    %0 = vector.load %arg2[%c0, %c0_0] : memref<168x576xbf16, #tpu.memory_space<vmem>>, vector<168x576xbf16>
    %c0_1 = arith.constant 0 : index
    %c0_2 = arith.constant 0 : index
    %1 = vector.load %arg3[%c0_1, %c0_2] : memref<576x128xbf16, #tpu.memory_space<vmem>>, vector<576x128xbf16>
    %cst = arith.constant dense<0.000000e+00> : vector<168x128xf32>
    %2 = tpu.matmul %0, %1, %cst {dimension_numbers = #tpu.dot_dimension_numbers<[1], [0], [0], [1], [0, 0, 1, 1], [], []>} : vector<168x576xbf16>, vector<576x128xbf16>, vector<168x128xf32> -> vector<168x128xf32>
    %c0_3 = arith.constant 0 : index
    %c0_4 = arith.constant 0 : index
    %3 = vector.load %arg4[%c0_3, %c0_4] : memref<1x128xf32, #tpu.memory_space<vmem>>, vector<1x128xf32>
    %4 = vector.broadcast %3 : vector<1x128xf32> to vector<168x128xf32>
    %5 = arith.addf %2, %4 : vector<168x128xf32>
    %cst_5 = arith.constant 0.000000e+00 : f32
    %6 = vector.broadcast %cst_5 : f32 to vector<168x128xf32>
    %7 = arith.maximumf %5, %6 : vector<168x128xf32>
    %8 = arith.truncf %7 : vector<168x128xf32> to vector<168x128xbf16>
    %c0_6 = arith.constant 0 : index
    %c0_7 = arith.constant 0 : index
    %9 = vector.load %arg5[%c0_6, %c0_7] : memref<168x128xbf16, #tpu.memory_space<vmem>>, vector<168x128xbf16>
    tpu.vector_store %arg5[%c0_6, %c0_7], %8 {strides = array<i32>} : memref<168x128xbf16, #tpu.memory_space<vmem>>, vector<168x128xbf16>,
    return
  }
  func.func @transform_0(%arg0: i32, %arg1: i32) -> (i32, i32) {
    %c0_i32 = arith.constant 0 : i32
    %c0_i32_0 = arith.constant 0 : i32
    return %arg0, %c0_i32 : i32, i32
  }
  func.func @transform_1(%arg0: i32, %arg1: i32) -> (i32, i32) {
    %c0_i32 = arith.constant 0 : i32
    %c0_i32_0 = arith.constant 0 : i32
    return %c0_i32, %arg1 : i32, i32
  }
  func.func @transform_2(%arg0: i32, %arg1: i32) -> (i32, i32) {
    %c0_i32 = arith.constant 0 : i32
    %c0_i32_0 = arith.constant 0 : i32
    return %c0_i32, %arg1 : i32, i32
  }
  func.func @transform_3(%arg0: i32, %arg1: i32) -> (i32, i32) {
    %c0_i32 = arith.constant 0 : i32
    return %arg0, %arg1 : i32, i32
  }
}

module attributes {stable_mosaic.version = 11 : i64} {
  func.func @_mm_bias_kernel(%arg0: i32, %arg1: i32, %arg2: memref<168x1152xbf16, #tpu.memory_space<vmem>>, %arg3: memref<1152x128xbf16, #tpu.memory_space<vmem>>, %arg4: memref<1x128xf32, #tpu.memory_space<vmem>>, %arg5: memref<168x128xbf16, #tpu.memory_space<vmem>>) attributes {dimension_semantics = [#tpu.dimension_semantics<parallel>, #tpu.dimension_semantics<parallel>], iteration_bounds = array<i64: 1, 1>, scalar_prefetch = 0 : i64, scratch_operands = 0 : i64, tpu.core_type = #tpu.core_type<tc>, window_params = [{transform_indices = @transform_0, window_bounds = array<i64: 168, 1152>}, {transform_indices = @transform_1, window_bounds = array<i64: 1152, 128>}, {transform_indices = @transform_2, window_bounds = array<i64: 1, 128>}, {transform_indices = @transform_3, window_bounds = array<i64: 168, 128>}]} {
    %c0 = arith.constant 0 : index
    %c0_0 = arith.constant 0 : index
    %0 = vector.load %arg2[%c0, %c0_0] : memref<168x1152xbf16, #tpu.memory_space<vmem>>, vector<168x1152xbf16>
    %c0_1 = arith.constant 0 : index
    %c0_2 = arith.constant 0 : index
    %1 = vector.load %arg3[%c0_1, %c0_2] : memref<1152x128xbf16, #tpu.memory_space<vmem>>, vector<1152x128xbf16>
    %cst = arith.constant dense<0.000000e+00> : vector<168x128xf32>
    %2 = tpu.matmul %0, %1, %cst {dimension_numbers = #tpu.dot_dimension_numbers<[1], [0], [0], [1], [0, 0, 1, 1], [], []>} : vector<168x1152xbf16>, vector<1152x128xbf16>, vector<168x128xf32> -> vector<168x128xf32>
    %c0_3 = arith.constant 0 : index
    %c0_4 = arith.constant 0 : index
    %3 = vector.load %arg4[%c0_3, %c0_4] : memref<1x128xf32, #tpu.memory_space<vmem>>, vector<1x128xf32>
    %4 = vector.broadcast %3 : vector<1x128xf32> to vector<168x128xf32>
    %5 = arith.addf %2, %4 : vector<168x128xf32>
    %cst_5 = arith.constant 0.000000e+00 : f32
    %6 = vector.broadcast %cst_5 : f32 to vector<168x128xf32>
    %7 = arith.maximumf %5, %6 : vector<168x128xf32>
    %8 = arith.truncf %7 : vector<168x128xf32> to vector<168x128xbf16>
    %c0_6 = arith.constant 0 : index
    %c0_7 = arith.constant 0 : index
    %9 = vector.load %arg5[%c0_6, %c0_7] : memref<168x128xbf16, #tpu.memory_space<vmem>>, vector<168x128xbf16>
    tpu.vector_store %arg5[%c0_6, %c0_7], %8 {strides = array<i32>} : memref<168x128xbf16, #tpu.memory_space<vmem>>, vector<168x128xbf16>,
    return
  }
  func.func @transform_0(%arg0: i32, %arg1: i32) -> (i32, i32) {
    %c0_i32 = arith.constant 0 : i32
    %c0_i32_0 = arith.constant 0 : i32
    return %arg0, %c0_i32 : i32, i32
  }
  func.func @transform_1(%arg0: i32, %arg1: i32) -> (i32, i32) {
    %c0_i32 = arith.constant 0 : i32
    %c0_i32_0 = arith.constant 0 : i32
    return %c0_i32, %arg1 : i32, i32
  }
  func.func @transform_2(%arg0: i32, %arg1: i32) -> (i32, i32) {
    %c0_i32 = arith.constant 0 : i32
    %c0_i32_0 = arith.constant 0 : i32
    return %c0_i32, %arg1 : i32, i32
  }
  func.func @transform_3(%arg0: i32, %arg1: i32) -> (i32, i32) {
    %c0_i32 = arith.constant 0 : i32
    return %arg0, %arg1 : i32, i32
  }
}

module attributes {stable_mosaic.version = 11 : i64} {
  func.func @_mm_bias_kernel(%arg0: i32, %arg1: i32, %arg2: memref<168x1152xbf16, #tpu.memory_space<vmem>>, %arg3: memref<1152x128xbf16, #tpu.memory_space<vmem>>, %arg4: memref<1x128xf32, #tpu.memory_space<vmem>>, %arg5: memref<168x128xf32, #tpu.memory_space<vmem>>) attributes {dimension_semantics = [#tpu.dimension_semantics<parallel>, #tpu.dimension_semantics<parallel>], iteration_bounds = array<i64: 1, 1>, scalar_prefetch = 0 : i64, scratch_operands = 0 : i64, tpu.core_type = #tpu.core_type<tc>, window_params = [{transform_indices = @transform_0, window_bounds = array<i64: 168, 1152>}, {transform_indices = @transform_1, window_bounds = array<i64: 1152, 128>}, {transform_indices = @transform_2, window_bounds = array<i64: 1, 128>}, {transform_indices = @transform_3, window_bounds = array<i64: 168, 128>}]} {
    %c0 = arith.constant 0 : index
    %c0_0 = arith.constant 0 : index
    %0 = vector.load %arg2[%c0, %c0_0] : memref<168x1152xbf16, #tpu.memory_space<vmem>>, vector<168x1152xbf16>
    %c0_1 = arith.constant 0 : index
    %c0_2 = arith.constant 0 : index
    %1 = vector.load %arg3[%c0_1, %c0_2] : memref<1152x128xbf16, #tpu.memory_space<vmem>>, vector<1152x128xbf16>
    %cst = arith.constant dense<0.000000e+00> : vector<168x128xf32>
    %2 = tpu.matmul %0, %1, %cst {dimension_numbers = #tpu.dot_dimension_numbers<[1], [0], [0], [1], [0, 0, 1, 1], [], []>} : vector<168x1152xbf16>, vector<1152x128xbf16>, vector<168x128xf32> -> vector<168x128xf32>
    %c0_3 = arith.constant 0 : index
    %c0_4 = arith.constant 0 : index
    %3 = vector.load %arg4[%c0_3, %c0_4] : memref<1x128xf32, #tpu.memory_space<vmem>>, vector<1x128xf32>
    %4 = vector.broadcast %3 : vector<1x128xf32> to vector<168x128xf32>
    %5 = arith.addf %2, %4 : vector<168x128xf32>
    %c0_5 = arith.constant 0 : index
    %c0_6 = arith.constant 0 : index
    %6 = vector.load %arg5[%c0_5, %c0_6] : memref<168x128xf32, #tpu.memory_space<vmem>>, vector<168x128xf32>
    tpu.vector_store %arg5[%c0_5, %c0_6], %5 {strides = array<i32>} : memref<168x128xf32, #tpu.memory_space<vmem>>, vector<168x128xf32>,
    return
  }
  func.func @transform_0(%arg0: i32, %arg1: i32) -> (i32, i32) {
    %c0_i32 = arith.constant 0 : i32
    %c0_i32_0 = arith.constant 0 : i32
    return %arg0, %c0_i32 : i32, i32
  }
  func.func @transform_1(%arg0: i32, %arg1: i32) -> (i32, i32) {
    %c0_i32 = arith.constant 0 : i32
    %c0_i32_0 = arith.constant 0 : i32
    return %c0_i32, %arg1 : i32, i32
  }
  func.func @transform_2(%arg0: i32, %arg1: i32) -> (i32, i32) {
    %c0_i32 = arith.constant 0 : i32
    %c0_i32_0 = arith.constant 0 : i32
    return %c0_i32, %arg1 : i32, i32
  }
  func.func @transform_3(%arg0: i32, %arg1: i32) -> (i32, i32) {
    %c0_i32 = arith.constant 0 : i32
    return %arg0, %arg1 : i32, i32
  }
}

</mosaic_0001>

<llo_original>
// kernel: retinanet_forward.13
$region0: #{retinanet_forward.13}
  #allocation0 [shape = 'u32[]', space=smem, size = 0x4, offset = 0x4, fixed_abs, tag = 'smem constant byte address 0x4 - core index']
  #allocation1 [shape = 'u32[144,128]{1,0:T(1,128)}', space=vmem, size = 0x12000, scoped, tag = 'internal scratch']
  %s0 = inlined_call_operand.vmem [shape: bf16[512,27], index: 0, kind: input, shape index: {}]
  %s1 = inlined_call_operand.vmem [shape: bf16[27,64], index: 1, kind: input, shape index: {}]
  %s2 = inlined_call_operand.vmem [shape: f32[1,64], index: 2, kind: input, shape index: {}]
  %s3 = inlined_call_operand.vmem [shape: bf16[512,64], index: 3, kind: output, shape index: {}]
  %s4 = sld [smem:[#allocation0]]
  $region45: #{retinanet_forward.13} parent=0
    _
  %s6 = ssub.s32 1, %s4
  %s7 = scalar_select 0, %s6, %s4
  loop: start=0, step=1, limit=4
  $region2: #{retinanet_forward.13} parent=0 // loop_pre_header
    _
  $region3: #{retinanet_forward.13} parent=0 // loop_header
    %s9 = sphi 0, %s13
    %p10 = scmp.ge.s32.totalorder %s9, 4
    %s16 = sphi 0, %s28
    %s17 = sphi 0, %s24
    %s18 = sphi 0, %s16
    %s19 = sphi 0, %s17
    %s20 = sphi 0, %s18
    %s21 = sphi 0, %s19
    %s31 = sphi 0, %s33
    %s34 = sphi 0, %s31
    %s35 = sphi 0, %s34
    %s51 = sphi 0, %s35
    %s57 = sphi 0, %s59
    %s60 = sphi 0, %s57
    %s61 = sphi 0, %s60
    %s77 = sphi 0, %s61
    %s83 = sphi 0, %s85
    %s86 = sphi 0, %s83
    %s87 = sphi 0, %s86
    %s103 = sphi 0, %s87
    %s111 = sphi 0, %s113
    %s114 = sphi 0, %s111
    %s115 = sphi 0, %s114
    %s131 = sphi 0, %s115
  $region4: #{retinanet_forward.13} parent=0 // loop_header_branch
    %12 = sbr.rel (%p10) target = $region8
  $region5: #{retinanet_forward.13} parent=0 // loop_body
    %s14 = ssub.s32 %s9, 1
    %s15 = ssub.s32 %s9, 2
    %s22 = sadd.s32 1, %s17
    %p23 = scmp.ge.s32.totalorder %s22, 1
    %s24 = scalar_select %p23, 0, %s22
    %s25 = sadd.s32 1, %s16
    %s26 = scalar_select %p23, %s25, %s16
    %p27 = scmp.ge.s32.totalorder %s26, 2
    %s28 = scalar_select %p27, 0, %s26
    %s29 = ssub.s32 %s16, %s28
    %p30 = scmp.eq.s32.totalorder %s29, 0
    %s32 = sadd.s32 %s31, 1
    %s33 = scalar_select %p30, %s31, %s32
    %p36 = pneg %p30
    %p37 = scmp.eq.s32.totalorder %s9, 1
    %p38 = por %p36, %p37
    %p39 = scmp.ne.s32.totalorder %s31, %s34
    %p40 = scmp.eq.s32.totalorder %s9, 0
    %p41 = por %p39, %p40
    %p42 = scmp.ne.s32.totalorder %s31, %s34
    %p43 = scmp.eq.s32.totalorder %s14, 1
    %p44 = por %p42, %p43
    %p45 = scmp.ne.s32.totalorder %s34, %s35
    %p46 = scmp.eq.s32.totalorder %s14, 0
    %p47 = por %p45, %p46
    %p48 = scmp.ne.s32.totalorder %s34, %s35
    %p49 = scmp.eq.s32.totalorder %s15, 1
    %p50 = por %p48, %p49
    %p52 = scmp.ne.s32.totalorder %s35, %s51
    %p53 = scmp.eq.s32.totalorder %s15, 0
    %p54 = por %p52, %p53
    %s55 = ssub.s32 %s17, %s24
    %p56 = scmp.eq.s32.totalorder %s55, 0
    %s58 = sadd.s32 %s57, 1
    %s59 = scalar_select %p56, %s57, %s58
    %p62 = pneg %p56
    %p63 = scmp.eq.s32.totalorder %s9, 1
    %p64 = por %p62, %p63
    %p65 = scmp.ne.s32.totalorder %s57, %s60
    %p66 = scmp.eq.s32.totalorder %s9, 0
    %p67 = por %p65, %p66
    %p68 = scmp.ne.s32.totalorder %s57, %s60
    %p69 = scmp.eq.s32.totalorder %s14, 1
    %p70 = por %p68, %p69
    %p71 = scmp.ne.s32.totalorder %s60, %s61
    %p72 = scmp.eq.s32.totalorder %s14, 0
    %p73 = por %p71, %p72
    %p74 = scmp.ne.s32.totalorder %s60, %s61
    %p75 = scmp.eq.s32.totalorder %s15, 1
    %p76 = por %p74, %p75
    %p78 = scmp.ne.s32.totalorder %s61, %s77
    %p79 = scmp.eq.s32.totalorder %s15, 0
    %p80 = por %p78, %p79
    %s81 = ssub.s32 %s17, %s24
    %p82 = scmp.eq.s32.totalorder %s81, 0
    %s84 = sadd.s32 %s83, 1
    %s85 = scalar_select %p82, %s83, %s84
    %p88 = pneg %p82
    %p89 = scmp.eq.s32.totalorder %s9, 1
    %p90 = por %p88, %p89
    %p91 = scmp.ne.s32.totalorder %s83, %s86
    %p92 = scmp.eq.s32.totalorder %s9, 0
    %p93 = por %p91, %p92
    %p94 = scmp.ne.s32.totalorder %s83, %s86
    %p95 = scmp.eq.s32.totalorder %s14, 1
    %p96 = por %p94, %p95
    %p97 = scmp.ne.s32.totalorder %s86, %s87
    %p98 = scmp.eq.s32.totalorder %s14, 0
    %p99 = por %p97, %p98
    %p100 = scmp.ne.s32.totalorder %s86, %s87
    %p101 = scmp.eq.s32.totalorder %s15, 1
    %p102 = por %p100, %p101
    %p104 = scmp.ne.s32.totalorder %s87, %s103
    %p105 = scmp.eq.s32.totalorder %s15, 0
    %p106 = por %p104, %p105
    %s107 = ssub.s32 %s16, %s28
    %s108 = ssub.s32 %s17, %s24
    %s109 = sor.u32 %s107, %s108
    %p110 = scmp.eq.s32.totalorder %s109, 0
    %s112 = sadd.s32 %s111, 1
    %s113 = scalar_select %p110, %s111, %s112
    %p116 = pneg %p110
    %p117 = scmp.eq.s32.totalorder %s9, 1
    %p118 = por %p116, %p117
    %p119 = scmp.ne.s32.totalorder %s111, %s114
    %p120 = scmp.eq.s32.totalorder %s9, 0
    %p121 = por %p119, %p120
    %p122 = scmp.ne.s32.totalorder %s111, %s114
    %p123 = scmp.eq.s32.totalorder %s14, 1
    %p124 = por %p122, %p123
    %p125 = scmp.ne.s32.totalorder %s114, %s115
    %p126 = scmp.eq.s32.totalorder %s14, 0
    %p127 = por %p125, %p126
    %p128 = scmp.ne.s32.totalorder %s114, %s115
    %p129 = scmp.eq.s32.totalorder %s15, 1
    %p130 = por %p128, %p129
    %p132 = scmp.ne.s32.totalorder %s115, %s131
    %p133 = scmp.eq.s32.totalorder %s15, 0
    %p134 = por %p132, %p133
    %p135 = scmp.le.s32.totalorder 1, %s9
    %p136 = scmp.lt.s32.totalorder %s9, 3
    %p137 = pnand %p135, %p136
    %p138 = pneg %p137
    // Predicated region
    $region9: #{retinanet_forward.13} parent=5 // pred_check
      _
    $region10: #{retinanet_forward.13} parent=5 // pred_check_branch
      %140 = sbr.rel (%p137) target = $region12
    $region11: #{retinanet_forward.13} parent=5 // pred_region
      %s141 = ssub.s32 %s9, 1
      // Predicated region
      $region13: #{retinanet_forward.13} parent=11 // pred_check
        %p142 = pneg %p73
      $region14: #{retinanet_forward.13} parent=11 // pred_check_branch
        %144 = sbr.rel (%p142) target = $region16
      $region15: #{retinanet_forward.13} parent=11 // pred_region
        %p145 = scmp.lt.s32.totalorder %s19, 0
        %s146 = scalar_select %p145, %s19, 0
        %s147 = smul.addr %s146, 4
        %s148 = scalar_lea.vmem %s1, %s147
      $region16: #{retinanet_forward.13} parent=11 // pred_fallthru
        _
      // Predicated region
      $region17: #{retinanet_forward.13} parent=11 // pred_check
        %p149 = pneg %p99
      $region18: #{retinanet_forward.13} parent=11 // pred_check_branch
        %151 = sbr.rel (%p149) target = $region20
      $region19: #{retinanet_forward.13} parent=11 // pred_region
        %p152 = scmp.lt.s32.totalorder %s19, 0
        %s153 = scalar_select %p152, %s19, 0
        %s154 = scalar_lea.vmem %s2, %s153
      $region20: #{retinanet_forward.13} parent=11 // pred_fallthru
        _
    $region12: #{retinanet_forward.13} parent=5 // pred_fallthru
      _
    %p155 = scmp.lt.s32.totalorder %s9, 2
    // Predicated region
    $region21: #{retinanet_forward.13} parent=5 // pred_check
      %p156 = pneg %p155
    $region22: #{retinanet_forward.13} parent=5 // pred_check_branch
      %158 = sbr.rel (%p156) target = $region24
    $region23: #{retinanet_forward.13} parent=5 // pred_region
      // Predicated region
      $region25: #{retinanet_forward.13} parent=23 // pred_check
        %p159 = pneg %p41
      $region26: #{retinanet_forward.13} parent=23 // pred_check_branch
        %161 = sbr.rel (%p159) target = $region28
      $region27: #{retinanet_forward.13} parent=23 // pred_region
        %s162 = smul.u32 32, %s16
        %p163 = scmp.lt.s32.totalorder %s162, 63
        %s164 = scalar_select %p163, %s162, 63
        %s165 = smul.addr %s164, 4
        %s166 = scalar_lea.vmem %s0, %s165
        %s167 = smul.u32 32, %s16
      $region28: #{retinanet_forward.13} parent=23 // pred_fallthru
        _
    $region24: #{retinanet_forward.13} parent=5 // pred_fallthru
      _
    %p168 = scmp.le.s32.totalorder 1, %s9
    %p169 = scmp.lt.s32.totalorder %s9, 3
    %p170 = pnand %p168, %p169
    %p171 = pneg %p170
    // Predicated region
    $region29: #{retinanet_forward.13} parent=5 // pred_check
      _
    $region30: #{retinanet_forward.13} parent=5 // pred_check_branch
      %173 = sbr.rel (%p170) target = $region32
    $region31: #{retinanet_forward.13} parent=5 // pred_region
      %s174 = ssub.s32 %s9, 1
      %s175 = smul.u32 32, %s18
      %p176 = scmp.lt.s32.totalorder %s175, 63
      %s177 = scalar_select %p176, %s175, 63
      %s178 = smul.addr %s177, 4
      %s179 = scalar_lea.vmem %s0, %s178
      %p180 = pneg %p47
      %p181 = pneg %p44
      %p182 = scmp.lt.s32.totalorder %s19, 0
      %s183 = scalar_select %p182, %s19, 0
      %s184 = smul.addr %s183, 4
      %s185 = scalar_lea.vmem %s1, %s184
      %p186 = pneg %p73
      %p187 = pneg %p70
      %p188 = scmp.lt.s32.totalorder %s19, 0
      %s189 = scalar_select %p188, %s19, 0
      %s190 = scalar_lea.vmem %s2, %s189
      %p191 = pneg %p99
      %p192 = pneg %p96
      %p193 = pneg %p127
      %p194 = pneg %p124
      %s195 = smul.u32 32, %s18
      %p196 = scmp.lt.s32.totalorder %s195, 63
      %s197 = scalar_select %p196, %s195, 63
      %p198 = scmp.lt.s32.totalorder %s19, 0
      %s199 = scalar_select %p198, %s19, 0
      %s200 = sadd.s32 %s199, %s197
      %s201 = smul.addr %s200, 4
      %s202 = scalar_lea.vmem %s3, %s201
      %s203 = smul.u32 32, %s18
      %p204 = scmp.lt.s32.totalorder %s203, 63
      %s205 = scalar_select %p204, %s203, 63
      %s206 = smul.addr %s205, 4
      %s207 = scalar_lea.vmem %s0, %s206
      %s208 = smul.u32 32, %s18
      %p209 = scmp.lt.s32.totalorder %s19, 0
      %s210 = scalar_select %p209, %s19, 0
      %s211 = smul.addr %s210, 4
      %s212 = scalar_lea.vmem %s1, %s211
      %p213 = scmp.lt.s32.totalorder %s19, 0
      %s214 = scalar_select %p213, %s19, 0
      %s215 = scalar_lea.vmem %s2, %s214
      %s216 = smul.u32 32, %s18
      %p217 = scmp.lt.s32.totalorder %s216, 63
      %s218 = scalar_select %p217, %s216, 63
      %p219 = scmp.lt.s32.totalorder %s19, 0
      %s220 = scalar_select %p219, %s19, 0
      %s221 = sadd.s32 %s220, %s218
      %s222 = smul.addr %s221, 4
      %s223 = scalar_lea.vmem %s3, %s222
      %s224 = smul.u32 32, %s18
      %v226 = vld [vmem:[%s207] sm:$0xf]
      %v227 = vld [vmem:[%s207 + $0x4] sm:$0xf]
      %v228 = vld [vmem:[%s207 + $0x8] sm:$0xf]
      %v229 = vld [vmem:[%s207 + $0xc] sm:$0xf]
      %v230 = vld [vmem:[%s207 + $0x10] sm:$0xf]
      %v231 = vld [vmem:[%s207 + $0x14] sm:$0xf]
      %v232 = vld [vmem:[%s207 + $0x18] sm:$0xf]
      %v233 = vld [vmem:[%s207 + $0x1c] sm:$0xf]
      %v234 = vld [vmem:[%s207 + $0x20] sm:$0xf]
      %v235 = vld [vmem:[%s207 + $0x24] sm:$0xf]
      %v236 = vld [vmem:[%s207 + $0x28] sm:$0xf]
      %v237 = vld [vmem:[%s207 + $0x2c] sm:$0xf]
      %v238 = vld [vmem:[%s207 + $0x30] sm:$0xf]
      %v239 = vld [vmem:[%s207 + $0x34] sm:$0xf]
      %v240 = vld [vmem:[%s207 + $0x38] sm:$0xf]
      %v241 = vld [vmem:[%s207 + $0x3c] sm:$0xf]
      %v242 = vld [vmem:[%s207 + $0x40] sm:$0xf]
      %v243 = vld [vmem:[%s207 + $0x44] sm:$0xf]
      %v244 = vld [vmem:[%s207 + $0x48] sm:$0xf]
      %v245 = vld [vmem:[%s207 + $0x4c] sm:$0xf]
      %v246 = vld [vmem:[%s207 + $0x50] sm:$0xf]
      %v247 = vld [vmem:[%s207 + $0x54] sm:$0xf]
      %v248 = vld [vmem:[%s207 + $0x58] sm:$0xf]
      %v249 = vld [vmem:[%s207 + $0x5c] sm:$0xf]
      %v250 = vld [vmem:[%s207 + $0x60] sm:$0xf]
      %v251 = vld [vmem:[%s207 + $0x64] sm:$0xf]
      %v252 = vld [vmem:[%s207 + $0x68] sm:$0xf]
      %v253 = vld [vmem:[%s207 + $0x6c] sm:$0xf]
      %v254 = vld [vmem:[%s207 + $0x70] sm:$0xf]
      %v255 = vld [vmem:[%s207 + $0x74] sm:$0xf]
      %v256 = vld [vmem:[%s207 + $0x78] sm:$0xf]
      %v257 = vld [vmem:[%s207 + $0x7c] sm:$0xf]
      %v258 = vld [vmem:[%s212] sm:$0xf]
      %v259 = vld [vmem:[%s212 + $0x4] sm:$0xf]
      %v260 = vld [vmem:[%s212 + $0x8] sm:$0xf]
      %v261 = vld [vmem:[%s212 + $0xc] sm:$0x3]
      %v262 = vld [vmem:[%s215] sm:$0x1]
      %v264 = vlaneseq
      %v265 = vshrl.u32 %v264, 7
      %v266 = vsub.s32 0, %v265
      %v267 = vrot.slane %v262, %v266
      %v301 = vunpack.c.l.b16 %v226
      %v302 = vunpack.c.l.b16 %v227
      %v303 = vunpack.c.l.b16 %v228
      %v304 = vunpack.c.l.b16 %v229
      %v305 = vunpack.c.l.b16 %v230
      %v306 = vunpack.c.l.b16 %v231
      %v307 = vunpack.c.l.b16 %v232
      %v308 = vunpack.c.l.b16 %v233
      %v309 = vunpack.c.l.b16 %v234
      %v310 = vunpack.c.l.b16 %v235
      %v311 = vunpack.c.l.b16 %v236
      %v312 = vunpack.c.l.b16 %v237
      %v313 = vunpack.c.l.b16 %v238
      %v314 = vunpack.c.l.b16 %v239
      %v315 = vunpack.c.l.b16 %v240
      %v316 = vunpack.c.l.b16 %v241
      %v317 = vunpack.c.l.b16 %v242
      %v318 = vunpack.c.l.b16 %v243
      %v319 = vunpack.c.l.b16 %v244
      %v320 = vunpack.c.l.b16 %v245
      %v321 = vunpack.c.l.b16 %v246
      %v322 = vunpack.c.l.b16 %v247
      %v323 = vunpack.c.l.b16 %v248
      %v324 = vunpack.c.l.b16 %v249
      %v325 = vunpack.c.l.b16 %v250
      %v326 = vunpack.c.l.b16 %v251
      %v327 = vunpack.c.l.b16 %v252
      %v328 = vunpack.c.l.b16 %v253
      %v329 = vunpack.c.l.b16 %v254
      %v330 = vunpack.c.l.b16 %v255
      %v331 = vunpack.c.l.b16 %v256
      %v332 = vunpack.c.l.b16 %v257
      %v333 = vpack.c.b16 %v302, %v301
      %v334 = vpack.c.b16 %v304, %v303
      %v335 = vpack.c.b16 %v306, %v305
      %v336 = vpack.c.b16 %v308, %v307
      %v337 = vpack.c.b16 %v310, %v309
      %v338 = vpack.c.b16 %v312, %v311
      %v339 = vpack.c.b16 %v314, %v313
      %v340 = vpack.c.b16 %v316, %v315
      %v341 = vpack.c.b16 %v318, %v317
      %v342 = vpack.c.b16 %v320, %v319
      %v343 = vpack.c.b16 %v322, %v321
      %v344 = vpack.c.b16 %v324, %v323
      %v345 = vpack.c.b16 %v326, %v325
      %v346 = vpack.c.b16 %v328, %v327
      %v347 = vpack.c.b16 %v330, %v329
      %v348 = vpack.c.b16 %v332, %v331
      %v353 = vunpack.c.l.b16 %v258
      %v354 = vunpack.c.l.b16 %v259
      %v355 = vunpack.c.l.b16 %v260
      %v356 = vunpack.c.l.b16 %v261
      %v357 = vpack.c.b16 %v354, %v353
      %v358 = vpack.c.b16 %v356, %v355
      %vm360 = vcmask 220160
      %v362 = vsel %vm360, %v333, 0
      %v365 = vsel %vm360, %v334, 0
      %v368 = vsel %vm360, %v335, 0
      %v371 = vsel %vm360, %v336, 0
      %v374 = vsel %vm360, %v337, 0
      %v377 = vsel %vm360, %v338, 0
      %v380 = vsel %vm360, %v339, 0
      %v383 = vsel %vm360, %v340, 0
      %v386 = vsel %vm360, %v341, 0
      %v389 = vsel %vm360, %v342, 0
      %v392 = vsel %vm360, %v343, 0
      %v395 = vsel %vm360, %v344, 0
      %v398 = vsel %vm360, %v345, 0
      %v401 = vsel %vm360, %v346, 0
      %v404 = vsel %vm360, %v347, 0
      %v407 = vsel %vm360, %v348, 0
      %vm409 = vcmask 1044480
      %vm410 = vcmask 1045504
      %v411 = vsel %vm409, 4294967295, 65535
      %v412 = vsel %vm410, %v411, 0
      %v414 = vand.u32 %v358, %v412
      %416 = vmatprep.subr.bf16.mxu0 0
      %417 = vmatpush1.bf16.msra.mxu0 %v357
      %418 = vmatprep.subr.bf16.mxu0 0
      %419 = vmatpush1.bf16.msra.mxu0 %v414
      %420 = vmatprep.subr.bf16.mxu0 0
      %421 = vmatpush1.bf16.msra.mxu0 0
      %422 = vmatprep.subr.bf16.mxu0 0
      %423 = vmatpush1.bf16.msra.mxu0 0
      %424 = vmatprep.subr.bf16.mxu0 0
      %425 = vmatpush1.bf16.msra.mxu0 0
      %426 = vmatprep.subr.bf16.mxu0 0
      %427 = vmatpush1.bf16.msra.mxu0 0
      %428 = vmatprep.subr.bf16.mxu0 0
      %429 = vmatpush1.bf16.msra.mxu0 0
      %430 = vmatprep.subr.bf16.mxu0 0
      %431 = vmatpush1.bf16.msra.mxu0 0
      %432 = vmatprep.subr.bf16.mxu0 0
      %433 = vmatpush1.bf16.msra.mxu0 0
      %434 = vmatprep.subr.bf16.mxu0 0
      %435 = vmatpush1.bf16.msra.mxu0 0
      %436 = vmatprep.subr.bf16.mxu0 0
      %437 = vmatpush1.bf16.msra.mxu0 0
      %438 = vmatprep.subr.bf16.mxu0 0
      %439 = vmatpush1.bf16.msra.mxu0 0
      %440 = vmatprep.subr.bf16.mxu0 0
      %441 = vmatpush1.bf16.msra.mxu0 0
      %442 = vmatprep.subr.bf16.mxu0 0
      %443 = vmatpush1.bf16.msra.mxu0 0
      %444 = vmatprep.subr.bf16.mxu0 0
      %445 = vmatpush1.bf16.msra.mxu0 0
      %446 = vmatprep.subr.bf16.mxu0 0
      %447 = vmatpush1.bf16.msra.mxu0 0
      %448 = vmatprep.mubr.bf16.mxu0 0
      %449 = vmatmul.mubr.bf16.gmra.mrb[0].mxu0 %v362
      %v450 = vpop.f32.mrb[0].mxu0
      %v451 = vadd.f32 %v267, %v450
      %v452 = vpop.f32.mrb[0].mxu0
      %v453 = vpop.f32.mrb[0].mxu0
      %v454 = vadd.f32 %v267, %v453
      %v455 = vpop.f32.mrb[0].mxu0
      %456 = vmatprep.mubr.bf16.mxu0 0
      %457 = vmatmul.mubr.bf16.gmra.mrb[0].mxu0 %v365
      %v458 = vpop.f32.mrb[0].mxu0
      %v459 = vadd.f32 %v267, %v458
      %v460 = vpop.f32.mrb[0].mxu0
      %v461 = vpop.f32.mrb[0].mxu0
      %v462 = vadd.f32 %v267, %v461
      %v463 = vpop.f32.mrb[0].mxu0
      %464 = vmatprep.mubr.bf16.mxu0 0
      %465 = vmatmul.mubr.bf16.gmra.mrb[0].mxu0 %v368
      %v466 = vpop.f32.mrb[0].mxu0
      %v467 = vadd.f32 %v267, %v466
      %v468 = vpop.f32.mrb[0].mxu0
      %v469 = vpop.f32.mrb[0].mxu0
      %v470 = vadd.f32 %v267, %v469
      %v471 = vpop.f32.mrb[0].mxu0
      %472 = vmatprep.mubr.bf16.mxu0 0
      %473 = vmatmul.mubr.bf16.gmra.mrb[0].mxu0 %v371
      %v474 = vpop.f32.mrb[0].mxu0
      %v475 = vadd.f32 %v267, %v474
      %v476 = vpop.f32.mrb[0].mxu0
      %v477 = vpop.f32.mrb[0].mxu0
      %v478 = vadd.f32 %v267, %v477
      %v479 = vpop.f32.mrb[0].mxu0
      %480 = vmatprep.mubr.bf16.mxu0 0
      %481 = vmatmul.mubr.bf16.gmra.mrb[0].mxu0 %v374
      %v482 = vpop.f32.mrb[0].mxu0
      %v483 = vadd.f32 %v267, %v482
      %v484 = vpop.f32.mrb[0].mxu0
      %v485 = vpop.f32.mrb[0].mxu0
      %v486 = vadd.f32 %v267, %v485
      %v487 = vpop.f32.mrb[0].mxu0
      %488 = vmatprep.mubr.bf16.mxu0 0
      %489 = vmatmul.mubr.bf16.gmra.mrb[0].mxu0 %v377
      %v490 = vpop.f32.mrb[0].mxu0
      %v491 = vadd.f32 %v267, %v490
      %v492 = vpop.f32.mrb[0].mxu0
      %v493 = vpop.f32.mrb[0].mxu0
      %v494 = vadd.f32 %v267, %v493
      %v495 = vpop.f32.mrb[0].mxu0
      %496 = vmatprep.mubr.bf16.mxu0 0
      %497 = vmatmul.mubr.bf16.gmra.mrb[0].mxu0 %v380
      %v498 = vpop.f32.mrb[0].mxu0
      %v499 = vadd.f32 %v267, %v498
      %v500 = vpop.f32.mrb[0].mxu0
      %v501 = vpop.f32.mrb[0].mxu0
      %v502 = vadd.f32 %v267, %v501
      %v503 = vpop.f32.mrb[0].mxu0
      %504 = vmatprep.mubr.bf16.mxu0 0
      %505 = vmatmul.mubr.bf16.gmra.mrb[0].mxu0 %v383
      %v506 = vpop.f32.mrb[0].mxu0
      %v507 = vadd.f32 %v267, %v506
      %v508 = vpop.f32.mrb[0].mxu0
      %v509 = vpop.f32.mrb[0].mxu0
      %v510 = vadd.f32 %v267, %v509
      %v511 = vpop.f32.mrb[0].mxu0
      %512 = vmatprep.mubr.bf16.mxu0 0
      %513 = vmatmul.mubr.bf16.gmra.mrb[0].mxu0 %v386
      %v514 = vpop.f32.mrb[0].mxu0
      %v515 = vadd.f32 %v267, %v514
      %v516 = vpop.f32.mrb[0].mxu0
      %v517 = vpop.f32.mrb[0].mxu0
      %v518 = vadd.f32 %v267, %v517
      %v519 = vpop.f32.mrb[0].mxu0
      %520 = vmatprep.mubr.bf16.mxu0 0
      %521 = vmatmul.mubr.bf16.gmra.mrb[0].mxu0 %v389
      %v522 = vpop.f32.mrb[0].mxu0
      %v523 = vadd.f32 %v267, %v522
      %v524 = vpop.f32.mrb[0].mxu0
      %v525 = vpop.f32.mrb[0].mxu0
      %v526 = vadd.f32 %v267, %v525
      %v527 = vpop.f32.mrb[0].mxu0
      %528 = vmatprep.mubr.bf16.mxu0 0
      %529 = vmatmul.mubr.bf16.gmra.mrb[0].mxu0 %v392
      %v530 = vpop.f32.mrb[0].mxu0
      %v531 = vadd.f32 %v267, %v530
      %v532 = vpop.f32.mrb[0].mxu0
      %v533 = vpop.f32.mrb[0].mxu0
      %v534 = vadd.f32 %v267, %v533
      %v535 = vpop.f32.mrb[0].mxu0
      %536 = vmatprep.mubr.bf16.mxu0 0
      %537 = vmatmul.mubr.bf16.gmra.mrb[0].mxu0 %v395
      %v538 = vpop.f32.mrb[0].mxu0
      %v539 = vadd.f32 %v267, %v538
      %v540 = vpop.f32.mrb[0].mxu0
      %v541 = vpop.f32.mrb[0].mxu0
      %v542 = vadd.f32 %v267, %v541
      %v543 = vpop.f32.mrb[0].mxu0
      %544 = vmatprep.mubr.bf16.mxu0 0
      %545 = vmatmul.mubr.bf16.gmra.mrb[0].mxu0 %v398
      %v546 = vpop.f32.mrb[0].mxu0
      %v547 = vadd.f32 %v267, %v546
      %v548 = vpop.f32.mrb[0].mxu0
      %v549 = vpop.f32.mrb[0].mxu0
      %v550 = vadd.f32 %v267, %v549
      %v551 = vpop.f32.mrb[0].mxu0
      %552 = vmatprep.mubr.bf16.mxu0 0
      %553 = vmatmul.mubr.bf16.gmra.mrb[0].mxu0 %v401
      %v554 = vpop.f32.mrb[0].mxu0
      %v555 = vadd.f32 %v267, %v554
      %v556 = vpop.f32.mrb[0].mxu0
      %v557 = vpop.f32.mrb[0].mxu0
      %v558 = vadd.f32 %v267, %v557
      %v559 = vpop.f32.mrb[0].mxu0
      %560 = vmatprep.mubr.bf16.mxu0 0
      %561 = vmatmul.mubr.bf16.gmra.mrb[0].mxu0 %v404
      %v562 = vpop.f32.mrb[0].mxu0
      %v563 = vadd.f32 %v267, %v562
      %v564 = vpop.f32.mrb[0].mxu0
      %v565 = vpop.f32.mrb[0].mxu0
      %v566 = vadd.f32 %v267, %v565
      %v567 = vpop.f32.mrb[0].mxu0
      %568 = vmatprep.mubr.bf16.mxu0 0
      %569 = vmatmul.mubr.bf16.gmra.mrb[0].mxu0 %v407
      %v570 = vpop.f32.mrb[0].mxu0
      %v571 = vadd.f32 %v267, %v570
      %v572 = vpop.f32.mrb[0].mxu0
      %v573 = vpop.f32.mrb[0].mxu0
      %v574 = vadd.f32 %v267, %v573
      %v575 = vpop.f32.mrb[0].mxu0
      %576 = vdwg.mxu0
      %v577 = vmax.f32 %v451, 0.0
      %v578 = vmax.f32 %v454, 0.0
      %v579 = vmax.f32 %v459, 0.0
      %v580 = vmax.f32 %v462, 0.0
      %v581 = vmax.f32 %v467, 0.0
      %v582 = vmax.f32 %v470, 0.0
      %v583 = vmax.f32 %v475, 0.0
      %v584 = vmax.f32 %v478, 0.0
      %v585 = vmax.f32 %v483, 0.0
      %v586 = vmax.f32 %v486, 0.0
      %v587 = vmax.f32 %v491, 0.0
      %v588 = vmax.f32 %v494, 0.0
      %v589 = vmax.f32 %v499, 0.0
      %v590 = vmax.f32 %v502, 0.0
      %v591 = vmax.f32 %v507, 0.0
      %v592 = vmax.f32 %v510, 0.0
      %v593 = vmax.f32 %v515, 0.0
      %v594 = vmax.f32 %v518, 0.0
      %v595 = vmax.f32 %v523, 0.0
      %v596 = vmax.f32 %v526, 0.0
      %v597 = vmax.f32 %v531, 0.0
      %v598 = vmax.f32 %v534, 0.0
      %v599 = vmax.f32 %v539, 0.0
      %v600 = vmax.f32 %v542, 0.0
      %v601 = vmax.f32 %v547, 0.0
      %v602 = vmax.f32 %v550, 0.0
      %v603 = vmax.f32 %v555, 0.0
      %v604 = vmax.f32 %v558, 0.0
      %v605 = vmax.f32 %v563, 0.0
      %v606 = vmax.f32 %v566, 0.0
      %v607 = vmax.f32 %v571, 0.0
      %v608 = vmax.f32 %v574, 0.0
      %v609 = vpack.c.bf16 %v578, %v577
      %v610 = vpack.c.bf16 %v580, %v579
      %v611 = vpack.c.bf16 %v582, %v581
      %v612 = vpack.c.bf16 %v584, %v583
      %v613 = vpack.c.bf16 %v586, %v585
      %v614 = vpack.c.bf16 %v588, %v587
      %v615 = vpack.c.bf16 %v590, %v589
      %v616 = vpack.c.bf16 %v592, %v591
      %v617 = vpack.c.bf16 %v594, %v593
      %v618 = vpack.c.bf16 %v596, %v595
      %v619 = vpack.c.bf16 %v598, %v597
      %v620 = vpack.c.bf16 %v600, %v599
      %v621 = vpack.c.bf16 %v602, %v601
      %v622 = vpack.c.bf16 %v604, %v603
      %v623 = vpack.c.bf16 %v606, %v605
      %v624 = vpack.c.bf16 %v608, %v607
      %v641 = vunpack.c.l.b16 %v609
      %v642 = vunpack.c.h.b16 %v609
      %v643 = vunpack.c.l.b16 %v610
      %v644 = vunpack.c.h.b16 %v610
      %v645 = vunpack.c.l.b16 %v611
      %v646 = vunpack.c.h.b16 %v611
      %v647 = vunpack.c.l.b16 %v612
      %v648 = vunpack.c.h.b16 %v612
      %v649 = vunpack.c.l.b16 %v613
      %v650 = vunpack.c.h.b16 %v613
      %v651 = vunpack.c.l.b16 %v614
      %v652 = vunpack.c.h.b16 %v614
      %v653 = vunpack.c.l.b16 %v615
      %v654 = vunpack.c.h.b16 %v615
      %v655 = vunpack.c.l.b16 %v616
      %v656 = vunpack.c.h.b16 %v616
      %v657 = vunpack.c.l.b16 %v617
      %v658 = vunpack.c.h.b16 %v617
      %v659 = vunpack.c.l.b16 %v618
      %v660 = vunpack.c.h.b16 %v618
      %v661 = vunpack.c.l.b16 %v619
      %v662 = vunpack.c.h.b16 %v619
      %v663 = vunpack.c.l.b16 %v620
      %v664 = vunpack.c.h.b16 %v620
      %v665 = vunpack.c.l.b16 %v621
      %v666 = vunpack.c.h.b16 %v621
      %v667 = vunpack.c.l.b16 %v622
      %v668 = vunpack.c.h.b16 %v622
      %v669 = vunpack.c.l.b16 %v623
      %v670 = vunpack.c.h.b16 %v623
      %v671 = vunpack.c.l.b16 %v624
      %v672 = vunpack.c.h.b16 %v624
      %v673 = vpack.c.b16 %v641, %v641
      %v674 = vpack.c.b16 %v642, %v642
      %v675 = vpack.c.b16 %v643, %v643
      %v676 = vpack.c.b16 %v644, %v644
      %v677 = vpack.c.b16 %v645, %v645
      %v678 = vpack.c.b16 %v646, %v646
      %v679 = vpack.c.b16 %v647, %v647
      %v680 = vpack.c.b16 %v648, %v648
      %v681 = vpack.c.b16 %v649, %v649
      %v682 = vpack.c.b16 %v650, %v650
      %v683 = vpack.c.b16 %v651, %v651
      %v684 = vpack.c.b16 %v652, %v652
      %v685 = vpack.c.b16 %v653, %v653
      %v686 = vpack.c.b16 %v654, %v654
      %v687 = vpack.c.b16 %v655, %v655
      %v688 = vpack.c.b16 %v656, %v656
      %v689 = vpack.c.b16 %v657, %v657
      %v690 = vpack.c.b16 %v658, %v658
      %v691 = vpack.c.b16 %v659, %v659
      %v692 = vpack.c.b16 %v660, %v660
      %v693 = vpack.c.b16 %v661, %v661
      %v694 = vpack.c.b16 %v662, %v662
      %v695 = vpack.c.b16 %v663, %v663
      %v696 = vpack.c.b16 %v664, %v664
      %v697 = vpack.c.b16 %v665, %v665
      %v698 = vpack.c.b16 %v666, %v666
      %v699 = vpack.c.b16 %v667, %v667
      %v700 = vpack.c.b16 %v668, %v668
      %v701 = vpack.c.b16 %v669, %v669
      %v702 = vpack.c.b16 %v670, %v670
      %v703 = vpack.c.b16 %v671, %v671
      %v704 = vpack.c.b16 %v672, %v672
      %vm737 = vcmask 519168
      %738 = vst.msk [vmem:[%s223] sm:$0xf] %vm737, %v673
      %739 = vst.msk [vmem:[%s223 + $0x4] sm:$0xf] %vm737, %v674
      %740 = vst.msk [vmem:[%s223 + $0x8] sm:$0xf] %vm737, %v675
      %741 = vst.msk [vmem:[%s223 + $0xc] sm:$0xf] %vm737, %v676
      %742 = vst.msk [vmem:[%s223 + $0x10] sm:$0xf] %vm737, %v677
      %743 = vst.msk [vmem:[%s223 + $0x14] sm:$0xf] %vm737, %v678
      %744 = vst.msk [vmem:[%s223 + $0x18] sm:$0xf] %vm737, %v679
      %745 = vst.msk [vmem:[%s223 + $0x1c] sm:$0xf] %vm737, %v680
      %746 = vst.msk [vmem:[%s223 + $0x20] sm:$0xf] %vm737, %v681
      %747 = vst.msk [vmem:[%s223 + $0x24] sm:$0xf] %vm737, %v682
      %748 = vst.msk [vmem:[%s223 + $0x28] sm:$0xf] %vm737, %v683
      %749 = vst.msk [vmem:[%s223 + $0x2c] sm:$0xf] %vm737, %v684
      %750 = vst.msk [vmem:[%s223 + $0x30] sm:$0xf] %vm737, %v685
      %751 = vst.msk [vmem:[%s223 + $0x34] sm:$0xf] %vm737, %v686
      %752 = vst.msk [vmem:[%s223 + $0x38] sm:$0xf] %vm737, %v687
      %753 = vst.msk [vmem:[%s223 + $0x3c] sm:$0xf] %vm737, %v688
      %754 = vst.msk [vmem:[%s223 + $0x40] sm:$0xf] %vm737, %v689
      %755 = vst.msk [vmem:[%s223 + $0x44] sm:$0xf] %vm737, %v690
      %756 = vst.msk [vmem:[%s223 + $0x48] sm:$0xf] %vm737, %v691
      %757 = vst.msk [vmem:[%s223 + $0x4c] sm:$0xf] %vm737, %v692
      %758 = vst.msk [vmem:[%s223 + $0x50] sm:$0xf] %vm737, %v693
      %759 = vst.msk [vmem:[%s223 + $0x54] sm:$0xf] %vm737, %v694
      %760 = vst.msk [vmem:[%s223 + $0x58] sm:$0xf] %vm737, %v695
      %761 = vst.msk [vmem:[%s223 + $0x5c] sm:$0xf] %vm737, %v696
      %762 = vst.msk [vmem:[%s223 + $0x60] sm:$0xf] %vm737, %v697
      %763 = vst.msk [vmem:[%s223 + $0x64] sm:$0xf] %vm737, %v698
      %764 = vst.msk [vmem:[%s223 + $0x68] sm:$0xf] %vm737, %v699
      %765 = vst.msk [vmem:[%s223 + $0x6c] sm:$0xf] %vm737, %v700
      %766 = vst.msk [vmem:[%s223 + $0x70] sm:$0xf] %vm737, %v701
      %767 = vst.msk [vmem:[%s223 + $0x74] sm:$0xf] %vm737, %v702
      %768 = vst.msk [vmem:[%s223 + $0x78] sm:$0xf] %vm737, %v703
      %769 = vst.msk [vmem:[%s223 + $0x7c] sm:$0xf] %vm737, %v704
      %s770 = smul.u32 32, %s18
      %p771 = scmp.lt.s32.totalorder %s770, 63
      %s772 = scalar_select %p771, %s770, 63
      %p773 = scmp.lt.s32.totalorder %s19, 0
      %s774 = scalar_select %p773, %s19, 0
      %s775 = sadd.s32 %s774, %s772
      %s776 = smul.addr %s775, 4
      %s777 = scalar_lea.vmem %s3, %s776
      // Predicated region
      $region33: #{retinanet_forward.13} parent=31 // pred_check
        %p778 = pneg %p124
      $region34: #{retinanet_forward.13} parent=31 // pred_check_branch
        %780 = sbr.rel (%p778) target = $region36
      $region35: #{retinanet_forward.13} parent=31 // pred_region
        %s781 = smul.u32 32, %s18
      $region36: #{retinanet_forward.13} parent=31 // pred_fallthru
        _
    $region32: #{retinanet_forward.13} parent=5 // pred_fallthru
      _
    %p782 = scmp.le.s32.totalorder 2, %s9
    // Predicated region
    $region37: #{retinanet_forward.13} parent=5 // pred_check
      %p783 = pneg %p782
    $region38: #{retinanet_forward.13} parent=5 // pred_check_branch
      %785 = sbr.rel (%p783) target = $region40
    $region39: #{retinanet_forward.13} parent=5 // pred_region
      %s786 = ssub.s32 %s9, 2
      // Predicated region
      $region41: #{retinanet_forward.13} parent=39 // pred_check
        %p787 = pneg %p130
      $region42: #{retinanet_forward.13} parent=39 // pred_check_branch
        %789 = sbr.rel (%p787) target = $region44
      $region43: #{retinanet_forward.13} parent=39 // pred_region
        %s790 = smul.u32 32, %s20
        %p791 = scmp.lt.s32.totalorder %s790, 63
        %s792 = scalar_select %p791, %s790, 63
        %p793 = scmp.lt.s32.totalorder %s21, 0
        %s794 = scalar_select %p793, %s21, 0
        %s795 = sadd.s32 %s794, %s792
        %s796 = smul.addr %s795, 4
        %s797 = scalar_lea.vmem %s3, %s796
      $region44: #{retinanet_forward.13} parent=39 // pred_fallthru
        _
    $region40: #{retinanet_forward.13} parent=5 // pred_fallthru
      _
  $region6: #{retinanet_forward.13} parent=0 // loop_footer
    %s13 = sadd.s32 1, %s9
  $region7: #{retinanet_forward.13} parent=0 // loop_footer_branch
    %8 = sbr.rel target = $region3
  $region8: #{retinanet_forward.13} parent=0 // loop_exit
    _

// kernel: retinanet_forward.14
$region0: #{retinanet_forward.14}
  #allocation0 [shape = 'u32[]', space=smem, size = 0x4, offset = 0x4, fixed_abs, tag = 'smem constant byte address 0x4 - core index']
  #allocation1 [shape = 'u32[144,128]{1,0:T(1,128)}', space=vmem, size = 0x12000, scoped, tag = 'internal scratch']
  %s0 = inlined_call_operand.vmem [shape: bf16[128,576], index: 0, kind: input, shape index: {}]
  %s1 = inlined_call_operand.vmem [shape: bf16[576,64], index: 1, kind: input, shape index: {}]
  %s2 = inlined_call_operand.vmem [shape: f32[1,64], index: 2, kind: input, shape index: {}]
  %s3 = inlined_call_operand.vmem [shape: bf16[128,64], index: 3, kind: output, shape index: {}]
  %s4 = sld [smem:[#allocation0]]
  $region22: #{retinanet_forward.14} parent=0
    _
  %s6 = ssub.s32 1, %s4
  %s7 = scalar_select 0, %s6, %s4
  // Predicated region
  $region2: #{retinanet_forward.14} parent=0 // pred_check
    _
  $region3: #{retinanet_forward.14} parent=0 // pred_check_branch
    %9 = sbr.rel (0) target = $region5
  $region4: #{retinanet_forward.14} parent=0 // pred_region
    _
  $region5: #{retinanet_forward.14} parent=0 // pred_fallthru
    _
  // Predicated region
  $region6: #{retinanet_forward.14} parent=0 // pred_check
    _
  $region7: #{retinanet_forward.14} parent=0 // pred_check_branch
    %11 = sbr.rel (0) target = $region9
  $region8: #{retinanet_forward.14} parent=0 // pred_region
    _
  $region9: #{retinanet_forward.14} parent=0 // pred_fallthru
    _
  // Predicated region
  $region10: #{retinanet_forward.14} parent=0 // pred_check
    _
  $region11: #{retinanet_forward.14} parent=0 // pred_check_branch
    %13 = sbr.rel (0) target = $region13
  $region12: #{retinanet_forward.14} parent=0 // pred_region
    _
  $region13: #{retinanet_forward.14} parent=0 // pred_fallthru
    _
  %v15 = vld [vmem:[%s0] sm:$0xff]
  %v16 = vld [vmem:[%s0 + $0x8] sm:$0xff]
  %v17 = vld [vmem:[%s0 + $0x10] sm:$0xf]
  %v18 = vld [vmem:[%s0 + $0x14] sm:$0xff]
  %v19 = vld [vmem:[%s0 + $0x1c] sm:$0xff]
  %v20 = vld [vmem:[%s0 + $0x24] sm:$0xf]
  %v21 = vld [vmem:[%s0 + $0x28] sm:$0xff]
  %v22 = vld [vmem:[%s0 + $0x30] sm:$0xff]
  %v23 = vld [vmem:[%s0 + $0x38] sm:$0xf]
  %v24 = vld [vmem:[%s0 + $0x3c] sm:$0xff]
  %v25 = vld [vmem:[%s0 + $0x44] sm:$0xff]
  %v26 = vld [vmem:[%s0 + $0x4c] sm:$0xf]
  %v27 = vld [vmem:[%s0 + $0x50] sm:$0xff]
  %v28 = vld [vmem:[%s0 + $0x58] sm:$0xff]
  %v29 = vld [vmem:[%s0 + $0x60] sm:$0xf]
  %v30 = vld [vmem:[%s0 + $0x64] sm:$0xff]
  %v31 = vld [vmem:[%s0 + $0x6c] sm:$0xff]
  %v32 = vld [vmem:[%s0 + $0x74] sm:$0xf]
  %v33 = vld [vmem:[%s0 + $0x78] sm:$0xff]
  %v34 = vld [vmem:[%s0 + $0x80] sm:$0xff]
  %v35 = vld [vmem:[%s0 + $0x88] sm:$0xf]
  %v36 = vld [vmem:[%s0 + $0x8c] sm:$0xff]
  %v37 = vld [vmem:[%s0 + $0x94] sm:$0xff]
  %v38 = vld [vmem:[%s0 + $0x9c] sm:$0xf]
  %v39 = vld [vmem:[%s0 + $0xa0] sm:$0xff]
  %v40 = vld [vmem:[%s0 + $0xa8] sm:$0xff]
  %v41 = vld [vmem:[%s0 + $0xb0] sm:$0xf]
  %v42 = vld [vmem:[%s0 + $0xb4] sm:$0xff]
  %v43 = vld [vmem:[%s0 + $0xbc] sm:$0xff]
  %v44 = vld [vmem:[%s0 + $0xc4] sm:$0xf]
  %v45 = vld [vmem:[%s0 + $0xc8] sm:$0xff]
  %v46 = vld [vmem:[%s0 + $0xd0] sm:$0xff]
  %v47 = vld [vmem:[%s0 + $0xd8] sm:$0xf]
  %v48 = vld [vmem:[%s0 + $0xdc] sm:$0xff]
  %v49 = vld [vmem:[%s0 + $0xe4] sm:$0xff]
  %v50 = vld [vmem:[%s0 + $0xec] sm:$0xf]
  %v51 = vld [vmem:[%s0 + $0xf0] sm:$0xff]
  %v52 = vld [vmem:[%s0 + $0xf8] sm:$0xff]
  %v53 = vld [vmem:[%s0 + $0x100] sm:$0xf]
  %v54 = vld [vmem:[%s0 + $0x104] sm:$0xff]
  %v55 = vld [vmem:[%s0 + $0x10c] sm:$0xff]
  %v56 = vld [vmem:[%s0 + $0x114] sm:$0xf]
  %v57 = vld [vmem:[%s0 + $0x118] sm:$0xff]
  %v58 = vld [vmem:[%s0 + $0x120] sm:$0xff]
  %v59 = vld [vmem:[%s0 + $0x128] sm:$0xf]
  %v60 = vld [vmem:[%s0 + $0x12c] sm:$0xff]
  %v61 = vld [vmem:[%s0 + $0x134] sm:$0xff]
  %v62 = vld [vmem:[%s0 + $0x13c] sm:$0xf]
  %v63 = vld [vmem:[%s1] sm:$0xf]
  %v64 = vld [vmem:[%s1 + $0x4] sm:$0xf]
  %v65 = vld [vmem:[%s1 + $0x8] sm:$0xf]
  %v66 = vld [vmem:[%s1 + $0xc] sm:$0xf]
  %v67 = vld [vmem:[%s1 + $0x10] sm:$0xf]
  %v68 = vld [vmem:[%s1 + $0x14] sm:$0xf]
  %v69 = vld [vmem:[%s1 + $0x18] sm:$0xf]
  %v70 = vld [vmem:[%s1 + $0x1c] sm:$0xf]
  %v71 = vld [vmem:[%s1 + $0x20] sm:$0xf]
  %v72 = vld [vmem:[%s1 + $0x24] sm:$0xf]
  %v73 = vld [vmem:[%s1 + $0x28] sm:$0xf]
  %v74 = vld [vmem:[%s1 + $0x2c] sm:$0xf]
  %v75 = vld [vmem:[%s1 + $0x30] sm:$0xf]
  %v76 = vld [vmem:[%s1 + $0x34] sm:$0xf]
  %v77 = vld [vmem:[%s1 + $0x38] sm:$0xf]
  %v78 = vld [vmem:[%s1 + $0x3c] sm:$0xf]
  %v79 = vld [vmem:[%s1 + $0x40] sm:$0xf]
  %v80 = vld [vmem:[%s1 + $0x44] sm:$0xf]
  %v81 = vld [vmem:[%s1 + $0x48] sm:$0xf]
  %v82 = vld [vmem:[%s1 + $0x4c] sm:$0xf]
  %v83 = vld [vmem:[%s1 + $0x50] sm:$0xf]
  %v84 = vld [vmem:[%s1 + $0x54] sm:$0xf]
  %v85 = vld [vmem:[%s1 + $0x58] sm:$0xf]
  %v86 = vld [vmem:[%s1 + $0x5c] sm:$0xf]
  %v87 = vld [vmem:[%s1 + $0x60] sm:$0xf]
  %v88 = vld [vmem:[%s1 + $0x64] sm:$0xf]
  %v89 = vld [vmem:[%s1 + $0x68] sm:$0xf]
  %v90 = vld [vmem:[%s1 + $0x6c] sm:$0xf]
  %v91 = vld [vmem:[%s1 + $0x70] sm:$0xf]
  %v92 = vld [vmem:[%s1 + $0x74] sm:$0xf]
  %v93 = vld [vmem:[%s1 + $0x78] sm:$0xf]
  %v94 = vld [vmem:[%s1 + $0x7c] sm:$0xf]
  %v95 = vld [vmem:[%s1 + $0x80] sm:$0xf]
  %v96 = vld [vmem:[%s1 + $0x84] sm:$0xf]
  %v97 = vld [vmem:[%s1 + $0x88] sm:$0xf]
  %v98 = vld [vmem:[%s1 + $0x8c] sm:$0xf]
  %v99 = vld [vmem:[%s1 + $0x90] sm:$0xf]
  %v100 = vld [vmem:[%s1 + $0x94] sm:$0xf]
  %v101 = vld [vmem:[%s1 + $0x98] sm:$0xf]
  %v102 = vld [vmem:[%s1 + $0x9c] sm:$0xf]
  %v103 = vld [vmem:[%s1 + $0xa0] sm:$0xf]
  %v104 = vld [vmem:[%s1 + $0xa4] sm:$0xf]
  %v105 = vld [vmem:[%s1 + $0xa8] sm:$0xf]
  %v106 = vld [vmem:[%s1 + $0xac] sm:$0xf]
  %v107 = vld [vmem:[%s1 + $0xb0] sm:$0xf]
  %v108 = vld [vmem:[%s1 + $0xb4] sm:$0xf]
  %v109 = vld [vmem:[%s1 + $0xb8] sm:$0xf]
  %v110 = vld [vmem:[%s1 + $0xbc] sm:$0xf]
  %v111 = vld [vmem:[%s1 + $0xc0] sm:$0xf]
  %v112 = vld [vmem:[%s1 + $0xc4] sm:$0xf]
  %v113 = vld [vmem:[%s1 + $0xc8] sm:$0xf]
  %v114 = vld [vmem:[%s1 + $0xcc] sm:$0xf]
  %v115 = vld [vmem:[%s1 + $0xd0] sm:$0xf]
  %v116 = vld [vmem:[%s1 + $0xd4] sm:$0xf]
  %v117 = vld [vmem:[%s1 + $0xd8] sm:$0xf]
  %v118 = vld [vmem:[%s1 + $0xdc] sm:$0xf]
  %v119 = vld [vmem:[%s1 + $0xe0] sm:$0xf]
  %v120 = vld [vmem:[%s1 + $0xe4] sm:$0xf]
  %v121 = vld [vmem:[%s1 + $0xe8] sm:$0xf]
  %v122 = vld [vmem:[%s1 + $0xec] sm:$0xf]
  %v123 = vld [vmem:[%s1 + $0xf0] sm:$0xf]
  %v124 = vld [vmem:[%s1 + $0xf4] sm:$0xf]
  %v125 = vld [vmem:[%s1 + $0xf8] sm:$0xf]
  %v126 = vld [vmem:[%s1 + $0xfc] sm:$0xf]
  %v127 = vld [vmem:[%s1 + $0x100] sm:$0xf]
  %v128 = vld [vmem:[%s1 + $0x104] sm:$0xf]
  %v129 = vld [vmem:[%s1 + $0x108] sm:$0xf]
  %v130 = vld [vmem:[%s1 + $0x10c] sm:$0xf]
  %v131 = vld [vmem:[%s1 + $0x110] sm:$0xf]
  %v132 = vld [vmem:[%s1 + $0x114] sm:$0xf]
  %v133 = vld [vmem:[%s1 + $0x118] sm:$0xf]
  %v134 = vld [vmem:[%s1 + $0x11c] sm:$0xf]
  %v135 = vld [vmem:[%s2] sm:$0x1]
  %v137 = vlaneseq
  %v138 = vshrl.u32 %v137, 7
  %v139 = vsub.s32 0, %v138
  %v140 = vrot.slane %v135, %v139
  %v190 = vunpack.c.l.b16 %v15
  %v191 = vunpack.c.h.b16 %v15
  %v192 = vunpack.c.l.b16 %v16
  %v193 = vunpack.c.h.b16 %v16
  %v194 = vunpack.c.l.b16 %v17
  %v195 = vunpack.c.l.b16 %v18
  %v196 = vunpack.c.h.b16 %v18
  %v197 = vunpack.c.l.b16 %v19
  %v198 = vunpack.c.h.b16 %v19
  %v199 = vunpack.c.l.b16 %v20
  %v200 = vunpack.c.l.b16 %v21
  %v201 = vunpack.c.h.b16 %v21
  %v202 = vunpack.c.l.b16 %v22
  %v203 = vunpack.c.h.b16 %v22
  %v204 = vunpack.c.l.b16 %v23
  %v205 = vunpack.c.l.b16 %v24
  %v206 = vunpack.c.h.b16 %v24
  %v207 = vunpack.c.l.b16 %v25
  %v208 = vunpack.c.h.b16 %v25
  %v209 = vunpack.c.l.b16 %v26
  %v210 = vunpack.c.l.b16 %v27
  %v211 = vunpack.c.h.b16 %v27
  %v212 = vunpack.c.l.b16 %v28
  %v213 = vunpack.c.h.b16 %v28
  %v214 = vunpack.c.l.b16 %v29
  %v215 = vunpack.c.l.b16 %v30
  %v216 = vunpack.c.h.b16 %v30
  %v217 = vunpack.c.l.b16 %v31
  %v218 = vunpack.c.h.b16 %v31
  %v219 = vunpack.c.l.b16 %v32
  %v220 = vunpack.c.l.b16 %v33
  %v221 = vunpack.c.h.b16 %v33
  %v222 = vunpack.c.l.b16 %v34
  %v223 = vunpack.c.h.b16 %v34
  %v224 = vunpack.c.l.b16 %v35
  %v225 = vunpack.c.l.b16 %v36
  %v226 = vunpack.c.h.b16 %v36
  %v227 = vunpack.c.l.b16 %v37
  %v228 = vunpack.c.h.b16 %v37
  %v229 = vunpack.c.l.b16 %v38
  %v230 = vunpack.c.l.b16 %v39
  %v231 = vunpack.c.h.b16 %v39
  %v232 = vunpack.c.l.b16 %v40
  %v233 = vunpack.c.h.b16 %v40
  %v234 = vunpack.c.l.b16 %v41
  %v235 = vunpack.c.l.b16 %v42
  %v236 = vunpack.c.h.b16 %v42
  %v237 = vunpack.c.l.b16 %v43
  %v238 = vunpack.c.h.b16 %v43
  %v239 = vunpack.c.l.b16 %v44
  %v240 = vunpack.c.l.b16 %v45
  %v241 = vunpack.c.h.b16 %v45
  %v242 = vunpack.c.l.b16 %v46
  %v243 = vunpack.c.h.b16 %v46
  %v244 = vunpack.c.l.b16 %v47
  %v245 = vunpack.c.l.b16 %v48
  %v246 = vunpack.c.h.b16 %v48
  %v247 = vunpack.c.l.b16 %v49
  %v248 = vunpack.c.h.b16 %v49
  %v249 = vunpack.c.l.b16 %v50
  %v250 = vunpack.c.l.b16 %v51
  %v251 = vunpack.c.h.b16 %v51
  %v252 = vunpack.c.l.b16 %v52
  %v253 = vunpack.c.h.b16 %v52
  %v254 = vunpack.c.l.b16 %v53
  %v255 = vunpack.c.l.b16 %v54
  %v256 = vunpack.c.h.b16 %v54
  %v257 = vunpack.c.l.b16 %v55
  %v258 = vunpack.c.h.b16 %v55
  %v259 = vunpack.c.l.b16 %v56
  %v260 = vunpack.c.l.b16 %v57
  %v261 = vunpack.c.h.b16 %v57
  %v262 = vunpack.c.l.b16 %v58
  %v263 = vunpack.c.h.b16 %v58
  %v264 = vunpack.c.l.b16 %v59
  %v265 = vunpack.c.l.b16 %v60
  %v266 = vunpack.c.h.b16 %v60
  %v267 = vunpack.c.l.b16 %v61
  %v268 = vunpack.c.h.b16 %v61
  %v269 = vunpack.c.l.b16 %v62
  %v270 = vpack.c.b16 %v195, %v190
  %v271 = vpack.c.b16 %v196, %v191
  %v272 = vpack.c.b16 %v197, %v192
  %v273 = vpack.c.b16 %v198, %v193
  %v274 = vpack.c.b16 %v199, %v194
  %v275 = vpack.c.b16 %v205, %v200
  %v276 = vpack.c.b16 %v206, %v201
  %v277 = vpack.c.b16 %v207, %v202
  %v278 = vpack.c.b16 %v208, %v203
  %v279 = vpack.c.b16 %v209, %v204
  %v280 = vpack.c.b16 %v215, %v210
  %v281 = vpack.c.b16 %v216, %v211
  %v282 = vpack.c.b16 %v217, %v212
  %v283 = vpack.c.b16 %v218, %v213
  %v284 = vpack.c.b16 %v219, %v214
  %v285 = vpack.c.b16 %v225, %v220
  %v286 = vpack.c.b16 %v226, %v221
  %v287 = vpack.c.b16 %v227, %v222
  %v288 = vpack.c.b16 %v228, %v223
  %v289 = vpack.c.b16 %v229, %v224
  %v290 = vpack.c.b16 %v235, %v230
  %v291 = vpack.c.b16 %v236, %v231
  %v292 = vpack.c.b16 %v237, %v232
  %v293 = vpack.c.b16 %v238, %v233
  %v294 = vpack.c.b16 %v239, %v234
  %v295 = vpack.c.b16 %v245, %v240
  %v296 = vpack.c.b16 %v246, %v241
  %v297 = vpack.c.b16 %v247, %v242
  %v298 = vpack.c.b16 %v248, %v243
  %v299 = vpack.c.b16 %v249, %v244
  %v300 = vpack.c.b16 %v255, %v250
  %v301 = vpack.c.b16 %v256, %v251
  %v302 = vpack.c.b16 %v257, %v252
  %v303 = vpack.c.b16 %v258, %v253
  %v304 = vpack.c.b16 %v259, %v254
  %v305 = vpack.c.b16 %v265, %v260
  %v306 = vpack.c.b16 %v266, %v261
  %v307 = vpack.c.b16 %v267, %v262
  %v308 = vpack.c.b16 %v268, %v263
  %v309 = vpack.c.b16 %v269, %v264
  %v414 = vunpack.c.l.b16 %v63
  %v415 = vunpack.c.l.b16 %v64
  %v416 = vunpack.c.l.b16 %v65
  %v417 = vunpack.c.l.b16 %v66
  %v418 = vunpack.c.l.b16 %v67
  %v419 = vunpack.c.l.b16 %v68
  %v420 = vunpack.c.l.b16 %v69
  %v421 = vunpack.c.l.b16 %v70
  %v422 = vunpack.c.l.b16 %v71
  %v423 = vunpack.c.l.b16 %v72
  %v424 = vunpack.c.l.b16 %v73
  %v425 = vunpack.c.l.b16 %v74
  %v426 = vunpack.c.l.b16 %v75
  %v427 = vunpack.c.l.b16 %v76
  %v428 = vunpack.c.l.b16 %v77
  %v429 = vunpack.c.l.b16 %v78
  %v430 = vunpack.c.l.b16 %v79
  %v431 = vunpack.c.l.b16 %v80
  %v432 = vunpack.c.l.b16 %v81
  %v433 = vunpack.c.l.b16 %v82
  %v434 = vunpack.c.l.b16 %v83
  %v435 = vunpack.c.l.b16 %v84
  %v436 = vunpack.c.l.b16 %v85
  %v437 = vunpack.c.l.b16 %v86
  %v438 = vunpack.c.l.b16 %v87
  %v439 = vunpack.c.l.b16 %v88
  %v440 = vunpack.c.l.b16 %v89
  %v441 = vunpack.c.l.b16 %v90
  %v442 = vunpack.c.l.b16 %v91
  %v443 = vunpack.c.l.b16 %v92
  %v444 = vunpack.c.l.b16 %v93
  %v445 = vunpack.c.l.b16 %v94
  %v446 = vunpack.c.l.b16 %v95
  %v447 = vunpack.c.l.b16 %v96
  %v448 = vunpack.c.l.b16 %v97
  %v449 = vunpack.c.l.b16 %v98
  %v450 = vunpack.c.l.b16 %v99
  %v451 = vunpack.c.l.b16 %v100
  %v452 = vunpack.c.l.b16 %v101
  %v453 = vunpack.c.l.b16 %v102
  %v454 = vunpack.c.l.b16 %v103
  %v455 = vunpack.c.l.b16 %v104
  %v456 = vunpack.c.l.b16 %v105
  %v457 = vunpack.c.l.b16 %v106
  %v458 = vunpack.c.l.b16 %v107
  %v459 = vunpack.c.l.b16 %v108
  %v460 = vunpack.c.l.b16 %v109
  %v461 = vunpack.c.l.b16 %v110
  %v462 = vunpack.c.l.b16 %v111
  %v463 = vunpack.c.l.b16 %v112
  %v464 = vunpack.c.l.b16 %v113
  %v465 = vunpack.c.l.b16 %v114
  %v466 = vunpack.c.l.b16 %v115
  %v467 = vunpack.c.l.b16 %v116
  %v468 = vunpack.c.l.b16 %v117
  %v469 = vunpack.c.l.b16 %v118
  %v470 = vunpack.c.l.b16 %v119
  %v471 = vunpack.c.l.b16 %v120
  %v472 = vunpack.c.l.b16 %v121
  %v473 = vunpack.c.l.b16 %v122
  %v474 = vunpack.c.l.b16 %v123
  %v475 = vunpack.c.l.b16 %v124
  %v476 = vunpack.c.l.b16 %v125
  %v477 = vunpack.c.l.b16 %v126
  %v478 = vunpack.c.l.b16 %v127
  %v479 = vunpack.c.l.b16 %v128
  %v480 = vunpack.c.l.b16 %v129
  %v481 = vunpack.c.l.b16 %v130
  %v482 = vunpack.c.l.b16 %v131
  %v483 = vunpack.c.l.b16 %v132
  %v484 = vunpack.c.l.b16 %v133
  %v485 = vunpack.c.l.b16 %v134
  %v486 = vpack.c.b16 %v415, %v414
  %v487 = vpack.c.b16 %v417, %v416
  %v488 = vpack.c.b16 %v419, %v418
  %v489 = vpack.c.b16 %v421, %v420
  %v490 = vpack.c.b16 %v423, %v422
  %v491 = vpack.c.b16 %v425, %v424
  %v492 = vpack.c.b16 %v427, %v426
  %v493 = vpack.c.b16 %v429, %v428
  %v494 = vpack.c.b16 %v431, %v430
  %v495 = vpack.c.b16 %v433, %v432
  %v496 = vpack.c.b16 %v435, %v434
  %v497 = vpack.c.b16 %v437, %v436
  %v498 = vpack.c.b16 %v439, %v438
  %v499 = vpack.c.b16 %v441, %v440
  %v500 = vpack.c.b16 %v443, %v442
  %v501 = vpack.c.b16 %v445, %v444
  %v502 = vpack.c.b16 %v447, %v446
  %v503 = vpack.c.b16 %v449, %v448
  %v504 = vpack.c.b16 %v451, %v450
  %v505 = vpack.c.b16 %v453, %v452
  %v506 = vpack.c.b16 %v455, %v454
  %v507 = vpack.c.b16 %v457, %v456
  %v508 = vpack.c.b16 %v459, %v458
  %v509 = vpack.c.b16 %v461, %v460
  %v510 = vpack.c.b16 %v463, %v462
  %v511 = vpack.c.b16 %v465, %v464
  %v512 = vpack.c.b16 %v467, %v466
  %v513 = vpack.c.b16 %v469, %v468
  %v514 = vpack.c.b16 %v471, %v470
  %v515 = vpack.c.b16 %v473, %v472
  %v516 = vpack.c.b16 %v475, %v474
  %v517 = vpack.c.b16 %v477, %v476
  %v518 = vpack.c.b16 %v479, %v478
  %v519 = vpack.c.b16 %v481, %v480
  %v520 = vpack.c.b16 %v483, %v482
  %v521 = vpack.c.b16 %v485, %v484
  %vm558 = vcmask 523264
  %v560 = vsel %vm558, %v274, 0
  %v563 = vsel %vm558, %v279, 0
  %v566 = vsel %vm558, %v284, 0
  %v569 = vsel %vm558, %v289, 0
  %v572 = vsel %vm558, %v294, 0
  %v575 = vsel %vm558, %v299, 0
  %v578 = vsel %vm558, %v304, 0
  %v581 = vsel %vm558, %v309, 0
  %583 = vmatprep.subr.bf16.mxu0 0
  %584 = vmatpush1.bf16.msra.mxu0 %v486
  %585 = vmatprep.subr.bf16.mxu0 0
  %586 = vmatpush1.bf16.msra.mxu0 %v487
  %587 = vmatprep.subr.bf16.mxu0 0
  %588 = vmatpush1.bf16.msra.mxu0 %v488
  %589 = vmatprep.subr.bf16.mxu0 0
  %590 = vmatpush1.bf16.msra.mxu0 %v489
  %591 = vmatprep.subr.bf16.mxu0 0
  %592 = vmatpush1.bf16.msra.mxu0 %v490
  %593 = vmatprep.subr.bf16.mxu0 0
  %594 = vmatpush1.bf16.msra.mxu0 %v491
  %595 = vmatprep.subr.bf16.mxu0 0
  %596 = vmatpush1.bf16.msra.mxu0 %v492
  %597 = vmatprep.subr.bf16.mxu0 0
  %598 = vmatpush1.bf16.msra.mxu0 %v493
  %599 = vmatprep.subr.bf16.mxu0 0
  %600 = vmatpush1.bf16.msra.mxu0 %v494
  %601 = vmatprep.subr.bf16.mxu0 0
  %602 = vmatpush1.bf16.msra.mxu0 %v495
  %603 = vmatprep.subr.bf16.mxu0 0
  %604 = vmatpush1.bf16.msra.mxu0 %v496
  %605 = vmatprep.subr.bf16.mxu0 0
  %606 = vmatpush1.bf16.msra.mxu0 %v497
  %607 = vmatprep.subr.bf16.mxu0 0
  %608 = vmatpush1.bf16.msra.mxu0 %v498
  %609 = vmatprep.subr.bf16.mxu0 0
  %610 = vmatpush1.bf16.msra.mxu0 %v499
  %611 = vmatprep.subr.bf16.mxu0 0
  %612 = vmatpush1.bf16.msra.mxu0 %v500
  %613 = vmatprep.subr.bf16.mxu0 0
  %614 = vmatpush1.bf16.msra.mxu0 %v501
  %615 = vmatprep.mubr.bf16.mxu0 %v271
  %616 = vmatmul.mubr.bf16.gmra.mrb[0].mxu0 %v270
  %v617 = vpop.f32.mrb[0].mxu0
  %v618 = vadd.f32 %v140, %v617
  %v619 = vpop.f32.mrb[0].mxu0
  %v620 = vpop.f32.mrb[0].mxu0
  %v621 = vadd.f32 %v140, %v620
  %v622 = vpop.f32.mrb[0].mxu0
  %623 = vmatprep.mubr.bf16.mxu0 %v276
  %624 = vmatmul.mubr.bf16.gmra.mrb[0].mxu0 %v275
  %v625 = vpop.f32.mrb[0].mxu0
  %v626 = vadd.f32 %v140, %v625
  %v627 = vpop.f32.mrb[0].mxu0
  %v628 = vpop.f32.mrb[0].mxu0
  %v629 = vadd.f32 %v140, %v628
  %v630 = vpop.f32.mrb[0].mxu0
  %631 = vmatprep.mubr.bf16.mxu0 %v281
  %632 = vmatmul.mubr.bf16.gmra.mrb[0].mxu0 %v280
  %v633 = vpop.f32.mrb[0].mxu0
  %v634 = vadd.f32 %v140, %v633
  %v635 = vpop.f32.mrb[0].mxu0
  %v636 = vpop.f32.mrb[0].mxu0
  %v637 = vadd.f32 %v140, %v636
  %v638 = vpop.f32.mrb[0].mxu0
  %639 = vmatprep.mubr.bf16.mxu0 %v286
  %640 = vmatmul.mubr.bf16.gmra.mrb[0].mxu0 %v285
  %v641 = vpop.f32.mrb[0].mxu0
  %v642 = vadd.f32 %v140, %v641
  %v643 = vpop.f32.mrb[0].mxu0
  %v644 = vpop.f32.mrb[0].mxu0
  %v645 = vadd.f32 %v140, %v644
  %v646 = vpop.f32.mrb[0].mxu0
  %647 = vmatprep.mubr.bf16.mxu0 %v291
  %648 = vmatmul.mubr.bf16.gmra.mrb[0].mxu0 %v290
  %v649 = vpop.f32.mrb[0].mxu0
  %v650 = vadd.f32 %v140, %v649
  %v651 = vpop.f32.mrb[0].mxu0
  %v652 = vpop.f32.mrb[0].mxu0
  %v653 = vadd.f32 %v140, %v652
  %v654 = vpop.f32.mrb[0].mxu0
  %655 = vmatprep.mubr.bf16.mxu0 %v296
  %656 = vmatmul.mubr.bf16.gmra.mrb[0].mxu0 %v295
  %v657 = vpop.f32.mrb[0].mxu0
  %v658 = vadd.f32 %v140, %v657
  %v659 = vpop.f32.mrb[0].mxu0
  %v660 = vpop.f32.mrb[0].mxu0
  %v661 = vadd.f32 %v140, %v660
  %v662 = vpop.f32.mrb[0].mxu0
  %663 = vmatprep.mubr.bf16.mxu0 %v301
  %664 = vmatmul.mubr.bf16.gmra.mrb[0].mxu0 %v300
  %v665 = vpop.f32.mrb[0].mxu0
  %v666 = vadd.f32 %v140, %v665
  %v667 = vpop.f32.mrb[0].mxu0
  %v668 = vpop.f32.mrb[0].mxu0
  %v669 = vadd.f32 %v140, %v668
  %v670 = vpop.f32.mrb[0].mxu0
  %671 = vmatprep.mubr.bf16.mxu0 %v306
  %672 = vmatmul.mubr.bf16.gmra.mrb[0].mxu0 %v305
  %v673 = vpop.f32.mrb[0].mxu0
  %v674 = vadd.f32 %v140, %v673
  %v675 = vpop.f32.mrb[0].mxu0
  %v676 = vpop.f32.mrb[0].mxu0
  %v677 = vadd.f32 %v140, %v676
  %v678 = vpop.f32.mrb[0].mxu0
  %679 = vdwg.mxu0
  %680 = vmatprep.subr.bf16.mxu0 0
  %681 = vmatpush1.bf16.msra.mxu0 %v502
  %682 = vmatprep.subr.bf16.mxu0 0
  %683 = vmatpush1.bf16.msra.mxu0 %v503
  %684 = vmatprep.subr.bf16.mxu0 0
  %685 = vmatpush1.bf16.msra.mxu0 %v504
  %686 = vmatprep.subr.bf16.mxu0 0
  %687 = vmatpush1.bf16.msra.mxu0 %v505
  %688 = vmatprep.subr.bf16.mxu0 0
  %689 = vmatpush1.bf16.msra.mxu0 %v506
  %690 = vmatprep.subr.bf16.mxu0 0
  %691 = vmatpush1.bf16.msra.mxu0 %v507
  %692 = vmatprep.subr.bf16.mxu0 0
  %693 = vmatpush1.bf16.msra.mxu0 %v508
  %694 = vmatprep.subr.bf16.mxu0 0
  %695 = vmatpush1.bf16.msra.mxu0 %v509
  %696 = vmatprep.subr.bf16.mxu0 0
  %697 = vmatpush1.bf16.msra.mxu0 %v510
  %698 = vmatprep.subr.bf16.mxu0 0
  %699 = vmatpush1.bf16.msra.mxu0 %v511
  %700 = vmatprep.subr.bf16.mxu0 0
  %701 = vmatpush1.bf16.msra.mxu0 %v512
  %702 = vmatprep.subr.bf16.mxu0 0
  %703 = vmatpush1.bf16.msra.mxu0 %v513
  %704 = vmatprep.subr.bf16.mxu0 0
  %705 = vmatpush1.bf16.msra.mxu0 %v514
  %706 = vmatprep.subr.bf16.mxu0 0
  %707 = vmatpush1.bf16.msra.mxu0 %v515
  %708 = vmatprep.subr.bf16.mxu0 0
  %709 = vmatpush1.bf16.msra.mxu0 %v516
  %710 = vmatprep.subr.bf16.mxu0 0
  %711 = vmatpush1.bf16.msra.mxu0 %v517
  %712 = vmatprep.mubr.bf16.mxu0 %v273
  %713 = vmatmul.mubr.bf16.gmra.mrb[0].mxu0 %v272
  %v714 = vpop.f32.mrb[0].mxu0
  %v715 = vadd.f32 %v618, %v714
  %v716 = vpop.f32.mrb[0].mxu0
  %v717 = vpop.f32.mrb[0].mxu0
  %v718 = vadd.f32 %v621, %v717
  %v719 = vpop.f32.mrb[0].mxu0
  %720 = vmatprep.mubr.bf16.mxu0 %v278
  %721 = vmatmul.mubr.bf16.gmra.mrb[0].mxu0 %v277
  %v722 = vpop.f32.mrb[0].mxu0
  %v723 = vadd.f32 %v626, %v722
  %v724 = vpop.f32.mrb[0].mxu0
  %v725 = vpop.f32.mrb[0].mxu0
  %v726 = vadd.f32 %v629, %v725
  %v727 = vpop.f32.mrb[0].mxu0
  %728 = vmatprep.mubr.bf16.mxu0 %v283
  %729 = vmatmul.mubr.bf16.gmra.mrb[0].mxu0 %v282
  %v730 = vpop.f32.mrb[0].mxu0
  %v731 = vadd.f32 %v634, %v730
  %v732 = vpop.f32.mrb[0].mxu0
  %v733 = vpop.f32.mrb[0].mxu0
  %v734 = vadd.f32 %v637, %v733
  %v735 = vpop.f32.mrb[0].mxu0
  %736 = vmatprep.mubr.bf16.mxu0 %v288
  %737 = vmatmul.mubr.bf16.gmra.mrb[0].mxu0 %v287
  %v738 = vpop.f32.mrb[0].mxu0
  %v739 = vadd.f32 %v642, %v738
  %v740 = vpop.f32.mrb[0].mxu0
  %v741 = vpop.f32.mrb[0].mxu0
  %v742 = vadd.f32 %v645, %v741
  %v743 = vpop.f32.mrb[0].mxu0
  %744 = vmatprep.mubr.bf16.mxu0 %v293
  %745 = vmatmul.mubr.bf16.gmra.mrb[0].mxu0 %v292
  %v746 = vpop.f32.mrb[0].mxu0
  %v747 = vadd.f32 %v650, %v746
  %v748 = vpop.f32.mrb[0].mxu0
  %v749 = vpop.f32.mrb[0].mxu0
  %v750 = vadd.f32 %v653, %v749
  %v751 = vpop.f32.mrb[0].mxu0
  %752 = vmatprep.mubr.bf16.mxu0 %v298
  %753 = vmatmul.mubr.bf16.gmra.mrb[0].mxu0 %v297
  %v754 = vpop.f32.mrb[0].mxu0
  %v755 = vadd.f32 %v658, %v754
  %v756 = vpop.f32.mrb[0].mxu0
  %v757 = vpop.f32.mrb[0].mxu0
  %v758 = vadd.f32 %v661, %v757
  %v759 = vpop.f32.mrb[0].mxu0
  %760 = vmatprep.mubr.bf16.mxu0 %v303
  %761 = vmatmul.mubr.bf16.gmra.mrb[0].mxu0 %v302
  %v762 = vpop.f32.mrb[0].mxu0
  %v763 = vadd.f32 %v666, %v762
  %v764 = vpop.f32.mrb[0].mxu0
  %v765 = vpop.f32.mrb[0].mxu0
  %v766 = vadd.f32 %v669, %v765
  %v767 = vpop.f32.mrb[0].mxu0
  %768 = vmatprep.mubr.bf16.mxu0 %v308
  %769 = vmatmul.mubr.bf16.gmra.mrb[0].mxu0 %v307
  %v770 = vpop.f32.mrb[0].mxu0
  %v771 = vadd.f32 %v674, %v770
  %v772 = vpop.f32.mrb[0].mxu0
  %v773 = vpop.f32.mrb[0].mxu0
  %v774 = vadd.f32 %v677, %v773
  %v775 = vpop.f32.mrb[0].mxu0
  %776 = vdwg.mxu0
  %777 = vmatprep.subr.bf16.mxu0 0
  %778 = vmatpush1.bf16.msra.mxu0 %v518
  %779 = vmatprep.subr.bf16.mxu0 0
  %780 = vmatpush1.bf16.msra.mxu0 %v519
  %781 = vmatprep.subr.bf16.mxu0 0
  %782 = vmatpush1.bf16.msra.mxu0 %v520
  %783 = vmatprep.subr.bf16.mxu0 0
  %784 = vmatpush1.bf16.msra.mxu0 %v521
  %785 = vmatprep.subr.bf16.mxu0 0
  %786 = vmatpush1.bf16.msra.mxu0 0
  %787 = vmatprep.subr.bf16.mxu0 0
  %788 = vmatpush1.bf16.msra.mxu0 0
  %789 = vmatprep.subr.bf16.mxu0 0
  %790 = vmatpush1.bf16.msra.mxu0 0
  %791 = vmatprep.subr.bf16.mxu0 0
  %792 = vmatpush1.bf16.msra.mxu0 0
  %793 = vmatprep.subr.bf16.mxu0 0
  %794 = vmatpush1.bf16.msra.mxu0 0
  %795 = vmatprep.subr.bf16.mxu0 0
  %796 = vmatpush1.bf16.msra.mxu0 0
  %797 = vmatprep.subr.bf16.mxu0 0
  %798 = vmatpush1.bf16.msra.mxu0 0
  %799 = vmatprep.subr.bf16.mxu0 0
  %800 = vmatpush1.bf16.msra.mxu0 0
  %801 = vmatprep.subr.bf16.mxu0 0
  %802 = vmatpush1.bf16.msra.mxu0 0
  %803 = vmatprep.subr.bf16.mxu0 0
  %804 = vmatpush1.bf16.msra.mxu0 0
  %805 = vmatprep.subr.bf16.mxu0 0
  %806 = vmatpush1.bf16.msra.mxu0 0
  %807 = vmatprep.subr.bf16.mxu0 0
  %808 = vmatpush1.bf16.msra.mxu0 0
  %809 = vmatprep.mubr.bf16.mxu0 0
  %810 = vmatmul.mubr.bf16.gmra.mrb[0].mxu0 %v560
  %v811 = vpop.f32.mrb[0].mxu0
  %v812 = vadd.f32 %v715, %v811
  %v813 = vpop.f32.mrb[0].mxu0
  %v814 = vpop.f32.mrb[0].mxu0
  %v815 = vadd.f32 %v718, %v814
  %v816 = vpop.f32.mrb[0].mxu0
  %817 = vmatprep.mubr.bf16.mxu0 0
  %818 = vmatmul.mubr.bf16.gmra.mrb[0].mxu0 %v563
  %v819 = vpop.f32.mrb[0].mxu0
  %v820 = vadd.f32 %v723, %v819
  %v821 = vpop.f32.mrb[0].mxu0
  %v822 = vpop.f32.mrb[0].mxu0
  %v823 = vadd.f32 %v726, %v822
  %v824 = vpop.f32.mrb[0].mxu0
  %825 = vmatprep.mubr.bf16.mxu0 0
  %826 = vmatmul.mubr.bf16.gmra.mrb[0].mxu0 %v566
  %v827 = vpop.f32.mrb[0].mxu0
  %v828 = vadd.f32 %v731, %v827
  %v829 = vpop.f32.mrb[0].mxu0
  %v830 = vpop.f32.mrb[0].mxu0
  %v831 = vadd.f32 %v734, %v830
  %v832 = vpop.f32.mrb[0].mxu0
  %833 = vmatprep.mubr.bf16.mxu0 0
  %834 = vmatmul.mubr.bf16.gmra.mrb[0].mxu0 %v569
  %v835 = vpop.f32.mrb[0].mxu0
  %v836 = vadd.f32 %v739, %v835
  %v837 = vpop.f32.mrb[0].mxu0
  %v838 = vpop.f32.mrb[0].mxu0
  %v839 = vadd.f32 %v742, %v838
  %v840 = vpop.f32.mrb[0].mxu0
  %841 = vmatprep.mubr.bf16.mxu0 0
  %842 = vmatmul.mubr.bf16.gmra.mrb[0].mxu0 %v572
  %v843 = vpop.f32.mrb[0].mxu0
  %v844 = vadd.f32 %v747, %v843
  %v845 = vpop.f32.mrb[0].mxu0
  %v846 = vpop.f32.mrb[0].mxu0
  %v847 = vadd.f32 %v750, %v846
  %v848 = vpop.f32.mrb[0].mxu0
  %849 = vmatprep.mubr.bf16.mxu0 0
  %850 = vmatmul.mubr.bf16.gmra.mrb[0].mxu0 %v575
  %v851 = vpop.f32.mrb[0].mxu0
  %v852 = vadd.f32 %v755, %v851
  %v853 = vpop.f32.mrb[0].mxu0
  %v854 = vpop.f32.mrb[0].mxu0
  %v855 = vadd.f32 %v758, %v854
  %v856 = vpop.f32.mrb[0].mxu0
  %857 = vmatprep.mubr.bf16.mxu0 0
  %858 = vmatmul.mubr.bf16.gmra.mrb[0].mxu0 %v578
  %v859 = vpop.f32.mrb[0].mxu0
  %v860 = vadd.f32 %v763, %v859
  %v861 = vpop.f32.mrb[0].mxu0
  %v862 = vpop.f32.mrb[0].mxu0
  %v863 = vadd.f32 %v766, %v862
  %v864 = vpop.f32.mrb[0].mxu0
  %865 = vmatprep.mubr.bf16.mxu0 0
  %866 = vmatmul.mubr.bf16.gmra.mrb[0].mxu0 %v581
  %v867 = vpop.f32.mrb[0].mxu0
  %v868 = vadd.f32 %v771, %v867
  %v869 = vpop.f32.mrb[0].mxu0
  %v870 = vpop.f32.mrb[0].mxu0
  %v871 = vadd.f32 %v774, %v870
  %v872 = vpop.f32.mrb[0].mxu0
  %873 = vdwg.mxu0
  %v874 = vmax.f32 %v812, 0.0
  %v875 = vmax.f32 %v815, 0.0
  %v876 = vmax.f32 %v820, 0.0
  %v877 = vmax.f32 %v823, 0.0
  %v878 = vmax.f32 %v828, 0.0
  %v879 = vmax.f32 %v831, 0.0
  %v880 = vmax.f32 %v836, 0.0
  %v881 = vmax.f32 %v839, 0.0
  %v882 = vmax.f32 %v844, 0.0
  %v883 = vmax.f32 %v847, 0.0
  %v884 = vmax.f32 %v852, 0.0
  %v885 = vmax.f32 %v855, 0.0
  %v886 = vmax.f32 %v860, 0.0
  %v887 = vmax.f32 %v863, 0.0
  %v888 = vmax.f32 %v868, 0.0
  %v889 = vmax.f32 %v871, 0.0
  %v890 = vpack.c.bf16 %v875, %v874
  %v891 = vpack.c.bf16 %v877, %v876
  %v892 = vpack.c.bf16 %v879, %v878
  %v893 = vpack.c.bf16 %v881, %v880
  %v894 = vpack.c.bf16 %v883, %v882
  %v895 = vpack.c.bf16 %v885, %v884
  %v896 = vpack.c.bf16 %v887, %v886
  %v897 = vpack.c.bf16 %v889, %v888
  %v906 = vunpack.c.l.b16 %v890
  %v907 = vunpack.c.h.b16 %v890
  %v908 = vunpack.c.l.b16 %v891
  %v909 = vunpack.c.h.b16 %v891
  %v910 = vunpack.c.l.b16 %v892
  %v911 = vunpack.c.h.b16 %v892
  %v912 = vunpack.c.l.b16 %v893
  %v913 = vunpack.c.h.b16 %v893
  %v914 = vunpack.c.l.b16 %v894
  %v915 = vunpack.c.h.b16 %v894
  %v916 = vunpack.c.l.b16 %v895
  %v917 = vunpack.c.h.b16 %v895
  %v918 = vunpack.c.l.b16 %v896
  %v919 = vunpack.c.h.b16 %v896
  %v920 = vunpack.c.l.b16 %v897
  %v921 = vunpack.c.h.b16 %v897
  %v922 = vpack.c.b16 %v906, %v906
  %v923 = vpack.c.b16 %v907, %v907
  %v924 = vpack.c.b16 %v908, %v908
  %v925 = vpack.c.b16 %v909, %v909
  %v926 = vpack.c.b16 %v910, %v910
  %v927 = vpack.c.b16 %v911, %v911
  %v928 = vpack.c.b16 %v912, %v912
  %v929 = vpack.c.b16 %v913, %v913
  %v930 = vpack.c.b16 %v914, %v914
  %v931 = vpack.c.b16 %v915, %v915
  %v932 = vpack.c.b16 %v916, %v916
  %v933 = vpack.c.b16 %v917, %v917
  %v934 = vpack.c.b16 %v918, %v918
  %v935 = vpack.c.b16 %v919, %v919
  %v936 = vpack.c.b16 %v920, %v920
  %v937 = vpack.c.b16 %v921, %v921
  %vm954 = vcmask 519168
  %955 = vst.msk [vmem:[%s3] sm:$0xf] %vm954, %v922
  %956 = vst.msk [vmem:[%s3 + $0x4] sm:$0xf] %vm954, %v923
  %957 = vst.msk [vmem:[%s3 + $0x8] sm:$0xf] %vm954, %v924
  %958 = vst.msk [vmem:[%s3 + $0xc] sm:$0xf] %vm954, %v925
  %959 = vst.msk [vmem:[%s3 + $0x10] sm:$0xf] %vm954, %v926
  %960 = vst.msk [vmem:[%s3 + $0x14] sm:$0xf] %vm954, %v927
  %961 = vst.msk [vmem:[%s3 + $0x18] sm:$0xf] %vm954, %v928
  %962 = vst.msk [vmem:[%s3 + $0x1c] sm:$0xf] %vm954, %v929
  %963 = vst.msk [vmem:[%s3 + $0x20] sm:$0xf] %vm954, %v930
  %964 = vst.msk [vmem:[%s3 + $0x24] sm:$0xf] %vm954, %v931
  %965 = vst.msk [vmem:[%s3 + $0x28] sm:$0xf] %vm954, %v932
  %966 = vst.msk [vmem:[%s3 + $0x2c] sm:$0xf] %vm954, %v933
  %967 = vst.msk [vmem:[%s3 + $0x30] sm:$0xf] %vm954, %v934
  %968 = vst.msk [vmem:[%s3 + $0x34] sm:$0xf] %vm954, %v935
  %969 = vst.msk [vmem:[%s3 + $0x38] sm:$0xf] %vm954, %v936
  %970 = vst.msk [vmem:[%s3 + $0x3c] sm:$0xf] %vm954, %v937
  // Predicated region
  $region14: #{retinanet_forward.14} parent=0 // pred_check
    _
  $region15: #{retinanet_forward.14} parent=0 // pred_check_branch
    %972 = sbr.rel (0) target = $region17
  $region16: #{retinanet_forward.14} parent=0 // pred_region
    _
  $region17: #{retinanet_forward.14} parent=0 // pred_fallthru
    _
  // Predicated region
  $region18: #{retinanet_forward.14} parent=0 // pred_check
    _
  $region19: #{retinanet_forward.14} parent=0 // pred_check_branch
    %974 = sbr.rel (0) target = $region21
  $region20: #{retinanet_forward.14} parent=0 // pred_region
    _
  $region21: #{retinanet_forward.14} parent=0 // pred_fallthru
    _

// kernel: retinanet_forward.15
$region0: #{retinanet_forward.15}
  #allocation0 [shape = 'u32[]', space=smem, size = 0x4, offset = 0x4, fixed_abs, tag = 'smem constant byte address 0x4 - core index']
  #allocation1 [shape = 'u32[144,128]{1,0:T(1,128)}', space=vmem, size = 0x12000, scoped, tag = 'internal scratch']
  %s0 = inlined_call_operand.vmem [shape: bf16[32,576], index: 0, kind: input, shape index: {}]
  %s1 = inlined_call_operand.vmem [shape: bf16[576,128], index: 1, kind: input, shape index: {}]
  %s2 = inlined_call_operand.vmem [shape: f32[1,128], index: 2, kind: input, shape index: {}]
  %s3 = inlined_call_operand.vmem [shape: bf16[32,128], index: 3, kind: output, shape index: {}]
  %s4 = sld [smem:[#allocation0]]
  $region22: #{retinanet_forward.15} parent=0
    _
  %s6 = ssub.s32 1, %s4
  %s7 = scalar_select 0, %s6, %s4
  // Predicated region
  $region2: #{retinanet_forward.15} parent=0 // pred_check
    _
  $region3: #{retinanet_forward.15} parent=0 // pred_check_branch
    %9 = sbr.rel (0) target = $region5
  $region4: #{retinanet_forward.15} parent=0 // pred_region
    _
  $region5: #{retinanet_forward.15} parent=0 // pred_fallthru
    _
  // Predicated region
  $region6: #{retinanet_forward.15} parent=0 // pred_check
    _
  $region7: #{retinanet_forward.15} parent=0 // pred_check_branch
    %11 = sbr.rel (0) target = $region9
  $region8: #{retinanet_forward.15} parent=0 // pred_region
    _
  $region9: #{retinanet_forward.15} parent=0 // pred_fallthru
    _
  // Predicated region
  $region10: #{retinanet_forward.15} parent=0 // pred_check
    _
  $region11: #{retinanet_forward.15} parent=0 // pred_check_branch
    %13 = sbr.rel (0) target = $region13
  $region12: #{retinanet_forward.15} parent=0 // pred_region
    _
  $region13: #{retinanet_forward.15} parent=0 // pred_fallthru
    _
  %v15 = vld [vmem:[%s0] sm:$0xff]
  %v16 = vld [vmem:[%s0 + $0x8] sm:$0xff]
  %v17 = vld [vmem:[%s0 + $0x10] sm:$0xf]
  %v18 = vld [vmem:[%s0 + $0x14] sm:$0xff]
  %v19 = vld [vmem:[%s0 + $0x1c] sm:$0xff]
  %v20 = vld [vmem:[%s0 + $0x24] sm:$0xf]
  %v21 = vld [vmem:[%s0 + $0x28] sm:$0xff]
  %v22 = vld [vmem:[%s0 + $0x30] sm:$0xff]
  %v23 = vld [vmem:[%s0 + $0x38] sm:$0xf]
  %v24 = vld [vmem:[%s0 + $0x3c] sm:$0xff]
  %v25 = vld [vmem:[%s0 + $0x44] sm:$0xff]
  %v26 = vld [vmem:[%s0 + $0x4c] sm:$0xf]
  %v27 = vld [vmem:[%s1] sm:$0xf]
  %v28 = vld [vmem:[%s1 + $0x4] sm:$0xf]
  %v29 = vld [vmem:[%s1 + $0x8] sm:$0xf]
  %v30 = vld [vmem:[%s1 + $0xc] sm:$0xf]
  %v31 = vld [vmem:[%s1 + $0x10] sm:$0xf]
  %v32 = vld [vmem:[%s1 + $0x14] sm:$0xf]
  %v33 = vld [vmem:[%s1 + $0x18] sm:$0xf]
  %v34 = vld [vmem:[%s1 + $0x1c] sm:$0xf]
  %v35 = vld [vmem:[%s1 + $0x20] sm:$0xf]
  %v36 = vld [vmem:[%s1 + $0x24] sm:$0xf]
  %v37 = vld [vmem:[%s1 + $0x28] sm:$0xf]
  %v38 = vld [vmem:[%s1 + $0x2c] sm:$0xf]
  %v39 = vld [vmem:[%s1 + $0x30] sm:$0xf]
  %v40 = vld [vmem:[%s1 + $0x34] sm:$0xf]
  %v41 = vld [vmem:[%s1 + $0x38] sm:$0xf]
  %v42 = vld [vmem:[%s1 + $0x3c] sm:$0xf]
  %v43 = vld [vmem:[%s1 + $0x40] sm:$0xf]
  %v44 = vld [vmem:[%s1 + $0x44] sm:$0xf]
  %v45 = vld [vmem:[%s1 + $0x48] sm:$0xf]
  %v46 = vld [vmem:[%s1 + $0x4c] sm:$0xf]
  %v47 = vld [vmem:[%s1 + $0x50] sm:$0xf]
  %v48 = vld [vmem:[%s1 + $0x54] sm:$0xf]
  %v49 = vld [vmem:[%s1 + $0x58] sm:$0xf]
  %v50 = vld [vmem:[%s1 + $0x5c] sm:$0xf]
  %v51 = vld [vmem:[%s1 + $0x60] sm:$0xf]
  %v52 = vld [vmem:[%s1 + $0x64] sm:$0xf]
  %v53 = vld [vmem:[%s1 + $0x68] sm:$0xf]
  %v54 = vld [vmem:[%s1 + $0x6c] sm:$0xf]
  %v55 = vld [vmem:[%s1 + $0x70] sm:$0xf]
  %v56 = vld [vmem:[%s1 + $0x74] sm:$0xf]
  %v57 = vld [vmem:[%s1 + $0x78] sm:$0xf]
  %v58 = vld [vmem:[%s1 + $0x7c] sm:$0xf]
  %v59 = vld [vmem:[%s1 + $0x80] sm:$0xf]
  %v60 = vld [vmem:[%s1 + $0x84] sm:$0xf]
  %v61 = vld [vmem:[%s1 + $0x88] sm:$0xf]
  %v62 = vld [vmem:[%s1 + $0x8c] sm:$0xf]
  %v63 = vld [vmem:[%s1 + $0x90] sm:$0xf]
  %v64 = vld [vmem:[%s1 + $0x94] sm:$0xf]
  %v65 = vld [vmem:[%s1 + $0x98] sm:$0xf]
  %v66 = vld [vmem:[%s1 + $0x9c] sm:$0xf]
  %v67 = vld [vmem:[%s1 + $0xa0] sm:$0xf]
  %v68 = vld [vmem:[%s1 + $0xa4] sm:$0xf]
  %v69 = vld [vmem:[%s1 + $0xa8] sm:$0xf]
  %v70 = vld [vmem:[%s1 + $0xac] sm:$0xf]
  %v71 = vld [vmem:[%s1 + $0xb0] sm:$0xf]
  %v72 = vld [vmem:[%s1 + $0xb4] sm:$0xf]
  %v73 = vld [vmem:[%s1 + $0xb8] sm:$0xf]
  %v74 = vld [vmem:[%s1 + $0xbc] sm:$0xf]
  %v75 = vld [vmem:[%s1 + $0xc0] sm:$0xf]
  %v76 = vld [vmem:[%s1 + $0xc4] sm:$0xf]
  %v77 = vld [vmem:[%s1 + $0xc8] sm:$0xf]
  %v78 = vld [vmem:[%s1 + $0xcc] sm:$0xf]
  %v79 = vld [vmem:[%s1 + $0xd0] sm:$0xf]
  %v80 = vld [vmem:[%s1 + $0xd4] sm:$0xf]
  %v81 = vld [vmem:[%s1 + $0xd8] sm:$0xf]
  %v82 = vld [vmem:[%s1 + $0xdc] sm:$0xf]
  %v83 = vld [vmem:[%s1 + $0xe0] sm:$0xf]
  %v84 = vld [vmem:[%s1 + $0xe4] sm:$0xf]
  %v85 = vld [vmem:[%s1 + $0xe8] sm:$0xf]
  %v86 = vld [vmem:[%s1 + $0xec] sm:$0xf]
  %v87 = vld [vmem:[%s1 + $0xf0] sm:$0xf]
  %v88 = vld [vmem:[%s1 + $0xf4] sm:$0xf]
  %v89 = vld [vmem:[%s1 + $0xf8] sm:$0xf]
  %v90 = vld [vmem:[%s1 + $0xfc] sm:$0xf]
  %v91 = vld [vmem:[%s1 + $0x100] sm:$0xf]
  %v92 = vld [vmem:[%s1 + $0x104] sm:$0xf]
  %v93 = vld [vmem:[%s1 + $0x108] sm:$0xf]
  %v94 = vld [vmem:[%s1 + $0x10c] sm:$0xf]
  %v95 = vld [vmem:[%s1 + $0x110] sm:$0xf]
  %v96 = vld [vmem:[%s1 + $0x114] sm:$0xf]
  %v97 = vld [vmem:[%s1 + $0x118] sm:$0xf]
  %v98 = vld [vmem:[%s1 + $0x11c] sm:$0xf]
  %v99 = vld [vmem:[%s2] sm:$0x1]
  %v101 = vlaneseq
  %v102 = vshrl.u32 %v101, 7
  %v103 = vsub.s32 0, %v102
  %v104 = vrot.slane %v99, %v103
  %v118 = vunpack.c.l.b16 %v15
  %v119 = vunpack.c.h.b16 %v15
  %v120 = vunpack.c.l.b16 %v16
  %v121 = vunpack.c.h.b16 %v16
  %v122 = vunpack.c.l.b16 %v17
  %v123 = vunpack.c.l.b16 %v18
  %v124 = vunpack.c.h.b16 %v18
  %v125 = vunpack.c.l.b16 %v19
  %v126 = vunpack.c.h.b16 %v19
  %v127 = vunpack.c.l.b16 %v20
  %v128 = vunpack.c.l.b16 %v21
  %v129 = vunpack.c.h.b16 %v21
  %v130 = vunpack.c.l.b16 %v22
  %v131 = vunpack.c.h.b16 %v22
  %v132 = vunpack.c.l.b16 %v23
  %v133 = vunpack.c.l.b16 %v24
  %v134 = vunpack.c.h.b16 %v24
  %v135 = vunpack.c.l.b16 %v25
  %v136 = vunpack.c.h.b16 %v25
  %v137 = vunpack.c.l.b16 %v26
  %v138 = vpack.c.b16 %v123, %v118
  %v139 = vpack.c.b16 %v124, %v119
  %v140 = vpack.c.b16 %v125, %v120
  %v141 = vpack.c.b16 %v126, %v121
  %v142 = vpack.c.b16 %v127, %v122
  %v143 = vpack.c.b16 %v133, %v128
  %v144 = vpack.c.b16 %v134, %v129
  %v145 = vpack.c.b16 %v135, %v130
  %v146 = vpack.c.b16 %v136, %v131
  %v147 = vpack.c.b16 %v137, %v132
  %v228 = vunpack.c.l.b16 %v27
  %v229 = vunpack.c.l.b16 %v28
  %v230 = vunpack.c.l.b16 %v29
  %v231 = vunpack.c.l.b16 %v30
  %v232 = vunpack.c.l.b16 %v31
  %v233 = vunpack.c.l.b16 %v32
  %v234 = vunpack.c.l.b16 %v33
  %v235 = vunpack.c.l.b16 %v34
  %v236 = vunpack.c.l.b16 %v35
  %v237 = vunpack.c.l.b16 %v36
  %v238 = vunpack.c.l.b16 %v37
  %v239 = vunpack.c.l.b16 %v38
  %v240 = vunpack.c.l.b16 %v39
  %v241 = vunpack.c.l.b16 %v40
  %v242 = vunpack.c.l.b16 %v41
  %v243 = vunpack.c.l.b16 %v42
  %v244 = vunpack.c.l.b16 %v43
  %v245 = vunpack.c.l.b16 %v44
  %v246 = vunpack.c.l.b16 %v45
  %v247 = vunpack.c.l.b16 %v46
  %v248 = vunpack.c.l.b16 %v47
  %v249 = vunpack.c.l.b16 %v48
  %v250 = vunpack.c.l.b16 %v49
  %v251 = vunpack.c.l.b16 %v50
  %v252 = vunpack.c.l.b16 %v51
  %v253 = vunpack.c.l.b16 %v52
  %v254 = vunpack.c.l.b16 %v53
  %v255 = vunpack.c.l.b16 %v54
  %v256 = vunpack.c.l.b16 %v55
  %v257 = vunpack.c.l.b16 %v56
  %v258 = vunpack.c.l.b16 %v57
  %v259 = vunpack.c.l.b16 %v58
  %v260 = vunpack.c.l.b16 %v59
  %v261 = vunpack.c.l.b16 %v60
  %v262 = vunpack.c.l.b16 %v61
  %v263 = vunpack.c.l.b16 %v62
  %v264 = vunpack.c.l.b16 %v63
  %v265 = vunpack.c.l.b16 %v64
  %v266 = vunpack.c.l.b16 %v65
  %v267 = vunpack.c.l.b16 %v66
  %v268 = vunpack.c.l.b16 %v67
  %v269 = vunpack.c.l.b16 %v68
  %v270 = vunpack.c.l.b16 %v69
  %v271 = vunpack.c.l.b16 %v70
  %v272 = vunpack.c.l.b16 %v71
  %v273 = vunpack.c.l.b16 %v72
  %v274 = vunpack.c.l.b16 %v73
  %v275 = vunpack.c.l.b16 %v74
  %v276 = vunpack.c.l.b16 %v75
  %v277 = vunpack.c.l.b16 %v76
  %v278 = vunpack.c.l.b16 %v77
  %v279 = vunpack.c.l.b16 %v78
  %v280 = vunpack.c.l.b16 %v79
  %v281 = vunpack.c.l.b16 %v80
  %v282 = vunpack.c.l.b16 %v81
  %v283 = vunpack.c.l.b16 %v82
  %v284 = vunpack.c.l.b16 %v83
  %v285 = vunpack.c.l.b16 %v84
  %v286 = vunpack.c.l.b16 %v85
  %v287 = vunpack.c.l.b16 %v86
  %v288 = vunpack.c.l.b16 %v87
  %v289 = vunpack.c.l.b16 %v88
  %v290 = vunpack.c.l.b16 %v89
  %v291 = vunpack.c.l.b16 %v90
  %v292 = vunpack.c.l.b16 %v91
  %v293 = vunpack.c.l.b16 %v92
  %v294 = vunpack.c.l.b16 %v93
  %v295 = vunpack.c.l.b16 %v94
  %v296 = vunpack.c.l.b16 %v95
  %v297 = vunpack.c.l.b16 %v96
  %v298 = vunpack.c.l.b16 %v97
  %v299 = vunpack.c.l.b16 %v98
  %v300 = vpack.c.b16 %v229, %v228
  %v301 = vpack.c.b16 %v231, %v230
  %v302 = vpack.c.b16 %v233, %v232
  %v303 = vpack.c.b16 %v235, %v234
  %v304 = vpack.c.b16 %v237, %v236
  %v305 = vpack.c.b16 %v239, %v238
  %v306 = vpack.c.b16 %v241, %v240
  %v307 = vpack.c.b16 %v243, %v242
  %v308 = vpack.c.b16 %v245, %v244
  %v309 = vpack.c.b16 %v247, %v246
  %v310 = vpack.c.b16 %v249, %v248
  %v311 = vpack.c.b16 %v251, %v250
  %v312 = vpack.c.b16 %v253, %v252
  %v313 = vpack.c.b16 %v255, %v254
  %v314 = vpack.c.b16 %v257, %v256
  %v315 = vpack.c.b16 %v259, %v258
  %v316 = vpack.c.b16 %v261, %v260
  %v317 = vpack.c.b16 %v263, %v262
  %v318 = vpack.c.b16 %v265, %v264
  %v319 = vpack.c.b16 %v267, %v266
  %v320 = vpack.c.b16 %v269, %v268
  %v321 = vpack.c.b16 %v271, %v270
  %v322 = vpack.c.b16 %v273, %v272
  %v323 = vpack.c.b16 %v275, %v274
  %v324 = vpack.c.b16 %v277, %v276
  %v325 = vpack.c.b16 %v279, %v278
  %v326 = vpack.c.b16 %v281, %v280
  %v327 = vpack.c.b16 %v283, %v282
  %v328 = vpack.c.b16 %v285, %v284
  %v329 = vpack.c.b16 %v287, %v286
  %v330 = vpack.c.b16 %v289, %v288
  %v331 = vpack.c.b16 %v291, %v290
  %v332 = vpack.c.b16 %v293, %v292
  %v333 = vpack.c.b16 %v295, %v294
  %v334 = vpack.c.b16 %v297, %v296
  %v335 = vpack.c.b16 %v299, %v298
  %vm372 = vcmask 523264
  %v374 = vsel %vm372, %v142, 0
  %v377 = vsel %vm372, %v147, 0
  %379 = vmatprep.subr.bf16.mxu0 0
  %380 = vmatpush1.bf16.msra.mxu0 %v300
  %381 = vmatprep.subr.bf16.mxu0 0
  %382 = vmatpush1.bf16.msra.mxu0 %v301
  %383 = vmatprep.subr.bf16.mxu0 0
  %384 = vmatpush1.bf16.msra.mxu0 %v302
  %385 = vmatprep.subr.bf16.mxu0 0
  %386 = vmatpush1.bf16.msra.mxu0 %v303
  %387 = vmatprep.subr.bf16.mxu0 0
  %388 = vmatpush1.bf16.msra.mxu0 %v304
  %389 = vmatprep.subr.bf16.mxu0 0
  %390 = vmatpush1.bf16.msra.mxu0 %v305
  %391 = vmatprep.subr.bf16.mxu0 0
  %392 = vmatpush1.bf16.msra.mxu0 %v306
  %393 = vmatprep.subr.bf16.mxu0 0
  %394 = vmatpush1.bf16.msra.mxu0 %v307
  %395 = vmatprep.subr.bf16.mxu0 0
  %396 = vmatpush1.bf16.msra.mxu0 %v308
  %397 = vmatprep.subr.bf16.mxu0 0
  %398 = vmatpush1.bf16.msra.mxu0 %v309
  %399 = vmatprep.subr.bf16.mxu0 0
  %400 = vmatpush1.bf16.msra.mxu0 %v310
  %401 = vmatprep.subr.bf16.mxu0 0
  %402 = vmatpush1.bf16.msra.mxu0 %v311
  %403 = vmatprep.subr.bf16.mxu0 0
  %404 = vmatpush1.bf16.msra.mxu0 %v312
  %405 = vmatprep.subr.bf16.mxu0 0
  %406 = vmatpush1.bf16.msra.mxu0 %v313
  %407 = vmatprep.subr.bf16.mxu0 0
  %408 = vmatpush1.bf16.msra.mxu0 %v314
  %409 = vmatprep.subr.bf16.mxu0 0
  %410 = vmatpush1.bf16.msra.mxu0 %v315
  %411 = vmatprep.mubr.bf16.mxu0 %v139
  %412 = vmatmul.mubr.bf16.gmra.mrb[0].mxu0 %v138
  %v413 = vpop.f32.mrb[0].mxu0
  %v414 = vadd.f32 %v104, %v413
  %v415 = vpop.f32.mrb[0].mxu0
  %v416 = vpop.f32.mrb[0].mxu0
  %v417 = vadd.f32 %v104, %v416
  %v418 = vpop.f32.mrb[0].mxu0
  %419 = vmatprep.mubr.bf16.mxu0 %v144
  %420 = vmatmul.mubr.bf16.gmra.mrb[0].mxu0 %v143
  %v421 = vpop.f32.mrb[0].mxu0
  %v422 = vadd.f32 %v104, %v421
  %v423 = vpop.f32.mrb[0].mxu0
  %v424 = vpop.f32.mrb[0].mxu0
  %v425 = vadd.f32 %v104, %v424
  %v426 = vpop.f32.mrb[0].mxu0
  %427 = vdwg.mxu0
  %428 = vmatprep.subr.bf16.mxu0 0
  %429 = vmatpush1.bf16.msra.mxu0 %v316
  %430 = vmatprep.subr.bf16.mxu0 0
  %431 = vmatpush1.bf16.msra.mxu0 %v317
  %432 = vmatprep.subr.bf16.mxu0 0
  %433 = vmatpush1.bf16.msra.mxu0 %v318
  %434 = vmatprep.subr.bf16.mxu0 0
  %435 = vmatpush1.bf16.msra.mxu0 %v319
  %436 = vmatprep.subr.bf16.mxu0 0
  %437 = vmatpush1.bf16.msra.mxu0 %v320
  %438 = vmatprep.subr.bf16.mxu0 0
  %439 = vmatpush1.bf16.msra.mxu0 %v321
  %440 = vmatprep.subr.bf16.mxu0 0
  %441 = vmatpush1.bf16.msra.mxu0 %v322
  %442 = vmatprep.subr.bf16.mxu0 0
  %443 = vmatpush1.bf16.msra.mxu0 %v323
  %444 = vmatprep.subr.bf16.mxu0 0
  %445 = vmatpush1.bf16.msra.mxu0 %v324
  %446 = vmatprep.subr.bf16.mxu0 0
  %447 = vmatpush1.bf16.msra.mxu0 %v325
  %448 = vmatprep.subr.bf16.mxu0 0
  %449 = vmatpush1.bf16.msra.mxu0 %v326
  %450 = vmatprep.subr.bf16.mxu0 0
  %451 = vmatpush1.bf16.msra.mxu0 %v327
  %452 = vmatprep.subr.bf16.mxu0 0
  %453 = vmatpush1.bf16.msra.mxu0 %v328
  %454 = vmatprep.subr.bf16.mxu0 0
  %455 = vmatpush1.bf16.msra.mxu0 %v329
  %456 = vmatprep.subr.bf16.mxu0 0
  %457 = vmatpush1.bf16.msra.mxu0 %v330
  %458 = vmatprep.subr.bf16.mxu0 0
  %459 = vmatpush1.bf16.msra.mxu0 %v331
  %460 = vmatprep.mubr.bf16.mxu0 %v141
  %461 = vmatmul.mubr.bf16.gmra.mrb[0].mxu0 %v140
  %v462 = vpop.f32.mrb[0].mxu0
  %v463 = vadd.f32 %v414, %v462
  %v464 = vpop.f32.mrb[0].mxu0
  %v465 = vpop.f32.mrb[0].mxu0
  %v466 = vadd.f32 %v417, %v465
  %v467 = vpop.f32.mrb[0].mxu0
  %468 = vmatprep.mubr.bf16.mxu0 %v146
  %469 = vmatmul.mubr.bf16.gmra.mrb[0].mxu0 %v145
  %v470 = vpop.f32.mrb[0].mxu0
  %v471 = vadd.f32 %v422, %v470
  %v472 = vpop.f32.mrb[0].mxu0
  %v473 = vpop.f32.mrb[0].mxu0
  %v474 = vadd.f32 %v425, %v473
  %v475 = vpop.f32.mrb[0].mxu0
  %476 = vdwg.mxu0
  %477 = vmatprep.subr.bf16.mxu0 0
  %478 = vmatpush1.bf16.msra.mxu0 %v332
  %479 = vmatprep.subr.bf16.mxu0 0
  %480 = vmatpush1.bf16.msra.mxu0 %v333
  %481 = vmatprep.subr.bf16.mxu0 0
  %482 = vmatpush1.bf16.msra.mxu0 %v334
  %483 = vmatprep.subr.bf16.mxu0 0
  %484 = vmatpush1.bf16.msra.mxu0 %v335
  %485 = vmatprep.subr.bf16.mxu0 0
  %486 = vmatpush1.bf16.msra.mxu0 0
  %487 = vmatprep.subr.bf16.mxu0 0
  %488 = vmatpush1.bf16.msra.mxu0 0
  %489 = vmatprep.subr.bf16.mxu0 0
  %490 = vmatpush1.bf16.msra.mxu0 0
  %491 = vmatprep.subr.bf16.mxu0 0
  %492 = vmatpush1.bf16.msra.mxu0 0
  %493 = vmatprep.subr.bf16.mxu0 0
  %494 = vmatpush1.bf16.msra.mxu0 0
  %495 = vmatprep.subr.bf16.mxu0 0
  %496 = vmatpush1.bf16.msra.mxu0 0
  %497 = vmatprep.subr.bf16.mxu0 0
  %498 = vmatpush1.bf16.msra.mxu0 0
  %499 = vmatprep.subr.bf16.mxu0 0
  %500 = vmatpush1.bf16.msra.mxu0 0
  %501 = vmatprep.subr.bf16.mxu0 0
  %502 = vmatpush1.bf16.msra.mxu0 0
  %503 = vmatprep.subr.bf16.mxu0 0
  %504 = vmatpush1.bf16.msra.mxu0 0
  %505 = vmatprep.subr.bf16.mxu0 0
  %506 = vmatpush1.bf16.msra.mxu0 0
  %507 = vmatprep.subr.bf16.mxu0 0
  %508 = vmatpush1.bf16.msra.mxu0 0
  %509 = vmatprep.mubr.bf16.mxu0 0
  %510 = vmatmul.mubr.bf16.gmra.mrb[0].mxu0 %v374
  %v511 = vpop.f32.mrb[0].mxu0
  %v512 = vadd.f32 %v463, %v511
  %v513 = vpop.f32.mrb[0].mxu0
  %v514 = vpop.f32.mrb[0].mxu0
  %v515 = vadd.f32 %v466, %v514
  %v516 = vpop.f32.mrb[0].mxu0
  %517 = vmatprep.mubr.bf16.mxu0 0
  %518 = vmatmul.mubr.bf16.gmra.mrb[0].mxu0 %v377
  %v519 = vpop.f32.mrb[0].mxu0
  %v520 = vadd.f32 %v471, %v519
  %v521 = vpop.f32.mrb[0].mxu0
  %v522 = vpop.f32.mrb[0].mxu0
  %v523 = vadd.f32 %v474, %v522
  %v524 = vpop.f32.mrb[0].mxu0
  %525 = vdwg.mxu0
  %v526 = vmax.f32 %v512, 0.0
  %v527 = vmax.f32 %v515, 0.0
  %v528 = vmax.f32 %v520, 0.0
  %v529 = vmax.f32 %v523, 0.0
  %v530 = vpack.c.bf16 %v527, %v526
  %v531 = vpack.c.bf16 %v529, %v528
  %v534 = vunpack.c.l.b16 %v530
  %v535 = vunpack.c.h.b16 %v530
  %v536 = vunpack.c.l.b16 %v531
  %v537 = vunpack.c.h.b16 %v531
  %v538 = vpack.c.b16 %v534, %v534
  %v539 = vpack.c.b16 %v535, %v535
  %v540 = vpack.c.b16 %v536, %v536
  %v541 = vpack.c.b16 %v537, %v537
  %546 = vst [vmem:[%s3] sm:$0xf] %v538
  %547 = vst [vmem:[%s3 + $0x4] sm:$0xf] %v539
  %548 = vst [vmem:[%s3 + $0x8] sm:$0xf] %v540
  %549 = vst [vmem:[%s3 + $0xc] sm:$0xf] %v541
  // Predicated region
  $region14: #{retinanet_forward.15} parent=0 // pred_check
    _
  $region15: #{retinanet_forward.15} parent=0 // pred_check_branch
    %551 = sbr.rel (0) target = $region17
  $region16: #{retinanet_forward.15} parent=0 // pred_region
    _
  $region17: #{retinanet_forward.15} parent=0 // pred_fallthru
    _
  // Predicated region
  $region18: #{retinanet_forward.15} parent=0 // pred_check
    _
  $region19: #{retinanet_forward.15} parent=0 // pred_check_branch
    %553 = sbr.rel (0) target = $region21
  $region20: #{retinanet_forward.15} parent=0 // pred_region
    _
  $region21: #{retinanet_forward.15} parent=0 // pred_fallthru
    _

// kernel: retinanet_forward.17
$region0: #{retinanet_forward.17}
  #allocation0 [shape = 'u32[]', space=smem, size = 0x4, offset = 0x4, fixed_abs, tag = 'smem constant byte address 0x4 - core index']
  #allocation1 [shape = 'u32[144,128]{1,0:T(1,128)}', space=vmem, size = 0x12000, scoped, tag = 'internal scratch']
  %s0 = inlined_call_operand.vmem [shape: bf16[8,128], index: 0, kind: input, shape index: {}]
  %s1 = inlined_call_operand.vmem [shape: bf16[128,64], index: 1, kind: input, shape index: {}]
  %s2 = inlined_call_operand.vmem [shape: f32[1,64], index: 2, kind: input, shape index: {}]
  %s3 = inlined_call_operand.vmem [shape: bf16[8,64], index: 3, kind: output, shape index: {}]
  %s4 = sld [smem:[#allocation0]]
  $region22: #{retinanet_forward.17} parent=0
    _
  %s6 = ssub.s32 1, %s4
  %s7 = scalar_select 0, %s6, %s4
  // Predicated region
  $region2: #{retinanet_forward.17} parent=0 // pred_check
    _
  $region3: #{retinanet_forward.17} parent=0 // pred_check_branch
    %9 = sbr.rel (0) target = $region5
  $region4: #{retinanet_forward.17} parent=0 // pred_region
    _
  $region5: #{retinanet_forward.17} parent=0 // pred_fallthru
    _
  // Predicated region
  $region6: #{retinanet_forward.17} parent=0 // pred_check
    _
  $region7: #{retinanet_forward.17} parent=0 // pred_check_branch
    %11 = sbr.rel (0) target = $region9
  $region8: #{retinanet_forward.17} parent=0 // pred_region
    _
  $region9: #{retinanet_forward.17} parent=0 // pred_fallthru
    _
  // Predicated region
  $region10: #{retinanet_forward.17} parent=0 // pred_check
    _
  $region11: #{retinanet_forward.17} parent=0 // pred_check_branch
    %13 = sbr.rel (0) target = $region13
  $region12: #{retinanet_forward.17} parent=0 // pred_region
    _
  $region13: #{retinanet_forward.17} parent=0 // pred_fallthru
    _
  %v15 = vld [vmem:[%s0] sm:$0xf]
  %v16 = vld [vmem:[%s1] sm:$0xf]
  %v17 = vld [vmem:[%s1 + $0x4] sm:$0xf]
  %v18 = vld [vmem:[%s1 + $0x8] sm:$0xf]
  %v19 = vld [vmem:[%s1 + $0xc] sm:$0xf]
  %v20 = vld [vmem:[%s1 + $0x10] sm:$0xf]
  %v21 = vld [vmem:[%s1 + $0x14] sm:$0xf]
  %v22 = vld [vmem:[%s1 + $0x18] sm:$0xf]
  %v23 = vld [vmem:[%s1 + $0x1c] sm:$0xf]
  %v24 = vld [vmem:[%s1 + $0x20] sm:$0xf]
  %v25 = vld [vmem:[%s1 + $0x24] sm:$0xf]
  %v26 = vld [vmem:[%s1 + $0x28] sm:$0xf]
  %v27 = vld [vmem:[%s1 + $0x2c] sm:$0xf]
  %v28 = vld [vmem:[%s1 + $0x30] sm:$0xf]
  %v29 = vld [vmem:[%s1 + $0x34] sm:$0xf]
  %v30 = vld [vmem:[%s1 + $0x38] sm:$0xf]
  %v31 = vld [vmem:[%s1 + $0x3c] sm:$0xf]
  %v32 = vld [vmem:[%s2] sm:$0x1]
  %v34 = vlaneseq
  %v35 = vshrl.u32 %v34, 7
  %v36 = vsub.s32 0, %v35
  %v37 = vrot.slane %v32, %v36
  %v55 = vunpack.c.l.b16 %v16
  %v56 = vunpack.c.l.b16 %v17
  %v57 = vunpack.c.l.b16 %v18
  %v58 = vunpack.c.l.b16 %v19
  %v59 = vunpack.c.l.b16 %v20
  %v60 = vunpack.c.l.b16 %v21
  %v61 = vunpack.c.l.b16 %v22
  %v62 = vunpack.c.l.b16 %v23
  %v63 = vunpack.c.l.b16 %v24
  %v64 = vunpack.c.l.b16 %v25
  %v65 = vunpack.c.l.b16 %v26
  %v66 = vunpack.c.l.b16 %v27
  %v67 = vunpack.c.l.b16 %v28
  %v68 = vunpack.c.l.b16 %v29
  %v69 = vunpack.c.l.b16 %v30
  %v70 = vunpack.c.l.b16 %v31
  %v71 = vpack.c.b16 %v56, %v55
  %v72 = vpack.c.b16 %v58, %v57
  %v73 = vpack.c.b16 %v60, %v59
  %v74 = vpack.c.b16 %v62, %v61
  %v75 = vpack.c.b16 %v64, %v63
  %v76 = vpack.c.b16 %v66, %v65
  %v77 = vpack.c.b16 %v68, %v67
  %v78 = vpack.c.b16 %v70, %v69
  %87 = vmatprep.subr.bf16.mxu0 0
  %88 = vmatpush1.bf16.msra.mxu0 %v71
  %89 = vmatprep.subr.bf16.mxu0 0
  %90 = vmatpush1.bf16.msra.mxu0 %v72
  %91 = vmatprep.subr.bf16.mxu0 0
  %92 = vmatpush1.bf16.msra.mxu0 %v73
  %93 = vmatprep.subr.bf16.mxu0 0
  %94 = vmatpush1.bf16.msra.mxu0 %v74
  %95 = vmatprep.subr.bf16.mxu0 0
  %96 = vmatpush1.bf16.msra.mxu0 %v75
  %97 = vmatprep.subr.bf16.mxu0 0
  %98 = vmatpush1.bf16.msra.mxu0 %v76
  %99 = vmatprep.subr.bf16.mxu0 0
  %100 = vmatpush1.bf16.msra.mxu0 %v77
  %101 = vmatprep.subr.bf16.mxu0 0
  %102 = vmatpush1.bf16.msra.mxu0 %v78
  %103 = vmatprep.subr.bf16.mxu0 0
  %104 = vmatpush1.bf16.msra.mxu0 0
  %105 = vmatprep.subr.bf16.mxu0 0
  %106 = vmatpush1.bf16.msra.mxu0 0
  %107 = vmatprep.subr.bf16.mxu0 0
  %108 = vmatpush1.bf16.msra.mxu0 0
  %109 = vmatprep.subr.bf16.mxu0 0
  %110 = vmatpush1.bf16.msra.mxu0 0
  %111 = vmatprep.subr.bf16.mxu0 0
  %112 = vmatpush1.bf16.msra.mxu0 0
  %113 = vmatprep.subr.bf16.mxu0 0
  %114 = vmatpush1.bf16.msra.mxu0 0
  %115 = vmatprep.subr.bf16.mxu0 0
  %116 = vmatpush1.bf16.msra.mxu0 0
  %117 = vmatprep.subr.bf16.mxu0 0
  %118 = vmatpush1.bf16.msra.mxu0 0
  %119 = vmatprep.mubr.bf16.mxu0 0
  %120 = vmatmul.mubr.bf16.gmra.mrb[0].mxu0 %v15
  %v121 = vpop.f32.mrb[0].mxu0
  %v122 = vadd.f32 %v37, %v121
  %v123 = vpop.f32.mrb[0].mxu0
  %v124 = vpop.f32.mrb[0].mxu0
  %v125 = vpop.f32.mrb[0].mxu0
  %126 = vdwg.mxu0
  %v127 = vpack.c.bf16 %v122, %v122
  %vm128 = vcmask 519168
  %129 = vst.msk [vmem:[%s3] sm:$0xf] %vm128, %v127
  // Predicated region
  $region14: #{retinanet_forward.17} parent=0 // pred_check
    _
  $region15: #{retinanet_forward.17} parent=0 // pred_check_branch
    %131 = sbr.rel (0) target = $region17
  $region16: #{retinanet_forward.17} parent=0 // pred_region
    _
  $region17: #{retinanet_forward.17} parent=0 // pred_fallthru
    _
  // Predicated region
  $region18: #{retinanet_forward.17} parent=0 // pred_check
    _
  $region19: #{retinanet_forward.17} parent=0 // pred_check_branch
    %133 = sbr.rel (0) target = $region21
  $region20: #{retinanet_forward.17} parent=0 // pred_region
    _
  $region21: #{retinanet_forward.17} parent=0 // pred_fallthru
    _

// kernel: retinanet_forward.16
$region0: #{retinanet_forward.16}
  #allocation0 [shape = 'u32[]', space=smem, size = 0x4, offset = 0x4, fixed_abs, tag = 'smem constant byte address 0x4 - core index']
  #allocation1 [shape = 'u32[144,128]{1,0:T(1,128)}', space=vmem, size = 0x12000, scoped, tag = 'internal scratch']
  %s0 = inlined_call_operand.vmem [shape: bf16[8,1152], index: 0, kind: input, shape index: {}]
  %s1 = inlined_call_operand.vmem [shape: bf16[1152,128], index: 1, kind: input, shape index: {}]
  %s2 = inlined_call_operand.vmem [shape: f32[1,128], index: 2, kind: input, shape index: {}]
  %s3 = inlined_call_operand.vmem [shape: bf16[8,128], index: 3, kind: output, shape index: {}]
  %s4 = sld [smem:[#allocation0]]
  $region22: #{retinanet_forward.16} parent=0
    _
  %s6 = ssub.s32 1, %s4
  %s7 = scalar_select 0, %s6, %s4
  // Predicated region
  $region2: #{retinanet_forward.16} parent=0 // pred_check
    _
  $region3: #{retinanet_forward.16} parent=0 // pred_check_branch
    %9 = sbr.rel (0) target = $region5
  $region4: #{retinanet_forward.16} parent=0 // pred_region
    _
  $region5: #{retinanet_forward.16} parent=0 // pred_fallthru
    _
  // Predicated region
  $region6: #{retinanet_forward.16} parent=0 // pred_check
    _
  $region7: #{retinanet_forward.16} parent=0 // pred_check_branch
    %11 = sbr.rel (0) target = $region9
  $region8: #{retinanet_forward.16} parent=0 // pred_region
    _
  $region9: #{retinanet_forward.16} parent=0 // pred_fallthru
    _
  // Predicated region
  $region10: #{retinanet_forward.16} parent=0 // pred_check
    _
  $region11: #{retinanet_forward.16} parent=0 // pred_check_branch
    %13 = sbr.rel (0) target = $region13
  $region12: #{retinanet_forward.16} parent=0 // pred_region
    _
  $region13: #{retinanet_forward.16} parent=0 // pred_fallthru
    _
  %v15 = vld [vmem:[%s0] sm:$0xff]
  %v16 = vld [vmem:[%s0 + $0x8] sm:$0xff]
  %v17 = vld [vmem:[%s0 + $0x10] sm:$0xff]
  %v18 = vld [vmem:[%s0 + $0x18] sm:$0xff]
  %v19 = vld [vmem:[%s0 + $0x20] sm:$0xf]
  %v20 = vld [vmem:[%s1] sm:$0xf]
  %v21 = vld [vmem:[%s1 + $0x4] sm:$0xf]
  %v22 = vld [vmem:[%s1 + $0x8] sm:$0xf]
  %v23 = vld [vmem:[%s1 + $0xc] sm:$0xf]
  %v24 = vld [vmem:[%s1 + $0x10] sm:$0xf]
  %v25 = vld [vmem:[%s1 + $0x14] sm:$0xf]
  %v26 = vld [vmem:[%s1 + $0x18] sm:$0xf]
  %v27 = vld [vmem:[%s1 + $0x1c] sm:$0xf]
  %v28 = vld [vmem:[%s1 + $0x20] sm:$0xf]
  %v29 = vld [vmem:[%s1 + $0x24] sm:$0xf]
  %v30 = vld [vmem:[%s1 + $0x28] sm:$0xf]
  %v31 = vld [vmem:[%s1 + $0x2c] sm:$0xf]
  %v32 = vld [vmem:[%s1 + $0x30] sm:$0xf]
  %v33 = vld [vmem:[%s1 + $0x34] sm:$0xf]
  %v34 = vld [vmem:[%s1 + $0x38] sm:$0xf]
  %v35 = vld [vmem:[%s1 + $0x3c] sm:$0xf]
  %v36 = vld [vmem:[%s1 + $0x40] sm:$0xf]
  %v37 = vld [vmem:[%s1 + $0x44] sm:$0xf]
  %v38 = vld [vmem:[%s1 + $0x48] sm:$0xf]
  %v39 = vld [vmem:[%s1 + $0x4c] sm:$0xf]
  %v40 = vld [vmem:[%s1 + $0x50] sm:$0xf]
  %v41 = vld [vmem:[%s1 + $0x54] sm:$0xf]
  %v42 = vld [vmem:[%s1 + $0x58] sm:$0xf]
  %v43 = vld [vmem:[%s1 + $0x5c] sm:$0xf]
  %v44 = vld [vmem:[%s1 + $0x60] sm:$0xf]
  %v45 = vld [vmem:[%s1 + $0x64] sm:$0xf]
  %v46 = vld [vmem:[%s1 + $0x68] sm:$0xf]
  %v47 = vld [vmem:[%s1 + $0x6c] sm:$0xf]
  %v48 = vld [vmem:[%s1 + $0x70] sm:$0xf]
  %v49 = vld [vmem:[%s1 + $0x74] sm:$0xf]
  %v50 = vld [vmem:[%s1 + $0x78] sm:$0xf]
  %v51 = vld [vmem:[%s1 + $0x7c] sm:$0xf]
  %v52 = vld [vmem:[%s1 + $0x80] sm:$0xf]
  %v53 = vld [vmem:[%s1 + $0x84] sm:$0xf]
  %v54 = vld [vmem:[%s1 + $0x88] sm:$0xf]
  %v55 = vld [vmem:[%s1 + $0x8c] sm:$0xf]
  %v56 = vld [vmem:[%s1 + $0x90] sm:$0xf]
  %v57 = vld [vmem:[%s1 + $0x94] sm:$0xf]
  %v58 = vld [vmem:[%s1 + $0x98] sm:$0xf]
  %v59 = vld [vmem:[%s1 + $0x9c] sm:$0xf]
  %v60 = vld [vmem:[%s1 + $0xa0] sm:$0xf]
  %v61 = vld [vmem:[%s1 + $0xa4] sm:$0xf]
  %v62 = vld [vmem:[%s1 + $0xa8] sm:$0xf]
  %v63 = vld [vmem:[%s1 + $0xac] sm:$0xf]
  %v64 = vld [vmem:[%s1 + $0xb0] sm:$0xf]
  %v65 = vld [vmem:[%s1 + $0xb4] sm:$0xf]
  %v66 = vld [vmem:[%s1 + $0xb8] sm:$0xf]
  %v67 = vld [vmem:[%s1 + $0xbc] sm:$0xf]
  %v68 = vld [vmem:[%s1 + $0xc0] sm:$0xf]
  %v69 = vld [vmem:[%s1 + $0xc4] sm:$0xf]
  %v70 = vld [vmem:[%s1 + $0xc8] sm:$0xf]
  %v71 = vld [vmem:[%s1 + $0xcc] sm:$0xf]
  %v72 = vld [vmem:[%s1 + $0xd0] sm:$0xf]
  %v73 = vld [vmem:[%s1 + $0xd4] sm:$0xf]
  %v74 = vld [vmem:[%s1 + $0xd8] sm:$0xf]
  %v75 = vld [vmem:[%s1 + $0xdc] sm:$0xf]
  %v76 = vld [vmem:[%s1 + $0xe0] sm:$0xf]
  %v77 = vld [vmem:[%s1 + $0xe4] sm:$0xf]
  %v78 = vld [vmem:[%s1 + $0xe8] sm:$0xf]
  %v79 = vld [vmem:[%s1 + $0xec] sm:$0xf]
  %v80 = vld [vmem:[%s1 + $0xf0] sm:$0xf]
  %v81 = vld [vmem:[%s1 + $0xf4] sm:$0xf]
  %v82 = vld [vmem:[%s1 + $0xf8] sm:$0xf]
  %v83 = vld [vmem:[%s1 + $0xfc] sm:$0xf]
  %v84 = vld [vmem:[%s1 + $0x100] sm:$0xf]
  %v85 = vld [vmem:[%s1 + $0x104] sm:$0xf]
  %v86 = vld [vmem:[%s1 + $0x108] sm:$0xf]
  %v87 = vld [vmem:[%s1 + $0x10c] sm:$0xf]
  %v88 = vld [vmem:[%s1 + $0x110] sm:$0xf]
  %v89 = vld [vmem:[%s1 + $0x114] sm:$0xf]
  %v90 = vld [vmem:[%s1 + $0x118] sm:$0xf]
  %v91 = vld [vmem:[%s1 + $0x11c] sm:$0xf]
  %v92 = vld [vmem:[%s1 + $0x120] sm:$0xf]
  %v93 = vld [vmem:[%s1 + $0x124] sm:$0xf]
  %v94 = vld [vmem:[%s1 + $0x128] sm:$0xf]
  %v95 = vld [vmem:[%s1 + $0x12c] sm:$0xf]
  %v96 = vld [vmem:[%s1 + $0x130] sm:$0xf]
  %v97 = vld [vmem:[%s1 + $0x134] sm:$0xf]
  %v98 = vld [vmem:[%s1 + $0x138] sm:$0xf]
  %v99 = vld [vmem:[%s1 + $0x13c] sm:$0xf]
  %v100 = vld [vmem:[%s1 + $0x140] sm:$0xf]
  %v101 = vld [vmem:[%s1 + $0x144] sm:$0xf]
  %v102 = vld [vmem:[%s1 + $0x148] sm:$0xf]
  %v103 = vld [vmem:[%s1 + $0x14c] sm:$0xf]
  %v104 = vld [vmem:[%s1 + $0x150] sm:$0xf]
  %v105 = vld [vmem:[%s1 + $0x154] sm:$0xf]
  %v106 = vld [vmem:[%s1 + $0x158] sm:$0xf]
  %v107 = vld [vmem:[%s1 + $0x15c] sm:$0xf]
  %v108 = vld [vmem:[%s1 + $0x160] sm:$0xf]
  %v109 = vld [vmem:[%s1 + $0x164] sm:$0xf]
  %v110 = vld [vmem:[%s1 + $0x168] sm:$0xf]
  %v111 = vld [vmem:[%s1 + $0x16c] sm:$0xf]
  %v112 = vld [vmem:[%s1 + $0x170] sm:$0xf]
  %v113 = vld [vmem:[%s1 + $0x174] sm:$0xf]
  %v114 = vld [vmem:[%s1 + $0x178] sm:$0xf]
  %v115 = vld [vmem:[%s1 + $0x17c] sm:$0xf]
  %v116 = vld [vmem:[%s1 + $0x180] sm:$0xf]
  %v117 = vld [vmem:[%s1 + $0x184] sm:$0xf]
  %v118 = vld [vmem:[%s1 + $0x188] sm:$0xf]
  %v119 = vld [vmem:[%s1 + $0x18c] sm:$0xf]
  %v120 = vld [vmem:[%s1 + $0x190] sm:$0xf]
  %v121 = vld [vmem:[%s1 + $0x194] sm:$0xf]
  %v122 = vld [vmem:[%s1 + $0x198] sm:$0xf]
  %v123 = vld [vmem:[%s1 + $0x19c] sm:$0xf]
  %v124 = vld [vmem:[%s1 + $0x1a0] sm:$0xf]
  %v125 = vld [vmem:[%s1 + $0x1a4] sm:$0xf]
  %v126 = vld [vmem:[%s1 + $0x1a8] sm:$0xf]
  %v127 = vld [vmem:[%s1 + $0x1ac] sm:$0xf]
  %v128 = vld [vmem:[%s1 + $0x1b0] sm:$0xf]
  %v129 = vld [vmem:[%s1 + $0x1b4] sm:$0xf]
  %v130 = vld [vmem:[%s1 + $0x1b8] sm:$0xf]
  %v131 = vld [vmem:[%s1 + $0x1bc] sm:$0xf]
  %v132 = vld [vmem:[%s1 + $0x1c0] sm:$0xf]
  %v133 = vld [vmem:[%s1 + $0x1c4] sm:$0xf]
  %v134 = vld [vmem:[%s1 + $0x1c8] sm:$0xf]
  %v135 = vld [vmem:[%s1 + $0x1cc] sm:$0xf]
  %v136 = vld [vmem:[%s1 + $0x1d0] sm:$0xf]
  %v137 = vld [vmem:[%s1 + $0x1d4] sm:$0xf]
  %v138 = vld [vmem:[%s1 + $0x1d8] sm:$0xf]
  %v139 = vld [vmem:[%s1 + $0x1dc] sm:$0xf]
  %v140 = vld [vmem:[%s1 + $0x1e0] sm:$0xf]
  %v141 = vld [vmem:[%s1 + $0x1e4] sm:$0xf]
  %v142 = vld [vmem:[%s1 + $0x1e8] sm:$0xf]
  %v143 = vld [vmem:[%s1 + $0x1ec] sm:$0xf]
  %v144 = vld [vmem:[%s1 + $0x1f0] sm:$0xf]
  %v145 = vld [vmem:[%s1 + $0x1f4] sm:$0xf]
  %v146 = vld [vmem:[%s1 + $0x1f8] sm:$0xf]
  %v147 = vld [vmem:[%s1 + $0x1fc] sm:$0xf]
  %v148 = vld [vmem:[%s1 + $0x200] sm:$0xf]
  %v149 = vld [vmem:[%s1 + $0x204] sm:$0xf]
  %v150 = vld [vmem:[%s1 + $0x208] sm:$0xf]
  %v151 = vld [vmem:[%s1 + $0x20c] sm:$0xf]
  %v152 = vld [vmem:[%s1 + $0x210] sm:$0xf]
  %v153 = vld [vmem:[%s1 + $0x214] sm:$0xf]
  %v154 = vld [vmem:[%s1 + $0x218] sm:$0xf]
  %v155 = vld [vmem:[%s1 + $0x21c] sm:$0xf]
  %v156 = vld [vmem:[%s1 + $0x220] sm:$0xf]
  %v157 = vld [vmem:[%s1 + $0x224] sm:$0xf]
  %v158 = vld [vmem:[%s1 + $0x228] sm:$0xf]
  %v159 = vld [vmem:[%s1 + $0x22c] sm:$0xf]
  %v160 = vld [vmem:[%s1 + $0x230] sm:$0xf]
  %v161 = vld [vmem:[%s1 + $0x234] sm:$0xf]
  %v162 = vld [vmem:[%s1 + $0x238] sm:$0xf]
  %v163 = vld [vmem:[%s1 + $0x23c] sm:$0xf]
  %v164 = vld [vmem:[%s2] sm:$0x1]
  %v166 = vlaneseq
  %v167 = vshrl.u32 %v166, 7
  %v168 = vsub.s32 0, %v167
  %v169 = vrot.slane %v164, %v168
  %v176 = vunpack.c.l.b16 %v15
  %v177 = vunpack.c.h.b16 %v15
  %v178 = vunpack.c.l.b16 %v16
  %v179 = vunpack.c.h.b16 %v16
  %v180 = vunpack.c.l.b16 %v17
  %v181 = vunpack.c.h.b16 %v17
  %v182 = vunpack.c.l.b16 %v18
  %v183 = vunpack.c.h.b16 %v18
  %v184 = vunpack.c.l.b16 %v19
  %v185 = vpack.c.b16 %v176, %v176
  %v186 = vpack.c.b16 %v177, %v177
  %v187 = vpack.c.b16 %v178, %v178
  %v188 = vpack.c.b16 %v179, %v179
  %v189 = vpack.c.b16 %v180, %v180
  %v190 = vpack.c.b16 %v181, %v181
  %v191 = vpack.c.b16 %v182, %v182
  %v192 = vpack.c.b16 %v183, %v183
  %v193 = vpack.c.b16 %v184, %v184
  %v347 = vunpack.c.l.b16 %v20
  %v348 = vunpack.c.l.b16 %v21
  %v349 = vunpack.c.l.b16 %v22
  %v350 = vunpack.c.l.b16 %v23
  %v351 = vunpack.c.l.b16 %v24
  %v352 = vunpack.c.l.b16 %v25
  %v353 = vunpack.c.l.b16 %v26
  %v354 = vunpack.c.l.b16 %v27
  %v355 = vunpack.c.l.b16 %v28
  %v356 = vunpack.c.l.b16 %v29
  %v357 = vunpack.c.l.b16 %v30
  %v358 = vunpack.c.l.b16 %v31
  %v359 = vunpack.c.l.b16 %v32
  %v360 = vunpack.c.l.b16 %v33
  %v361 = vunpack.c.l.b16 %v34
  %v362 = vunpack.c.l.b16 %v35
  %v363 = vunpack.c.l.b16 %v36
  %v364 = vunpack.c.l.b16 %v37
  %v365 = vunpack.c.l.b16 %v38
  %v366 = vunpack.c.l.b16 %v39
  %v367 = vunpack.c.l.b16 %v40
  %v368 = vunpack.c.l.b16 %v41
  %v369 = vunpack.c.l.b16 %v42
  %v370 = vunpack.c.l.b16 %v43
  %v371 = vunpack.c.l.b16 %v44
  %v372 = vunpack.c.l.b16 %v45
  %v373 = vunpack.c.l.b16 %v46
  %v374 = vunpack.c.l.b16 %v47
  %v375 = vunpack.c.l.b16 %v48
  %v376 = vunpack.c.l.b16 %v49
  %v377 = vunpack.c.l.b16 %v50
  %v378 = vunpack.c.l.b16 %v51
  %v379 = vunpack.c.l.b16 %v52
  %v380 = vunpack.c.l.b16 %v53
  %v381 = vunpack.c.l.b16 %v54
  %v382 = vunpack.c.l.b16 %v55
  %v383 = vunpack.c.l.b16 %v56
  %v384 = vunpack.c.l.b16 %v57
  %v385 = vunpack.c.l.b16 %v58
  %v386 = vunpack.c.l.b16 %v59
  %v387 = vunpack.c.l.b16 %v60
  %v388 = vunpack.c.l.b16 %v61
  %v389 = vunpack.c.l.b16 %v62
  %v390 = vunpack.c.l.b16 %v63
  %v391 = vunpack.c.l.b16 %v64
  %v392 = vunpack.c.l.b16 %v65
  %v393 = vunpack.c.l.b16 %v66
  %v394 = vunpack.c.l.b16 %v67
  %v395 = vunpack.c.l.b16 %v68
  %v396 = vunpack.c.l.b16 %v69
  %v397 = vunpack.c.l.b16 %v70
  %v398 = vunpack.c.l.b16 %v71
  %v399 = vunpack.c.l.b16 %v72
  %v400 = vunpack.c.l.b16 %v73
  %v401 = vunpack.c.l.b16 %v74
  %v402 = vunpack.c.l.b16 %v75
  %v403 = vunpack.c.l.b16 %v76
  %v404 = vunpack.c.l.b16 %v77
  %v405 = vunpack.c.l.b16 %v78
  %v406 = vunpack.c.l.b16 %v79
  %v407 = vunpack.c.l.b16 %v80
  %v408 = vunpack.c.l.b16 %v81
  %v409 = vunpack.c.l.b16 %v82
  %v410 = vunpack.c.l.b16 %v83
  %v411 = vunpack.c.l.b16 %v84
  %v412 = vunpack.c.l.b16 %v85
  %v413 = vunpack.c.l.b16 %v86
  %v414 = vunpack.c.l.b16 %v87
  %v415 = vunpack.c.l.b16 %v88
  %v416 = vunpack.c.l.b16 %v89
  %v417 = vunpack.c.l.b16 %v90
  %v418 = vunpack.c.l.b16 %v91
  %v419 = vunpack.c.l.b16 %v92
  %v420 = vunpack.c.l.b16 %v93
  %v421 = vunpack.c.l.b16 %v94
  %v422 = vunpack.c.l.b16 %v95
  %v423 = vunpack.c.l.b16 %v96
  %v424 = vunpack.c.l.b16 %v97
  %v425 = vunpack.c.l.b16 %v98
  %v426 = vunpack.c.l.b16 %v99
  %v427 = vunpack.c.l.b16 %v100
  %v428 = vunpack.c.l.b16 %v101
  %v429 = vunpack.c.l.b16 %v102
  %v430 = vunpack.c.l.b16 %v103
  %v431 = vunpack.c.l.b16 %v104
  %v432 = vunpack.c.l.b16 %v105
  %v433 = vunpack.c.l.b16 %v106
  %v434 = vunpack.c.l.b16 %v107
  %v435 = vunpack.c.l.b16 %v108
  %v436 = vunpack.c.l.b16 %v109
  %v437 = vunpack.c.l.b16 %v110
  %v438 = vunpack.c.l.b16 %v111
  %v439 = vunpack.c.l.b16 %v112
  %v440 = vunpack.c.l.b16 %v113
  %v441 = vunpack.c.l.b16 %v114
  %v442 = vunpack.c.l.b16 %v115
  %v443 = vunpack.c.l.b16 %v116
  %v444 = vunpack.c.l.b16 %v117
  %v445 = vunpack.c.l.b16 %v118
  %v446 = vunpack.c.l.b16 %v119
  %v447 = vunpack.c.l.b16 %v120
  %v448 = vunpack.c.l.b16 %v121
  %v449 = vunpack.c.l.b16 %v122
  %v450 = vunpack.c.l.b16 %v123
  %v451 = vunpack.c.l.b16 %v124
  %v452 = vunpack.c.l.b16 %v125
  %v453 = vunpack.c.l.b16 %v126
  %v454 = vunpack.c.l.b16 %v127
  %v455 = vunpack.c.l.b16 %v128
  %v456 = vunpack.c.l.b16 %v129
  %v457 = vunpack.c.l.b16 %v130
  %v458 = vunpack.c.l.b16 %v131
  %v459 = vunpack.c.l.b16 %v132
  %v460 = vunpack.c.l.b16 %v133
  %v461 = vunpack.c.l.b16 %v134
  %v462 = vunpack.c.l.b16 %v135
  %v463 = vunpack.c.l.b16 %v136
  %v464 = vunpack.c.l.b16 %v137
  %v465 = vunpack.c.l.b16 %v138
  %v466 = vunpack.c.l.b16 %v139
  %v467 = vunpack.c.l.b16 %v140
  %v468 = vunpack.c.l.b16 %v141
  %v469 = vunpack.c.l.b16 %v142
  %v470 = vunpack.c.l.b16 %v143
  %v471 = vunpack.c.l.b16 %v144
  %v472 = vunpack.c.l.b16 %v145
  %v473 = vunpack.c.l.b16 %v146
  %v474 = vunpack.c.l.b16 %v147
  %v475 = vunpack.c.l.b16 %v148
  %v476 = vunpack.c.l.b16 %v149
  %v477 = vunpack.c.l.b16 %v150
  %v478 = vunpack.c.l.b16 %v151
  %v479 = vunpack.c.l.b16 %v152
  %v480 = vunpack.c.l.b16 %v153
  %v481 = vunpack.c.l.b16 %v154
  %v482 = vunpack.c.l.b16 %v155
  %v483 = vunpack.c.l.b16 %v156
  %v484 = vunpack.c.l.b16 %v157
  %v485 = vunpack.c.l.b16 %v158
  %v486 = vunpack.c.l.b16 %v159
  %v487 = vunpack.c.l.b16 %v160
  %v488 = vunpack.c.l.b16 %v161
  %v489 = vunpack.c.l.b16 %v162
  %v490 = vunpack.c.l.b16 %v163
  %v491 = vpack.c.b16 %v348, %v347
  %v492 = vpack.c.b16 %v350, %v349
  %v493 = vpack.c.b16 %v352, %v351
  %v494 = vpack.c.b16 %v354, %v353
  %v495 = vpack.c.b16 %v356, %v355
  %v496 = vpack.c.b16 %v358, %v357
  %v497 = vpack.c.b16 %v360, %v359
  %v498 = vpack.c.b16 %v362, %v361
  %v499 = vpack.c.b16 %v364, %v363
  %v500 = vpack.c.b16 %v366, %v365
  %v501 = vpack.c.b16 %v368, %v367
  %v502 = vpack.c.b16 %v370, %v369
  %v503 = vpack.c.b16 %v372, %v371
  %v504 = vpack.c.b16 %v374, %v373
  %v505 = vpack.c.b16 %v376, %v375
  %v506 = vpack.c.b16 %v378, %v377
  %v507 = vpack.c.b16 %v380, %v379
  %v508 = vpack.c.b16 %v382, %v381
  %v509 = vpack.c.b16 %v384, %v383
  %v510 = vpack.c.b16 %v386, %v385
  %v511 = vpack.c.b16 %v388, %v387
  %v512 = vpack.c.b16 %v390, %v389
  %v513 = vpack.c.b16 %v392, %v391
  %v514 = vpack.c.b16 %v394, %v393
  %v515 = vpack.c.b16 %v396, %v395
  %v516 = vpack.c.b16 %v398, %v397
  %v517 = vpack.c.b16 %v400, %v399
  %v518 = vpack.c.b16 %v402, %v401
  %v519 = vpack.c.b16 %v404, %v403
  %v520 = vpack.c.b16 %v406, %v405
  %v521 = vpack.c.b16 %v408, %v407
  %v522 = vpack.c.b16 %v410, %v409
  %v523 = vpack.c.b16 %v412, %v411
  %v524 = vpack.c.b16 %v414, %v413
  %v525 = vpack.c.b16 %v416, %v415
  %v526 = vpack.c.b16 %v418, %v417
  %v527 = vpack.c.b16 %v420, %v419
  %v528 = vpack.c.b16 %v422, %v421
  %v529 = vpack.c.b16 %v424, %v423
  %v530 = vpack.c.b16 %v426, %v425
  %v531 = vpack.c.b16 %v428, %v427
  %v532 = vpack.c.b16 %v430, %v429
  %v533 = vpack.c.b16 %v432, %v431
  %v534 = vpack.c.b16 %v434, %v433
  %v535 = vpack.c.b16 %v436, %v435
  %v536 = vpack.c.b16 %v438, %v437
  %v537 = vpack.c.b16 %v440, %v439
  %v538 = vpack.c.b16 %v442, %v441
  %v539 = vpack.c.b16 %v444, %v443
  %v540 = vpack.c.b16 %v446, %v445
  %v541 = vpack.c.b16 %v448, %v447
  %v542 = vpack.c.b16 %v450, %v449
  %v543 = vpack.c.b16 %v452, %v451
  %v544 = vpack.c.b16 %v454, %v453
  %v545 = vpack.c.b16 %v456, %v455
  %v546 = vpack.c.b16 %v458, %v457
  %v547 = vpack.c.b16 %v460, %v459
  %v548 = vpack.c.b16 %v462, %v461
  %v549 = vpack.c.b16 %v464, %v463
  %v550 = vpack.c.b16 %v466, %v465
  %v551 = vpack.c.b16 %v468, %v467
  %v552 = vpack.c.b16 %v470, %v469
  %v553 = vpack.c.b16 %v472, %v471
  %v554 = vpack.c.b16 %v474, %v473
  %v555 = vpack.c.b16 %v476, %v475
  %v556 = vpack.c.b16 %v478, %v477
  %v557 = vpack.c.b16 %v480, %v479
  %v558 = vpack.c.b16 %v482, %v481
  %v559 = vpack.c.b16 %v484, %v483
  %v560 = vpack.c.b16 %v486, %v485
  %v561 = vpack.c.b16 %v488, %v487
  %v562 = vpack.c.b16 %v490, %v489
  %635 = vmatprep.subr.bf16.mxu0 0
  %636 = vmatpush1.bf16.msra.mxu0 %v491
  %637 = vmatprep.subr.bf16.mxu0 0
  %638 = vmatpush1.bf16.msra.mxu0 %v492
  %639 = vmatprep.subr.bf16.mxu0 0
  %640 = vmatpush1.bf16.msra.mxu0 %v493
  %641 = vmatprep.subr.bf16.mxu0 0
  %642 = vmatpush1.bf16.msra.mxu0 %v494
  %643 = vmatprep.subr.bf16.mxu0 0
  %644 = vmatpush1.bf16.msra.mxu0 %v495
  %645 = vmatprep.subr.bf16.mxu0 0
  %646 = vmatpush1.bf16.msra.mxu0 %v496
  %647 = vmatprep.subr.bf16.mxu0 0
  %648 = vmatpush1.bf16.msra.mxu0 %v497
  %649 = vmatprep.subr.bf16.mxu0 0
  %650 = vmatpush1.bf16.msra.mxu0 %v498
  %651 = vmatprep.subr.bf16.mxu0 0
  %652 = vmatpush1.bf16.msra.mxu0 %v499
  %653 = vmatprep.subr.bf16.mxu0 0
  %654 = vmatpush1.bf16.msra.mxu0 %v500
  %655 = vmatprep.subr.bf16.mxu0 0
  %656 = vmatpush1.bf16.msra.mxu0 %v501
  %657 = vmatprep.subr.bf16.mxu0 0
  %658 = vmatpush1.bf16.msra.mxu0 %v502
  %659 = vmatprep.subr.bf16.mxu0 0
  %660 = vmatpush1.bf16.msra.mxu0 %v503
  %661 = vmatprep.subr.bf16.mxu0 0
  %662 = vmatpush1.bf16.msra.mxu0 %v504
  %663 = vmatprep.subr.bf16.mxu0 0
  %664 = vmatpush1.bf16.msra.mxu0 %v505
  %665 = vmatprep.subr.bf16.mxu0 0
  %666 = vmatpush1.bf16.msra.mxu0 %v506
  %667 = vmatprep.mubr.bf16.mxu0 %v186
  %668 = vmatmul.mubr.bf16.gmra.mrb[0].mxu0 %v185
  %v669 = vpop.f32.mrb[0].mxu0
  %v670 = vadd.f32 %v169, %v669
  %v671 = vpop.f32.mrb[0].mxu0
  %v672 = vpop.f32.mrb[0].mxu0
  %v673 = vpop.f32.mrb[0].mxu0
  %674 = vdwg.mxu0
  %675 = vmatprep.subr.bf16.mxu0 0
  %676 = vmatpush1.bf16.msra.mxu0 %v507
  %677 = vmatprep.subr.bf16.mxu0 0
  %678 = vmatpush1.bf16.msra.mxu0 %v508
  %679 = vmatprep.subr.bf16.mxu0 0
  %680 = vmatpush1.bf16.msra.mxu0 %v509
  %681 = vmatprep.subr.bf16.mxu0 0
  %682 = vmatpush1.bf16.msra.mxu0 %v510
  %683 = vmatprep.subr.bf16.mxu0 0
  %684 = vmatpush1.bf16.msra.mxu0 %v511
  %685 = vmatprep.subr.bf16.mxu0 0
  %686 = vmatpush1.bf16.msra.mxu0 %v512
  %687 = vmatprep.subr.bf16.mxu0 0
  %688 = vmatpush1.bf16.msra.mxu0 %v513
  %689 = vmatprep.subr.bf16.mxu0 0
  %690 = vmatpush1.bf16.msra.mxu0 %v514
  %691 = vmatprep.subr.bf16.mxu0 0
  %692 = vmatpush1.bf16.msra.mxu0 %v515
  %693 = vmatprep.subr.bf16.mxu0 0
  %694 = vmatpush1.bf16.msra.mxu0 %v516
  %695 = vmatprep.subr.bf16.mxu0 0
  %696 = vmatpush1.bf16.msra.mxu0 %v517
  %697 = vmatprep.subr.bf16.mxu0 0
  %698 = vmatpush1.bf16.msra.mxu0 %v518
  %699 = vmatprep.subr.bf16.mxu0 0
  %700 = vmatpush1.bf16.msra.mxu0 %v519
  %701 = vmatprep.subr.bf16.mxu0 0
  %702 = vmatpush1.bf16.msra.mxu0 %v520
  %703 = vmatprep.subr.bf16.mxu0 0
  %704 = vmatpush1.bf16.msra.mxu0 %v521
  %705 = vmatprep.subr.bf16.mxu0 0
  %706 = vmatpush1.bf16.msra.mxu0 %v522
  %707 = vmatprep.mubr.bf16.mxu0 %v188
  %708 = vmatmul.mubr.bf16.gmra.mrb[0].mxu0 %v187
  %v709 = vpop.f32.mrb[0].mxu0
  %v710 = vadd.f32 %v670, %v709
  %v711 = vpop.f32.mrb[0].mxu0
  %v712 = vpop.f32.mrb[0].mxu0
  %v713 = vpop.f32.mrb[0].mxu0
  %714 = vdwg.mxu0
  %715 = vmatprep.subr.bf16.mxu0 0
  %716 = vmatpush1.bf16.msra.mxu0 %v523
  %717 = vmatprep.subr.bf16.mxu0 0
  %718 = vmatpush1.bf16.msra.mxu0 %v524
  %719 = vmatprep.subr.bf16.mxu0 0
  %720 = vmatpush1.bf16.msra.mxu0 %v525
  %721 = vmatprep.subr.bf16.mxu0 0
  %722 = vmatpush1.bf16.msra.mxu0 %v526
  %723 = vmatprep.subr.bf16.mxu0 0
  %724 = vmatpush1.bf16.msra.mxu0 %v527
  %725 = vmatprep.subr.bf16.mxu0 0
  %726 = vmatpush1.bf16.msra.mxu0 %v528
  %727 = vmatprep.subr.bf16.mxu0 0
  %728 = vmatpush1.bf16.msra.mxu0 %v529
  %729 = vmatprep.subr.bf16.mxu0 0
  %730 = vmatpush1.bf16.msra.mxu0 %v530
  %731 = vmatprep.subr.bf16.mxu0 0
  %732 = vmatpush1.bf16.msra.mxu0 %v531
  %733 = vmatprep.subr.bf16.mxu0 0
  %734 = vmatpush1.bf16.msra.mxu0 %v532
  %735 = vmatprep.subr.bf16.mxu0 0
  %736 = vmatpush1.bf16.msra.mxu0 %v533
  %737 = vmatprep.subr.bf16.mxu0 0
  %738 = vmatpush1.bf16.msra.mxu0 %v534
  %739 = vmatprep.subr.bf16.mxu0 0
  %740 = vmatpush1.bf16.msra.mxu0 %v535
  %741 = vmatprep.subr.bf16.mxu0 0
  %742 = vmatpush1.bf16.msra.mxu0 %v536
  %743 = vmatprep.subr.bf16.mxu0 0
  %744 = vmatpush1.bf16.msra.mxu0 %v537
  %745 = vmatprep.subr.bf16.mxu0 0
  %746 = vmatpush1.bf16.msra.mxu0 %v538
  %747 = vmatprep.mubr.bf16.mxu0 %v190
  %748 = vmatmul.mubr.bf16.gmra.mrb[0].mxu0 %v189
  %v749 = vpop.f32.mrb[0].mxu0
  %v750 = vadd.f32 %v710, %v749
  %v751 = vpop.f32.mrb[0].mxu0
  %v752 = vpop.f32.mrb[0].mxu0
  %v753 = vpop.f32.mrb[0].mxu0
  %754 = vdwg.mxu0
  %755 = vmatprep.subr.bf16.mxu0 0
  %756 = vmatpush1.bf16.msra.mxu0 %v539
  %757 = vmatprep.subr.bf16.mxu0 0
  %758 = vmatpush1.bf16.msra.mxu0 %v540
  %759 = vmatprep.subr.bf16.mxu0 0
  %760 = vmatpush1.bf16.msra.mxu0 %v541
  %761 = vmatprep.subr.bf16.mxu0 0
  %762 = vmatpush1.bf16.msra.mxu0 %v542
  %763 = vmatprep.subr.bf16.mxu0 0
  %764 = vmatpush1.bf16.msra.mxu0 %v543
  %765 = vmatprep.subr.bf16.mxu0 0
  %766 = vmatpush1.bf16.msra.mxu0 %v544
  %767 = vmatprep.subr.bf16.mxu0 0
  %768 = vmatpush1.bf16.msra.mxu0 %v545
  %769 = vmatprep.subr.bf16.mxu0 0
  %770 = vmatpush1.bf16.msra.mxu0 %v546
  %771 = vmatprep.subr.bf16.mxu0 0
  %772 = vmatpush1.bf16.msra.mxu0 %v547
  %773 = vmatprep.subr.bf16.mxu0 0
  %774 = vmatpush1.bf16.msra.mxu0 %v548
  %775 = vmatprep.subr.bf16.mxu0 0
  %776 = vmatpush1.bf16.msra.mxu0 %v549
  %777 = vmatprep.subr.bf16.mxu0 0
  %778 = vmatpush1.bf16.msra.mxu0 %v550
  %779 = vmatprep.subr.bf16.mxu0 0
  %780 = vmatpush1.bf16.msra.mxu0 %v551
  %781 = vmatprep.subr.bf16.mxu0 0
  %782 = vmatpush1.bf16.msra.mxu0 %v552
  %783 = vmatprep.subr.bf16.mxu0 0
  %784 = vmatpush1.bf16.msra.mxu0 %v553
  %785 = vmatprep.subr.bf16.mxu0 0
  %786 = vmatpush1.bf16.msra.mxu0 %v554
  %787 = vmatprep.mubr.bf16.mxu0 %v192
  %788 = vmatmul.mubr.bf16.gmra.mrb[0].mxu0 %v191
  %v789 = vpop.f32.mrb[0].mxu0
  %v790 = vadd.f32 %v750, %v789
  %v791 = vpop.f32.mrb[0].mxu0
  %v792 = vpop.f32.mrb[0].mxu0
  %v793 = vpop.f32.mrb[0].mxu0
  %794 = vdwg.mxu0
  %795 = vmatprep.subr.bf16.mxu0 0
  %796 = vmatpush1.bf16.msra.mxu0 %v555
  %797 = vmatprep.subr.bf16.mxu0 0
  %798 = vmatpush1.bf16.msra.mxu0 %v556
  %799 = vmatprep.subr.bf16.mxu0 0
  %800 = vmatpush1.bf16.msra.mxu0 %v557
  %801 = vmatprep.subr.bf16.mxu0 0
  %802 = vmatpush1.bf16.msra.mxu0 %v558
  %803 = vmatprep.subr.bf16.mxu0 0
  %804 = vmatpush1.bf16.msra.mxu0 %v559
  %805 = vmatprep.subr.bf16.mxu0 0
  %806 = vmatpush1.bf16.msra.mxu0 %v560
  %807 = vmatprep.subr.bf16.mxu0 0
  %808 = vmatpush1.bf16.msra.mxu0 %v561
  %809 = vmatprep.subr.bf16.mxu0 0
  %810 = vmatpush1.bf16.msra.mxu0 %v562
  %811 = vmatprep.subr.bf16.mxu0 0
  %812 = vmatpush1.bf16.msra.mxu0 0
  %813 = vmatprep.subr.bf16.mxu0 0
  %814 = vmatpush1.bf16.msra.mxu0 0
  %815 = vmatprep.subr.bf16.mxu0 0
  %816 = vmatpush1.bf16.msra.mxu0 0
  %817 = vmatprep.subr.bf16.mxu0 0
  %818 = vmatpush1.bf16.msra.mxu0 0
  %819 = vmatprep.subr.bf16.mxu0 0
  %820 = vmatpush1.bf16.msra.mxu0 0
  %821 = vmatprep.subr.bf16.mxu0 0
  %822 = vmatpush1.bf16.msra.mxu0 0
  %823 = vmatprep.subr.bf16.mxu0 0
  %824 = vmatpush1.bf16.msra.mxu0 0
  %825 = vmatprep.subr.bf16.mxu0 0
  %826 = vmatpush1.bf16.msra.mxu0 0
  %827 = vmatprep.mubr.bf16.mxu0 0
  %828 = vmatmul.mubr.bf16.gmra.mrb[0].mxu0 %v193
  %v829 = vpop.f32.mrb[0].mxu0
  %v830 = vadd.f32 %v790, %v829
  %v831 = vpop.f32.mrb[0].mxu0
  %v832 = vpop.f32.mrb[0].mxu0
  %v833 = vpop.f32.mrb[0].mxu0
  %834 = vdwg.mxu0
  %v835 = vmax.f32 %v830, 0.0
  %v836 = vpack.c.bf16 %v835, %v835
  %837 = vst [vmem:[%s3] sm:$0xf] %v836
  // Predicated region
  $region14: #{retinanet_forward.16} parent=0 // pred_check
    _
  $region15: #{retinanet_forward.16} parent=0 // pred_check_branch
    %839 = sbr.rel (0) target = $region17
  $region16: #{retinanet_forward.16} parent=0 // pred_region
    _
  $region17: #{retinanet_forward.16} parent=0 // pred_fallthru
    _
  // Predicated region
  $region18: #{retinanet_forward.16} parent=0 // pred_check
    _
  $region19: #{retinanet_forward.16} parent=0 // pred_check_branch
    %841 = sbr.rel (0) target = $region21
  $region20: #{retinanet_forward.16} parent=0 // pred_region
    _
  $region21: #{retinanet_forward.16} parent=0 // pred_fallthru
    _

// kernel: retinanet_forward.18
$region0: #{retinanet_forward.18}
  #allocation0 [shape = 'u32[]', space=smem, size = 0x4, offset = 0x4, fixed_abs, tag = 'smem constant byte address 0x4 - core index']
  #allocation1 [shape = 'u32[144,128]{1,0:T(1,128)}', space=vmem, size = 0x12000, scoped, tag = 'internal scratch']
  %s0 = inlined_call_operand.vmem [shape: bf16[32,128], index: 0, kind: input, shape index: {}]
  %s1 = inlined_call_operand.vmem [shape: bf16[128,64], index: 1, kind: input, shape index: {}]
  %s2 = inlined_call_operand.vmem [shape: f32[1,64], index: 2, kind: input, shape index: {}]
  %s3 = inlined_call_operand.vmem [shape: bf16[32,64], index: 3, kind: input, shape index: {}]
  %s4 = inlined_call_operand.vmem [shape: bf16[32,64], index: 4, kind: output, shape index: {}]
  %s5 = sld [smem:[#allocation0]]
  $region26: #{retinanet_forward.18} parent=0
    _
  %s7 = ssub.s32 1, %s5
  %s8 = scalar_select 0, %s7, %s5
  // Predicated region
  $region2: #{retinanet_forward.18} parent=0 // pred_check
    _
  $region3: #{retinanet_forward.18} parent=0 // pred_check_branch
    %10 = sbr.rel (0) target = $region5
  $region4: #{retinanet_forward.18} parent=0 // pred_region
    _
  $region5: #{retinanet_forward.18} parent=0 // pred_fallthru
    _
  // Predicated region
  $region6: #{retinanet_forward.18} parent=0 // pred_check
    _
  $region7: #{retinanet_forward.18} parent=0 // pred_check_branch
    %12 = sbr.rel (0) target = $region9
  $region8: #{retinanet_forward.18} parent=0 // pred_region
    _
  $region9: #{retinanet_forward.18} parent=0 // pred_fallthru
    _
  // Predicated region
  $region10: #{retinanet_forward.18} parent=0 // pred_check
    _
  $region11: #{retinanet_forward.18} parent=0 // pred_check_branch
    %14 = sbr.rel (0) target = $region13
  $region12: #{retinanet_forward.18} parent=0 // pred_region
    _
  $region13: #{retinanet_forward.18} parent=0 // pred_fallthru
    _
  // Predicated region
  $region14: #{retinanet_forward.18} parent=0 // pred_check
    _
  $region15: #{retinanet_forward.18} parent=0 // pred_check_branch
    %16 = sbr.rel (0) target = $region17
  $region16: #{retinanet_forward.18} parent=0 // pred_region
    _
  $region17: #{retinanet_forward.18} parent=0 // pred_fallthru
    _
  %v18 = vld [vmem:[%s0] sm:$0xf]
  %v19 = vld [vmem:[%s0 + $0x4] sm:$0xf]
  %v20 = vld [vmem:[%s0 + $0x8] sm:$0xf]
  %v21 = vld [vmem:[%s0 + $0xc] sm:$0xf]
  %v22 = vld [vmem:[%s1] sm:$0xf]
  %v23 = vld [vmem:[%s1 + $0x4] sm:$0xf]
  %v24 = vld [vmem:[%s1 + $0x8] sm:$0xf]
  %v25 = vld [vmem:[%s1 + $0xc] sm:$0xf]
  %v26 = vld [vmem:[%s1 + $0x10] sm:$0xf]
  %v27 = vld [vmem:[%s1 + $0x14] sm:$0xf]
  %v28 = vld [vmem:[%s1 + $0x18] sm:$0xf]
  %v29 = vld [vmem:[%s1 + $0x1c] sm:$0xf]
  %v30 = vld [vmem:[%s1 + $0x20] sm:$0xf]
  %v31 = vld [vmem:[%s1 + $0x24] sm:$0xf]
  %v32 = vld [vmem:[%s1 + $0x28] sm:$0xf]
  %v33 = vld [vmem:[%s1 + $0x2c] sm:$0xf]
  %v34 = vld [vmem:[%s1 + $0x30] sm:$0xf]
  %v35 = vld [vmem:[%s1 + $0x34] sm:$0xf]
  %v36 = vld [vmem:[%s1 + $0x38] sm:$0xf]
  %v37 = vld [vmem:[%s1 + $0x3c] sm:$0xf]
  %v38 = vld [vmem:[%s2] sm:$0x1]
  %v40 = vlaneseq
  %v41 = vshrl.u32 %v40, 7
  %v42 = vsub.s32 0, %v41
  %v43 = vrot.slane %v38, %v42
  %v49 = vunpack.c.l.b16 %v18
  %v50 = vunpack.c.l.b16 %v19
  %v51 = vunpack.c.l.b16 %v20
  %v52 = vunpack.c.l.b16 %v21
  %v53 = vpack.c.b16 %v50, %v49
  %v54 = vpack.c.b16 %v52, %v51
  %v73 = vunpack.c.l.b16 %v22
  %v74 = vunpack.c.l.b16 %v23
  %v75 = vunpack.c.l.b16 %v24
  %v76 = vunpack.c.l.b16 %v25
  %v77 = vunpack.c.l.b16 %v26
  %v78 = vunpack.c.l.b16 %v27
  %v79 = vunpack.c.l.b16 %v28
  %v80 = vunpack.c.l.b16 %v29
  %v81 = vunpack.c.l.b16 %v30
  %v82 = vunpack.c.l.b16 %v31
  %v83 = vunpack.c.l.b16 %v32
  %v84 = vunpack.c.l.b16 %v33
  %v85 = vunpack.c.l.b16 %v34
  %v86 = vunpack.c.l.b16 %v35
  %v87 = vunpack.c.l.b16 %v36
  %v88 = vunpack.c.l.b16 %v37
  %v89 = vpack.c.b16 %v74, %v73
  %v90 = vpack.c.b16 %v76, %v75
  %v91 = vpack.c.b16 %v78, %v77
  %v92 = vpack.c.b16 %v80, %v79
  %v93 = vpack.c.b16 %v82, %v81
  %v94 = vpack.c.b16 %v84, %v83
  %v95 = vpack.c.b16 %v86, %v85
  %v96 = vpack.c.b16 %v88, %v87
  %105 = vmatprep.subr.bf16.mxu0 0
  %106 = vmatpush1.bf16.msra.mxu0 %v89
  %107 = vmatprep.subr.bf16.mxu0 0
  %108 = vmatpush1.bf16.msra.mxu0 %v90
  %109 = vmatprep.subr.bf16.mxu0 0
  %110 = vmatpush1.bf16.msra.mxu0 %v91
  %111 = vmatprep.subr.bf16.mxu0 0
  %112 = vmatpush1.bf16.msra.mxu0 %v92
  %113 = vmatprep.subr.bf16.mxu0 0
  %114 = vmatpush1.bf16.msra.mxu0 %v93
  %115 = vmatprep.subr.bf16.mxu0 0
  %116 = vmatpush1.bf16.msra.mxu0 %v94
  %117 = vmatprep.subr.bf16.mxu0 0
  %118 = vmatpush1.bf16.msra.mxu0 %v95
  %119 = vmatprep.subr.bf16.mxu0 0
  %120 = vmatpush1.bf16.msra.mxu0 %v96
  %121 = vmatprep.subr.bf16.mxu0 0
  %122 = vmatpush1.bf16.msra.mxu0 0
  %123 = vmatprep.subr.bf16.mxu0 0
  %124 = vmatpush1.bf16.msra.mxu0 0
  %125 = vmatprep.subr.bf16.mxu0 0
  %126 = vmatpush1.bf16.msra.mxu0 0
  %127 = vmatprep.subr.bf16.mxu0 0
  %128 = vmatpush1.bf16.msra.mxu0 0
  %129 = vmatprep.subr.bf16.mxu0 0
  %130 = vmatpush1.bf16.msra.mxu0 0
  %131 = vmatprep.subr.bf16.mxu0 0
  %132 = vmatpush1.bf16.msra.mxu0 0
  %133 = vmatprep.subr.bf16.mxu0 0
  %134 = vmatpush1.bf16.msra.mxu0 0
  %135 = vmatprep.subr.bf16.mxu0 0
  %136 = vmatpush1.bf16.msra.mxu0 0
  %137 = vmatprep.mubr.bf16.mxu0 0
  %138 = vmatmul.mubr.bf16.gmra.mrb[0].mxu0 %v53
  %v139 = vpop.f32.mrb[0].mxu0
  %v140 = vadd.f32 %v43, %v139
  %v141 = vpop.f32.mrb[0].mxu0
  %v142 = vpop.f32.mrb[0].mxu0
  %v143 = vadd.f32 %v43, %v142
  %v144 = vpop.f32.mrb[0].mxu0
  %145 = vmatprep.mubr.bf16.mxu0 0
  %146 = vmatmul.mubr.bf16.gmra.mrb[0].mxu0 %v54
  %v147 = vpop.f32.mrb[0].mxu0
  %v148 = vadd.f32 %v43, %v147
  %v149 = vpop.f32.mrb[0].mxu0
  %v150 = vpop.f32.mrb[0].mxu0
  %v151 = vadd.f32 %v43, %v150
  %v152 = vpop.f32.mrb[0].mxu0
  %153 = vdwg.mxu0
  %v154 = vld [vmem:[%s3] sm:$0xf]
  %v155 = vld [vmem:[%s3 + $0x4] sm:$0xf]
  %v156 = vld [vmem:[%s3 + $0x8] sm:$0xf]
  %v157 = vld [vmem:[%s3 + $0xc] sm:$0xf]
  %v158 = vunpack.c.l.bf16 %v154
  %v159 = vunpack.c.l.bf16 %v155
  %v160 = vunpack.c.l.bf16 %v156
  %v161 = vunpack.c.l.bf16 %v157
  %v162 = vadd.f32 %v140, %v158
  %v163 = vadd.f32 %v143, %v159
  %v164 = vadd.f32 %v148, %v160
  %v165 = vadd.f32 %v151, %v161
  %v166 = vpack.c.bf16 %v163, %v162
  %v167 = vpack.c.bf16 %v165, %v164
  %v170 = vunpack.c.l.b16 %v166
  %v171 = vunpack.c.h.b16 %v166
  %v172 = vunpack.c.l.b16 %v167
  %v173 = vunpack.c.h.b16 %v167
  %v174 = vpack.c.b16 %v170, %v170
  %v175 = vpack.c.b16 %v171, %v171
  %v176 = vpack.c.b16 %v172, %v172
  %v177 = vpack.c.b16 %v173, %v173
  %vm182 = vcmask 519168
  %183 = vst.msk [vmem:[%s4] sm:$0xf] %vm182, %v174
  %184 = vst.msk [vmem:[%s4 + $0x4] sm:$0xf] %vm182, %v175
  %185 = vst.msk [vmem:[%s4 + $0x8] sm:$0xf] %vm182, %v176
  %186 = vst.msk [vmem:[%s4 + $0xc] sm:$0xf] %vm182, %v177
  // Predicated region
  $region18: #{retinanet_forward.18} parent=0 // pred_check
    _
  $region19: #{retinanet_forward.18} parent=0 // pred_check_branch
    %188 = sbr.rel (0) target = $region21
  $region20: #{retinanet_forward.18} parent=0 // pred_region
    _
  $region21: #{retinanet_forward.18} parent=0 // pred_fallthru
    _
  // Predicated region
  $region22: #{retinanet_forward.18} parent=0 // pred_check
    _
  $region23: #{retinanet_forward.18} parent=0 // pred_check_branch
    %190 = sbr.rel (0) target = $region25
  $region24: #{retinanet_forward.18} parent=0 // pred_region
    _
  $region25: #{retinanet_forward.18} parent=0 // pred_fallthru
    _

// kernel: retinanet_forward.19
$region0: #{retinanet_forward.19}
  #allocation0 [shape = 'u32[]', space=smem, size = 0x4, offset = 0x4, fixed_abs, tag = 'smem constant byte address 0x4 - core index']
  #allocation1 [shape = 'u32[144,128]{1,0:T(1,128)}', space=vmem, size = 0x12000, scoped, tag = 'internal scratch']
  %s0 = inlined_call_operand.vmem [shape: bf16[128,64], index: 0, kind: input, shape index: {}]
  %s1 = inlined_call_operand.vmem [shape: bf16[64,64], index: 1, kind: input, shape index: {}]
  %s2 = inlined_call_operand.vmem [shape: f32[1,64], index: 2, kind: input, shape index: {}]
  %s3 = inlined_call_operand.vmem [shape: bf16[128,64], index: 3, kind: input, shape index: {}]
  %s4 = inlined_call_operand.vmem [shape: bf16[128,64], index: 4, kind: output, shape index: {}]
  %s5 = sld [smem:[#allocation0]]
  $region26: #{retinanet_forward.19} parent=0
    _
  %s7 = ssub.s32 1, %s5
  %s8 = scalar_select 0, %s7, %s5
  // Predicated region
  $region2: #{retinanet_forward.19} parent=0 // pred_check
    _
  $region3: #{retinanet_forward.19} parent=0 // pred_check_branch
    %10 = sbr.rel (0) target = $region5
  $region4: #{retinanet_forward.19} parent=0 // pred_region
    _
  $region5: #{retinanet_forward.19} parent=0 // pred_fallthru
    _
  // Predicated region
  $region6: #{retinanet_forward.19} parent=0 // pred_check
    _
  $region7: #{retinanet_forward.19} parent=0 // pred_check_branch
    %12 = sbr.rel (0) target = $region9
  $region8: #{retinanet_forward.19} parent=0 // pred_region
    _
  $region9: #{retinanet_forward.19} parent=0 // pred_fallthru
    _
  // Predicated region
  $region10: #{retinanet_forward.19} parent=0 // pred_check
    _
  $region11: #{retinanet_forward.19} parent=0 // pred_check_branch
    %14 = sbr.rel (0) target = $region13
  $region12: #{retinanet_forward.19} parent=0 // pred_region
    _
  $region13: #{retinanet_forward.19} parent=0 // pred_fallthru
    _
  // Predicated region
  $region14: #{retinanet_forward.19} parent=0 // pred_check
    _
  $region15: #{retinanet_forward.19} parent=0 // pred_check_branch
    %16 = sbr.rel (0) target = $region17
  $region16: #{retinanet_forward.19} parent=0 // pred_region
    _
  $region17: #{retinanet_forward.19} parent=0 // pred_fallthru
    _
  %v18 = vld [vmem:[%s0] sm:$0xf]
  %v19 = vld [vmem:[%s0 + $0x4] sm:$0xf]
  %v20 = vld [vmem:[%s0 + $0x8] sm:$0xf]
  %v21 = vld [vmem:[%s0 + $0xc] sm:$0xf]
  %v22 = vld [vmem:[%s0 + $0x10] sm:$0xf]
  %v23 = vld [vmem:[%s0 + $0x14] sm:$0xf]
  %v24 = vld [vmem:[%s0 + $0x18] sm:$0xf]
  %v25 = vld [vmem:[%s0 + $0x1c] sm:$0xf]
  %v26 = vld [vmem:[%s0 + $0x20] sm:$0xf]
  %v27 = vld [vmem:[%s0 + $0x24] sm:$0xf]
  %v28 = vld [vmem:[%s0 + $0x28] sm:$0xf]
  %v29 = vld [vmem:[%s0 + $0x2c] sm:$0xf]
  %v30 = vld [vmem:[%s0 + $0x30] sm:$0xf]
  %v31 = vld [vmem:[%s0 + $0x34] sm:$0xf]
  %v32 = vld [vmem:[%s0 + $0x38] sm:$0xf]
  %v33 = vld [vmem:[%s0 + $0x3c] sm:$0xf]
  %v34 = vld [vmem:[%s1] sm:$0xf]
  %v35 = vld [vmem:[%s1 + $0x4] sm:$0xf]
  %v36 = vld [vmem:[%s1 + $0x8] sm:$0xf]
  %v37 = vld [vmem:[%s1 + $0xc] sm:$0xf]
  %v38 = vld [vmem:[%s1 + $0x10] sm:$0xf]
  %v39 = vld [vmem:[%s1 + $0x14] sm:$0xf]
  %v40 = vld [vmem:[%s1 + $0x18] sm:$0xf]
  %v41 = vld [vmem:[%s1 + $0x1c] sm:$0xf]
  %v42 = vld [vmem:[%s2] sm:$0x1]
  %v44 = vlaneseq
  %v45 = vshrl.u32 %v44, 7
  %v46 = vsub.s32 0, %v45
  %v47 = vrot.slane %v42, %v46
  %v65 = vunpack.c.l.b16 %v18
  %v66 = vunpack.c.l.b16 %v19
  %v67 = vunpack.c.l.b16 %v20
  %v68 = vunpack.c.l.b16 %v21
  %v69 = vunpack.c.l.b16 %v22
  %v70 = vunpack.c.l.b16 %v23
  %v71 = vunpack.c.l.b16 %v24
  %v72 = vunpack.c.l.b16 %v25
  %v73 = vunpack.c.l.b16 %v26
  %v74 = vunpack.c.l.b16 %v27
  %v75 = vunpack.c.l.b16 %v28
  %v76 = vunpack.c.l.b16 %v29
  %v77 = vunpack.c.l.b16 %v30
  %v78 = vunpack.c.l.b16 %v31
  %v79 = vunpack.c.l.b16 %v32
  %v80 = vunpack.c.l.b16 %v33
  %v81 = vpack.c.b16 %v66, %v65
  %v82 = vpack.c.b16 %v68, %v67
  %v83 = vpack.c.b16 %v70, %v69
  %v84 = vpack.c.b16 %v72, %v71
  %v85 = vpack.c.b16 %v74, %v73
  %v86 = vpack.c.b16 %v76, %v75
  %v87 = vpack.c.b16 %v78, %v77
  %v88 = vpack.c.b16 %v80, %v79
  %v97 = vunpack.c.l.b16 %v34
  %v98 = vunpack.c.l.b16 %v35
  %v99 = vunpack.c.l.b16 %v36
  %v100 = vunpack.c.l.b16 %v37
  %v101 = vunpack.c.l.b16 %v38
  %v102 = vunpack.c.l.b16 %v39
  %v103 = vunpack.c.l.b16 %v40
  %v104 = vunpack.c.l.b16 %v41
  %v105 = vpack.c.b16 %v98, %v97
  %v106 = vpack.c.b16 %v100, %v99
  %v107 = vpack.c.b16 %v102, %v101
  %v108 = vpack.c.b16 %v104, %v103
  %vm113 = vcmask 523264
  %v115 = vsel %vm113, %v81, 0
  %v118 = vsel %vm113, %v82, 0
  %v121 = vsel %vm113, %v83, 0
  %v124 = vsel %vm113, %v84, 0
  %v127 = vsel %vm113, %v85, 0
  %v130 = vsel %vm113, %v86, 0
  %v133 = vsel %vm113, %v87, 0
  %v136 = vsel %vm113, %v88, 0
  %138 = vmatprep.subr.bf16.mxu0 0
  %139 = vmatpush1.bf16.msra.mxu0 %v105
  %140 = vmatprep.subr.bf16.mxu0 0
  %141 = vmatpush1.bf16.msra.mxu0 %v106
  %142 = vmatprep.subr.bf16.mxu0 0
  %143 = vmatpush1.bf16.msra.mxu0 %v107
  %144 = vmatprep.subr.bf16.mxu0 0
  %145 = vmatpush1.bf16.msra.mxu0 %v108
  %146 = vmatprep.subr.bf16.mxu0 0
  %147 = vmatpush1.bf16.msra.mxu0 0
  %148 = vmatprep.subr.bf16.mxu0 0
  %149 = vmatpush1.bf16.msra.mxu0 0
  %150 = vmatprep.subr.bf16.mxu0 0
  %151 = vmatpush1.bf16.msra.mxu0 0
  %152 = vmatprep.subr.bf16.mxu0 0
  %153 = vmatpush1.bf16.msra.mxu0 0
  %154 = vmatprep.subr.bf16.mxu0 0
  %155 = vmatpush1.bf16.msra.mxu0 0
  %156 = vmatprep.subr.bf16.mxu0 0
  %157 = vmatpush1.bf16.msra.mxu0 0
  %158 = vmatprep.subr.bf16.mxu0 0
  %159 = vmatpush1.bf16.msra.mxu0 0
  %160 = vmatprep.subr.bf16.mxu0 0
  %161 = vmatpush1.bf16.msra.mxu0 0
  %162 = vmatprep.subr.bf16.mxu0 0
  %163 = vmatpush1.bf16.msra.mxu0 0
  %164 = vmatprep.subr.bf16.mxu0 0
  %165 = vmatpush1.bf16.msra.mxu0 0
  %166 = vmatprep.subr.bf16.mxu0 0
  %167 = vmatpush1.bf16.msra.mxu0 0
  %168 = vmatprep.subr.bf16.mxu0 0
  %169 = vmatpush1.bf16.msra.mxu0 0
  %170 = vmatprep.mubr.bf16.mxu0 0
  %171 = vmatmul.mubr.bf16.gmra.mrb[0].mxu0 %v115
  %v172 = vpop.f32.mrb[0].mxu0
  %v173 = vadd.f32 %v47, %v172
  %v174 = vpop.f32.mrb[0].mxu0
  %v175 = vpop.f32.mrb[0].mxu0
  %v176 = vadd.f32 %v47, %v175
  %v177 = vpop.f32.mrb[0].mxu0
  %178 = vmatprep.mubr.bf16.mxu0 0
  %179 = vmatmul.mubr.bf16.gmra.mrb[0].mxu0 %v118
  %v180 = vpop.f32.mrb[0].mxu0
  %v181 = vadd.f32 %v47, %v180
  %v182 = vpop.f32.mrb[0].mxu0
  %v183 = vpop.f32.mrb[0].mxu0
  %v184 = vadd.f32 %v47, %v183
  %v185 = vpop.f32.mrb[0].mxu0
  %186 = vmatprep.mubr.bf16.mxu0 0
  %187 = vmatmul.mubr.bf16.gmra.mrb[0].mxu0 %v121
  %v188 = vpop.f32.mrb[0].mxu0
  %v189 = vadd.f32 %v47, %v188
  %v190 = vpop.f32.mrb[0].mxu0
  %v191 = vpop.f32.mrb[0].mxu0
  %v192 = vadd.f32 %v47, %v191
  %v193 = vpop.f32.mrb[0].mxu0
  %194 = vmatprep.mubr.bf16.mxu0 0
  %195 = vmatmul.mubr.bf16.gmra.mrb[0].mxu0 %v124
  %v196 = vpop.f32.mrb[0].mxu0
  %v197 = vadd.f32 %v47, %v196
  %v198 = vpop.f32.mrb[0].mxu0
  %v199 = vpop.f32.mrb[0].mxu0
  %v200 = vadd.f32 %v47, %v199
  %v201 = vpop.f32.mrb[0].mxu0
  %202 = vmatprep.mubr.bf16.mxu0 0
  %203 = vmatmul.mubr.bf16.gmra.mrb[0].mxu0 %v127
  %v204 = vpop.f32.mrb[0].mxu0
  %v205 = vadd.f32 %v47, %v204
  %v206 = vpop.f32.mrb[0].mxu0
  %v207 = vpop.f32.mrb[0].mxu0
  %v208 = vadd.f32 %v47, %v207
  %v209 = vpop.f32.mrb[0].mxu0
  %210 = vmatprep.mubr.bf16.mxu0 0
  %211 = vmatmul.mubr.bf16.gmra.mrb[0].mxu0 %v130
  %v212 = vpop.f32.mrb[0].mxu0
  %v213 = vadd.f32 %v47, %v212
  %v214 = vpop.f32.mrb[0].mxu0
  %v215 = vpop.f32.mrb[0].mxu0
  %v216 = vadd.f32 %v47, %v215
  %v217 = vpop.f32.mrb[0].mxu0
  %218 = vmatprep.mubr.bf16.mxu0 0
  %219 = vmatmul.mubr.bf16.gmra.mrb[0].mxu0 %v133
  %v220 = vpop.f32.mrb[0].mxu0
  %v221 = vadd.f32 %v47, %v220
  %v222 = vpop.f32.mrb[0].mxu0
  %v223 = vpop.f32.mrb[0].mxu0
  %v224 = vadd.f32 %v47, %v223
  %v225 = vpop.f32.mrb[0].mxu0
  %226 = vmatprep.mubr.bf16.mxu0 0
  %227 = vmatmul.mubr.bf16.gmra.mrb[0].mxu0 %v136
  %v228 = vpop.f32.mrb[0].mxu0
  %v229 = vadd.f32 %v47, %v228
  %v230 = vpop.f32.mrb[0].mxu0
  %v231 = vpop.f32.mrb[0].mxu0
  %v232 = vadd.f32 %v47, %v231
  %v233 = vpop.f32.mrb[0].mxu0
  %234 = vdwg.mxu0
  %v235 = vld [vmem:[%s3] sm:$0xf]
  %v236 = vld [vmem:[%s3 + $0x4] sm:$0xf]
  %v237 = vld [vmem:[%s3 + $0x8] sm:$0xf]
  %v238 = vld [vmem:[%s3 + $0xc] sm:$0xf]
  %v239 = vld [vmem:[%s3 + $0x10] sm:$0xf]
  %v240 = vld [vmem:[%s3 + $0x14] sm:$0xf]
  %v241 = vld [vmem:[%s3 + $0x18] sm:$0xf]
  %v242 = vld [vmem:[%s3 + $0x1c] sm:$0xf]
  %v243 = vld [vmem:[%s3 + $0x20] sm:$0xf]
  %v244 = vld [vmem:[%s3 + $0x24] sm:$0xf]
  %v245 = vld [vmem:[%s3 + $0x28] sm:$0xf]
  %v246 = vld [vmem:[%s3 + $0x2c] sm:$0xf]
  %v247 = vld [vmem:[%s3 + $0x30] sm:$0xf]
  %v248 = vld [vmem:[%s3 + $0x34] sm:$0xf]
  %v249 = vld [vmem:[%s3 + $0x38] sm:$0xf]
  %v250 = vld [vmem:[%s3 + $0x3c] sm:$0xf]
  %v251 = vunpack.c.l.bf16 %v235
  %v252 = vunpack.c.l.bf16 %v236
  %v253 = vunpack.c.l.bf16 %v237
  %v254 = vunpack.c.l.bf16 %v238
  %v255 = vunpack.c.l.bf16 %v239
  %v256 = vunpack.c.l.bf16 %v240
  %v257 = vunpack.c.l.bf16 %v241
  %v258 = vunpack.c.l.bf16 %v242
  %v259 = vunpack.c.l.bf16 %v243
  %v260 = vunpack.c.l.bf16 %v244
  %v261 = vunpack.c.l.bf16 %v245
  %v262 = vunpack.c.l.bf16 %v246
  %v263 = vunpack.c.l.bf16 %v247
  %v264 = vunpack.c.l.bf16 %v248
  %v265 = vunpack.c.l.bf16 %v249
  %v266 = vunpack.c.l.bf16 %v250
  %v267 = vadd.f32 %v173, %v251
  %v268 = vadd.f32 %v176, %v252
  %v269 = vadd.f32 %v181, %v253
  %v270 = vadd.f32 %v184, %v254
  %v271 = vadd.f32 %v189, %v255
  %v272 = vadd.f32 %v192, %v256
  %v273 = vadd.f32 %v197, %v257
  %v274 = vadd.f32 %v200, %v258
  %v275 = vadd.f32 %v205, %v259
  %v276 = vadd.f32 %v208, %v260
  %v277 = vadd.f32 %v213, %v261
  %v278 = vadd.f32 %v216, %v262
  %v279 = vadd.f32 %v221, %v263
  %v280 = vadd.f32 %v224, %v264
  %v281 = vadd.f32 %v229, %v265
  %v282 = vadd.f32 %v232, %v266
  %v283 = vpack.c.bf16 %v268, %v267
  %v284 = vpack.c.bf16 %v270, %v269
  %v285 = vpack.c.bf16 %v272, %v271
  %v286 = vpack.c.bf16 %v274, %v273
  %v287 = vpack.c.bf16 %v276, %v275
  %v288 = vpack.c.bf16 %v278, %v277
  %v289 = vpack.c.bf16 %v280, %v279
  %v290 = vpack.c.bf16 %v282, %v281
  %v299 = vunpack.c.l.b16 %v283
  %v300 = vunpack.c.h.b16 %v283
  %v301 = vunpack.c.l.b16 %v284
  %v302 = vunpack.c.h.b16 %v284
  %v303 = vunpack.c.l.b16 %v285
  %v304 = vunpack.c.h.b16 %v285
  %v305 = vunpack.c.l.b16 %v286
  %v306 = vunpack.c.h.b16 %v286
  %v307 = vunpack.c.l.b16 %v287
  %v308 = vunpack.c.h.b16 %v287
  %v309 = vunpack.c.l.b16 %v288
  %v310 = vunpack.c.h.b16 %v288
  %v311 = vunpack.c.l.b16 %v289
  %v312 = vunpack.c.h.b16 %v289
  %v313 = vunpack.c.l.b16 %v290
  %v314 = vunpack.c.h.b16 %v290
  %v315 = vpack.c.b16 %v299, %v299
  %v316 = vpack.c.b16 %v300, %v300
  %v317 = vpack.c.b16 %v301, %v301
  %v318 = vpack.c.b16 %v302, %v302
  %v319 = vpack.c.b16 %v303, %v303
  %v320 = vpack.c.b16 %v304, %v304
  %v321 = vpack.c.b16 %v305, %v305
  %v322 = vpack.c.b16 %v306, %v306
  %v323 = vpack.c.b16 %v307, %v307
  %v324 = vpack.c.b16 %v308, %v308
  %v325 = vpack.c.b16 %v309, %v309
  %v326 = vpack.c.b16 %v310, %v310
  %v327 = vpack.c.b16 %v311, %v311
  %v328 = vpack.c.b16 %v312, %v312
  %v329 = vpack.c.b16 %v313, %v313
  %v330 = vpack.c.b16 %v314, %v314
  %vm347 = vcmask 519168
  %348 = vst.msk [vmem:[%s4] sm:$0xf] %vm347, %v315
  %349 = vst.msk [vmem:[%s4 + $0x4] sm:$0xf] %vm347, %v316
  %350 = vst.msk [vmem:[%s4 + $0x8] sm:$0xf] %vm347, %v317
  %351 = vst.msk [vmem:[%s4 + $0xc] sm:$0xf] %vm347, %v318
  %352 = vst.msk [vmem:[%s4 + $0x10] sm:$0xf] %vm347, %v319
  %353 = vst.msk [vmem:[%s4 + $0x14] sm:$0xf] %vm347, %v320
  %354 = vst.msk [vmem:[%s4 + $0x18] sm:$0xf] %vm347, %v321
  %355 = vst.msk [vmem:[%s4 + $0x1c] sm:$0xf] %vm347, %v322
  %356 = vst.msk [vmem:[%s4 + $0x20] sm:$0xf] %vm347, %v323
  %357 = vst.msk [vmem:[%s4 + $0x24] sm:$0xf] %vm347, %v324
  %358 = vst.msk [vmem:[%s4 + $0x28] sm:$0xf] %vm347, %v325
  %359 = vst.msk [vmem:[%s4 + $0x2c] sm:$0xf] %vm347, %v326
  %360 = vst.msk [vmem:[%s4 + $0x30] sm:$0xf] %vm347, %v327
  %361 = vst.msk [vmem:[%s4 + $0x34] sm:$0xf] %vm347, %v328
  %362 = vst.msk [vmem:[%s4 + $0x38] sm:$0xf] %vm347, %v329
  %363 = vst.msk [vmem:[%s4 + $0x3c] sm:$0xf] %vm347, %v330
  // Predicated region
  $region18: #{retinanet_forward.19} parent=0 // pred_check
    _
  $region19: #{retinanet_forward.19} parent=0 // pred_check_branch
    %365 = sbr.rel (0) target = $region21
  $region20: #{retinanet_forward.19} parent=0 // pred_region
    _
  $region21: #{retinanet_forward.19} parent=0 // pred_fallthru
    _
  // Predicated region
  $region22: #{retinanet_forward.19} parent=0 // pred_check
    _
  $region23: #{retinanet_forward.19} parent=0 // pred_check_branch
    %367 = sbr.rel (0) target = $region25
  $region24: #{retinanet_forward.19} parent=0 // pred_region
    _
  $region25: #{retinanet_forward.19} parent=0 // pred_fallthru
    _

// kernel: retinanet_forward.20
$region0: #{retinanet_forward.20}
  #allocation0 [shape = 'u32[]', space=smem, size = 0x4, offset = 0x4, fixed_abs, tag = 'smem constant byte address 0x4 - core index']
  #allocation1 [shape = 'u32[144,128]{1,0:T(1,128)}', space=vmem, size = 0x12000, scoped, tag = 'internal scratch']
  %s0 = inlined_call_operand.vmem [shape: bf16[128,576], index: 0, kind: input, shape index: {}]
  %s1 = inlined_call_operand.vmem [shape: bf16[576,64], index: 1, kind: input, shape index: {}]
  %s2 = inlined_call_operand.vmem [shape: f32[1,64], index: 2, kind: input, shape index: {}]
  %s3 = inlined_call_operand.vmem [shape: bf16[128,64], index: 3, kind: output, shape index: {}]
  %s4 = sld [smem:[#allocation0]]
  $region22: #{retinanet_forward.20} parent=0
    _
  %s6 = ssub.s32 1, %s4
  %s7 = scalar_select 0, %s6, %s4
  // Predicated region
  $region2: #{retinanet_forward.20} parent=0 // pred_check
    _
  $region3: #{retinanet_forward.20} parent=0 // pred_check_branch
    %9 = sbr.rel (0) target = $region5
  $region4: #{retinanet_forward.20} parent=0 // pred_region
    _
  $region5: #{retinanet_forward.20} parent=0 // pred_fallthru
    _
  // Predicated region
  $region6: #{retinanet_forward.20} parent=0 // pred_check
    _
  $region7: #{retinanet_forward.20} parent=0 // pred_check_branch
    %11 = sbr.rel (0) target = $region9
  $region8: #{retinanet_forward.20} parent=0 // pred_region
    _
  $region9: #{retinanet_forward.20} parent=0 // pred_fallthru
    _
  // Predicated region
  $region10: #{retinanet_forward.20} parent=0 // pred_check
    _
  $region11: #{retinanet_forward.20} parent=0 // pred_check_branch
    %13 = sbr.rel (0) target = $region13
  $region12: #{retinanet_forward.20} parent=0 // pred_region
    _
  $region13: #{retinanet_forward.20} parent=0 // pred_fallthru
    _
  %v15 = vld [vmem:[%s0] sm:$0xff]
  %v16 = vld [vmem:[%s0 + $0x8] sm:$0xff]
  %v17 = vld [vmem:[%s0 + $0x10] sm:$0xf]
  %v18 = vld [vmem:[%s0 + $0x14] sm:$0xff]
  %v19 = vld [vmem:[%s0 + $0x1c] sm:$0xff]
  %v20 = vld [vmem:[%s0 + $0x24] sm:$0xf]
  %v21 = vld [vmem:[%s0 + $0x28] sm:$0xff]
  %v22 = vld [vmem:[%s0 + $0x30] sm:$0xff]
  %v23 = vld [vmem:[%s0 + $0x38] sm:$0xf]
  %v24 = vld [vmem:[%s0 + $0x3c] sm:$0xff]
  %v25 = vld [vmem:[%s0 + $0x44] sm:$0xff]
  %v26 = vld [vmem:[%s0 + $0x4c] sm:$0xf]
  %v27 = vld [vmem:[%s0 + $0x50] sm:$0xff]
  %v28 = vld [vmem:[%s0 + $0x58] sm:$0xff]
  %v29 = vld [vmem:[%s0 + $0x60] sm:$0xf]
  %v30 = vld [vmem:[%s0 + $0x64] sm:$0xff]
  %v31 = vld [vmem:[%s0 + $0x6c] sm:$0xff]
  %v32 = vld [vmem:[%s0 + $0x74] sm:$0xf]
  %v33 = vld [vmem:[%s0 + $0x78] sm:$0xff]
  %v34 = vld [vmem:[%s0 + $0x80] sm:$0xff]
  %v35 = vld [vmem:[%s0 + $0x88] sm:$0xf]
  %v36 = vld [vmem:[%s0 + $0x8c] sm:$0xff]
  %v37 = vld [vmem:[%s0 + $0x94] sm:$0xff]
  %v38 = vld [vmem:[%s0 + $0x9c] sm:$0xf]
  %v39 = vld [vmem:[%s0 + $0xa0] sm:$0xff]
  %v40 = vld [vmem:[%s0 + $0xa8] sm:$0xff]
  %v41 = vld [vmem:[%s0 + $0xb0] sm:$0xf]
  %v42 = vld [vmem:[%s0 + $0xb4] sm:$0xff]
  %v43 = vld [vmem:[%s0 + $0xbc] sm:$0xff]
  %v44 = vld [vmem:[%s0 + $0xc4] sm:$0xf]
  %v45 = vld [vmem:[%s0 + $0xc8] sm:$0xff]
  %v46 = vld [vmem:[%s0 + $0xd0] sm:$0xff]
  %v47 = vld [vmem:[%s0 + $0xd8] sm:$0xf]
  %v48 = vld [vmem:[%s0 + $0xdc] sm:$0xff]
  %v49 = vld [vmem:[%s0 + $0xe4] sm:$0xff]
  %v50 = vld [vmem:[%s0 + $0xec] sm:$0xf]
  %v51 = vld [vmem:[%s0 + $0xf0] sm:$0xff]
  %v52 = vld [vmem:[%s0 + $0xf8] sm:$0xff]
  %v53 = vld [vmem:[%s0 + $0x100] sm:$0xf]
  %v54 = vld [vmem:[%s0 + $0x104] sm:$0xff]
  %v55 = vld [vmem:[%s0 + $0x10c] sm:$0xff]
  %v56 = vld [vmem:[%s0 + $0x114] sm:$0xf]
  %v57 = vld [vmem:[%s0 + $0x118] sm:$0xff]
  %v58 = vld [vmem:[%s0 + $0x120] sm:$0xff]
  %v59 = vld [vmem:[%s0 + $0x128] sm:$0xf]
  %v60 = vld [vmem:[%s0 + $0x12c] sm:$0xff]
  %v61 = vld [vmem:[%s0 + $0x134] sm:$0xff]
  %v62 = vld [vmem:[%s0 + $0x13c] sm:$0xf]
  %v63 = vld [vmem:[%s1] sm:$0xf]
  %v64 = vld [vmem:[%s1 + $0x4] sm:$0xf]
  %v65 = vld [vmem:[%s1 + $0x8] sm:$0xf]
  %v66 = vld [vmem:[%s1 + $0xc] sm:$0xf]
  %v67 = vld [vmem:[%s1 + $0x10] sm:$0xf]
  %v68 = vld [vmem:[%s1 + $0x14] sm:$0xf]
  %v69 = vld [vmem:[%s1 + $0x18] sm:$0xf]
  %v70 = vld [vmem:[%s1 + $0x1c] sm:$0xf]
  %v71 = vld [vmem:[%s1 + $0x20] sm:$0xf]
  %v72 = vld [vmem:[%s1 + $0x24] sm:$0xf]
  %v73 = vld [vmem:[%s1 + $0x28] sm:$0xf]
  %v74 = vld [vmem:[%s1 + $0x2c] sm:$0xf]
  %v75 = vld [vmem:[%s1 + $0x30] sm:$0xf]
  %v76 = vld [vmem:[%s1 + $0x34] sm:$0xf]
  %v77 = vld [vmem:[%s1 + $0x38] sm:$0xf]
  %v78 = vld [vmem:[%s1 + $0x3c] sm:$0xf]
  %v79 = vld [vmem:[%s1 + $0x40] sm:$0xf]
  %v80 = vld [vmem:[%s1 + $0x44] sm:$0xf]
  %v81 = vld [vmem:[%s1 + $0x48] sm:$0xf]
  %v82 = vld [vmem:[%s1 + $0x4c] sm:$0xf]
  %v83 = vld [vmem:[%s1 + $0x50] sm:$0xf]
  %v84 = vld [vmem:[%s1 + $0x54] sm:$0xf]
  %v85 = vld [vmem:[%s1 + $0x58] sm:$0xf]
  %v86 = vld [vmem:[%s1 + $0x5c] sm:$0xf]
  %v87 = vld [vmem:[%s1 + $0x60] sm:$0xf]
  %v88 = vld [vmem:[%s1 + $0x64] sm:$0xf]
  %v89 = vld [vmem:[%s1 + $0x68] sm:$0xf]
  %v90 = vld [vmem:[%s1 + $0x6c] sm:$0xf]
  %v91 = vld [vmem:[%s1 + $0x70] sm:$0xf]
  %v92 = vld [vmem:[%s1 + $0x74] sm:$0xf]
  %v93 = vld [vmem:[%s1 + $0x78] sm:$0xf]
  %v94 = vld [vmem:[%s1 + $0x7c] sm:$0xf]
  %v95 = vld [vmem:[%s1 + $0x80] sm:$0xf]
  %v96 = vld [vmem:[%s1 + $0x84] sm:$0xf]
  %v97 = vld [vmem:[%s1 + $0x88] sm:$0xf]
  %v98 = vld [vmem:[%s1 + $0x8c] sm:$0xf]
  %v99 = vld [vmem:[%s1 + $0x90] sm:$0xf]
  %v100 = vld [vmem:[%s1 + $0x94] sm:$0xf]
  %v101 = vld [vmem:[%s1 + $0x98] sm:$0xf]
  %v102 = vld [vmem:[%s1 + $0x9c] sm:$0xf]
  %v103 = vld [vmem:[%s1 + $0xa0] sm:$0xf]
  %v104 = vld [vmem:[%s1 + $0xa4] sm:$0xf]
  %v105 = vld [vmem:[%s1 + $0xa8] sm:$0xf]
  %v106 = vld [vmem:[%s1 + $0xac] sm:$0xf]
  %v107 = vld [vmem:[%s1 + $0xb0] sm:$0xf]
  %v108 = vld [vmem:[%s1 + $0xb4] sm:$0xf]
  %v109 = vld [vmem:[%s1 + $0xb8] sm:$0xf]
  %v110 = vld [vmem:[%s1 + $0xbc] sm:$0xf]
  %v111 = vld [vmem:[%s1 + $0xc0] sm:$0xf]
  %v112 = vld [vmem:[%s1 + $0xc4] sm:$0xf]
  %v113 = vld [vmem:[%s1 + $0xc8] sm:$0xf]
  %v114 = vld [vmem:[%s1 + $0xcc] sm:$0xf]
  %v115 = vld [vmem:[%s1 + $0xd0] sm:$0xf]
  %v116 = vld [vmem:[%s1 + $0xd4] sm:$0xf]
  %v117 = vld [vmem:[%s1 + $0xd8] sm:$0xf]
  %v118 = vld [vmem:[%s1 + $0xdc] sm:$0xf]
  %v119 = vld [vmem:[%s1 + $0xe0] sm:$0xf]
  %v120 = vld [vmem:[%s1 + $0xe4] sm:$0xf]
  %v121 = vld [vmem:[%s1 + $0xe8] sm:$0xf]
  %v122 = vld [vmem:[%s1 + $0xec] sm:$0xf]
  %v123 = vld [vmem:[%s1 + $0xf0] sm:$0xf]
  %v124 = vld [vmem:[%s1 + $0xf4] sm:$0xf]
  %v125 = vld [vmem:[%s1 + $0xf8] sm:$0xf]
  %v126 = vld [vmem:[%s1 + $0xfc] sm:$0xf]
  %v127 = vld [vmem:[%s1 + $0x100] sm:$0xf]
  %v128 = vld [vmem:[%s1 + $0x104] sm:$0xf]
  %v129 = vld [vmem:[%s1 + $0x108] sm:$0xf]
  %v130 = vld [vmem:[%s1 + $0x10c] sm:$0xf]
  %v131 = vld [vmem:[%s1 + $0x110] sm:$0xf]
  %v132 = vld [vmem:[%s1 + $0x114] sm:$0xf]
  %v133 = vld [vmem:[%s1 + $0x118] sm:$0xf]
  %v134 = vld [vmem:[%s1 + $0x11c] sm:$0xf]
  %v135 = vld [vmem:[%s2] sm:$0x1]
  %v137 = vlaneseq
  %v138 = vshrl.u32 %v137, 7
  %v139 = vsub.s32 0, %v138
  %v140 = vrot.slane %v135, %v139
  %v190 = vunpack.c.l.b16 %v15
  %v191 = vunpack.c.h.b16 %v15
  %v192 = vunpack.c.l.b16 %v16
  %v193 = vunpack.c.h.b16 %v16
  %v194 = vunpack.c.l.b16 %v17
  %v195 = vunpack.c.l.b16 %v18
  %v196 = vunpack.c.h.b16 %v18
  %v197 = vunpack.c.l.b16 %v19
  %v198 = vunpack.c.h.b16 %v19
  %v199 = vunpack.c.l.b16 %v20
  %v200 = vunpack.c.l.b16 %v21
  %v201 = vunpack.c.h.b16 %v21
  %v202 = vunpack.c.l.b16 %v22
  %v203 = vunpack.c.h.b16 %v22
  %v204 = vunpack.c.l.b16 %v23
  %v205 = vunpack.c.l.b16 %v24
  %v206 = vunpack.c.h.b16 %v24
  %v207 = vunpack.c.l.b16 %v25
  %v208 = vunpack.c.h.b16 %v25
  %v209 = vunpack.c.l.b16 %v26
  %v210 = vunpack.c.l.b16 %v27
  %v211 = vunpack.c.h.b16 %v27
  %v212 = vunpack.c.l.b16 %v28
  %v213 = vunpack.c.h.b16 %v28
  %v214 = vunpack.c.l.b16 %v29
  %v215 = vunpack.c.l.b16 %v30
  %v216 = vunpack.c.h.b16 %v30
  %v217 = vunpack.c.l.b16 %v31
  %v218 = vunpack.c.h.b16 %v31
  %v219 = vunpack.c.l.b16 %v32
  %v220 = vunpack.c.l.b16 %v33
  %v221 = vunpack.c.h.b16 %v33
  %v222 = vunpack.c.l.b16 %v34
  %v223 = vunpack.c.h.b16 %v34
  %v224 = vunpack.c.l.b16 %v35
  %v225 = vunpack.c.l.b16 %v36
  %v226 = vunpack.c.h.b16 %v36
  %v227 = vunpack.c.l.b16 %v37
  %v228 = vunpack.c.h.b16 %v37
  %v229 = vunpack.c.l.b16 %v38
  %v230 = vunpack.c.l.b16 %v39
  %v231 = vunpack.c.h.b16 %v39
  %v232 = vunpack.c.l.b16 %v40
  %v233 = vunpack.c.h.b16 %v40
  %v234 = vunpack.c.l.b16 %v41
  %v235 = vunpack.c.l.b16 %v42
  %v236 = vunpack.c.h.b16 %v42
  %v237 = vunpack.c.l.b16 %v43
  %v238 = vunpack.c.h.b16 %v43
  %v239 = vunpack.c.l.b16 %v44
  %v240 = vunpack.c.l.b16 %v45
  %v241 = vunpack.c.h.b16 %v45
  %v242 = vunpack.c.l.b16 %v46
  %v243 = vunpack.c.h.b16 %v46
  %v244 = vunpack.c.l.b16 %v47
  %v245 = vunpack.c.l.b16 %v48
  %v246 = vunpack.c.h.b16 %v48
  %v247 = vunpack.c.l.b16 %v49
  %v248 = vunpack.c.h.b16 %v49
  %v249 = vunpack.c.l.b16 %v50
  %v250 = vunpack.c.l.b16 %v51
  %v251 = vunpack.c.h.b16 %v51
  %v252 = vunpack.c.l.b16 %v52
  %v253 = vunpack.c.h.b16 %v52
  %v254 = vunpack.c.l.b16 %v53
  %v255 = vunpack.c.l.b16 %v54
  %v256 = vunpack.c.h.b16 %v54
  %v257 = vunpack.c.l.b16 %v55
  %v258 = vunpack.c.h.b16 %v55
  %v259 = vunpack.c.l.b16 %v56
  %v260 = vunpack.c.l.b16 %v57
  %v261 = vunpack.c.h.b16 %v57
  %v262 = vunpack.c.l.b16 %v58
  %v263 = vunpack.c.h.b16 %v58
  %v264 = vunpack.c.l.b16 %v59
  %v265 = vunpack.c.l.b16 %v60
  %v266 = vunpack.c.h.b16 %v60
  %v267 = vunpack.c.l.b16 %v61
  %v268 = vunpack.c.h.b16 %v61
  %v269 = vunpack.c.l.b16 %v62
  %v270 = vpack.c.b16 %v195, %v190
  %v271 = vpack.c.b16 %v196, %v191
  %v272 = vpack.c.b16 %v197, %v192
  %v273 = vpack.c.b16 %v198, %v193
  %v274 = vpack.c.b16 %v199, %v194
  %v275 = vpack.c.b16 %v205, %v200
  %v276 = vpack.c.b16 %v206, %v201
  %v277 = vpack.c.b16 %v207, %v202
  %v278 = vpack.c.b16 %v208, %v203
  %v279 = vpack.c.b16 %v209, %v204
  %v280 = vpack.c.b16 %v215, %v210
  %v281 = vpack.c.b16 %v216, %v211
  %v282 = vpack.c.b16 %v217, %v212
  %v283 = vpack.c.b16 %v218, %v213
  %v284 = vpack.c.b16 %v219, %v214
  %v285 = vpack.c.b16 %v225, %v220
  %v286 = vpack.c.b16 %v226, %v221
  %v287 = vpack.c.b16 %v227, %v222
  %v288 = vpack.c.b16 %v228, %v223
  %v289 = vpack.c.b16 %v229, %v224
  %v290 = vpack.c.b16 %v235, %v230
  %v291 = vpack.c.b16 %v236, %v231
  %v292 = vpack.c.b16 %v237, %v232
  %v293 = vpack.c.b16 %v238, %v233
  %v294 = vpack.c.b16 %v239, %v234
  %v295 = vpack.c.b16 %v245, %v240
  %v296 = vpack.c.b16 %v246, %v241
  %v297 = vpack.c.b16 %v247, %v242
  %v298 = vpack.c.b16 %v248, %v243
  %v299 = vpack.c.b16 %v249, %v244
  %v300 = vpack.c.b16 %v255, %v250
  %v301 = vpack.c.b16 %v256, %v251
  %v302 = vpack.c.b16 %v257, %v252
  %v303 = vpack.c.b16 %v258, %v253
  %v304 = vpack.c.b16 %v259, %v254
  %v305 = vpack.c.b16 %v265, %v260
  %v306 = vpack.c.b16 %v266, %v261
  %v307 = vpack.c.b16 %v267, %v262
  %v308 = vpack.c.b16 %v268, %v263
  %v309 = vpack.c.b16 %v269, %v264
  %v414 = vunpack.c.l.b16 %v63
  %v415 = vunpack.c.l.b16 %v64
  %v416 = vunpack.c.l.b16 %v65
  %v417 = vunpack.c.l.b16 %v66
  %v418 = vunpack.c.l.b16 %v67
  %v419 = vunpack.c.l.b16 %v68
  %v420 = vunpack.c.l.b16 %v69
  %v421 = vunpack.c.l.b16 %v70
  %v422 = vunpack.c.l.b16 %v71
  %v423 = vunpack.c.l.b16 %v72
  %v424 = vunpack.c.l.b16 %v73
  %v425 = vunpack.c.l.b16 %v74
  %v426 = vunpack.c.l.b16 %v75
  %v427 = vunpack.c.l.b16 %v76
  %v428 = vunpack.c.l.b16 %v77
  %v429 = vunpack.c.l.b16 %v78
  %v430 = vunpack.c.l.b16 %v79
  %v431 = vunpack.c.l.b16 %v80
  %v432 = vunpack.c.l.b16 %v81
  %v433 = vunpack.c.l.b16 %v82
  %v434 = vunpack.c.l.b16 %v83
  %v435 = vunpack.c.l.b16 %v84
  %v436 = vunpack.c.l.b16 %v85
  %v437 = vunpack.c.l.b16 %v86
  %v438 = vunpack.c.l.b16 %v87
  %v439 = vunpack.c.l.b16 %v88
  %v440 = vunpack.c.l.b16 %v89
  %v441 = vunpack.c.l.b16 %v90
  %v442 = vunpack.c.l.b16 %v91
  %v443 = vunpack.c.l.b16 %v92
  %v444 = vunpack.c.l.b16 %v93
  %v445 = vunpack.c.l.b16 %v94
  %v446 = vunpack.c.l.b16 %v95
  %v447 = vunpack.c.l.b16 %v96
  %v448 = vunpack.c.l.b16 %v97
  %v449 = vunpack.c.l.b16 %v98
  %v450 = vunpack.c.l.b16 %v99
  %v451 = vunpack.c.l.b16 %v100
  %v452 = vunpack.c.l.b16 %v101
  %v453 = vunpack.c.l.b16 %v102
  %v454 = vunpack.c.l.b16 %v103
  %v455 = vunpack.c.l.b16 %v104
  %v456 = vunpack.c.l.b16 %v105
  %v457 = vunpack.c.l.b16 %v106
  %v458 = vunpack.c.l.b16 %v107
  %v459 = vunpack.c.l.b16 %v108
  %v460 = vunpack.c.l.b16 %v109
  %v461 = vunpack.c.l.b16 %v110
  %v462 = vunpack.c.l.b16 %v111
  %v463 = vunpack.c.l.b16 %v112
  %v464 = vunpack.c.l.b16 %v113
  %v465 = vunpack.c.l.b16 %v114
  %v466 = vunpack.c.l.b16 %v115
  %v467 = vunpack.c.l.b16 %v116
  %v468 = vunpack.c.l.b16 %v117
  %v469 = vunpack.c.l.b16 %v118
  %v470 = vunpack.c.l.b16 %v119
  %v471 = vunpack.c.l.b16 %v120
  %v472 = vunpack.c.l.b16 %v121
  %v473 = vunpack.c.l.b16 %v122
  %v474 = vunpack.c.l.b16 %v123
  %v475 = vunpack.c.l.b16 %v124
  %v476 = vunpack.c.l.b16 %v125
  %v477 = vunpack.c.l.b16 %v126
  %v478 = vunpack.c.l.b16 %v127
  %v479 = vunpack.c.l.b16 %v128
  %v480 = vunpack.c.l.b16 %v129
  %v481 = vunpack.c.l.b16 %v130
  %v482 = vunpack.c.l.b16 %v131
  %v483 = vunpack.c.l.b16 %v132
  %v484 = vunpack.c.l.b16 %v133
  %v485 = vunpack.c.l.b16 %v134
  %v486 = vpack.c.b16 %v415, %v414
  %v487 = vpack.c.b16 %v417, %v416
  %v488 = vpack.c.b16 %v419, %v418
  %v489 = vpack.c.b16 %v421, %v420
  %v490 = vpack.c.b16 %v423, %v422
  %v491 = vpack.c.b16 %v425, %v424
  %v492 = vpack.c.b16 %v427, %v426
  %v493 = vpack.c.b16 %v429, %v428
  %v494 = vpack.c.b16 %v431, %v430
  %v495 = vpack.c.b16 %v433, %v432
  %v496 = vpack.c.b16 %v435, %v434
  %v497 = vpack.c.b16 %v437, %v436
  %v498 = vpack.c.b16 %v439, %v438
  %v499 = vpack.c.b16 %v441, %v440
  %v500 = vpack.c.b16 %v443, %v442
  %v501 = vpack.c.b16 %v445, %v444
  %v502 = vpack.c.b16 %v447, %v446
  %v503 = vpack.c.b16 %v449, %v448
  %v504 = vpack.c.b16 %v451, %v450
  %v505 = vpack.c.b16 %v453, %v452
  %v506 = vpack.c.b16 %v455, %v454
  %v507 = vpack.c.b16 %v457, %v456
  %v508 = vpack.c.b16 %v459, %v458
  %v509 = vpack.c.b16 %v461, %v460
  %v510 = vpack.c.b16 %v463, %v462
  %v511 = vpack.c.b16 %v465, %v464
  %v512 = vpack.c.b16 %v467, %v466
  %v513 = vpack.c.b16 %v469, %v468
  %v514 = vpack.c.b16 %v471, %v470
  %v515 = vpack.c.b16 %v473, %v472
  %v516 = vpack.c.b16 %v475, %v474
  %v517 = vpack.c.b16 %v477, %v476
  %v518 = vpack.c.b16 %v479, %v478
  %v519 = vpack.c.b16 %v481, %v480
  %v520 = vpack.c.b16 %v483, %v482
  %v521 = vpack.c.b16 %v485, %v484
  %vm558 = vcmask 523264
  %v560 = vsel %vm558, %v274, 0
  %v563 = vsel %vm558, %v279, 0
  %v566 = vsel %vm558, %v284, 0
  %v569 = vsel %vm558, %v289, 0
  %v572 = vsel %vm558, %v294, 0
  %v575 = vsel %vm558, %v299, 0
  %v578 = vsel %vm558, %v304, 0
  %v581 = vsel %vm558, %v309, 0
  %583 = vmatprep.subr.bf16.mxu0 0
  %584 = vmatpush1.bf16.msra.mxu0 %v486
  %585 = vmatprep.subr.bf16.mxu0 0
  %586 = vmatpush1.bf16.msra.mxu0 %v487
  %587 = vmatprep.subr.bf16.mxu0 0
  %588 = vmatpush1.bf16.msra.mxu0 %v488
  %589 = vmatprep.subr.bf16.mxu0 0
  %590 = vmatpush1.bf16.msra.mxu0 %v489
  %591 = vmatprep.subr.bf16.mxu0 0
  %592 = vmatpush1.bf16.msra.mxu0 %v490
  %593 = vmatprep.subr.bf16.mxu0 0
  %594 = vmatpush1.bf16.msra.mxu0 %v491
  %595 = vmatprep.subr.bf16.mxu0 0
  %596 = vmatpush1.bf16.msra.mxu0 %v492
  %597 = vmatprep.subr.bf16.mxu0 0
  %598 = vmatpush1.bf16.msra.mxu0 %v493
  %599 = vmatprep.subr.bf16.mxu0 0
  %600 = vmatpush1.bf16.msra.mxu0 %v494
  %601 = vmatprep.subr.bf16.mxu0 0
  %602 = vmatpush1.bf16.msra.mxu0 %v495
  %603 = vmatprep.subr.bf16.mxu0 0
  %604 = vmatpush1.bf16.msra.mxu0 %v496
  %605 = vmatprep.subr.bf16.mxu0 0
  %606 = vmatpush1.bf16.msra.mxu0 %v497
  %607 = vmatprep.subr.bf16.mxu0 0
  %608 = vmatpush1.bf16.msra.mxu0 %v498
  %609 = vmatprep.subr.bf16.mxu0 0
  %610 = vmatpush1.bf16.msra.mxu0 %v499
  %611 = vmatprep.subr.bf16.mxu0 0
  %612 = vmatpush1.bf16.msra.mxu0 %v500
  %613 = vmatprep.subr.bf16.mxu0 0
  %614 = vmatpush1.bf16.msra.mxu0 %v501
  %615 = vmatprep.mubr.bf16.mxu0 %v271
  %616 = vmatmul.mubr.bf16.gmra.mrb[0].mxu0 %v270
  %v617 = vpop.f32.mrb[0].mxu0
  %v618 = vadd.f32 %v140, %v617
  %v619 = vpop.f32.mrb[0].mxu0
  %v620 = vpop.f32.mrb[0].mxu0
  %v621 = vadd.f32 %v140, %v620
  %v622 = vpop.f32.mrb[0].mxu0
  %623 = vmatprep.mubr.bf16.mxu0 %v276
  %624 = vmatmul.mubr.bf16.gmra.mrb[0].mxu0 %v275
  %v625 = vpop.f32.mrb[0].mxu0
  %v626 = vadd.f32 %v140, %v625
  %v627 = vpop.f32.mrb[0].mxu0
  %v628 = vpop.f32.mrb[0].mxu0
  %v629 = vadd.f32 %v140, %v628
  %v630 = vpop.f32.mrb[0].mxu0
  %631 = vmatprep.mubr.bf16.mxu0 %v281
  %632 = vmatmul.mubr.bf16.gmra.mrb[0].mxu0 %v280
  %v633 = vpop.f32.mrb[0].mxu0
  %v634 = vadd.f32 %v140, %v633
  %v635 = vpop.f32.mrb[0].mxu0
  %v636 = vpop.f32.mrb[0].mxu0
  %v637 = vadd.f32 %v140, %v636
  %v638 = vpop.f32.mrb[0].mxu0
  %639 = vmatprep.mubr.bf16.mxu0 %v286
  %640 = vmatmul.mubr.bf16.gmra.mrb[0].mxu0 %v285
  %v641 = vpop.f32.mrb[0].mxu0
  %v642 = vadd.f32 %v140, %v641
  %v643 = vpop.f32.mrb[0].mxu0
  %v644 = vpop.f32.mrb[0].mxu0
  %v645 = vadd.f32 %v140, %v644
  %v646 = vpop.f32.mrb[0].mxu0
  %647 = vmatprep.mubr.bf16.mxu0 %v291
  %648 = vmatmul.mubr.bf16.gmra.mrb[0].mxu0 %v290
  %v649 = vpop.f32.mrb[0].mxu0
  %v650 = vadd.f32 %v140, %v649
  %v651 = vpop.f32.mrb[0].mxu0
  %v652 = vpop.f32.mrb[0].mxu0
  %v653 = vadd.f32 %v140, %v652
  %v654 = vpop.f32.mrb[0].mxu0
  %655 = vmatprep.mubr.bf16.mxu0 %v296
  %656 = vmatmul.mubr.bf16.gmra.mrb[0].mxu0 %v295
  %v657 = vpop.f32.mrb[0].mxu0
  %v658 = vadd.f32 %v140, %v657
  %v659 = vpop.f32.mrb[0].mxu0
  %v660 = vpop.f32.mrb[0].mxu0
  %v661 = vadd.f32 %v140, %v660
  %v662 = vpop.f32.mrb[0].mxu0
  %663 = vmatprep.mubr.bf16.mxu0 %v301
  %664 = vmatmul.mubr.bf16.gmra.mrb[0].mxu0 %v300
  %v665 = vpop.f32.mrb[0].mxu0
  %v666 = vadd.f32 %v140, %v665
  %v667 = vpop.f32.mrb[0].mxu0
  %v668 = vpop.f32.mrb[0].mxu0
  %v669 = vadd.f32 %v140, %v668
  %v670 = vpop.f32.mrb[0].mxu0
  %671 = vmatprep.mubr.bf16.mxu0 %v306
  %672 = vmatmul.mubr.bf16.gmra.mrb[0].mxu0 %v305
  %v673 = vpop.f32.mrb[0].mxu0
  %v674 = vadd.f32 %v140, %v673
  %v675 = vpop.f32.mrb[0].mxu0
  %v676 = vpop.f32.mrb[0].mxu0
  %v677 = vadd.f32 %v140, %v676
  %v678 = vpop.f32.mrb[0].mxu0
  %679 = vdwg.mxu0
  %680 = vmatprep.subr.bf16.mxu0 0
  %681 = vmatpush1.bf16.msra.mxu0 %v502
  %682 = vmatprep.subr.bf16.mxu0 0
  %683 = vmatpush1.bf16.msra.mxu0 %v503
  %684 = vmatprep.subr.bf16.mxu0 0
  %685 = vmatpush1.bf16.msra.mxu0 %v504
  %686 = vmatprep.subr.bf16.mxu0 0
  %687 = vmatpush1.bf16.msra.mxu0 %v505
  %688 = vmatprep.subr.bf16.mxu0 0
  %689 = vmatpush1.bf16.msra.mxu0 %v506
  %690 = vmatprep.subr.bf16.mxu0 0
  %691 = vmatpush1.bf16.msra.mxu0 %v507
  %692 = vmatprep.subr.bf16.mxu0 0
  %693 = vmatpush1.bf16.msra.mxu0 %v508
  %694 = vmatprep.subr.bf16.mxu0 0
  %695 = vmatpush1.bf16.msra.mxu0 %v509
  %696 = vmatprep.subr.bf16.mxu0 0
  %697 = vmatpush1.bf16.msra.mxu0 %v510
  %698 = vmatprep.subr.bf16.mxu0 0
  %699 = vmatpush1.bf16.msra.mxu0 %v511
  %700 = vmatprep.subr.bf16.mxu0 0
  %701 = vmatpush1.bf16.msra.mxu0 %v512
  %702 = vmatprep.subr.bf16.mxu0 0
  %703 = vmatpush1.bf16.msra.mxu0 %v513
  %704 = vmatprep.subr.bf16.mxu0 0
  %705 = vmatpush1.bf16.msra.mxu0 %v514
  %706 = vmatprep.subr.bf16.mxu0 0
  %707 = vmatpush1.bf16.msra.mxu0 %v515
  %708 = vmatprep.subr.bf16.mxu0 0
  %709 = vmatpush1.bf16.msra.mxu0 %v516
  %710 = vmatprep.subr.bf16.mxu0 0
  %711 = vmatpush1.bf16.msra.mxu0 %v517
  %712 = vmatprep.mubr.bf16.mxu0 %v273
  %713 = vmatmul.mubr.bf16.gmra.mrb[0].mxu0 %v272
  %v714 = vpop.f32.mrb[0].mxu0
  %v715 = vadd.f32 %v618, %v714
  %v716 = vpop.f32.mrb[0].mxu0
  %v717 = vpop.f32.mrb[0].mxu0
  %v718 = vadd.f32 %v621, %v717
  %v719 = vpop.f32.mrb[0].mxu0
  %720 = vmatprep.mubr.bf16.mxu0 %v278
  %721 = vmatmul.mubr.bf16.gmra.mrb[0].mxu0 %v277
  %v722 = vpop.f32.mrb[0].mxu0
  %v723 = vadd.f32 %v626, %v722
  %v724 = vpop.f32.mrb[0].mxu0
  %v725 = vpop.f32.mrb[0].mxu0
  %v726 = vadd.f32 %v629, %v725
  %v727 = vpop.f32.mrb[0].mxu0
  %728 = vmatprep.mubr.bf16.mxu0 %v283
  %729 = vmatmul.mubr.bf16.gmra.mrb[0].mxu0 %v282
  %v730 = vpop.f32.mrb[0].mxu0
  %v731 = vadd.f32 %v634, %v730
  %v732 = vpop.f32.mrb[0].mxu0
  %v733 = vpop.f32.mrb[0].mxu0
  %v734 = vadd.f32 %v637, %v733
  %v735 = vpop.f32.mrb[0].mxu0
  %736 = vmatprep.mubr.bf16.mxu0 %v288
  %737 = vmatmul.mubr.bf16.gmra.mrb[0].mxu0 %v287
  %v738 = vpop.f32.mrb[0].mxu0
  %v739 = vadd.f32 %v642, %v738
  %v740 = vpop.f32.mrb[0].mxu0
  %v741 = vpop.f32.mrb[0].mxu0
  %v742 = vadd.f32 %v645, %v741
  %v743 = vpop.f32.mrb[0].mxu0
  %744 = vmatprep.mubr.bf16.mxu0 %v293
  %745 = vmatmul.mubr.bf16.gmra.mrb[0].mxu0 %v292
  %v746 = vpop.f32.mrb[0].mxu0
  %v747 = vadd.f32 %v650, %v746
  %v748 = vpop.f32.mrb[0].mxu0
  %v749 = vpop.f32.mrb[0].mxu0
  %v750 = vadd.f32 %v653, %v749
  %v751 = vpop.f32.mrb[0].mxu0
  %752 = vmatprep.mubr.bf16.mxu0 %v298
  %753 = vmatmul.mubr.bf16.gmra.mrb[0].mxu0 %v297
  %v754 = vpop.f32.mrb[0].mxu0
  %v755 = vadd.f32 %v658, %v754
  %v756 = vpop.f32.mrb[0].mxu0
  %v757 = vpop.f32.mrb[0].mxu0
  %v758 = vadd.f32 %v661, %v757
  %v759 = vpop.f32.mrb[0].mxu0
  %760 = vmatprep.mubr.bf16.mxu0 %v303
  %761 = vmatmul.mubr.bf16.gmra.mrb[0].mxu0 %v302
  %v762 = vpop.f32.mrb[0].mxu0
  %v763 = vadd.f32 %v666, %v762
  %v764 = vpop.f32.mrb[0].mxu0
  %v765 = vpop.f32.mrb[0].mxu0
  %v766 = vadd.f32 %v669, %v765
  %v767 = vpop.f32.mrb[0].mxu0
  %768 = vmatprep.mubr.bf16.mxu0 %v308
  %769 = vmatmul.mubr.bf16.gmra.mrb[0].mxu0 %v307
  %v770 = vpop.f32.mrb[0].mxu0
  %v771 = vadd.f32 %v674, %v770
  %v772 = vpop.f32.mrb[0].mxu0
  %v773 = vpop.f32.mrb[0].mxu0
  %v774 = vadd.f32 %v677, %v773
  %v775 = vpop.f32.mrb[0].mxu0
  %776 = vdwg.mxu0
  %777 = vmatprep.subr.bf16.mxu0 0
  %778 = vmatpush1.bf16.msra.mxu0 %v518
  %779 = vmatprep.subr.bf16.mxu0 0
  %780 = vmatpush1.bf16.msra.mxu0 %v519
  %781 = vmatprep.subr.bf16.mxu0 0
  %782 = vmatpush1.bf16.msra.mxu0 %v520
  %783 = vmatprep.subr.bf16.mxu0 0
  %784 = vmatpush1.bf16.msra.mxu0 %v521
  %785 = vmatprep.subr.bf16.mxu0 0
  %786 = vmatpush1.bf16.msra.mxu0 0
  %787 = vmatprep.subr.bf16.mxu0 0
  %788 = vmatpush1.bf16.msra.mxu0 0
  %789 = vmatprep.subr.bf16.mxu0 0
  %790 = vmatpush1.bf16.msra.mxu0 0
  %791 = vmatprep.subr.bf16.mxu0 0
  %792 = vmatpush1.bf16.msra.mxu0 0
  %793 = vmatprep.subr.bf16.mxu0 0
  %794 = vmatpush1.bf16.msra.mxu0 0
  %795 = vmatprep.subr.bf16.mxu0 0
  %796 = vmatpush1.bf16.msra.mxu0 0
  %797 = vmatprep.subr.bf16.mxu0 0
  %798 = vmatpush1.bf16.msra.mxu0 0
  %799 = vmatprep.subr.bf16.mxu0 0
  %800 = vmatpush1.bf16.msra.mxu0 0
  %801 = vmatprep.subr.bf16.mxu0 0
  %802 = vmatpush1.bf16.msra.mxu0 0
  %803 = vmatprep.subr.bf16.mxu0 0
  %804 = vmatpush1.bf16.msra.mxu0 0
  %805 = vmatprep.subr.bf16.mxu0 0
  %806 = vmatpush1.bf16.msra.mxu0 0
  %807 = vmatprep.subr.bf16.mxu0 0
  %808 = vmatpush1.bf16.msra.mxu0 0
  %809 = vmatprep.mubr.bf16.mxu0 0
  %810 = vmatmul.mubr.bf16.gmra.mrb[0].mxu0 %v560
  %v811 = vpop.f32.mrb[0].mxu0
  %v812 = vadd.f32 %v715, %v811
  %v813 = vpop.f32.mrb[0].mxu0
  %v814 = vpop.f32.mrb[0].mxu0
  %v815 = vadd.f32 %v718, %v814
  %v816 = vpop.f32.mrb[0].mxu0
  %817 = vmatprep.mubr.bf16.mxu0 0
  %818 = vmatmul.mubr.bf16.gmra.mrb[0].mxu0 %v563
  %v819 = vpop.f32.mrb[0].mxu0
  %v820 = vadd.f32 %v723, %v819
  %v821 = vpop.f32.mrb[0].mxu0
  %v822 = vpop.f32.mrb[0].mxu0
  %v823 = vadd.f32 %v726, %v822
  %v824 = vpop.f32.mrb[0].mxu0
  %825 = vmatprep.mubr.bf16.mxu0 0
  %826 = vmatmul.mubr.bf16.gmra.mrb[0].mxu0 %v566
  %v827 = vpop.f32.mrb[0].mxu0
  %v828 = vadd.f32 %v731, %v827
  %v829 = vpop.f32.mrb[0].mxu0
  %v830 = vpop.f32.mrb[0].mxu0
  %v831 = vadd.f32 %v734, %v830
  %v832 = vpop.f32.mrb[0].mxu0
  %833 = vmatprep.mubr.bf16.mxu0 0
  %834 = vmatmul.mubr.bf16.gmra.mrb[0].mxu0 %v569
  %v835 = vpop.f32.mrb[0].mxu0
  %v836 = vadd.f32 %v739, %v835
  %v837 = vpop.f32.mrb[0].mxu0
  %v838 = vpop.f32.mrb[0].mxu0
  %v839 = vadd.f32 %v742, %v838
  %v840 = vpop.f32.mrb[0].mxu0
  %841 = vmatprep.mubr.bf16.mxu0 0
  %842 = vmatmul.mubr.bf16.gmra.mrb[0].mxu0 %v572
  %v843 = vpop.f32.mrb[0].mxu0
  %v844 = vadd.f32 %v747, %v843
  %v845 = vpop.f32.mrb[0].mxu0
  %v846 = vpop.f32.mrb[0].mxu0
  %v847 = vadd.f32 %v750, %v846
  %v848 = vpop.f32.mrb[0].mxu0
  %849 = vmatprep.mubr.bf16.mxu0 0
  %850 = vmatmul.mubr.bf16.gmra.mrb[0].mxu0 %v575
  %v851 = vpop.f32.mrb[0].mxu0
  %v852 = vadd.f32 %v755, %v851
  %v853 = vpop.f32.mrb[0].mxu0
  %v854 = vpop.f32.mrb[0].mxu0
  %v855 = vadd.f32 %v758, %v854
  %v856 = vpop.f32.mrb[0].mxu0
  %857 = vmatprep.mubr.bf16.mxu0 0
  %858 = vmatmul.mubr.bf16.gmra.mrb[0].mxu0 %v578
  %v859 = vpop.f32.mrb[0].mxu0
  %v860 = vadd.f32 %v763, %v859
  %v861 = vpop.f32.mrb[0].mxu0
  %v862 = vpop.f32.mrb[0].mxu0
  %v863 = vadd.f32 %v766, %v862
  %v864 = vpop.f32.mrb[0].mxu0
  %865 = vmatprep.mubr.bf16.mxu0 0
  %866 = vmatmul.mubr.bf16.gmra.mrb[0].mxu0 %v581
  %v867 = vpop.f32.mrb[0].mxu0
  %v868 = vadd.f32 %v771, %v867
  %v869 = vpop.f32.mrb[0].mxu0
  %v870 = vpop.f32.mrb[0].mxu0
  %v871 = vadd.f32 %v774, %v870
  %v872 = vpop.f32.mrb[0].mxu0
  %873 = vdwg.mxu0
  %v874 = vpack.c.bf16 %v815, %v812
  %v875 = vpack.c.bf16 %v823, %v820
  %v876 = vpack.c.bf16 %v831, %v828
  %v877 = vpack.c.bf16 %v839, %v836
  %v878 = vpack.c.bf16 %v847, %v844
  %v879 = vpack.c.bf16 %v855, %v852
  %v880 = vpack.c.bf16 %v863, %v860
  %v881 = vpack.c.bf16 %v871, %v868
  %v890 = vunpack.c.l.b16 %v874
  %v891 = vunpack.c.h.b16 %v874
  %v892 = vunpack.c.l.b16 %v875
  %v893 = vunpack.c.h.b16 %v875
  %v894 = vunpack.c.l.b16 %v876
  %v895 = vunpack.c.h.b16 %v876
  %v896 = vunpack.c.l.b16 %v877
  %v897 = vunpack.c.h.b16 %v877
  %v898 = vunpack.c.l.b16 %v878
  %v899 = vunpack.c.h.b16 %v878
  %v900 = vunpack.c.l.b16 %v879
  %v901 = vunpack.c.h.b16 %v879
  %v902 = vunpack.c.l.b16 %v880
  %v903 = vunpack.c.h.b16 %v880
  %v904 = vunpack.c.l.b16 %v881
  %v905 = vunpack.c.h.b16 %v881
  %v906 = vpack.c.b16 %v890, %v890
  %v907 = vpack.c.b16 %v891, %v891
  %v908 = vpack.c.b16 %v892, %v892
  %v909 = vpack.c.b16 %v893, %v893
  %v910 = vpack.c.b16 %v894, %v894
  %v911 = vpack.c.b16 %v895, %v895
  %v912 = vpack.c.b16 %v896, %v896
  %v913 = vpack.c.b16 %v897, %v897
  %v914 = vpack.c.b16 %v898, %v898
  %v915 = vpack.c.b16 %v899, %v899
  %v916 = vpack.c.b16 %v900, %v900
  %v917 = vpack.c.b16 %v901, %v901
  %v918 = vpack.c.b16 %v902, %v902
  %v919 = vpack.c.b16 %v903, %v903
  %v920 = vpack.c.b16 %v904, %v904
  %v921 = vpack.c.b16 %v905, %v905
  %vm938 = vcmask 519168
  %939 = vst.msk [vmem:[%s3] sm:$0xf] %vm938, %v906
  %940 = vst.msk [vmem:[%s3 + $0x4] sm:$0xf] %vm938, %v907
  %941 = vst.msk [vmem:[%s3 + $0x8] sm:$0xf] %vm938, %v908
  %942 = vst.msk [vmem:[%s3 + $0xc] sm:$0xf] %vm938, %v909
  %943 = vst.msk [vmem:[%s3 + $0x10] sm:$0xf] %vm938, %v910
  %944 = vst.msk [vmem:[%s3 + $0x14] sm:$0xf] %vm938, %v911
  %945 = vst.msk [vmem:[%s3 + $0x18] sm:$0xf] %vm938, %v912
  %946 = vst.msk [vmem:[%s3 + $0x1c] sm:$0xf] %vm938, %v913
  %947 = vst.msk [vmem:[%s3 + $0x20] sm:$0xf] %vm938, %v914
  %948 = vst.msk [vmem:[%s3 + $0x24] sm:$0xf] %vm938, %v915
  %949 = vst.msk [vmem:[%s3 + $0x28] sm:$0xf] %vm938, %v916
  %950 = vst.msk [vmem:[%s3 + $0x2c] sm:$0xf] %vm938, %v917
  %951 = vst.msk [vmem:[%s3 + $0x30] sm:$0xf] %vm938, %v918
  %952 = vst.msk [vmem:[%s3 + $0x34] sm:$0xf] %vm938, %v919
  %953 = vst.msk [vmem:[%s3 + $0x38] sm:$0xf] %vm938, %v920
  %954 = vst.msk [vmem:[%s3 + $0x3c] sm:$0xf] %vm938, %v921
  // Predicated region
  $region14: #{retinanet_forward.20} parent=0 // pred_check
    _
  $region15: #{retinanet_forward.20} parent=0 // pred_check_branch
    %956 = sbr.rel (0) target = $region17
  $region16: #{retinanet_forward.20} parent=0 // pred_region
    _
  $region17: #{retinanet_forward.20} parent=0 // pred_fallthru
    _
  // Predicated region
  $region18: #{retinanet_forward.20} parent=0 // pred_check
    _
  $region19: #{retinanet_forward.20} parent=0 // pred_check_branch
    %958 = sbr.rel (0) target = $region21
  $region20: #{retinanet_forward.20} parent=0 // pred_region
    _
  $region21: #{retinanet_forward.20} parent=0 // pred_fallthru
    _

// kernel: retinanet_forward.21
$region0: #{retinanet_forward.21}
  #allocation0 [shape = 'u32[]', space=smem, size = 0x4, offset = 0x4, fixed_abs, tag = 'smem constant byte address 0x4 - core index']
  #allocation1 [shape = 'u32[144,128]{1,0:T(1,128)}', space=vmem, size = 0x12000, scoped, tag = 'internal scratch']
  %s0 = inlined_call_operand.vmem [shape: bf16[32,576], index: 0, kind: input, shape index: {}]
  %s1 = inlined_call_operand.vmem [shape: bf16[576,64], index: 1, kind: input, shape index: {}]
  %s2 = inlined_call_operand.vmem [shape: f32[1,64], index: 2, kind: input, shape index: {}]
  %s3 = inlined_call_operand.vmem [shape: bf16[32,64], index: 3, kind: output, shape index: {}]
  %s4 = sld [smem:[#allocation0]]
  $region22: #{retinanet_forward.21} parent=0
    _
  %s6 = ssub.s32 1, %s4
  %s7 = scalar_select 0, %s6, %s4
  // Predicated region
  $region2: #{retinanet_forward.21} parent=0 // pred_check
    _
  $region3: #{retinanet_forward.21} parent=0 // pred_check_branch
    %9 = sbr.rel (0) target = $region5
  $region4: #{retinanet_forward.21} parent=0 // pred_region
    _
  $region5: #{retinanet_forward.21} parent=0 // pred_fallthru
    _
  // Predicated region
  $region6: #{retinanet_forward.21} parent=0 // pred_check
    _
  $region7: #{retinanet_forward.21} parent=0 // pred_check_branch
    %11 = sbr.rel (0) target = $region9
  $region8: #{retinanet_forward.21} parent=0 // pred_region
    _
  $region9: #{retinanet_forward.21} parent=0 // pred_fallthru
    _
  // Predicated region
  $region10: #{retinanet_forward.21} parent=0 // pred_check
    _
  $region11: #{retinanet_forward.21} parent=0 // pred_check_branch
    %13 = sbr.rel (0) target = $region13
  $region12: #{retinanet_forward.21} parent=0 // pred_region
    _
  $region13: #{retinanet_forward.21} parent=0 // pred_fallthru
    _
  %v15 = vld [vmem:[%s0] sm:$0xff]
  %v16 = vld [vmem:[%s0 + $0x8] sm:$0xff]
  %v17 = vld [vmem:[%s0 + $0x10] sm:$0xf]
  %v18 = vld [vmem:[%s0 + $0x14] sm:$0xff]
  %v19 = vld [vmem:[%s0 + $0x1c] sm:$0xff]
  %v20 = vld [vmem:[%s0 + $0x24] sm:$0xf]
  %v21 = vld [vmem:[%s0 + $0x28] sm:$0xff]
  %v22 = vld [vmem:[%s0 + $0x30] sm:$0xff]
  %v23 = vld [vmem:[%s0 + $0x38] sm:$0xf]
  %v24 = vld [vmem:[%s0 + $0x3c] sm:$0xff]
  %v25 = vld [vmem:[%s0 + $0x44] sm:$0xff]
  %v26 = vld [vmem:[%s0 + $0x4c] sm:$0xf]
  %v27 = vld [vmem:[%s1] sm:$0xf]
  %v28 = vld [vmem:[%s1 + $0x4] sm:$0xf]
  %v29 = vld [vmem:[%s1 + $0x8] sm:$0xf]
  %v30 = vld [vmem:[%s1 + $0xc] sm:$0xf]
  %v31 = vld [vmem:[%s1 + $0x10] sm:$0xf]
  %v32 = vld [vmem:[%s1 + $0x14] sm:$0xf]
  %v33 = vld [vmem:[%s1 + $0x18] sm:$0xf]
  %v34 = vld [vmem:[%s1 + $0x1c] sm:$0xf]
  %v35 = vld [vmem:[%s1 + $0x20] sm:$0xf]
  %v36 = vld [vmem:[%s1 + $0x24] sm:$0xf]
  %v37 = vld [vmem:[%s1 + $0x28] sm:$0xf]
  %v38 = vld [vmem:[%s1 + $0x2c] sm:$0xf]
  %v39 = vld [vmem:[%s1 + $0x30] sm:$0xf]
  %v40 = vld [vmem:[%s1 + $0x34] sm:$0xf]
  %v41 = vld [vmem:[%s1 + $0x38] sm:$0xf]
  %v42 = vld [vmem:[%s1 + $0x3c] sm:$0xf]
  %v43 = vld [vmem:[%s1 + $0x40] sm:$0xf]
  %v44 = vld [vmem:[%s1 + $0x44] sm:$0xf]
  %v45 = vld [vmem:[%s1 + $0x48] sm:$0xf]
  %v46 = vld [vmem:[%s1 + $0x4c] sm:$0xf]
  %v47 = vld [vmem:[%s1 + $0x50] sm:$0xf]
  %v48 = vld [vmem:[%s1 + $0x54] sm:$0xf]
  %v49 = vld [vmem:[%s1 + $0x58] sm:$0xf]
  %v50 = vld [vmem:[%s1 + $0x5c] sm:$0xf]
  %v51 = vld [vmem:[%s1 + $0x60] sm:$0xf]
  %v52 = vld [vmem:[%s1 + $0x64] sm:$0xf]
  %v53 = vld [vmem:[%s1 + $0x68] sm:$0xf]
  %v54 = vld [vmem:[%s1 + $0x6c] sm:$0xf]
  %v55 = vld [vmem:[%s1 + $0x70] sm:$0xf]
  %v56 = vld [vmem:[%s1 + $0x74] sm:$0xf]
  %v57 = vld [vmem:[%s1 + $0x78] sm:$0xf]
  %v58 = vld [vmem:[%s1 + $0x7c] sm:$0xf]
  %v59 = vld [vmem:[%s1 + $0x80] sm:$0xf]
  %v60 = vld [vmem:[%s1 + $0x84] sm:$0xf]
  %v61 = vld [vmem:[%s1 + $0x88] sm:$0xf]
  %v62 = vld [vmem:[%s1 + $0x8c] sm:$0xf]
  %v63 = vld [vmem:[%s1 + $0x90] sm:$0xf]
  %v64 = vld [vmem:[%s1 + $0x94] sm:$0xf]
  %v65 = vld [vmem:[%s1 + $0x98] sm:$0xf]
  %v66 = vld [vmem:[%s1 + $0x9c] sm:$0xf]
  %v67 = vld [vmem:[%s1 + $0xa0] sm:$0xf]
  %v68 = vld [vmem:[%s1 + $0xa4] sm:$0xf]
  %v69 = vld [vmem:[%s1 + $0xa8] sm:$0xf]
  %v70 = vld [vmem:[%s1 + $0xac] sm:$0xf]
  %v71 = vld [vmem:[%s1 + $0xb0] sm:$0xf]
  %v72 = vld [vmem:[%s1 + $0xb4] sm:$0xf]
  %v73 = vld [vmem:[%s1 + $0xb8] sm:$0xf]
  %v74 = vld [vmem:[%s1 + $0xbc] sm:$0xf]
  %v75 = vld [vmem:[%s1 + $0xc0] sm:$0xf]
  %v76 = vld [vmem:[%s1 + $0xc4] sm:$0xf]
  %v77 = vld [vmem:[%s1 + $0xc8] sm:$0xf]
  %v78 = vld [vmem:[%s1 + $0xcc] sm:$0xf]
  %v79 = vld [vmem:[%s1 + $0xd0] sm:$0xf]
  %v80 = vld [vmem:[%s1 + $0xd4] sm:$0xf]
  %v81 = vld [vmem:[%s1 + $0xd8] sm:$0xf]
  %v82 = vld [vmem:[%s1 + $0xdc] sm:$0xf]
  %v83 = vld [vmem:[%s1 + $0xe0] sm:$0xf]
  %v84 = vld [vmem:[%s1 + $0xe4] sm:$0xf]
  %v85 = vld [vmem:[%s1 + $0xe8] sm:$0xf]
  %v86 = vld [vmem:[%s1 + $0xec] sm:$0xf]
  %v87 = vld [vmem:[%s1 + $0xf0] sm:$0xf]
  %v88 = vld [vmem:[%s1 + $0xf4] sm:$0xf]
  %v89 = vld [vmem:[%s1 + $0xf8] sm:$0xf]
  %v90 = vld [vmem:[%s1 + $0xfc] sm:$0xf]
  %v91 = vld [vmem:[%s1 + $0x100] sm:$0xf]
  %v92 = vld [vmem:[%s1 + $0x104] sm:$0xf]
  %v93 = vld [vmem:[%s1 + $0x108] sm:$0xf]
  %v94 = vld [vmem:[%s1 + $0x10c] sm:$0xf]
  %v95 = vld [vmem:[%s1 + $0x110] sm:$0xf]
  %v96 = vld [vmem:[%s1 + $0x114] sm:$0xf]
  %v97 = vld [vmem:[%s1 + $0x118] sm:$0xf]
  %v98 = vld [vmem:[%s1 + $0x11c] sm:$0xf]
  %v99 = vld [vmem:[%s2] sm:$0x1]
  %v101 = vlaneseq
  %v102 = vshrl.u32 %v101, 7
  %v103 = vsub.s32 0, %v102
  %v104 = vrot.slane %v99, %v103
  %v118 = vunpack.c.l.b16 %v15
  %v119 = vunpack.c.h.b16 %v15
  %v120 = vunpack.c.l.b16 %v16
  %v121 = vunpack.c.h.b16 %v16
  %v122 = vunpack.c.l.b16 %v17
  %v123 = vunpack.c.l.b16 %v18
  %v124 = vunpack.c.h.b16 %v18
  %v125 = vunpack.c.l.b16 %v19
  %v126 = vunpack.c.h.b16 %v19
  %v127 = vunpack.c.l.b16 %v20
  %v128 = vunpack.c.l.b16 %v21
  %v129 = vunpack.c.h.b16 %v21
  %v130 = vunpack.c.l.b16 %v22
  %v131 = vunpack.c.h.b16 %v22
  %v132 = vunpack.c.l.b16 %v23
  %v133 = vunpack.c.l.b16 %v24
  %v134 = vunpack.c.h.b16 %v24
  %v135 = vunpack.c.l.b16 %v25
  %v136 = vunpack.c.h.b16 %v25
  %v137 = vunpack.c.l.b16 %v26
  %v138 = vpack.c.b16 %v123, %v118
  %v139 = vpack.c.b16 %v124, %v119
  %v140 = vpack.c.b16 %v125, %v120
  %v141 = vpack.c.b16 %v126, %v121
  %v142 = vpack.c.b16 %v127, %v122
  %v143 = vpack.c.b16 %v133, %v128
  %v144 = vpack.c.b16 %v134, %v129
  %v145 = vpack.c.b16 %v135, %v130
  %v146 = vpack.c.b16 %v136, %v131
  %v147 = vpack.c.b16 %v137, %v132
  %v228 = vunpack.c.l.b16 %v27
  %v229 = vunpack.c.l.b16 %v28
  %v230 = vunpack.c.l.b16 %v29
  %v231 = vunpack.c.l.b16 %v30
  %v232 = vunpack.c.l.b16 %v31
  %v233 = vunpack.c.l.b16 %v32
  %v234 = vunpack.c.l.b16 %v33
  %v235 = vunpack.c.l.b16 %v34
  %v236 = vunpack.c.l.b16 %v35
  %v237 = vunpack.c.l.b16 %v36
  %v238 = vunpack.c.l.b16 %v37
  %v239 = vunpack.c.l.b16 %v38
  %v240 = vunpack.c.l.b16 %v39
  %v241 = vunpack.c.l.b16 %v40
  %v242 = vunpack.c.l.b16 %v41
  %v243 = vunpack.c.l.b16 %v42
  %v244 = vunpack.c.l.b16 %v43
  %v245 = vunpack.c.l.b16 %v44
  %v246 = vunpack.c.l.b16 %v45
  %v247 = vunpack.c.l.b16 %v46
  %v248 = vunpack.c.l.b16 %v47
  %v249 = vunpack.c.l.b16 %v48
  %v250 = vunpack.c.l.b16 %v49
  %v251 = vunpack.c.l.b16 %v50
  %v252 = vunpack.c.l.b16 %v51
  %v253 = vunpack.c.l.b16 %v52
  %v254 = vunpack.c.l.b16 %v53
  %v255 = vunpack.c.l.b16 %v54
  %v256 = vunpack.c.l.b16 %v55
  %v257 = vunpack.c.l.b16 %v56
  %v258 = vunpack.c.l.b16 %v57
  %v259 = vunpack.c.l.b16 %v58
  %v260 = vunpack.c.l.b16 %v59
  %v261 = vunpack.c.l.b16 %v60
  %v262 = vunpack.c.l.b16 %v61
  %v263 = vunpack.c.l.b16 %v62
  %v264 = vunpack.c.l.b16 %v63
  %v265 = vunpack.c.l.b16 %v64
  %v266 = vunpack.c.l.b16 %v65
  %v267 = vunpack.c.l.b16 %v66
  %v268 = vunpack.c.l.b16 %v67
  %v269 = vunpack.c.l.b16 %v68
  %v270 = vunpack.c.l.b16 %v69
  %v271 = vunpack.c.l.b16 %v70
  %v272 = vunpack.c.l.b16 %v71
  %v273 = vunpack.c.l.b16 %v72
  %v274 = vunpack.c.l.b16 %v73
  %v275 = vunpack.c.l.b16 %v74
  %v276 = vunpack.c.l.b16 %v75
  %v277 = vunpack.c.l.b16 %v76
  %v278 = vunpack.c.l.b16 %v77
  %v279 = vunpack.c.l.b16 %v78
  %v280 = vunpack.c.l.b16 %v79
  %v281 = vunpack.c.l.b16 %v80
  %v282 = vunpack.c.l.b16 %v81
  %v283 = vunpack.c.l.b16 %v82
  %v284 = vunpack.c.l.b16 %v83
  %v285 = vunpack.c.l.b16 %v84
  %v286 = vunpack.c.l.b16 %v85
  %v287 = vunpack.c.l.b16 %v86
  %v288 = vunpack.c.l.b16 %v87
  %v289 = vunpack.c.l.b16 %v88
  %v290 = vunpack.c.l.b16 %v89
  %v291 = vunpack.c.l.b16 %v90
  %v292 = vunpack.c.l.b16 %v91
  %v293 = vunpack.c.l.b16 %v92
  %v294 = vunpack.c.l.b16 %v93
  %v295 = vunpack.c.l.b16 %v94
  %v296 = vunpack.c.l.b16 %v95
  %v297 = vunpack.c.l.b16 %v96
  %v298 = vunpack.c.l.b16 %v97
  %v299 = vunpack.c.l.b16 %v98
  %v300 = vpack.c.b16 %v229, %v228
  %v301 = vpack.c.b16 %v231, %v230
  %v302 = vpack.c.b16 %v233, %v232
  %v303 = vpack.c.b16 %v235, %v234
  %v304 = vpack.c.b16 %v237, %v236
  %v305 = vpack.c.b16 %v239, %v238
  %v306 = vpack.c.b16 %v241, %v240
  %v307 = vpack.c.b16 %v243, %v242
  %v308 = vpack.c.b16 %v245, %v244
  %v309 = vpack.c.b16 %v247, %v246
  %v310 = vpack.c.b16 %v249, %v248
  %v311 = vpack.c.b16 %v251, %v250
  %v312 = vpack.c.b16 %v253, %v252
  %v313 = vpack.c.b16 %v255, %v254
  %v314 = vpack.c.b16 %v257, %v256
  %v315 = vpack.c.b16 %v259, %v258
  %v316 = vpack.c.b16 %v261, %v260
  %v317 = vpack.c.b16 %v263, %v262
  %v318 = vpack.c.b16 %v265, %v264
  %v319 = vpack.c.b16 %v267, %v266
  %v320 = vpack.c.b16 %v269, %v268
  %v321 = vpack.c.b16 %v271, %v270
  %v322 = vpack.c.b16 %v273, %v272
  %v323 = vpack.c.b16 %v275, %v274
  %v324 = vpack.c.b16 %v277, %v276
  %v325 = vpack.c.b16 %v279, %v278
  %v326 = vpack.c.b16 %v281, %v280
  %v327 = vpack.c.b16 %v283, %v282
  %v328 = vpack.c.b16 %v285, %v284
  %v329 = vpack.c.b16 %v287, %v286
  %v330 = vpack.c.b16 %v289, %v288
  %v331 = vpack.c.b16 %v291, %v290
  %v332 = vpack.c.b16 %v293, %v292
  %v333 = vpack.c.b16 %v295, %v294
  %v334 = vpack.c.b16 %v297, %v296
  %v335 = vpack.c.b16 %v299, %v298
  %vm372 = vcmask 523264
  %v374 = vsel %vm372, %v142, 0
  %v377 = vsel %vm372, %v147, 0
  %379 = vmatprep.subr.bf16.mxu0 0
  %380 = vmatpush1.bf16.msra.mxu0 %v300
  %381 = vmatprep.subr.bf16.mxu0 0
  %382 = vmatpush1.bf16.msra.mxu0 %v301
  %383 = vmatprep.subr.bf16.mxu0 0
  %384 = vmatpush1.bf16.msra.mxu0 %v302
  %385 = vmatprep.subr.bf16.mxu0 0
  %386 = vmatpush1.bf16.msra.mxu0 %v303
  %387 = vmatprep.subr.bf16.mxu0 0
  %388 = vmatpush1.bf16.msra.mxu0 %v304
  %389 = vmatprep.subr.bf16.mxu0 0
  %390 = vmatpush1.bf16.msra.mxu0 %v305
  %391 = vmatprep.subr.bf16.mxu0 0
  %392 = vmatpush1.bf16.msra.mxu0 %v306
  %393 = vmatprep.subr.bf16.mxu0 0
  %394 = vmatpush1.bf16.msra.mxu0 %v307
  %395 = vmatprep.subr.bf16.mxu0 0
  %396 = vmatpush1.bf16.msra.mxu0 %v308
  %397 = vmatprep.subr.bf16.mxu0 0
  %398 = vmatpush1.bf16.msra.mxu0 %v309
  %399 = vmatprep.subr.bf16.mxu0 0
  %400 = vmatpush1.bf16.msra.mxu0 %v310
  %401 = vmatprep.subr.bf16.mxu0 0
  %402 = vmatpush1.bf16.msra.mxu0 %v311
  %403 = vmatprep.subr.bf16.mxu0 0
  %404 = vmatpush1.bf16.msra.mxu0 %v312
  %405 = vmatprep.subr.bf16.mxu0 0
  %406 = vmatpush1.bf16.msra.mxu0 %v313
  %407 = vmatprep.subr.bf16.mxu0 0
  %408 = vmatpush1.bf16.msra.mxu0 %v314
  %409 = vmatprep.subr.bf16.mxu0 0
  %410 = vmatpush1.bf16.msra.mxu0 %v315
  %411 = vmatprep.mubr.bf16.mxu0 %v139
  %412 = vmatmul.mubr.bf16.gmra.mrb[0].mxu0 %v138
  %v413 = vpop.f32.mrb[0].mxu0
  %v414 = vadd.f32 %v104, %v413
  %v415 = vpop.f32.mrb[0].mxu0
  %v416 = vpop.f32.mrb[0].mxu0
  %v417 = vadd.f32 %v104, %v416
  %v418 = vpop.f32.mrb[0].mxu0
  %419 = vmatprep.mubr.bf16.mxu0 %v144
  %420 = vmatmul.mubr.bf16.gmra.mrb[0].mxu0 %v143
  %v421 = vpop.f32.mrb[0].mxu0
  %v422 = vadd.f32 %v104, %v421
  %v423 = vpop.f32.mrb[0].mxu0
  %v424 = vpop.f32.mrb[0].mxu0
  %v425 = vadd.f32 %v104, %v424
  %v426 = vpop.f32.mrb[0].mxu0
  %427 = vdwg.mxu0
  %428 = vmatprep.subr.bf16.mxu0 0
  %429 = vmatpush1.bf16.msra.mxu0 %v316
  %430 = vmatprep.subr.bf16.mxu0 0
  %431 = vmatpush1.bf16.msra.mxu0 %v317
  %432 = vmatprep.subr.bf16.mxu0 0
  %433 = vmatpush1.bf16.msra.mxu0 %v318
  %434 = vmatprep.subr.bf16.mxu0 0
  %435 = vmatpush1.bf16.msra.mxu0 %v319
  %436 = vmatprep.subr.bf16.mxu0 0
  %437 = vmatpush1.bf16.msra.mxu0 %v320
  %438 = vmatprep.subr.bf16.mxu0 0
  %439 = vmatpush1.bf16.msra.mxu0 %v321
  %440 = vmatprep.subr.bf16.mxu0 0
  %441 = vmatpush1.bf16.msra.mxu0 %v322
  %442 = vmatprep.subr.bf16.mxu0 0
  %443 = vmatpush1.bf16.msra.mxu0 %v323
  %444 = vmatprep.subr.bf16.mxu0 0
  %445 = vmatpush1.bf16.msra.mxu0 %v324
  %446 = vmatprep.subr.bf16.mxu0 0
  %447 = vmatpush1.bf16.msra.mxu0 %v325
  %448 = vmatprep.subr.bf16.mxu0 0
  %449 = vmatpush1.bf16.msra.mxu0 %v326
  %450 = vmatprep.subr.bf16.mxu0 0
  %451 = vmatpush1.bf16.msra.mxu0 %v327
  %452 = vmatprep.subr.bf16.mxu0 0
  %453 = vmatpush1.bf16.msra.mxu0 %v328
  %454 = vmatprep.subr.bf16.mxu0 0
  %455 = vmatpush1.bf16.msra.mxu0 %v329
  %456 = vmatprep.subr.bf16.mxu0 0
  %457 = vmatpush1.bf16.msra.mxu0 %v330
  %458 = vmatprep.subr.bf16.mxu0 0
  %459 = vmatpush1.bf16.msra.mxu0 %v331
  %460 = vmatprep.mubr.bf16.mxu0 %v141
  %461 = vmatmul.mubr.bf16.gmra.mrb[0].mxu0 %v140
  %v462 = vpop.f32.mrb[0].mxu0
  %v463 = vadd.f32 %v414, %v462
  %v464 = vpop.f32.mrb[0].mxu0
  %v465 = vpop.f32.mrb[0].mxu0
  %v466 = vadd.f32 %v417, %v465
  %v467 = vpop.f32.mrb[0].mxu0
  %468 = vmatprep.mubr.bf16.mxu0 %v146
  %469 = vmatmul.mubr.bf16.gmra.mrb[0].mxu0 %v145
  %v470 = vpop.f32.mrb[0].mxu0
  %v471 = vadd.f32 %v422, %v470
  %v472 = vpop.f32.mrb[0].mxu0
  %v473 = vpop.f32.mrb[0].mxu0
  %v474 = vadd.f32 %v425, %v473
  %v475 = vpop.f32.mrb[0].mxu0
  %476 = vdwg.mxu0
  %477 = vmatprep.subr.bf16.mxu0 0
  %478 = vmatpush1.bf16.msra.mxu0 %v332
  %479 = vmatprep.subr.bf16.mxu0 0
  %480 = vmatpush1.bf16.msra.mxu0 %v333
  %481 = vmatprep.subr.bf16.mxu0 0
  %482 = vmatpush1.bf16.msra.mxu0 %v334
  %483 = vmatprep.subr.bf16.mxu0 0
  %484 = vmatpush1.bf16.msra.mxu0 %v335
  %485 = vmatprep.subr.bf16.mxu0 0
  %486 = vmatpush1.bf16.msra.mxu0 0
  %487 = vmatprep.subr.bf16.mxu0 0
  %488 = vmatpush1.bf16.msra.mxu0 0
  %489 = vmatprep.subr.bf16.mxu0 0
  %490 = vmatpush1.bf16.msra.mxu0 0
  %491 = vmatprep.subr.bf16.mxu0 0
  %492 = vmatpush1.bf16.msra.mxu0 0
  %493 = vmatprep.subr.bf16.mxu0 0
  %494 = vmatpush1.bf16.msra.mxu0 0
  %495 = vmatprep.subr.bf16.mxu0 0
  %496 = vmatpush1.bf16.msra.mxu0 0
  %497 = vmatprep.subr.bf16.mxu0 0
  %498 = vmatpush1.bf16.msra.mxu0 0
  %499 = vmatprep.subr.bf16.mxu0 0
  %500 = vmatpush1.bf16.msra.mxu0 0
  %501 = vmatprep.subr.bf16.mxu0 0
  %502 = vmatpush1.bf16.msra.mxu0 0
  %503 = vmatprep.subr.bf16.mxu0 0
  %504 = vmatpush1.bf16.msra.mxu0 0
  %505 = vmatprep.subr.bf16.mxu0 0
  %506 = vmatpush1.bf16.msra.mxu0 0
  %507 = vmatprep.subr.bf16.mxu0 0
  %508 = vmatpush1.bf16.msra.mxu0 0
  %509 = vmatprep.mubr.bf16.mxu0 0
  %510 = vmatmul.mubr.bf16.gmra.mrb[0].mxu0 %v374
  %v511 = vpop.f32.mrb[0].mxu0
  %v512 = vadd.f32 %v463, %v511
  %v513 = vpop.f32.mrb[0].mxu0
  %v514 = vpop.f32.mrb[0].mxu0
  %v515 = vadd.f32 %v466, %v514
  %v516 = vpop.f32.mrb[0].mxu0
  %517 = vmatprep.mubr.bf16.mxu0 0
  %518 = vmatmul.mubr.bf16.gmra.mrb[0].mxu0 %v377
  %v519 = vpop.f32.mrb[0].mxu0
  %v520 = vadd.f32 %v471, %v519
  %v521 = vpop.f32.mrb[0].mxu0
  %v522 = vpop.f32.mrb[0].mxu0
  %v523 = vadd.f32 %v474, %v522
  %v524 = vpop.f32.mrb[0].mxu0
  %525 = vdwg.mxu0
  %v526 = vpack.c.bf16 %v515, %v512
  %v527 = vpack.c.bf16 %v523, %v520
  %v530 = vunpack.c.l.b16 %v526
  %v531 = vunpack.c.h.b16 %v526
  %v532 = vunpack.c.l.b16 %v527
  %v533 = vunpack.c.h.b16 %v527
  %v534 = vpack.c.b16 %v530, %v530
  %v535 = vpack.c.b16 %v531, %v531
  %v536 = vpack.c.b16 %v532, %v532
  %v537 = vpack.c.b16 %v533, %v533
  %vm542 = vcmask 519168
  %543 = vst.msk [vmem:[%s3] sm:$0xf] %vm542, %v534
  %544 = vst.msk [vmem:[%s3 + $0x4] sm:$0xf] %vm542, %v535
  %545 = vst.msk [vmem:[%s3 + $0x8] sm:$0xf] %vm542, %v536
  %546 = vst.msk [vmem:[%s3 + $0xc] sm:$0xf] %vm542, %v537
  // Predicated region
  $region14: #{retinanet_forward.21} parent=0 // pred_check
    _
  $region15: #{retinanet_forward.21} parent=0 // pred_check_branch
    %548 = sbr.rel (0) target = $region17
  $region16: #{retinanet_forward.21} parent=0 // pred_region
    _
  $region17: #{retinanet_forward.21} parent=0 // pred_fallthru
    _
  // Predicated region
  $region18: #{retinanet_forward.21} parent=0 // pred_check
    _
  $region19: #{retinanet_forward.21} parent=0 // pred_check_branch
    %550 = sbr.rel (0) target = $region21
  $region20: #{retinanet_forward.21} parent=0 // pred_region
    _
  $region21: #{retinanet_forward.21} parent=0 // pred_fallthru
    _

// kernel: reverse.1
$region0: #{reverse.1}
  #allocation0 [shape = 's32[1]{0}', space=sflag, size = 0x4, scoped, tag = 'scoped memory for reverse.1']
  %s0 = inlined_call_operand.vmem [shape: bf16[3,3,64,576], index: 0, kind: input, shape index: {}]
  %s1 = inlined_call_operand.vmem [shape: bf16[3,3,64,576], index: 1, kind: output, shape index: {}]
  %s2 = scalar_lea.vmem %s0, 1280
  %v3 = vld [vmem:[%s2] sm:$0xf]
  %v4 = vunpack.c.l.bf16 %v3
  %v5 = vunpack.c.h.bf16 %v3
  %s6 = scalar_lea.vmem %s0, 800
  %v7 = vld [vmem:[%s6] sm:$0xf]
  %v8 = vunpack.c.l.bf16 %v7
  %v9 = vunpack.c.h.bf16 %v7
  %s10 = scalar_lea.vmem %s1, 480
  %s11 = scalar_lea.vmem %s0, 320
  %v12 = vld [vmem:[%s11] sm:$0xf]
  %v13 = vunpack.c.l.bf16 %v12
  %v14 = vunpack.c.h.bf16 %v12
  %s15 = scalar_lea.vmem %s1, 960
  %s16 = scalar_lea.vmem %s0, 1120
  %v17 = vld [vmem:[%s16] sm:$0xf]
  %v18 = vunpack.c.l.bf16 %v17
  %v19 = vunpack.c.h.bf16 %v17
  %s20 = scalar_lea.vmem %s1, 160
  %s21 = scalar_lea.vmem %s0, 640
  %v22 = vld [vmem:[%s21] sm:$0xf]
  %v23 = vunpack.c.l.bf16 %v22
  %v24 = vunpack.c.h.bf16 %v22
  %s25 = scalar_lea.vmem %s1, 640
  %s26 = scalar_lea.vmem %s0, 160
  %v27 = vld [vmem:[%s26] sm:$0xf]
  %v28 = vunpack.c.l.bf16 %v27
  %v29 = vunpack.c.h.bf16 %v27
  %s30 = scalar_lea.vmem %s1, 1120
  %s31 = scalar_lea.vmem %s0, 960
  %v32 = vld [vmem:[%s31] sm:$0xf]
  %v33 = vunpack.c.l.bf16 %v32
  %v34 = vunpack.c.h.bf16 %v32
  %s35 = scalar_lea.vmem %s1, 320
  %s36 = scalar_lea.vmem %s0, 480
  %v37 = vld [vmem:[%s36] sm:$0xf]
  %v38 = vunpack.c.l.bf16 %v37
  %v39 = vunpack.c.h.bf16 %v37
  %s40 = scalar_lea.vmem %s1, 800
  %v41 = vld [vmem:[%s0] sm:$0xf]
  %v42 = vunpack.c.l.bf16 %v41
  %v43 = vunpack.c.h.bf16 %v41
  %s44 = scalar_lea.vmem %s1, 1280
  %s45 = scalar_lea.vmem %s0, 1300
  %v46 = vld [vmem:[%s45] sm:$0xf]
  %v47 = vunpack.c.l.bf16 %v46
  %v48 = vunpack.c.h.bf16 %v46
  %s49 = scalar_lea.vmem %s1, 20
  %s50 = scalar_lea.vmem %s0, 820
  %v51 = vld [vmem:[%s50] sm:$0xf]
  %v52 = vunpack.c.l.bf16 %v51
  %v53 = vunpack.c.h.bf16 %v51
  %s54 = scalar_lea.vmem %s1, 500
  %s55 = scalar_lea.vmem %s0, 340
  %v56 = vld [vmem:[%s55] sm:$0xf]
  %v57 = vunpack.c.l.bf16 %v56
  %v58 = vunpack.c.h.bf16 %v56
  %s59 = scalar_lea.vmem %s1, 980
  %s60 = scalar_lea.vmem %s0, 1140
  %v61 = vld [vmem:[%s60] sm:$0xf]
  %v62 = vunpack.c.l.bf16 %v61
  %v63 = vunpack.c.h.bf16 %v61
  %s64 = scalar_lea.vmem %s1, 180
  %s65 = scalar_lea.vmem %s0, 660
  %v66 = vld [vmem:[%s65] sm:$0xf]
  %v67 = vunpack.c.l.bf16 %v66
  %v68 = vunpack.c.h.bf16 %v66
  %s69 = scalar_lea.vmem %s1, 660
  %s70 = scalar_lea.vmem %s0, 180
  %v71 = vld [vmem:[%s70] sm:$0xf]
  %v72 = vunpack.c.l.bf16 %v71
  %v73 = vunpack.c.h.bf16 %v71
  %s74 = scalar_lea.vmem %s1, 1140
  %s75 = scalar_lea.vmem %s0, 980
  %v76 = vld [vmem:[%s75] sm:$0xf]
  %v77 = vunpack.c.l.bf16 %v76
  %v78 = vunpack.c.h.bf16 %v76
  %s79 = scalar_lea.vmem %s1, 340
  %s80 = scalar_lea.vmem %s0, 500
  %v81 = vld [vmem:[%s80] sm:$0xf]
  %v82 = vunpack.c.l.bf16 %v81
  %v83 = vunpack.c.h.bf16 %v81
  %s84 = scalar_lea.vmem %s1, 820
  %s85 = scalar_lea.vmem %s0, 20
  %v86 = vld [vmem:[%s85] sm:$0xf]
  %v87 = vunpack.c.l.bf16 %v86
  %v88 = vunpack.c.h.bf16 %v86
  %s89 = scalar_lea.vmem %s1, 1300
  %s90 = scalar_lea.vmem %s0, 1320
  %v91 = vld [vmem:[%s90] sm:$0xf]
  %v92 = vunpack.c.l.bf16 %v91
  %v93 = vunpack.c.h.bf16 %v91
  %s94 = scalar_lea.vmem %s1, 40
  %s95 = scalar_lea.vmem %s0, 840
  %v96 = vld [vmem:[%s95] sm:$0xf]
  %v97 = vunpack.c.l.bf16 %v96
  %v98 = vunpack.c.h.bf16 %v96
  %s99 = scalar_lea.vmem %s1, 520
  %s100 = scalar_lea.vmem %s0, 360
  %v101 = vld [vmem:[%s100] sm:$0xf]
  %v102 = vunpack.c.l.bf16 %v101
  %v103 = vunpack.c.h.bf16 %v101
  %s104 = scalar_lea.vmem %s1, 1000
  %s105 = scalar_lea.vmem %s0, 1160
  %v106 = vld [vmem:[%s105] sm:$0xf]
  %v107 = vunpack.c.l.bf16 %v106
  %v108 = vunpack.c.h.bf16 %v106
  %s109 = scalar_lea.vmem %s1, 200
  %s110 = scalar_lea.vmem %s0, 680
  %v111 = vld [vmem:[%s110] sm:$0xf]
  %v112 = vunpack.c.l.bf16 %v111
  %v113 = vunpack.c.h.bf16 %v111
  %s114 = scalar_lea.vmem %s1, 680
  %s115 = scalar_lea.vmem %s0, 200
  %v116 = vld [vmem:[%s115] sm:$0xf]
  %v117 = vunpack.c.l.bf16 %v116
  %v118 = vunpack.c.h.bf16 %v116
  %s119 = scalar_lea.vmem %s1, 1160
  %s120 = scalar_lea.vmem %s0, 1000
  %v121 = vld [vmem:[%s120] sm:$0xf]
  %v122 = vunpack.c.l.bf16 %v121
  %v123 = vunpack.c.h.bf16 %v121
  %s124 = scalar_lea.vmem %s1, 360
  %s125 = scalar_lea.vmem %s0, 520
  %v126 = vld [vmem:[%s125] sm:$0xf]
  %v127 = vunpack.c.l.bf16 %v126
  %v128 = vunpack.c.h.bf16 %v126
  %s129 = scalar_lea.vmem %s1, 840
  %s130 = scalar_lea.vmem %s0, 40
  %v131 = vld [vmem:[%s130] sm:$0xf]
  %v132 = vunpack.c.l.bf16 %v131
  %v133 = vunpack.c.h.bf16 %v131
  %s134 = scalar_lea.vmem %s1, 1320
  %s135 = scalar_lea.vmem %s0, 1340
  %v136 = vld [vmem:[%s135] sm:$0xf]
  %v137 = vunpack.c.l.bf16 %v136
  %v138 = vunpack.c.h.bf16 %v136
  %s139 = scalar_lea.vmem %s1, 60
  %s140 = scalar_lea.vmem %s0, 860
  %v141 = vld [vmem:[%s140] sm:$0xf]
  %v142 = vunpack.c.l.bf16 %v141
  %v143 = vunpack.c.h.bf16 %v141
  %s144 = scalar_lea.vmem %s1, 540
  %s145 = scalar_lea.vmem %s0, 380
  %v146 = vld [vmem:[%s145] sm:$0xf]
  %v147 = vunpack.c.l.bf16 %v146
  %v148 = vunpack.c.h.bf16 %v146
  %s149 = scalar_lea.vmem %s1, 1020
  %s150 = scalar_lea.vmem %s0, 1180
  %v151 = vld [vmem:[%s150] sm:$0xf]
  %v152 = vunpack.c.l.bf16 %v151
  %v153 = vunpack.c.h.bf16 %v151
  %s154 = scalar_lea.vmem %s1, 220
  %s155 = scalar_lea.vmem %s0, 700
  %v156 = vld [vmem:[%s155] sm:$0xf]
  %v157 = vunpack.c.l.bf16 %v156
  %v158 = vunpack.c.h.bf16 %v156
  %s159 = scalar_lea.vmem %s1, 700
  %s160 = scalar_lea.vmem %s0, 220
  %v161 = vld [vmem:[%s160] sm:$0xf]
  %v162 = vunpack.c.l.bf16 %v161
  %v163 = vunpack.c.h.bf16 %v161
  %s164 = scalar_lea.vmem %s1, 1180
  %s165 = scalar_lea.vmem %s0, 1020
  %v166 = vld [vmem:[%s165] sm:$0xf]
  %v167 = vunpack.c.l.bf16 %v166
  %v168 = vunpack.c.h.bf16 %v166
  %s169 = scalar_lea.vmem %s1, 380
  %s170 = scalar_lea.vmem %s0, 540
  %v171 = vld [vmem:[%s170] sm:$0xf]
  %v172 = vunpack.c.l.bf16 %v171
  %v173 = vunpack.c.h.bf16 %v171
  %s174 = scalar_lea.vmem %s1, 860
  %s175 = scalar_lea.vmem %s0, 60
  %v176 = vld [vmem:[%s175] sm:$0xf]
  %v177 = vunpack.c.l.bf16 %v176
  %v178 = vunpack.c.h.bf16 %v176
  %s179 = scalar_lea.vmem %s1, 1340
  %s180 = scalar_lea.vmem %s0, 1360
  %v181 = vld [vmem:[%s180] sm:$0xf]
  %v182 = vunpack.c.l.bf16 %v181
  %v183 = vunpack.c.h.bf16 %v181
  %s184 = scalar_lea.vmem %s1, 80
  %s185 = scalar_lea.vmem %s0, 880
  %v186 = vld [vmem:[%s185] sm:$0xf]
  %v187 = vunpack.c.l.bf16 %v186
  %v188 = vunpack.c.h.bf16 %v186
  %s189 = scalar_lea.vmem %s1, 560
  %s190 = scalar_lea.vmem %s0, 400
  %v191 = vld [vmem:[%s190] sm:$0xf]
  %v192 = vunpack.c.l.bf16 %v191
  %v193 = vunpack.c.h.bf16 %v191
  %s194 = scalar_lea.vmem %s1, 1040
  %s195 = scalar_lea.vmem %s0, 1200
  %v196 = vld [vmem:[%s195] sm:$0xf]
  %v197 = vunpack.c.l.bf16 %v196
  %v198 = vunpack.c.h.bf16 %v196
  %s199 = scalar_lea.vmem %s1, 240
  %s200 = scalar_lea.vmem %s0, 720
  %v201 = vld [vmem:[%s200] sm:$0xf]
  %v202 = vunpack.c.l.bf16 %v201
  %v203 = vunpack.c.h.bf16 %v201
  %s204 = scalar_lea.vmem %s1, 720
  %s205 = scalar_lea.vmem %s0, 240
  %v206 = vld [vmem:[%s205] sm:$0xf]
  %v207 = vunpack.c.l.bf16 %v206
  %v208 = vunpack.c.h.bf16 %v206
  %s209 = scalar_lea.vmem %s1, 1200
  %s210 = scalar_lea.vmem %s0, 1040
  %v211 = vld [vmem:[%s210] sm:$0xf]
  %v212 = vunpack.c.l.bf16 %v211
  %v213 = vunpack.c.h.bf16 %v211
  %s214 = scalar_lea.vmem %s1, 400
  %s215 = scalar_lea.vmem %s0, 560
  %v216 = vld [vmem:[%s215] sm:$0xf]
  %v217 = vunpack.c.l.bf16 %v216
  %v218 = vunpack.c.h.bf16 %v216
  %s219 = scalar_lea.vmem %s1, 880
  %s220 = scalar_lea.vmem %s0, 80
  %v221 = vld [vmem:[%s220] sm:$0xf]
  %v222 = vunpack.c.l.bf16 %v221
  %v223 = vunpack.c.h.bf16 %v221
  %s224 = scalar_lea.vmem %s1, 1360
  %s225 = scalar_lea.vmem %s0, 1380
  %v226 = vld [vmem:[%s225] sm:$0xf]
  %v227 = vunpack.c.l.bf16 %v226
  %v228 = vunpack.c.h.bf16 %v226
  %s229 = scalar_lea.vmem %s1, 100
  %s230 = scalar_lea.vmem %s0, 900
  %v231 = vld [vmem:[%s230] sm:$0xf]
  %v232 = vunpack.c.l.bf16 %v231
  %v233 = vunpack.c.h.bf16 %v231
  %s234 = scalar_lea.vmem %s1, 580
  %s235 = scalar_lea.vmem %s0, 420
  %v236 = vld [vmem:[%s235] sm:$0xf]
  %v237 = vunpack.c.l.bf16 %v236
  %v238 = vunpack.c.h.bf16 %v236
  %s239 = scalar_lea.vmem %s1, 1060
  %s240 = scalar_lea.vmem %s0, 1220
  %v241 = vld [vmem:[%s240] sm:$0xf]
  %v242 = vunpack.c.l.bf16 %v241
  %v243 = vunpack.c.h.bf16 %v241
  %s244 = scalar_lea.vmem %s1, 260
  %s245 = scalar_lea.vmem %s0, 740
  %v246 = vld [vmem:[%s245] sm:$0xf]
  %v247 = vunpack.c.l.bf16 %v246
  %v248 = vunpack.c.h.bf16 %v246
  %s249 = scalar_lea.vmem %s1, 740
  %s250 = scalar_lea.vmem %s0, 260
  %v251 = vld [vmem:[%s250] sm:$0xf]
  %v252 = vunpack.c.l.bf16 %v251
  %v253 = vunpack.c.h.bf16 %v251
  %s254 = scalar_lea.vmem %s1, 1220
  %s255 = scalar_lea.vmem %s0, 1060
  %v256 = vld [vmem:[%s255] sm:$0xf]
  %v257 = vunpack.c.l.bf16 %v256
  %v258 = vunpack.c.h.bf16 %v256
  %s259 = scalar_lea.vmem %s1, 420
  %s260 = scalar_lea.vmem %s0, 580
  %v261 = vld [vmem:[%s260] sm:$0xf]
  %v262 = vunpack.c.l.bf16 %v261
  %v263 = vunpack.c.h.bf16 %v261
  %s264 = scalar_lea.vmem %s1, 900
  %s265 = scalar_lea.vmem %s0, 100
  %v266 = vld [vmem:[%s265] sm:$0xf]
  %v267 = vunpack.c.l.bf16 %v266
  %v268 = vunpack.c.h.bf16 %v266
  %s269 = scalar_lea.vmem %s1, 1380
  %s270 = scalar_lea.vmem %s0, 1400
  %v271 = vld [vmem:[%s270] sm:$0xf]
  %v272 = vunpack.c.l.bf16 %v271
  %v273 = vunpack.c.h.bf16 %v271
  %s274 = scalar_lea.vmem %s1, 120
  %s275 = scalar_lea.vmem %s0, 920
  %v276 = vld [vmem:[%s275] sm:$0xf]
  %v277 = vunpack.c.l.bf16 %v276
  %v278 = vunpack.c.h.bf16 %v276
  %s279 = scalar_lea.vmem %s1, 600
  %s280 = scalar_lea.vmem %s0, 440
  %v281 = vld [vmem:[%s280] sm:$0xf]
  %v282 = vunpack.c.l.bf16 %v281
  %v283 = vunpack.c.h.bf16 %v281
  %s284 = scalar_lea.vmem %s1, 1080
  %s285 = scalar_lea.vmem %s0, 1240
  %v286 = vld [vmem:[%s285] sm:$0xf]
  %v287 = vunpack.c.l.bf16 %v286
  %v288 = vunpack.c.h.bf16 %v286
  %s289 = scalar_lea.vmem %s1, 280
  %s290 = scalar_lea.vmem %s0, 760
  %v291 = vld [vmem:[%s290] sm:$0xf]
  %v292 = vunpack.c.l.bf16 %v291
  %v293 = vunpack.c.h.bf16 %v291
  %s294 = scalar_lea.vmem %s1, 760
  %s295 = scalar_lea.vmem %s0, 280
  %v296 = vld [vmem:[%s295] sm:$0xf]
  %v297 = vunpack.c.l.bf16 %v296
  %v298 = vunpack.c.h.bf16 %v296
  %s299 = scalar_lea.vmem %s1, 1240
  %s300 = scalar_lea.vmem %s0, 1080
  %v301 = vld [vmem:[%s300] sm:$0xf]
  %v302 = vunpack.c.l.bf16 %v301
  %v303 = vunpack.c.h.bf16 %v301
  %s304 = scalar_lea.vmem %s1, 440
  %s305 = scalar_lea.vmem %s0, 600
  %v306 = vld [vmem:[%s305] sm:$0xf]
  %v307 = vunpack.c.l.bf16 %v306
  %v308 = vunpack.c.h.bf16 %v306
  %s309 = scalar_lea.vmem %s1, 920
  %s310 = scalar_lea.vmem %s0, 120
  %v311 = vld [vmem:[%s310] sm:$0xf]
  %v312 = vunpack.c.l.bf16 %v311
  %v313 = vunpack.c.h.bf16 %v311
  %s314 = scalar_lea.vmem %s1, 1400
  %s315 = scalar_lea.vmem %s0, 1420
  %v316 = vld [vmem:[%s315] sm:$0xf]
  %v317 = vunpack.c.l.bf16 %v316
  %v318 = vunpack.c.h.bf16 %v316
  %s319 = scalar_lea.vmem %s1, 140
  %s320 = scalar_lea.vmem %s0, 940
  %v321 = vld [vmem:[%s320] sm:$0xf]
  %v322 = vunpack.c.l.bf16 %v321
  %v323 = vunpack.c.h.bf16 %v321
  %s324 = scalar_lea.vmem %s1, 620
  %s325 = scalar_lea.vmem %s0, 460
  %v326 = vld [vmem:[%s325] sm:$0xf]
  %v327 = vunpack.c.l.bf16 %v326
  %v328 = vunpack.c.h.bf16 %v326
  %s329 = scalar_lea.vmem %s1, 1100
  %s330 = scalar_lea.vmem %s0, 1260
  %v331 = vld [vmem:[%s330] sm:$0xf]
  %v332 = vunpack.c.l.bf16 %v331
  %v333 = vunpack.c.h.bf16 %v331
  %s334 = scalar_lea.vmem %s1, 300
  %s335 = scalar_lea.vmem %s0, 780
  %v336 = vld [vmem:[%s335] sm:$0xf]
  %v337 = vunpack.c.l.bf16 %v336
  %v338 = vunpack.c.h.bf16 %v336
  %s339 = scalar_lea.vmem %s1, 780
  %s340 = scalar_lea.vmem %s0, 300
  %v341 = vld [vmem:[%s340] sm:$0xf]
  %v342 = vunpack.c.l.bf16 %v341
  %v343 = vunpack.c.h.bf16 %v341
  %s344 = scalar_lea.vmem %s1, 1260
  %s345 = scalar_lea.vmem %s0, 1100
  %v346 = vld [vmem:[%s345] sm:$0xf]
  %v347 = vunpack.c.l.bf16 %v346
  %v348 = vunpack.c.h.bf16 %v346
  %s349 = scalar_lea.vmem %s1, 460
  %s350 = scalar_lea.vmem %s0, 620
  %v351 = vld [vmem:[%s350] sm:$0xf]
  %v352 = vunpack.c.l.bf16 %v351
  %v353 = vunpack.c.h.bf16 %v351
  %s354 = scalar_lea.vmem %s1, 940
  %s355 = scalar_lea.vmem %s0, 140
  %v356 = vld [vmem:[%s355] sm:$0xf]
  %v357 = vunpack.c.l.bf16 %v356
  %v358 = vunpack.c.h.bf16 %v356
  %s359 = scalar_lea.vmem %s1, 1420
  %s360 = scalar_lea.vmem %s0, 1284
  %v361 = vld [vmem:[%s360] sm:$0xf]
  %v362 = vunpack.c.l.bf16 %v361
  %v363 = vunpack.c.h.bf16 %v361
  %s364 = scalar_lea.vmem %s1, 4
  %s366 = ssub.s32 0, 4
  %s367 = scalar_lea.vmem %s364, %s366
  %v368 = vpack.c.bf16 %v362, %v4
  %369 = vst [vmem:[%s367] sm:$0xff] %v368
  %s370 = scalar_lea.vmem %s0, 804
  %v371 = vld [vmem:[%s370] sm:$0xf]
  %v372 = vunpack.c.l.bf16 %v371
  %v373 = vunpack.c.h.bf16 %v371
  %s374 = scalar_lea.vmem %s1, 484
  %s376 = ssub.s32 0, 4
  %s377 = scalar_lea.vmem %s374, %s376
  %v378 = vpack.c.bf16 %v372, %v8
  %379 = vst [vmem:[%s377] sm:$0xff] %v378
  %s380 = scalar_lea.vmem %s0, 324
  %v381 = vld [vmem:[%s380] sm:$0xf]
  %v382 = vunpack.c.l.bf16 %v381
  %v383 = vunpack.c.h.bf16 %v381
  %s384 = scalar_lea.vmem %s1, 964
  %s386 = ssub.s32 0, 4
  %s387 = scalar_lea.vmem %s384, %s386
  %v388 = vpack.c.bf16 %v382, %v13
  %389 = vst [vmem:[%s387] sm:$0xff] %v388
  %s390 = scalar_lea.vmem %s0, 1124
  %v391 = vld [vmem:[%s390] sm:$0xf]
  %v392 = vunpack.c.l.bf16 %v391
  %v393 = vunpack.c.h.bf16 %v391
  %s394 = scalar_lea.vmem %s1, 164
  %s396 = ssub.s32 0, 4
  %s397 = scalar_lea.vmem %s394, %s396
  %v398 = vpack.c.bf16 %v392, %v18
  %399 = vst [vmem:[%s397] sm:$0xff] %v398
  %s400 = scalar_lea.vmem %s0, 644
  %v401 = vld [vmem:[%s400] sm:$0xf]
  %v402 = vunpack.c.l.bf16 %v401
  %v403 = vunpack.c.h.bf16 %v401
  %s404 = scalar_lea.vmem %s1, 644
  %s406 = ssub.s32 0, 4
  %s407 = scalar_lea.vmem %s404, %s406
  %v408 = vpack.c.bf16 %v402, %v23
  %409 = vst [vmem:[%s407] sm:$0xff] %v408
  %s410 = scalar_lea.vmem %s0, 164
  %v411 = vld [vmem:[%s410] sm:$0xf]
  %v412 = vunpack.c.l.bf16 %v411
  %v413 = vunpack.c.h.bf16 %v411
  %s414 = scalar_lea.vmem %s1, 1124
  %s416 = ssub.s32 0, 4
  %s417 = scalar_lea.vmem %s414, %s416
  %v418 = vpack.c.bf16 %v412, %v28
  %419 = vst [vmem:[%s417] sm:$0xff] %v418
  %s420 = scalar_lea.vmem %s0, 964
  %v421 = vld [vmem:[%s420] sm:$0xf]
  %v422 = vunpack.c.l.bf16 %v421
  %v423 = vunpack.c.h.bf16 %v421
  %s424 = scalar_lea.vmem %s1, 324
  %s426 = ssub.s32 0, 4
  %s427 = scalar_lea.vmem %s424, %s426
  %v428 = vpack.c.bf16 %v422, %v33
  %429 = vst [vmem:[%s427] sm:$0xff] %v428
  %s430 = scalar_lea.vmem %s0, 484
  %v431 = vld [vmem:[%s430] sm:$0xf]
  %v432 = vunpack.c.l.bf16 %v431
  %v433 = vunpack.c.h.bf16 %v431
  %s434 = scalar_lea.vmem %s1, 804
  %s436 = ssub.s32 0, 4
  %s437 = scalar_lea.vmem %s434, %s436
  %v438 = vpack.c.bf16 %v432, %v38
  %439 = vst [vmem:[%s437] sm:$0xff] %v438
  %s440 = scalar_lea.vmem %s0, 4
  %v441 = vld [vmem:[%s440] sm:$0xf]
  %v442 = vunpack.c.l.bf16 %v441
  %v443 = vunpack.c.h.bf16 %v441
  %s444 = scalar_lea.vmem %s1, 1284
  %s446 = ssub.s32 0, 4
  %s447 = scalar_lea.vmem %s444, %s446
  %v448 = vpack.c.bf16 %v442, %v42
  %449 = vst [vmem:[%s447] sm:$0xff] %v448
  %s450 = scalar_lea.vmem %s0, 1304
  %v451 = vld [vmem:[%s450] sm:$0xf]
  %v452 = vunpack.c.l.bf16 %v451
  %v453 = vunpack.c.h.bf16 %v451
  %s454 = scalar_lea.vmem %s1, 24
  %s456 = ssub.s32 0, 4
  %s457 = scalar_lea.vmem %s454, %s456
  %v458 = vpack.c.bf16 %v452, %v47
  %459 = vst [vmem:[%s457] sm:$0xff] %v458
  %s460 = scalar_lea.vmem %s0, 824
  %v461 = vld [vmem:[%s460] sm:$0xf]
  %v462 = vunpack.c.l.bf16 %v461
  %v463 = vunpack.c.h.bf16 %v461
  %s464 = scalar_lea.vmem %s1, 504
  %s466 = ssub.s32 0, 4
  %s467 = scalar_lea.vmem %s464, %s466
  %v468 = vpack.c.bf16 %v462, %v52
  %469 = vst [vmem:[%s467] sm:$0xff] %v468
  %s470 = scalar_lea.vmem %s0, 344
  %v471 = vld [vmem:[%s470] sm:$0xf]
  %v472 = vunpack.c.l.bf16 %v471
  %v473 = vunpack.c.h.bf16 %v471
  %s474 = scalar_lea.vmem %s1, 984
  %s476 = ssub.s32 0, 4
  %s477 = scalar_lea.vmem %s474, %s476
  %v478 = vpack.c.bf16 %v472, %v57
  %479 = vst [vmem:[%s477] sm:$0xff] %v478
  %s480 = scalar_lea.vmem %s0, 1144
  %v481 = vld [vmem:[%s480] sm:$0xf]
  %v482 = vunpack.c.l.bf16 %v481
  %v483 = vunpack.c.h.bf16 %v481
  %s484 = scalar_lea.vmem %s1, 184
  %s486 = ssub.s32 0, 4
  %s487 = scalar_lea.vmem %s484, %s486
  %v488 = vpack.c.bf16 %v482, %v62
  %489 = vst [vmem:[%s487] sm:$0xff] %v488
  %s490 = scalar_lea.vmem %s0, 664
  %v491 = vld [vmem:[%s490] sm:$0xf]
  %v492 = vunpack.c.l.bf16 %v491
  %v493 = vunpack.c.h.bf16 %v491
  %s494 = scalar_lea.vmem %s1, 664
  %s496 = ssub.s32 0, 4
  %s497 = scalar_lea.vmem %s494, %s496
  %v498 = vpack.c.bf16 %v492, %v67
  %499 = vst [vmem:[%s497] sm:$0xff] %v498
  %s500 = scalar_lea.vmem %s0, 184
  %v501 = vld [vmem:[%s500] sm:$0xf]
  %v502 = vunpack.c.l.bf16 %v501
  %v503 = vunpack.c.h.bf16 %v501
  %s504 = scalar_lea.vmem %s1, 1144
  %s506 = ssub.s32 0, 4
  %s507 = scalar_lea.vmem %s504, %s506
  %v508 = vpack.c.bf16 %v502, %v72
  %509 = vst [vmem:[%s507] sm:$0xff] %v508
  %s510 = scalar_lea.vmem %s0, 984
  %v511 = vld [vmem:[%s510] sm:$0xf]
  %v512 = vunpack.c.l.bf16 %v511
  %v513 = vunpack.c.h.bf16 %v511
  %s514 = scalar_lea.vmem %s1, 344
  %s516 = ssub.s32 0, 4
  %s517 = scalar_lea.vmem %s514, %s516
  %v518 = vpack.c.bf16 %v512, %v77
  %519 = vst [vmem:[%s517] sm:$0xff] %v518
  %s520 = scalar_lea.vmem %s0, 504
  %v521 = vld [vmem:[%s520] sm:$0xf]
  %v522 = vunpack.c.l.bf16 %v521
  %v523 = vunpack.c.h.bf16 %v521
  %s524 = scalar_lea.vmem %s1, 824
  %s526 = ssub.s32 0, 4
  %s527 = scalar_lea.vmem %s524, %s526
  %v528 = vpack.c.bf16 %v522, %v82
  %529 = vst [vmem:[%s527] sm:$0xff] %v528
  %s530 = scalar_lea.vmem %s0, 24
  %v531 = vld [vmem:[%s530] sm:$0xf]
  %v532 = vunpack.c.l.bf16 %v531
  %v533 = vunpack.c.h.bf16 %v531
  %s534 = scalar_lea.vmem %s1, 1304
  %s536 = ssub.s32 0, 4
  %s537 = scalar_lea.vmem %s534, %s536
  %v538 = vpack.c.bf16 %v532, %v87
  %539 = vst [vmem:[%s537] sm:$0xff] %v538
  %s540 = scalar_lea.vmem %s0, 1324
  %v541 = vld [vmem:[%s540] sm:$0xf]
  %v542 = vunpack.c.l.bf16 %v541
  %v543 = vunpack.c.h.bf16 %v541
  %s544 = scalar_lea.vmem %s1, 44
  %s546 = ssub.s32 0, 4
  %s547 = scalar_lea.vmem %s544, %s546
  %v548 = vpack.c.bf16 %v542, %v92
  %549 = vst [vmem:[%s547] sm:$0xff] %v548
  %s550 = scalar_lea.vmem %s0, 844
  %v551 = vld [vmem:[%s550] sm:$0xf]
  %v552 = vunpack.c.l.bf16 %v551
  %v553 = vunpack.c.h.bf16 %v551
  %s554 = scalar_lea.vmem %s1, 524
  %s556 = ssub.s32 0, 4
  %s557 = scalar_lea.vmem %s554, %s556
  %v558 = vpack.c.bf16 %v552, %v97
  %559 = vst [vmem:[%s557] sm:$0xff] %v558
  %s560 = scalar_lea.vmem %s0, 364
  %v561 = vld [vmem:[%s560] sm:$0xf]
  %v562 = vunpack.c.l.bf16 %v561
  %v563 = vunpack.c.h.bf16 %v561
  %s564 = scalar_lea.vmem %s1, 1004
  %s566 = ssub.s32 0, 4
  %s567 = scalar_lea.vmem %s564, %s566
  %v568 = vpack.c.bf16 %v562, %v102
  %569 = vst [vmem:[%s567] sm:$0xff] %v568
  %s570 = scalar_lea.vmem %s0, 1164
  %v571 = vld [vmem:[%s570] sm:$0xf]
  %v572 = vunpack.c.l.bf16 %v571
  %v573 = vunpack.c.h.bf16 %v571
  %s574 = scalar_lea.vmem %s1, 204
  %s576 = ssub.s32 0, 4
  %s577 = scalar_lea.vmem %s574, %s576
  %v578 = vpack.c.bf16 %v572, %v107
  %579 = vst [vmem:[%s577] sm:$0xff] %v578
  %s580 = scalar_lea.vmem %s0, 684
  %v581 = vld [vmem:[%s580] sm:$0xf]
  %v582 = vunpack.c.l.bf16 %v581
  %v583 = vunpack.c.h.bf16 %v581
  %s584 = scalar_lea.vmem %s1, 684
  %s586 = ssub.s32 0, 4
  %s587 = scalar_lea.vmem %s584, %s586
  %v588 = vpack.c.bf16 %v582, %v112
  %589 = vst [vmem:[%s587] sm:$0xff] %v588
  %s590 = scalar_lea.vmem %s0, 204
  %v591 = vld [vmem:[%s590] sm:$0xf]
  %v592 = vunpack.c.l.bf16 %v591
  %v593 = vunpack.c.h.bf16 %v591
  %s594 = scalar_lea.vmem %s1, 1164
  %s596 = ssub.s32 0, 4
  %s597 = scalar_lea.vmem %s594, %s596
  %v598 = vpack.c.bf16 %v592, %v117
  %599 = vst [vmem:[%s597] sm:$0xff] %v598
  %s600 = scalar_lea.vmem %s0, 1004
  %v601 = vld [vmem:[%s600] sm:$0xf]
  %v602 = vunpack.c.l.bf16 %v601
  %v603 = vunpack.c.h.bf16 %v601
  %s604 = scalar_lea.vmem %s1, 364
  %s606 = ssub.s32 0, 4
  %s607 = scalar_lea.vmem %s604, %s606
  %v608 = vpack.c.bf16 %v602, %v122
  %609 = vst [vmem:[%s607] sm:$0xff] %v608
  %s610 = scalar_lea.vmem %s0, 524
  %v611 = vld [vmem:[%s610] sm:$0xf]
  %v612 = vunpack.c.l.bf16 %v611
  %v613 = vunpack.c.h.bf16 %v611
  %s614 = scalar_lea.vmem %s1, 844
  %s616 = ssub.s32 0, 4
  %s617 = scalar_lea.vmem %s614, %s616
  %v618 = vpack.c.bf16 %v612, %v127
  %619 = vst [vmem:[%s617] sm:$0xff] %v618
  %s620 = scalar_lea.vmem %s0, 44
  %v621 = vld [vmem:[%s620] sm:$0xf]
  %v622 = vunpack.c.l.bf16 %v621
  %v623 = vunpack.c.h.bf16 %v621
  %s624 = scalar_lea.vmem %s1, 1324
  %s626 = ssub.s32 0, 4
  %s627 = scalar_lea.vmem %s624, %s626
  %v628 = vpack.c.bf16 %v622, %v132
  %629 = vst [vmem:[%s627] sm:$0xff] %v628
  %s630 = scalar_lea.vmem %s0, 1344
  %v631 = vld [vmem:[%s630] sm:$0xf]
  %v632 = vunpack.c.l.bf16 %v631
  %v633 = vunpack.c.h.bf16 %v631
  %s634 = scalar_lea.vmem %s1, 64
  %s636 = ssub.s32 0, 4
  %s637 = scalar_lea.vmem %s634, %s636
  %v638 = vpack.c.bf16 %v632, %v137
  %639 = vst [vmem:[%s637] sm:$0xff] %v638
  %s640 = scalar_lea.vmem %s0, 864
  %v641 = vld [vmem:[%s640] sm:$0xf]
  %v642 = vunpack.c.l.bf16 %v641
  %v643 = vunpack.c.h.bf16 %v641
  %s644 = scalar_lea.vmem %s1, 544
  %s646 = ssub.s32 0, 4
  %s647 = scalar_lea.vmem %s644, %s646
  %v648 = vpack.c.bf16 %v642, %v142
  %649 = vst [vmem:[%s647] sm:$0xff] %v648
  %s650 = scalar_lea.vmem %s0, 384
  %v651 = vld [vmem:[%s650] sm:$0xf]
  %v652 = vunpack.c.l.bf16 %v651
  %v653 = vunpack.c.h.bf16 %v651
  %s654 = scalar_lea.vmem %s1, 1024
  %s656 = ssub.s32 0, 4
  %s657 = scalar_lea.vmem %s654, %s656
  %v658 = vpack.c.bf16 %v652, %v147
  %659 = vst [vmem:[%s657] sm:$0xff] %v658
  %s660 = scalar_lea.vmem %s0, 1184
  %v661 = vld [vmem:[%s660] sm:$0xf]
  %v662 = vunpack.c.l.bf16 %v661
  %v663 = vunpack.c.h.bf16 %v661
  %s664 = scalar_lea.vmem %s1, 224
  %s666 = ssub.s32 0, 4
  %s667 = scalar_lea.vmem %s664, %s666
  %v668 = vpack.c.bf16 %v662, %v152
  %669 = vst [vmem:[%s667] sm:$0xff] %v668
  %s670 = scalar_lea.vmem %s0, 704
  %v671 = vld [vmem:[%s670] sm:$0xf]
  %v672 = vunpack.c.l.bf16 %v671
  %v673 = vunpack.c.h.bf16 %v671
  %s674 = scalar_lea.vmem %s1, 704
  %s676 = ssub.s32 0, 4
  %s677 = scalar_lea.vmem %s674, %s676
  %v678 = vpack.c.bf16 %v672, %v157
  %679 = vst [vmem:[%s677] sm:$0xff] %v678
  %s680 = scalar_lea.vmem %s0, 224
  %v681 = vld [vmem:[%s680] sm:$0xf]
  %v682 = vunpack.c.l.bf16 %v681
  %v683 = vunpack.c.h.bf16 %v681
  %s684 = scalar_lea.vmem %s1, 1184
  %s686 = ssub.s32 0, 4
  %s687 = scalar_lea.vmem %s684, %s686
  %v688 = vpack.c.bf16 %v682, %v162
  %689 = vst [vmem:[%s687] sm:$0xff] %v688
  %s690 = scalar_lea.vmem %s0, 1024
  %v691 = vld [vmem:[%s690] sm:$0xf]
  %v692 = vunpack.c.l.bf16 %v691
  %v693 = vunpack.c.h.bf16 %v691
  %s694 = scalar_lea.vmem %s1, 384
  %s696 = ssub.s32 0, 4
  %s697 = scalar_lea.vmem %s694, %s696
  %v698 = vpack.c.bf16 %v692, %v167
  %699 = vst [vmem:[%s697] sm:$0xff] %v698
  %s700 = scalar_lea.vmem %s0, 544
  %v701 = vld [vmem:[%s700] sm:$0xf]
  %v702 = vunpack.c.l.bf16 %v701
  %v703 = vunpack.c.h.bf16 %v701
  %s704 = scalar_lea.vmem %s1, 864
  %s706 = ssub.s32 0, 4
  %s707 = scalar_lea.vmem %s704, %s706
  %v708 = vpack.c.bf16 %v702, %v172
  %709 = vst [vmem:[%s707] sm:$0xff] %v708
  %s710 = scalar_lea.vmem %s0, 64
  %v711 = vld [vmem:[%s710] sm:$0xf]
  %v712 = vunpack.c.l.bf16 %v711
  %v713 = vunpack.c.h.bf16 %v711
  %s714 = scalar_lea.vmem %s1, 1344
  %s716 = ssub.s32 0, 4
  %s717 = scalar_lea.vmem %s714, %s716
  %v718 = vpack.c.bf16 %v712, %v177
  %719 = vst [vmem:[%s717] sm:$0xff] %v718
  %s720 = scalar_lea.vmem %s0, 1364
  %v721 = vld [vmem:[%s720] sm:$0xf]
  %v722 = vunpack.c.l.bf16 %v721
  %v723 = vunpack.c.h.bf16 %v721
  %s724 = scalar_lea.vmem %s1, 84
  %s726 = ssub.s32 0, 4
  %s727 = scalar_lea.vmem %s724, %s726
  %v728 = vpack.c.bf16 %v722, %v182
  %729 = vst [vmem:[%s727] sm:$0xff] %v728
  %s730 = scalar_lea.vmem %s0, 884
  %v731 = vld [vmem:[%s730] sm:$0xf]
  %v732 = vunpack.c.l.bf16 %v731
  %v733 = vunpack.c.h.bf16 %v731
  %s734 = scalar_lea.vmem %s1, 564
  %s736 = ssub.s32 0, 4
  %s737 = scalar_lea.vmem %s734, %s736
  %v738 = vpack.c.bf16 %v732, %v187
  %739 = vst [vmem:[%s737] sm:$0xff] %v738
  %s740 = scalar_lea.vmem %s0, 404
  %v741 = vld [vmem:[%s740] sm:$0xf]
  %v742 = vunpack.c.l.bf16 %v741
  %v743 = vunpack.c.h.bf16 %v741
  %s744 = scalar_lea.vmem %s1, 1044
  %s746 = ssub.s32 0, 4
  %s747 = scalar_lea.vmem %s744, %s746
  %v748 = vpack.c.bf16 %v742, %v192
  %749 = vst [vmem:[%s747] sm:$0xff] %v748
  %s750 = scalar_lea.vmem %s0, 1204
  %v751 = vld [vmem:[%s750] sm:$0xf]
  %v752 = vunpack.c.l.bf16 %v751
  %v753 = vunpack.c.h.bf16 %v751
  %s754 = scalar_lea.vmem %s1, 244
  %s756 = ssub.s32 0, 4
  %s757 = scalar_lea.vmem %s754, %s756
  %v758 = vpack.c.bf16 %v752, %v197
  %759 = vst [vmem:[%s757] sm:$0xff] %v758
  %s760 = scalar_lea.vmem %s0, 724
  %v761 = vld [vmem:[%s760] sm:$0xf]
  %v762 = vunpack.c.l.bf16 %v761
  %v763 = vunpack.c.h.bf16 %v761
  %s764 = scalar_lea.vmem %s1, 724
  %s766 = ssub.s32 0, 4
  %s767 = scalar_lea.vmem %s764, %s766
  %v768 = vpack.c.bf16 %v762, %v202
  %769 = vst [vmem:[%s767] sm:$0xff] %v768
  %s770 = scalar_lea.vmem %s0, 244
  %v771 = vld [vmem:[%s770] sm:$0xf]
  %v772 = vunpack.c.l.bf16 %v771
  %v773 = vunpack.c.h.bf16 %v771
  %s774 = scalar_lea.vmem %s1, 1204
  %s776 = ssub.s32 0, 4
  %s777 = scalar_lea.vmem %s774, %s776
  %v778 = vpack.c.bf16 %v772, %v207
  %779 = vst [vmem:[%s777] sm:$0xff] %v778
  %s780 = scalar_lea.vmem %s0, 1044
  %v781 = vld [vmem:[%s780] sm:$0xf]
  %v782 = vunpack.c.l.bf16 %v781
  %v783 = vunpack.c.h.bf16 %v781
  %s784 = scalar_lea.vmem %s1, 404
  %s786 = ssub.s32 0, 4
  %s787 = scalar_lea.vmem %s784, %s786
  %v788 = vpack.c.bf16 %v782, %v212
  %789 = vst [vmem:[%s787] sm:$0xff] %v788
  %s790 = scalar_lea.vmem %s0, 564
  %v791 = vld [vmem:[%s790] sm:$0xf]
  %v792 = vunpack.c.l.bf16 %v791
  %v793 = vunpack.c.h.bf16 %v791
  %s794 = scalar_lea.vmem %s1, 884
  %s796 = ssub.s32 0, 4
  %s797 = scalar_lea.vmem %s794, %s796
  %v798 = vpack.c.bf16 %v792, %v217
  %799 = vst [vmem:[%s797] sm:$0xff] %v798
  %s800 = scalar_lea.vmem %s0, 84
  %v801 = vld [vmem:[%s800] sm:$0xf]
  %v802 = vunpack.c.l.bf16 %v801
  %v803 = vunpack.c.h.bf16 %v801
  %s804 = scalar_lea.vmem %s1, 1364
  %s806 = ssub.s32 0, 4
  %s807 = scalar_lea.vmem %s804, %s806
  %v808 = vpack.c.bf16 %v802, %v222
  %809 = vst [vmem:[%s807] sm:$0xff] %v808
  %s810 = scalar_lea.vmem %s0, 1384
  %v811 = vld [vmem:[%s810] sm:$0xf]
  %v812 = vunpack.c.l.bf16 %v811
  %v813 = vunpack.c.h.bf16 %v811
  %s814 = scalar_lea.vmem %s1, 104
  %s816 = ssub.s32 0, 4
  %s817 = scalar_lea.vmem %s814, %s816
  %v818 = vpack.c.bf16 %v812, %v227
  %819 = vst [vmem:[%s817] sm:$0xff] %v818
  %s820 = scalar_lea.vmem %s0, 904
  %v821 = vld [vmem:[%s820] sm:$0xf]
  %v822 = vunpack.c.l.bf16 %v821
  %v823 = vunpack.c.h.bf16 %v821
  %s824 = scalar_lea.vmem %s1, 584
  %s826 = ssub.s32 0, 4
  %s827 = scalar_lea.vmem %s824, %s826
  %v828 = vpack.c.bf16 %v822, %v232
  %829 = vst [vmem:[%s827] sm:$0xff] %v828
  %s830 = scalar_lea.vmem %s0, 424
  %v831 = vld [vmem:[%s830] sm:$0xf]
  %v832 = vunpack.c.l.bf16 %v831
  %v833 = vunpack.c.h.bf16 %v831
  %s834 = scalar_lea.vmem %s1, 1064
  %s836 = ssub.s32 0, 4
  %s837 = scalar_lea.vmem %s834, %s836
  %v838 = vpack.c.bf16 %v832, %v237
  %839 = vst [vmem:[%s837] sm:$0xff] %v838
  %s840 = scalar_lea.vmem %s0, 1224
  %v841 = vld [vmem:[%s840] sm:$0xf]
  %v842 = vunpack.c.l.bf16 %v841
  %v843 = vunpack.c.h.bf16 %v841
  %s844 = scalar_lea.vmem %s1, 264
  %s846 = ssub.s32 0, 4
  %s847 = scalar_lea.vmem %s844, %s846
  %v848 = vpack.c.bf16 %v842, %v242
  %849 = vst [vmem:[%s847] sm:$0xff] %v848
  %s850 = scalar_lea.vmem %s0, 744
  %v851 = vld [vmem:[%s850] sm:$0xf]
  %v852 = vunpack.c.l.bf16 %v851
  %v853 = vunpack.c.h.bf16 %v851
  %s854 = scalar_lea.vmem %s1, 744
  %s856 = ssub.s32 0, 4
  %s857 = scalar_lea.vmem %s854, %s856
  %v858 = vpack.c.bf16 %v852, %v247
  %859 = vst [vmem:[%s857] sm:$0xff] %v858
  %s860 = scalar_lea.vmem %s0, 264
  %v861 = vld [vmem:[%s860] sm:$0xf]
  %v862 = vunpack.c.l.bf16 %v861
  %v863 = vunpack.c.h.bf16 %v861
  %s864 = scalar_lea.vmem %s1, 1224
  %s866 = ssub.s32 0, 4
  %s867 = scalar_lea.vmem %s864, %s866
  %v868 = vpack.c.bf16 %v862, %v252
  %869 = vst [vmem:[%s867] sm:$0xff] %v868
  %s870 = scalar_lea.vmem %s0, 1064
  %v871 = vld [vmem:[%s870] sm:$0xf]
  %v872 = vunpack.c.l.bf16 %v871
  %v873 = vunpack.c.h.bf16 %v871
  %s874 = scalar_lea.vmem %s1, 424
  %s876 = ssub.s32 0, 4
  %s877 = scalar_lea.vmem %s874, %s876
  %v878 = vpack.c.bf16 %v872, %v257
  %879 = vst [vmem:[%s877] sm:$0xff] %v878
  %s880 = scalar_lea.vmem %s0, 584
  %v881 = vld [vmem:[%s880] sm:$0xf]
  %v882 = vunpack.c.l.bf16 %v881
  %v883 = vunpack.c.h.bf16 %v881
  %s884 = scalar_lea.vmem %s1, 904
  %s886 = ssub.s32 0, 4
  %s887 = scalar_lea.vmem %s884, %s886
  %v888 = vpack.c.bf16 %v882, %v262
  %889 = vst [vmem:[%s887] sm:$0xff] %v888
  %s890 = scalar_lea.vmem %s0, 104
  %v891 = vld [vmem:[%s890] sm:$0xf]
  %v892 = vunpack.c.l.bf16 %v891
  %v893 = vunpack.c.h.bf16 %v891
  %s894 = scalar_lea.vmem %s1, 1384
  %s896 = ssub.s32 0, 4
  %s897 = scalar_lea.vmem %s894, %s896
  %v898 = vpack.c.bf16 %v892, %v267
  %899 = vst [vmem:[%s897] sm:$0xff] %v898
  %s900 = scalar_lea.vmem %s0, 1404
  %v901 = vld [vmem:[%s900] sm:$0xf]
  %v902 = vunpack.c.l.bf16 %v901
  %v903 = vunpack.c.h.bf16 %v901
  %s904 = scalar_lea.vmem %s1, 124
  %s906 = ssub.s32 0, 4
  %s907 = scalar_lea.vmem %s904, %s906
  %v908 = vpack.c.bf16 %v902, %v272
  %909 = vst [vmem:[%s907] sm:$0xff] %v908
  %s910 = scalar_lea.vmem %s0, 924
  %v911 = vld [vmem:[%s910] sm:$0xf]
  %v912 = vunpack.c.l.bf16 %v911
  %v913 = vunpack.c.h.bf16 %v911
  %s914 = scalar_lea.vmem %s1, 604
  %s916 = ssub.s32 0, 4
  %s917 = scalar_lea.vmem %s914, %s916
  %v918 = vpack.c.bf16 %v912, %v277
  %919 = vst [vmem:[%s917] sm:$0xff] %v918
  %s920 = scalar_lea.vmem %s0, 444
  %v921 = vld [vmem:[%s920] sm:$0xf]
  %v922 = vunpack.c.l.bf16 %v921
  %v923 = vunpack.c.h.bf16 %v921
  %s924 = scalar_lea.vmem %s1, 1084
  %s926 = ssub.s32 0, 4
  %s927 = scalar_lea.vmem %s924, %s926
  %v928 = vpack.c.bf16 %v922, %v282
  %929 = vst [vmem:[%s927] sm:$0xff] %v928
  %s930 = scalar_lea.vmem %s0, 1244
  %v931 = vld [vmem:[%s930] sm:$0xf]
  %v932 = vunpack.c.l.bf16 %v931
  %v933 = vunpack.c.h.bf16 %v931
  %s934 = scalar_lea.vmem %s1, 284
  %s936 = ssub.s32 0, 4
  %s937 = scalar_lea.vmem %s934, %s936
  %v938 = vpack.c.bf16 %v932, %v287
  %939 = vst [vmem:[%s937] sm:$0xff] %v938
  %s940 = scalar_lea.vmem %s0, 764
  %v941 = vld [vmem:[%s940] sm:$0xf]
  %v942 = vunpack.c.l.bf16 %v941
  %v943 = vunpack.c.h.bf16 %v941
  %s944 = scalar_lea.vmem %s1, 764
  %s946 = ssub.s32 0, 4
  %s947 = scalar_lea.vmem %s944, %s946
  %v948 = vpack.c.bf16 %v942, %v292
  %949 = vst [vmem:[%s947] sm:$0xff] %v948
  %s950 = scalar_lea.vmem %s0, 284
  %v951 = vld [vmem:[%s950] sm:$0xf]
  %v952 = vunpack.c.l.bf16 %v951
  %v953 = vunpack.c.h.bf16 %v951
  %s954 = scalar_lea.vmem %s1, 1244
  %s956 = ssub.s32 0, 4
  %s957 = scalar_lea.vmem %s954, %s956
  %v958 = vpack.c.bf16 %v952, %v297
  %959 = vst [vmem:[%s957] sm:$0xff] %v958
  %s960 = scalar_lea.vmem %s0, 1084
  %v961 = vld [vmem:[%s960] sm:$0xf]
  %v962 = vunpack.c.l.bf16 %v961
  %v963 = vunpack.c.h.bf16 %v961
  %s964 = scalar_lea.vmem %s1, 444
  %s966 = ssub.s32 0, 4
  %s967 = scalar_lea.vmem %s964, %s966
  %v968 = vpack.c.bf16 %v962, %v302
  %969 = vst [vmem:[%s967] sm:$0xff] %v968
  %s970 = scalar_lea.vmem %s0, 604
  %v971 = vld [vmem:[%s970] sm:$0xf]
  %v972 = vunpack.c.l.bf16 %v971
  %v973 = vunpack.c.h.bf16 %v971
  %s974 = scalar_lea.vmem %s1, 924
  %s976 = ssub.s32 0, 4
  %s977 = scalar_lea.vmem %s974, %s976
  %v978 = vpack.c.bf16 %v972, %v307
  %979 = vst [vmem:[%s977] sm:$0xff] %v978
  %s980 = scalar_lea.vmem %s0, 124
  %v981 = vld [vmem:[%s980] sm:$0xf]
  %v982 = vunpack.c.l.bf16 %v981
  %v983 = vunpack.c.h.bf16 %v981
  %s984 = scalar_lea.vmem %s1, 1404
  %s986 = ssub.s32 0, 4
  %s987 = scalar_lea.vmem %s984, %s986
  %v988 = vpack.c.bf16 %v982, %v312
  %989 = vst [vmem:[%s987] sm:$0xff] %v988
  %s990 = scalar_lea.vmem %s0, 1424
  %v991 = vld [vmem:[%s990] sm:$0xf]
  %v992 = vunpack.c.l.bf16 %v991
  %v993 = vunpack.c.h.bf16 %v991
  %s994 = scalar_lea.vmem %s1, 144
  %s996 = ssub.s32 0, 4
  %s997 = scalar_lea.vmem %s994, %s996
  %v998 = vpack.c.bf16 %v992, %v317
  %999 = vst [vmem:[%s997] sm:$0xff] %v998
  %s1000 = scalar_lea.vmem %s0, 944
  %v1001 = vld [vmem:[%s1000] sm:$0xf]
  %v1002 = vunpack.c.l.bf16 %v1001
  %v1003 = vunpack.c.h.bf16 %v1001
  %s1004 = scalar_lea.vmem %s1, 624
  %s1006 = ssub.s32 0, 4
  %s1007 = scalar_lea.vmem %s1004, %s1006
  %v1008 = vpack.c.bf16 %v1002, %v322
  %1009 = vst [vmem:[%s1007] sm:$0xff] %v1008
  %s1010 = scalar_lea.vmem %s0, 464
  %v1011 = vld [vmem:[%s1010] sm:$0xf]
  %v1012 = vunpack.c.l.bf16 %v1011
  %v1013 = vunpack.c.h.bf16 %v1011
  %s1014 = scalar_lea.vmem %s1, 1104
  %s1016 = ssub.s32 0, 4
  %s1017 = scalar_lea.vmem %s1014, %s1016
  %v1018 = vpack.c.bf16 %v1012, %v327
  %1019 = vst [vmem:[%s1017] sm:$0xff] %v1018
  %s1020 = scalar_lea.vmem %s0, 1264
  %v1021 = vld [vmem:[%s1020] sm:$0xf]
  %v1022 = vunpack.c.l.bf16 %v1021
  %v1023 = vunpack.c.h.bf16 %v1021
  %s1024 = scalar_lea.vmem %s1, 304
  %s1026 = ssub.s32 0, 4
  %s1027 = scalar_lea.vmem %s1024, %s1026
  %v1028 = vpack.c.bf16 %v1022, %v332
  %1029 = vst [vmem:[%s1027] sm:$0xff] %v1028
  %s1030 = scalar_lea.vmem %s0, 784
  %v1031 = vld [vmem:[%s1030] sm:$0xf]
  %v1032 = vunpack.c.l.bf16 %v1031
  %v1033 = vunpack.c.h.bf16 %v1031
  %s1034 = scalar_lea.vmem %s1, 784
  %s1036 = ssub.s32 0, 4
  %s1037 = scalar_lea.vmem %s1034, %s1036
  %v1038 = vpack.c.bf16 %v1032, %v337
  %1039 = vst [vmem:[%s1037] sm:$0xff] %v1038
  %s1040 = scalar_lea.vmem %s0, 304
  %v1041 = vld [vmem:[%s1040] sm:$0xf]
  %v1042 = vunpack.c.l.bf16 %v1041
  %v1043 = vunpack.c.h.bf16 %v1041
  %s1044 = scalar_lea.vmem %s1, 1264
  %s1046 = ssub.s32 0, 4
  %s1047 = scalar_lea.vmem %s1044, %s1046
  %v1048 = vpack.c.bf16 %v1042, %v342
  %1049 = vst [vmem:[%s1047] sm:$0xff] %v1048
  %s1050 = scalar_lea.vmem %s0, 1104
  %v1051 = vld [vmem:[%s1050] sm:$0xf]
  %v1052 = vunpack.c.l.bf16 %v1051
  %v1053 = vunpack.c.h.bf16 %v1051
  %s1054 = scalar_lea.vmem %s1, 464
  %s1056 = ssub.s32 0, 4
  %s1057 = scalar_lea.vmem %s1054, %s1056
  %v1058 = vpack.c.bf16 %v1052, %v347
  %1059 = vst [vmem:[%s1057] sm:$0xff] %v1058
  %s1060 = scalar_lea.vmem %s0, 624
  %v1061 = vld [vmem:[%s1060] sm:$0xf]
  %v1062 = vunpack.c.l.bf16 %v1061
  %v1063 = vunpack.c.h.bf16 %v1061
  %s1064 = scalar_lea.vmem %s1, 944
  %s1066 = ssub.s32 0, 4
  %s1067 = scalar_lea.vmem %s1064, %s1066
  %v1068 = vpack.c.bf16 %v1062, %v352
  %1069 = vst [vmem:[%s1067] sm:$0xff] %v1068
  %s1070 = scalar_lea.vmem %s0, 144
  %v1071 = vld [vmem:[%s1070] sm:$0xf]
  %v1072 = vunpack.c.l.bf16 %v1071
  %v1073 = vunpack.c.h.bf16 %v1071
  %s1074 = scalar_lea.vmem %s1, 1424
  %s1076 = ssub.s32 0, 4
  %s1077 = scalar_lea.vmem %s1074, %s1076
  %v1078 = vpack.c.bf16 %v1072, %v357
  %1079 = vst [vmem:[%s1077] sm:$0xff] %v1078
  %s1080 = scalar_lea.vmem %s0, 1288
  %v1081 = vld [vmem:[%s1080] sm:$0xf]
  %v1082 = vunpack.c.l.bf16 %v1081
  %v1083 = vunpack.c.h.bf16 %v1081
  %s1084 = scalar_lea.vmem %s1, 8
  %s1085 = scalar_lea.vmem %s0, 808
  %v1086 = vld [vmem:[%s1085] sm:$0xf]
  %v1087 = vunpack.c.l.bf16 %v1086
  %v1088 = vunpack.c.h.bf16 %v1086
  %s1089 = scalar_lea.vmem %s1, 488
  %s1090 = scalar_lea.vmem %s0, 328
  %v1091 = vld [vmem:[%s1090] sm:$0xf]
  %v1092 = vunpack.c.l.bf16 %v1091
  %v1093 = vunpack.c.h.bf16 %v1091
  %s1094 = scalar_lea.vmem %s1, 968
  %s1095 = scalar_lea.vmem %s0, 1128
  %v1096 = vld [vmem:[%s1095] sm:$0xf]
  %v1097 = vunpack.c.l.bf16 %v1096
  %v1098 = vunpack.c.h.bf16 %v1096
  %s1099 = scalar_lea.vmem %s1, 168
  %s1100 = scalar_lea.vmem %s0, 648
  %v1101 = vld [vmem:[%s1100] sm:$0xf]
  %v1102 = vunpack.c.l.bf16 %v1101
  %v1103 = vunpack.c.h.bf16 %v1101
  %s1104 = scalar_lea.vmem %s1, 648
  %s1105 = scalar_lea.vmem %s0, 168
  %v1106 = vld [vmem:[%s1105] sm:$0xf]
  %v1107 = vunpack.c.l.bf16 %v1106
  %v1108 = vunpack.c.h.bf16 %v1106
  %s1109 = scalar_lea.vmem %s1, 1128
  %s1110 = scalar_lea.vmem %s0, 968
  %v1111 = vld [vmem:[%s1110] sm:$0xf]
  %v1112 = vunpack.c.l.bf16 %v1111
  %v1113 = vunpack.c.h.bf16 %v1111
  %s1114 = scalar_lea.vmem %s1, 328
  %s1115 = scalar_lea.vmem %s0, 488
  %v1116 = vld [vmem:[%s1115] sm:$0xf]
  %v1117 = vunpack.c.l.bf16 %v1116
  %v1118 = vunpack.c.h.bf16 %v1116
  %s1119 = scalar_lea.vmem %s1, 808
  %s1120 = scalar_lea.vmem %s0, 8
  %v1121 = vld [vmem:[%s1120] sm:$0xf]
  %v1122 = vunpack.c.l.bf16 %v1121
  %v1123 = vunpack.c.h.bf16 %v1121
  %s1124 = scalar_lea.vmem %s1, 1288
  %s1125 = scalar_lea.vmem %s0, 1308
  %v1126 = vld [vmem:[%s1125] sm:$0xf]
  %v1127 = vunpack.c.l.bf16 %v1126
  %v1128 = vunpack.c.h.bf16 %v1126
  %s1129 = scalar_lea.vmem %s1, 28
  %s1130 = scalar_lea.vmem %s0, 828
  %v1131 = vld [vmem:[%s1130] sm:$0xf]
  %v1132 = vunpack.c.l.bf16 %v1131
  %v1133 = vunpack.c.h.bf16 %v1131
  %s1134 = scalar_lea.vmem %s1, 508
  %s1135 = scalar_lea.vmem %s0, 348
  %v1136 = vld [vmem:[%s1135] sm:$0xf]
  %v1137 = vunpack.c.l.bf16 %v1136
  %v1138 = vunpack.c.h.bf16 %v1136
  %s1139 = scalar_lea.vmem %s1, 988
  %s1140 = scalar_lea.vmem %s0, 1148
  %v1141 = vld [vmem:[%s1140] sm:$0xf]
  %v1142 = vunpack.c.l.bf16 %v1141
  %v1143 = vunpack.c.h.bf16 %v1141
  %s1144 = scalar_lea.vmem %s1, 188
  %s1145 = scalar_lea.vmem %s0, 668
  %v1146 = vld [vmem:[%s1145] sm:$0xf]
  %v1147 = vunpack.c.l.bf16 %v1146
  %v1148 = vunpack.c.h.bf16 %v1146
  %s1149 = scalar_lea.vmem %s1, 668
  %s1150 = scalar_lea.vmem %s0, 188
  %v1151 = vld [vmem:[%s1150] sm:$0xf]
  %v1152 = vunpack.c.l.bf16 %v1151
  %v1153 = vunpack.c.h.bf16 %v1151
  %s1154 = scalar_lea.vmem %s1, 1148
  %s1155 = scalar_lea.vmem %s0, 988
  %v1156 = vld [vmem:[%s1155] sm:$0xf]
  %v1157 = vunpack.c.l.bf16 %v1156
  %v1158 = vunpack.c.h.bf16 %v1156
  %s1159 = scalar_lea.vmem %s1, 348
  %s1160 = scalar_lea.vmem %s0, 508
  %v1161 = vld [vmem:[%s1160] sm:$0xf]
  %v1162 = vunpack.c.l.bf16 %v1161
  %v1163 = vunpack.c.h.bf16 %v1161
  %s1164 = scalar_lea.vmem %s1, 828
  %s1165 = scalar_lea.vmem %s0, 28
  %v1166 = vld [vmem:[%s1165] sm:$0xf]
  %v1167 = vunpack.c.l.bf16 %v1166
  %v1168 = vunpack.c.h.bf16 %v1166
  %s1169 = scalar_lea.vmem %s1, 1308
  %s1170 = scalar_lea.vmem %s0, 1328
  %v1171 = vld [vmem:[%s1170] sm:$0xf]
  %v1172 = vunpack.c.l.bf16 %v1171
  %v1173 = vunpack.c.h.bf16 %v1171
  %s1174 = scalar_lea.vmem %s1, 48
  %s1175 = scalar_lea.vmem %s0, 848
  %v1176 = vld [vmem:[%s1175] sm:$0xf]
  %v1177 = vunpack.c.l.bf16 %v1176
  %v1178 = vunpack.c.h.bf16 %v1176
  %s1179 = scalar_lea.vmem %s1, 528
  %s1180 = scalar_lea.vmem %s0, 368
  %v1181 = vld [vmem:[%s1180] sm:$0xf]
  %v1182 = vunpack.c.l.bf16 %v1181
  %v1183 = vunpack.c.h.bf16 %v1181
  %s1184 = scalar_lea.vmem %s1, 1008
  %s1185 = scalar_lea.vmem %s0, 1168
  %v1186 = vld [vmem:[%s1185] sm:$0xf]
  %v1187 = vunpack.c.l.bf16 %v1186
  %v1188 = vunpack.c.h.bf16 %v1186
  %s1189 = scalar_lea.vmem %s1, 208
  %s1190 = scalar_lea.vmem %s0, 688
  %v1191 = vld [vmem:[%s1190] sm:$0xf]
  %v1192 = vunpack.c.l.bf16 %v1191
  %v1193 = vunpack.c.h.bf16 %v1191
  %s1194 = scalar_lea.vmem %s1, 688
  %s1195 = scalar_lea.vmem %s0, 208
  %v1196 = vld [vmem:[%s1195] sm:$0xf]
  %v1197 = vunpack.c.l.bf16 %v1196
  %v1198 = vunpack.c.h.bf16 %v1196
  %s1199 = scalar_lea.vmem %s1, 1168
  %s1200 = scalar_lea.vmem %s0, 1008
  %v1201 = vld [vmem:[%s1200] sm:$0xf]
  %v1202 = vunpack.c.l.bf16 %v1201
  %v1203 = vunpack.c.h.bf16 %v1201
  %s1204 = scalar_lea.vmem %s1, 368
  %s1205 = scalar_lea.vmem %s0, 528
  %v1206 = vld [vmem:[%s1205] sm:$0xf]
  %v1207 = vunpack.c.l.bf16 %v1206
  %v1208 = vunpack.c.h.bf16 %v1206
  %s1209 = scalar_lea.vmem %s1, 848
  %s1210 = scalar_lea.vmem %s0, 48
  %v1211 = vld [vmem:[%s1210] sm:$0xf]
  %v1212 = vunpack.c.l.bf16 %v1211
  %v1213 = vunpack.c.h.bf16 %v1211
  %s1214 = scalar_lea.vmem %s1, 1328
  %s1215 = scalar_lea.vmem %s0, 1348
  %v1216 = vld [vmem:[%s1215] sm:$0xf]
  %v1217 = vunpack.c.l.bf16 %v1216
  %v1218 = vunpack.c.h.bf16 %v1216
  %s1219 = scalar_lea.vmem %s1, 68
  %s1220 = scalar_lea.vmem %s0, 868
  %v1221 = vld [vmem:[%s1220] sm:$0xf]
  %v1222 = vunpack.c.l.bf16 %v1221
  %v1223 = vunpack.c.h.bf16 %v1221
  %s1224 = scalar_lea.vmem %s1, 548
  %s1225 = scalar_lea.vmem %s0, 388
  %v1226 = vld [vmem:[%s1225] sm:$0xf]
  %v1227 = vunpack.c.l.bf16 %v1226
  %v1228 = vunpack.c.h.bf16 %v1226
  %s1229 = scalar_lea.vmem %s1, 1028
  %s1230 = scalar_lea.vmem %s0, 1188
  %v1231 = vld [vmem:[%s1230] sm:$0xf]
  %v1232 = vunpack.c.l.bf16 %v1231
  %v1233 = vunpack.c.h.bf16 %v1231
  %s1234 = scalar_lea.vmem %s1, 228
  %s1235 = scalar_lea.vmem %s0, 708
  %v1236 = vld [vmem:[%s1235] sm:$0xf]
  %v1237 = vunpack.c.l.bf16 %v1236
  %v1238 = vunpack.c.h.bf16 %v1236
  %s1239 = scalar_lea.vmem %s1, 708
  %s1240 = scalar_lea.vmem %s0, 228
  %v1241 = vld [vmem:[%s1240] sm:$0xf]
  %v1242 = vunpack.c.l.bf16 %v1241
  %v1243 = vunpack.c.h.bf16 %v1241
  %s1244 = scalar_lea.vmem %s1, 1188
  %s1245 = scalar_lea.vmem %s0, 1028
  %v1246 = vld [vmem:[%s1245] sm:$0xf]
  %v1247 = vunpack.c.l.bf16 %v1246
  %v1248 = vunpack.c.h.bf16 %v1246
  %s1249 = scalar_lea.vmem %s1, 388
  %s1250 = scalar_lea.vmem %s0, 548
  %v1251 = vld [vmem:[%s1250] sm:$0xf]
  %v1252 = vunpack.c.l.bf16 %v1251
  %v1253 = vunpack.c.h.bf16 %v1251
  %s1254 = scalar_lea.vmem %s1, 868
  %s1255 = scalar_lea.vmem %s0, 68
  %v1256 = vld [vmem:[%s1255] sm:$0xf]
  %v1257 = vunpack.c.l.bf16 %v1256
  %v1258 = vunpack.c.h.bf16 %v1256
  %s1259 = scalar_lea.vmem %s1, 1348
  %s1260 = scalar_lea.vmem %s0, 1368
  %v1261 = vld [vmem:[%s1260] sm:$0xf]
  %v1262 = vunpack.c.l.bf16 %v1261
  %v1263 = vunpack.c.h.bf16 %v1261
  %s1264 = scalar_lea.vmem %s1, 88
  %s1265 = scalar_lea.vmem %s0, 888
  %v1266 = vld [vmem:[%s1265] sm:$0xf]
  %v1267 = vunpack.c.l.bf16 %v1266
  %v1268 = vunpack.c.h.bf16 %v1266
  %s1269 = scalar_lea.vmem %s1, 568
  %s1270 = scalar_lea.vmem %s0, 408
  %v1271 = vld [vmem:[%s1270] sm:$0xf]
  %v1272 = vunpack.c.l.bf16 %v1271
  %v1273 = vunpack.c.h.bf16 %v1271
  %s1274 = scalar_lea.vmem %s1, 1048
  %s1275 = scalar_lea.vmem %s0, 1208
  %v1276 = vld [vmem:[%s1275] sm:$0xf]
  %v1277 = vunpack.c.l.bf16 %v1276
  %v1278 = vunpack.c.h.bf16 %v1276
  %s1279 = scalar_lea.vmem %s1, 248
  %s1280 = scalar_lea.vmem %s0, 728
  %v1281 = vld [vmem:[%s1280] sm:$0xf]
  %v1282 = vunpack.c.l.bf16 %v1281
  %v1283 = vunpack.c.h.bf16 %v1281
  %s1284 = scalar_lea.vmem %s1, 728
  %s1285 = scalar_lea.vmem %s0, 248
  %v1286 = vld [vmem:[%s1285] sm:$0xf]
  %v1287 = vunpack.c.l.bf16 %v1286
  %v1288 = vunpack.c.h.bf16 %v1286
  %s1289 = scalar_lea.vmem %s1, 1208
  %s1290 = scalar_lea.vmem %s0, 1048
  %v1291 = vld [vmem:[%s1290] sm:$0xf]
  %v1292 = vunpack.c.l.bf16 %v1291
  %v1293 = vunpack.c.h.bf16 %v1291
  %s1294 = scalar_lea.vmem %s1, 408
  %s1295 = scalar_lea.vmem %s0, 568
  %v1296 = vld [vmem:[%s1295] sm:$0xf]
  %v1297 = vunpack.c.l.bf16 %v1296
  %v1298 = vunpack.c.h.bf16 %v1296
  %s1299 = scalar_lea.vmem %s1, 888
  %s1300 = scalar_lea.vmem %s0, 88
  %v1301 = vld [vmem:[%s1300] sm:$0xf]
  %v1302 = vunpack.c.l.bf16 %v1301
  %v1303 = vunpack.c.h.bf16 %v1301
  %s1304 = scalar_lea.vmem %s1, 1368
  %s1305 = scalar_lea.vmem %s0, 1388
  %v1306 = vld [vmem:[%s1305] sm:$0xf]
  %v1307 = vunpack.c.l.bf16 %v1306
  %v1308 = vunpack.c.h.bf16 %v1306
  %s1309 = scalar_lea.vmem %s1, 108
  %s1310 = scalar_lea.vmem %s0, 908
  %v1311 = vld [vmem:[%s1310] sm:$0xf]
  %v1312 = vunpack.c.l.bf16 %v1311
  %v1313 = vunpack.c.h.bf16 %v1311
  %s1314 = scalar_lea.vmem %s1, 588
  %s1315 = scalar_lea.vmem %s0, 428
  %v1316 = vld [vmem:[%s1315] sm:$0xf]
  %v1317 = vunpack.c.l.bf16 %v1316
  %v1318 = vunpack.c.h.bf16 %v1316
  %s1319 = scalar_lea.vmem %s1, 1068
  %s1320 = scalar_lea.vmem %s0, 1228
  %v1321 = vld [vmem:[%s1320] sm:$0xf]
  %v1322 = vunpack.c.l.bf16 %v1321
  %v1323 = vunpack.c.h.bf16 %v1321
  %s1324 = scalar_lea.vmem %s1, 268
  %s1325 = scalar_lea.vmem %s0, 748
  %v1326 = vld [vmem:[%s1325] sm:$0xf]
  %v1327 = vunpack.c.l.bf16 %v1326
  %v1328 = vunpack.c.h.bf16 %v1326
  %s1329 = scalar_lea.vmem %s1, 748
  %s1330 = scalar_lea.vmem %s0, 268
  %v1331 = vld [vmem:[%s1330] sm:$0xf]
  %v1332 = vunpack.c.l.bf16 %v1331
  %v1333 = vunpack.c.h.bf16 %v1331
  %s1334 = scalar_lea.vmem %s1, 1228
  %s1335 = scalar_lea.vmem %s0, 1068
  %v1336 = vld [vmem:[%s1335] sm:$0xf]
  %v1337 = vunpack.c.l.bf16 %v1336
  %v1338 = vunpack.c.h.bf16 %v1336
  %s1339 = scalar_lea.vmem %s1, 428
  %s1340 = scalar_lea.vmem %s0, 588
  %v1341 = vld [vmem:[%s1340] sm:$0xf]
  %v1342 = vunpack.c.l.bf16 %v1341
  %v1343 = vunpack.c.h.bf16 %v1341
  %s1344 = scalar_lea.vmem %s1, 908
  %s1345 = scalar_lea.vmem %s0, 108
  %v1346 = vld [vmem:[%s1345] sm:$0xf]
  %v1347 = vunpack.c.l.bf16 %v1346
  %v1348 = vunpack.c.h.bf16 %v1346
  %s1349 = scalar_lea.vmem %s1, 1388
  %s1350 = scalar_lea.vmem %s0, 1408
  %v1351 = vld [vmem:[%s1350] sm:$0xf]
  %v1352 = vunpack.c.l.bf16 %v1351
  %v1353 = vunpack.c.h.bf16 %v1351
  %s1354 = scalar_lea.vmem %s1, 128
  %s1355 = scalar_lea.vmem %s0, 928
  %v1356 = vld [vmem:[%s1355] sm:$0xf]
  %v1357 = vunpack.c.l.bf16 %v1356
  %v1358 = vunpack.c.h.bf16 %v1356
  %s1359 = scalar_lea.vmem %s1, 608
  %s1360 = scalar_lea.vmem %s0, 448
  %v1361 = vld [vmem:[%s1360] sm:$0xf]
  %v1362 = vunpack.c.l.bf16 %v1361
  %v1363 = vunpack.c.h.bf16 %v1361
  %s1364 = scalar_lea.vmem %s1, 1088
  %s1365 = scalar_lea.vmem %s0, 1248
  %v1366 = vld [vmem:[%s1365] sm:$0xf]
  %v1367 = vunpack.c.l.bf16 %v1366
  %v1368 = vunpack.c.h.bf16 %v1366
  %s1369 = scalar_lea.vmem %s1, 288
  %s1370 = scalar_lea.vmem %s0, 768
  %v1371 = vld [vmem:[%s1370] sm:$0xf]
  %v1372 = vunpack.c.l.bf16 %v1371
  %v1373 = vunpack.c.h.bf16 %v1371
  %s1374 = scalar_lea.vmem %s1, 768
  %s1375 = scalar_lea.vmem %s0, 288
  %v1376 = vld [vmem:[%s1375] sm:$0xf]
  %v1377 = vunpack.c.l.bf16 %v1376
  %v1378 = vunpack.c.h.bf16 %v1376
  %s1379 = scalar_lea.vmem %s1, 1248
  %s1380 = scalar_lea.vmem %s0, 1088
  %v1381 = vld [vmem:[%s1380] sm:$0xf]
  %v1382 = vunpack.c.l.bf16 %v1381
  %v1383 = vunpack.c.h.bf16 %v1381
  %s1384 = scalar_lea.vmem %s1, 448
  %s1385 = scalar_lea.vmem %s0, 608
  %v1386 = vld [vmem:[%s1385] sm:$0xf]
  %v1387 = vunpack.c.l.bf16 %v1386
  %v1388 = vunpack.c.h.bf16 %v1386
  %s1389 = scalar_lea.vmem %s1, 928
  %s1390 = scalar_lea.vmem %s0, 128
  %v1391 = vld [vmem:[%s1390] sm:$0xf]
  %v1392 = vunpack.c.l.bf16 %v1391
  %v1393 = vunpack.c.h.bf16 %v1391
  %s1394 = scalar_lea.vmem %s1, 1408
  %s1395 = scalar_lea.vmem %s0, 1428
  %v1396 = vld [vmem:[%s1395] sm:$0xf]
  %v1397 = vunpack.c.l.bf16 %v1396
  %v1398 = vunpack.c.h.bf16 %v1396
  %s1399 = scalar_lea.vmem %s1, 148
  %s1400 = scalar_lea.vmem %s0, 948
  %v1401 = vld [vmem:[%s1400] sm:$0xf]
  %v1402 = vunpack.c.l.bf16 %v1401
  %v1403 = vunpack.c.h.bf16 %v1401
  %s1404 = scalar_lea.vmem %s1, 628
  %s1405 = scalar_lea.vmem %s0, 468
  %v1406 = vld [vmem:[%s1405] sm:$0xf]
  %v1407 = vunpack.c.l.bf16 %v1406
  %v1408 = vunpack.c.h.bf16 %v1406
  %s1409 = scalar_lea.vmem %s1, 1108
  %s1410 = scalar_lea.vmem %s0, 1268
  %v1411 = vld [vmem:[%s1410] sm:$0xf]
  %v1412 = vunpack.c.l.bf16 %v1411
  %v1413 = vunpack.c.h.bf16 %v1411
  %s1414 = scalar_lea.vmem %s1, 308
  %s1415 = scalar_lea.vmem %s0, 788
  %v1416 = vld [vmem:[%s1415] sm:$0xf]
  %v1417 = vunpack.c.l.bf16 %v1416
  %v1418 = vunpack.c.h.bf16 %v1416
  %s1419 = scalar_lea.vmem %s1, 788
  %s1420 = scalar_lea.vmem %s0, 308
  %v1421 = vld [vmem:[%s1420] sm:$0xf]
  %v1422 = vunpack.c.l.bf16 %v1421
  %v1423 = vunpack.c.h.bf16 %v1421
  %s1424 = scalar_lea.vmem %s1, 1268
  %s1425 = scalar_lea.vmem %s0, 1108
  %v1426 = vld [vmem:[%s1425] sm:$0xf]
  %v1427 = vunpack.c.l.bf16 %v1426
  %v1428 = vunpack.c.h.bf16 %v1426
  %s1429 = scalar_lea.vmem %s1, 468
  %s1430 = scalar_lea.vmem %s0, 628
  %v1431 = vld [vmem:[%s1430] sm:$0xf]
  %v1432 = vunpack.c.l.bf16 %v1431
  %v1433 = vunpack.c.h.bf16 %v1431
  %s1434 = scalar_lea.vmem %s1, 948
  %s1435 = scalar_lea.vmem %s0, 148
  %v1436 = vld [vmem:[%s1435] sm:$0xf]
  %v1437 = vunpack.c.l.bf16 %v1436
  %v1438 = vunpack.c.h.bf16 %v1436
  %s1439 = scalar_lea.vmem %s1, 1428
  %s1440 = scalar_lea.vmem %s0, 1292
  %v1441 = vld [vmem:[%s1440] sm:$0xf]
  %v1442 = vunpack.c.l.bf16 %v1441
  %v1443 = vunpack.c.h.bf16 %v1441
  %s1444 = scalar_lea.vmem %s1, 12
  %s1446 = ssub.s32 0, 4
  %s1447 = scalar_lea.vmem %s1444, %s1446
  %v1448 = vpack.c.bf16 %v1442, %v1082
  %1449 = vst [vmem:[%s1447] sm:$0xff] %v1448
  %s1450 = scalar_lea.vmem %s0, 812
  %v1451 = vld [vmem:[%s1450] sm:$0xf]
  %v1452 = vunpack.c.l.bf16 %v1451
  %v1453 = vunpack.c.h.bf16 %v1451
  %s1454 = scalar_lea.vmem %s1, 492
  %s1456 = ssub.s32 0, 4
  %s1457 = scalar_lea.vmem %s1454, %s1456
  %v1458 = vpack.c.bf16 %v1452, %v1087
  %1459 = vst [vmem:[%s1457] sm:$0xff] %v1458
  %s1460 = scalar_lea.vmem %s0, 332
  %v1461 = vld [vmem:[%s1460] sm:$0xf]
  %v1462 = vunpack.c.l.bf16 %v1461
  %v1463 = vunpack.c.h.bf16 %v1461
  %s1464 = scalar_lea.vmem %s1, 972
  %s1466 = ssub.s32 0, 4
  %s1467 = scalar_lea.vmem %s1464, %s1466
  %v1468 = vpack.c.bf16 %v1462, %v1092
  %1469 = vst [vmem:[%s1467] sm:$0xff] %v1468
  %s1470 = scalar_lea.vmem %s0, 1132
  %v1471 = vld [vmem:[%s1470] sm:$0xf]
  %v1472 = vunpack.c.l.bf16 %v1471
  %v1473 = vunpack.c.h.bf16 %v1471
  %s1474 = scalar_lea.vmem %s1, 172
  %s1476 = ssub.s32 0, 4
  %s1477 = scalar_lea.vmem %s1474, %s1476
  %v1478 = vpack.c.bf16 %v1472, %v1097
  %1479 = vst [vmem:[%s1477] sm:$0xff] %v1478
  %s1480 = scalar_lea.vmem %s0, 652
  %v1481 = vld [vmem:[%s1480] sm:$0xf]
  %v1482 = vunpack.c.l.bf16 %v1481
  %v1483 = vunpack.c.h.bf16 %v1481
  %s1484 = scalar_lea.vmem %s1, 652
  %s1486 = ssub.s32 0, 4
  %s1487 = scalar_lea.vmem %s1484, %s1486
  %v1488 = vpack.c.bf16 %v1482, %v1102
  %1489 = vst [vmem:[%s1487] sm:$0xff] %v1488
  %s1490 = scalar_lea.vmem %s0, 172
  %v1491 = vld [vmem:[%s1490] sm:$0xf]
  %v1492 = vunpack.c.l.bf16 %v1491
  %v1493 = vunpack.c.h.bf16 %v1491
  %s1494 = scalar_lea.vmem %s1, 1132
  %s1496 = ssub.s32 0, 4
  %s1497 = scalar_lea.vmem %s1494, %s1496
  %v1498 = vpack.c.bf16 %v1492, %v1107
  %1499 = vst [vmem:[%s1497] sm:$0xff] %v1498
  %s1500 = scalar_lea.vmem %s0, 972
  %v1501 = vld [vmem:[%s1500] sm:$0xf]
  %v1502 = vunpack.c.l.bf16 %v1501
  %v1503 = vunpack.c.h.bf16 %v1501
  %s1504 = scalar_lea.vmem %s1, 332
  %s1506 = ssub.s32 0, 4
  %s1507 = scalar_lea.vmem %s1504, %s1506
  %v1508 = vpack.c.bf16 %v1502, %v1112
  %1509 = vst [vmem:[%s1507] sm:$0xff] %v1508
  %s1510 = scalar_lea.vmem %s0, 492
  %v1511 = vld [vmem:[%s1510] sm:$0xf]
  %v1512 = vunpack.c.l.bf16 %v1511
  %v1513 = vunpack.c.h.bf16 %v1511
  %s1514 = scalar_lea.vmem %s1, 812
  %s1516 = ssub.s32 0, 4
  %s1517 = scalar_lea.vmem %s1514, %s1516
  %v1518 = vpack.c.bf16 %v1512, %v1117
  %1519 = vst [vmem:[%s1517] sm:$0xff] %v1518
  %s1520 = scalar_lea.vmem %s0, 12
  %v1521 = vld [vmem:[%s1520] sm:$0xf]
  %v1522 = vunpack.c.l.bf16 %v1521
  %v1523 = vunpack.c.h.bf16 %v1521
  %s1524 = scalar_lea.vmem %s1, 1292
  %s1526 = ssub.s32 0, 4
  %s1527 = scalar_lea.vmem %s1524, %s1526
  %v1528 = vpack.c.bf16 %v1522, %v1122
  %1529 = vst [vmem:[%s1527] sm:$0xff] %v1528
  %s1530 = scalar_lea.vmem %s0, 1312
  %v1531 = vld [vmem:[%s1530] sm:$0xf]
  %v1532 = vunpack.c.l.bf16 %v1531
  %v1533 = vunpack.c.h.bf16 %v1531
  %s1534 = scalar_lea.vmem %s1, 32
  %s1536 = ssub.s32 0, 4
  %s1537 = scalar_lea.vmem %s1534, %s1536
  %v1538 = vpack.c.bf16 %v1532, %v1127
  %1539 = vst [vmem:[%s1537] sm:$0xff] %v1538
  %s1540 = scalar_lea.vmem %s0, 832
  %v1541 = vld [vmem:[%s1540] sm:$0xf]
  %v1542 = vunpack.c.l.bf16 %v1541
  %v1543 = vunpack.c.h.bf16 %v1541
  %s1544 = scalar_lea.vmem %s1, 512
  %s1546 = ssub.s32 0, 4
  %s1547 = scalar_lea.vmem %s1544, %s1546
  %v1548 = vpack.c.bf16 %v1542, %v1132
  %1549 = vst [vmem:[%s1547] sm:$0xff] %v1548
  %s1550 = scalar_lea.vmem %s0, 352
  %v1551 = vld [vmem:[%s1550] sm:$0xf]
  %v1552 = vunpack.c.l.bf16 %v1551
  %v1553 = vunpack.c.h.bf16 %v1551
  %s1554 = scalar_lea.vmem %s1, 992
  %s1556 = ssub.s32 0, 4
  %s1557 = scalar_lea.vmem %s1554, %s1556
  %v1558 = vpack.c.bf16 %v1552, %v1137
  %1559 = vst [vmem:[%s1557] sm:$0xff] %v1558
  %s1560 = scalar_lea.vmem %s0, 1152
  %v1561 = vld [vmem:[%s1560] sm:$0xf]
  %v1562 = vunpack.c.l.bf16 %v1561
  %v1563 = vunpack.c.h.bf16 %v1561
  %s1564 = scalar_lea.vmem %s1, 192
  %s1566 = ssub.s32 0, 4
  %s1567 = scalar_lea.vmem %s1564, %s1566
  %v1568 = vpack.c.bf16 %v1562, %v1142
  %1569 = vst [vmem:[%s1567] sm:$0xff] %v1568
  %s1570 = scalar_lea.vmem %s0, 672
  %v1571 = vld [vmem:[%s1570] sm:$0xf]
  %v1572 = vunpack.c.l.bf16 %v1571
  %v1573 = vunpack.c.h.bf16 %v1571
  %s1574 = scalar_lea.vmem %s1, 672
  %s1576 = ssub.s32 0, 4
  %s1577 = scalar_lea.vmem %s1574, %s1576
  %v1578 = vpack.c.bf16 %v1572, %v1147
  %1579 = vst [vmem:[%s1577] sm:$0xff] %v1578
  %s1580 = scalar_lea.vmem %s0, 192
  %v1581 = vld [vmem:[%s1580] sm:$0xf]
  %v1582 = vunpack.c.l.bf16 %v1581
  %v1583 = vunpack.c.h.bf16 %v1581
  %s1584 = scalar_lea.vmem %s1, 1152
  %s1586 = ssub.s32 0, 4
  %s1587 = scalar_lea.vmem %s1584, %s1586
  %v1588 = vpack.c.bf16 %v1582, %v1152
  %1589 = vst [vmem:[%s1587] sm:$0xff] %v1588
  %s1590 = scalar_lea.vmem %s0, 992
  %v1591 = vld [vmem:[%s1590] sm:$0xf]
  %v1592 = vunpack.c.l.bf16 %v1591
  %v1593 = vunpack.c.h.bf16 %v1591
  %s1594 = scalar_lea.vmem %s1, 352
  %s1596 = ssub.s32 0, 4
  %s1597 = scalar_lea.vmem %s1594, %s1596
  %v1598 = vpack.c.bf16 %v1592, %v1157
  %1599 = vst [vmem:[%s1597] sm:$0xff] %v1598
  %s1600 = scalar_lea.vmem %s0, 512
  %v1601 = vld [vmem:[%s1600] sm:$0xf]
  %v1602 = vunpack.c.l.bf16 %v1601
  %v1603 = vunpack.c.h.bf16 %v1601
  %s1604 = scalar_lea.vmem %s1, 832
  %s1606 = ssub.s32 0, 4
  %s1607 = scalar_lea.vmem %s1604, %s1606
  %v1608 = vpack.c.bf16 %v1602, %v1162
  %1609 = vst [vmem:[%s1607] sm:$0xff] %v1608
  %s1610 = scalar_lea.vmem %s0, 32
  %v1611 = vld [vmem:[%s1610] sm:$0xf]
  %v1612 = vunpack.c.l.bf16 %v1611
  %v1613 = vunpack.c.h.bf16 %v1611
  %s1614 = scalar_lea.vmem %s1, 1312
  %s1616 = ssub.s32 0, 4
  %s1617 = scalar_lea.vmem %s1614, %s1616
  %v1618 = vpack.c.bf16 %v1612, %v1167
  %1619 = vst [vmem:[%s1617] sm:$0xff] %v1618
  %s1620 = scalar_lea.vmem %s0, 1332
  %v1621 = vld [vmem:[%s1620] sm:$0xf]
  %v1622 = vunpack.c.l.bf16 %v1621
  %v1623 = vunpack.c.h.bf16 %v1621
  %s1624 = scalar_lea.vmem %s1, 52
  %s1626 = ssub.s32 0, 4
  %s1627 = scalar_lea.vmem %s1624, %s1626
  %v1628 = vpack.c.bf16 %v1622, %v1172
  %1629 = vst [vmem:[%s1627] sm:$0xff] %v1628
  %s1630 = scalar_lea.vmem %s0, 852
  %v1631 = vld [vmem:[%s1630] sm:$0xf]
  %v1632 = vunpack.c.l.bf16 %v1631
  %v1633 = vunpack.c.h.bf16 %v1631
  %s1634 = scalar_lea.vmem %s1, 532
  %s1636 = ssub.s32 0, 4
  %s1637 = scalar_lea.vmem %s1634, %s1636
  %v1638 = vpack.c.bf16 %v1632, %v1177
  %1639 = vst [vmem:[%s1637] sm:$0xff] %v1638
  %s1640 = scalar_lea.vmem %s0, 372
  %v1641 = vld [vmem:[%s1640] sm:$0xf]
  %v1642 = vunpack.c.l.bf16 %v1641
  %v1643 = vunpack.c.h.bf16 %v1641
  %s1644 = scalar_lea.vmem %s1, 1012
  %s1646 = ssub.s32 0, 4
  %s1647 = scalar_lea.vmem %s1644, %s1646
  %v1648 = vpack.c.bf16 %v1642, %v1182
  %1649 = vst [vmem:[%s1647] sm:$0xff] %v1648
  %s1650 = scalar_lea.vmem %s0, 1172
  %v1651 = vld [vmem:[%s1650] sm:$0xf]
  %v1652 = vunpack.c.l.bf16 %v1651
  %v1653 = vunpack.c.h.bf16 %v1651
  %s1654 = scalar_lea.vmem %s1, 212
  %s1656 = ssub.s32 0, 4
  %s1657 = scalar_lea.vmem %s1654, %s1656
  %v1658 = vpack.c.bf16 %v1652, %v1187
  %1659 = vst [vmem:[%s1657] sm:$0xff] %v1658
  %s1660 = scalar_lea.vmem %s0, 692
  %v1661 = vld [vmem:[%s1660] sm:$0xf]
  %v1662 = vunpack.c.l.bf16 %v1661
  %v1663 = vunpack.c.h.bf16 %v1661
  %s1664 = scalar_lea.vmem %s1, 692
  %s1666 = ssub.s32 0, 4
  %s1667 = scalar_lea.vmem %s1664, %s1666
  %v1668 = vpack.c.bf16 %v1662, %v1192
  %1669 = vst [vmem:[%s1667] sm:$0xff] %v1668
  %s1670 = scalar_lea.vmem %s0, 212
  %v1671 = vld [vmem:[%s1670] sm:$0xf]
  %v1672 = vunpack.c.l.bf16 %v1671
  %v1673 = vunpack.c.h.bf16 %v1671
  %s1674 = scalar_lea.vmem %s1, 1172
  %s1676 = ssub.s32 0, 4
  %s1677 = scalar_lea.vmem %s1674, %s1676
  %v1678 = vpack.c.bf16 %v1672, %v1197
  %1679 = vst [vmem:[%s1677] sm:$0xff] %v1678
  %s1680 = scalar_lea.vmem %s0, 1012
  %v1681 = vld [vmem:[%s1680] sm:$0xf]
  %v1682 = vunpack.c.l.bf16 %v1681
  %v1683 = vunpack.c.h.bf16 %v1681
  %s1684 = scalar_lea.vmem %s1, 372
  %s1686 = ssub.s32 0, 4
  %s1687 = scalar_lea.vmem %s1684, %s1686
  %v1688 = vpack.c.bf16 %v1682, %v1202
  %1689 = vst [vmem:[%s1687] sm:$0xff] %v1688
  %s1690 = scalar_lea.vmem %s0, 532
  %v1691 = vld [vmem:[%s1690] sm:$0xf]
  %v1692 = vunpack.c.l.bf16 %v1691
  %v1693 = vunpack.c.h.bf16 %v1691
  %s1694 = scalar_lea.vmem %s1, 852
  %s1696 = ssub.s32 0, 4
  %s1697 = scalar_lea.vmem %s1694, %s1696
  %v1698 = vpack.c.bf16 %v1692, %v1207
  %1699 = vst [vmem:[%s1697] sm:$0xff] %v1698
  %s1700 = scalar_lea.vmem %s0, 52
  %v1701 = vld [vmem:[%s1700] sm:$0xf]
  %v1702 = vunpack.c.l.bf16 %v1701
  %v1703 = vunpack.c.h.bf16 %v1701
  %s1704 = scalar_lea.vmem %s1, 1332
  %s1706 = ssub.s32 0, 4
  %s1707 = scalar_lea.vmem %s1704, %s1706
  %v1708 = vpack.c.bf16 %v1702, %v1212
  %1709 = vst [vmem:[%s1707] sm:$0xff] %v1708
  %s1710 = scalar_lea.vmem %s0, 1352
  %v1711 = vld [vmem:[%s1710] sm:$0xf]
  %v1712 = vunpack.c.l.bf16 %v1711
  %v1713 = vunpack.c.h.bf16 %v1711
  %s1714 = scalar_lea.vmem %s1, 72
  %s1716 = ssub.s32 0, 4
  %s1717 = scalar_lea.vmem %s1714, %s1716
  %v1718 = vpack.c.bf16 %v1712, %v1217
  %1719 = vst [vmem:[%s1717] sm:$0xff] %v1718
  %s1720 = scalar_lea.vmem %s0, 872
  %v1721 = vld [vmem:[%s1720] sm:$0xf]
  %v1722 = vunpack.c.l.bf16 %v1721
  %v1723 = vunpack.c.h.bf16 %v1721
  %s1724 = scalar_lea.vmem %s1, 552
  %s1726 = ssub.s32 0, 4
  %s1727 = scalar_lea.vmem %s1724, %s1726
  %v1728 = vpack.c.bf16 %v1722, %v1222
  %1729 = vst [vmem:[%s1727] sm:$0xff] %v1728
  %s1730 = scalar_lea.vmem %s0, 392
  %v1731 = vld [vmem:[%s1730] sm:$0xf]
  %v1732 = vunpack.c.l.bf16 %v1731
  %v1733 = vunpack.c.h.bf16 %v1731
  %s1734 = scalar_lea.vmem %s1, 1032
  %s1736 = ssub.s32 0, 4
  %s1737 = scalar_lea.vmem %s1734, %s1736
  %v1738 = vpack.c.bf16 %v1732, %v1227
  %1739 = vst [vmem:[%s1737] sm:$0xff] %v1738
  %s1740 = scalar_lea.vmem %s0, 1192
  %v1741 = vld [vmem:[%s1740] sm:$0xf]
  %v1742 = vunpack.c.l.bf16 %v1741
  %v1743 = vunpack.c.h.bf16 %v1741
  %s1744 = scalar_lea.vmem %s1, 232
  %s1746 = ssub.s32 0, 4
  %s1747 = scalar_lea.vmem %s1744, %s1746
  %v1748 = vpack.c.bf16 %v1742, %v1232
  %1749 = vst [vmem:[%s1747] sm:$0xff] %v1748
  %s1750 = scalar_lea.vmem %s0, 712
  %v1751 = vld [vmem:[%s1750] sm:$0xf]
  %v1752 = vunpack.c.l.bf16 %v1751
  %v1753 = vunpack.c.h.bf16 %v1751
  %s1754 = scalar_lea.vmem %s1, 712
  %s1756 = ssub.s32 0, 4
  %s1757 = scalar_lea.vmem %s1754, %s1756
  %v1758 = vpack.c.bf16 %v1752, %v1237
  %1759 = vst [vmem:[%s1757] sm:$0xff] %v1758
  %s1760 = scalar_lea.vmem %s0, 232
  %v1761 = vld [vmem:[%s1760] sm:$0xf]
  %v1762 = vunpack.c.l.bf16 %v1761
  %v1763 = vunpack.c.h.bf16 %v1761
  %s1764 = scalar_lea.vmem %s1, 1192
  %s1766 = ssub.s32 0, 4
  %s1767 = scalar_lea.vmem %s1764, %s1766
  %v1768 = vpack.c.bf16 %v1762, %v1242
  %1769 = vst [vmem:[%s1767] sm:$0xff] %v1768
  %s1770 = scalar_lea.vmem %s0, 1032
  %v1771 = vld [vmem:[%s1770] sm:$0xf]
  %v1772 = vunpack.c.l.bf16 %v1771
  %v1773 = vunpack.c.h.bf16 %v1771
  %s1774 = scalar_lea.vmem %s1, 392
  %s1776 = ssub.s32 0, 4
  %s1777 = scalar_lea.vmem %s1774, %s1776
  %v1778 = vpack.c.bf16 %v1772, %v1247
  %1779 = vst [vmem:[%s1777] sm:$0xff] %v1778
  %s1780 = scalar_lea.vmem %s0, 552
  %v1781 = vld [vmem:[%s1780] sm:$0xf]
  %v1782 = vunpack.c.l.bf16 %v1781
  %v1783 = vunpack.c.h.bf16 %v1781
  %s1784 = scalar_lea.vmem %s1, 872
  %s1786 = ssub.s32 0, 4
  %s1787 = scalar_lea.vmem %s1784, %s1786
  %v1788 = vpack.c.bf16 %v1782, %v1252
  %1789 = vst [vmem:[%s1787] sm:$0xff] %v1788
  %s1790 = scalar_lea.vmem %s0, 72
  %v1791 = vld [vmem:[%s1790] sm:$0xf]
  %v1792 = vunpack.c.l.bf16 %v1791
  %v1793 = vunpack.c.h.bf16 %v1791
  %s1794 = scalar_lea.vmem %s1, 1352
  %s1796 = ssub.s32 0, 4
  %s1797 = scalar_lea.vmem %s1794, %s1796
  %v1798 = vpack.c.bf16 %v1792, %v1257
  %1799 = vst [vmem:[%s1797] sm:$0xff] %v1798
  %s1800 = scalar_lea.vmem %s0, 1372
  %v1801 = vld [vmem:[%s1800] sm:$0xf]
  %v1802 = vunpack.c.l.bf16 %v1801
  %v1803 = vunpack.c.h.bf16 %v1801
  %s1804 = scalar_lea.vmem %s1, 92
  %s1806 = ssub.s32 0, 4
  %s1807 = scalar_lea.vmem %s1804, %s1806
  %v1808 = vpack.c.bf16 %v1802, %v1262
  %1809 = vst [vmem:[%s1807] sm:$0xff] %v1808
  %s1810 = scalar_lea.vmem %s0, 892
  %v1811 = vld [vmem:[%s1810] sm:$0xf]
  %v1812 = vunpack.c.l.bf16 %v1811
  %v1813 = vunpack.c.h.bf16 %v1811
  %s1814 = scalar_lea.vmem %s1, 572
  %s1816 = ssub.s32 0, 4
  %s1817 = scalar_lea.vmem %s1814, %s1816
  %v1818 = vpack.c.bf16 %v1812, %v1267
  %1819 = vst [vmem:[%s1817] sm:$0xff] %v1818
  %s1820 = scalar_lea.vmem %s0, 412
  %v1821 = vld [vmem:[%s1820] sm:$0xf]
  %v1822 = vunpack.c.l.bf16 %v1821
  %v1823 = vunpack.c.h.bf16 %v1821
  %s1824 = scalar_lea.vmem %s1, 1052
  %s1826 = ssub.s32 0, 4
  %s1827 = scalar_lea.vmem %s1824, %s1826
  %v1828 = vpack.c.bf16 %v1822, %v1272
  %1829 = vst [vmem:[%s1827] sm:$0xff] %v1828
  %s1830 = scalar_lea.vmem %s0, 1212
  %v1831 = vld [vmem:[%s1830] sm:$0xf]
  %v1832 = vunpack.c.l.bf16 %v1831
  %v1833 = vunpack.c.h.bf16 %v1831
  %s1834 = scalar_lea.vmem %s1, 252
  %s1836 = ssub.s32 0, 4
  %s1837 = scalar_lea.vmem %s1834, %s1836
  %v1838 = vpack.c.bf16 %v1832, %v1277
  %1839 = vst [vmem:[%s1837] sm:$0xff] %v1838
  %s1840 = scalar_lea.vmem %s0, 732
  %v1841 = vld [vmem:[%s1840] sm:$0xf]
  %v1842 = vunpack.c.l.bf16 %v1841
  %v1843 = vunpack.c.h.bf16 %v1841
  %s1844 = scalar_lea.vmem %s1, 732
  %s1846 = ssub.s32 0, 4
  %s1847 = scalar_lea.vmem %s1844, %s1846
  %v1848 = vpack.c.bf16 %v1842, %v1282
  %1849 = vst [vmem:[%s1847] sm:$0xff] %v1848
  %s1850 = scalar_lea.vmem %s0, 252
  %v1851 = vld [vmem:[%s1850] sm:$0xf]
  %v1852 = vunpack.c.l.bf16 %v1851
  %v1853 = vunpack.c.h.bf16 %v1851
  %s1854 = scalar_lea.vmem %s1, 1212
  %s1856 = ssub.s32 0, 4
  %s1857 = scalar_lea.vmem %s1854, %s1856
  %v1858 = vpack.c.bf16 %v1852, %v1287
  %1859 = vst [vmem:[%s1857] sm:$0xff] %v1858
  %s1860 = scalar_lea.vmem %s0, 1052
  %v1861 = vld [vmem:[%s1860] sm:$0xf]
  %v1862 = vunpack.c.l.bf16 %v1861
  %v1863 = vunpack.c.h.bf16 %v1861
  %s1864 = scalar_lea.vmem %s1, 412
  %s1866 = ssub.s32 0, 4
  %s1867 = scalar_lea.vmem %s1864, %s1866
  %v1868 = vpack.c.bf16 %v1862, %v1292
  %1869 = vst [vmem:[%s1867] sm:$0xff] %v1868
  %s1870 = scalar_lea.vmem %s0, 572
  %v1871 = vld [vmem:[%s1870] sm:$0xf]
  %v1872 = vunpack.c.l.bf16 %v1871
  %v1873 = vunpack.c.h.bf16 %v1871
  %s1874 = scalar_lea.vmem %s1, 892
  %s1876 = ssub.s32 0, 4
  %s1877 = scalar_lea.vmem %s1874, %s1876
  %v1878 = vpack.c.bf16 %v1872, %v1297
  %1879 = vst [vmem:[%s1877] sm:$0xff] %v1878
  %s1880 = scalar_lea.vmem %s0, 92
  %v1881 = vld [vmem:[%s1880] sm:$0xf]
  %v1882 = vunpack.c.l.bf16 %v1881
  %v1883 = vunpack.c.h.bf16 %v1881
  %s1884 = scalar_lea.vmem %s1, 1372
  %s1886 = ssub.s32 0, 4
  %s1887 = scalar_lea.vmem %s1884, %s1886
  %v1888 = vpack.c.bf16 %v1882, %v1302
  %1889 = vst [vmem:[%s1887] sm:$0xff] %v1888
  %s1890 = scalar_lea.vmem %s0, 1392
  %v1891 = vld [vmem:[%s1890] sm:$0xf]
  %v1892 = vunpack.c.l.bf16 %v1891
  %v1893 = vunpack.c.h.bf16 %v1891
  %s1894 = scalar_lea.vmem %s1, 112
  %s1896 = ssub.s32 0, 4
  %s1897 = scalar_lea.vmem %s1894, %s1896
  %v1898 = vpack.c.bf16 %v1892, %v1307
  %1899 = vst [vmem:[%s1897] sm:$0xff] %v1898
  %s1900 = scalar_lea.vmem %s0, 912
  %v1901 = vld [vmem:[%s1900] sm:$0xf]
  %v1902 = vunpack.c.l.bf16 %v1901
  %v1903 = vunpack.c.h.bf16 %v1901
  %s1904 = scalar_lea.vmem %s1, 592
  %s1906 = ssub.s32 0, 4
  %s1907 = scalar_lea.vmem %s1904, %s1906
  %v1908 = vpack.c.bf16 %v1902, %v1312
  %1909 = vst [vmem:[%s1907] sm:$0xff] %v1908
  %s1910 = scalar_lea.vmem %s0, 432
  %v1911 = vld [vmem:[%s1910] sm:$0xf]
  %v1912 = vunpack.c.l.bf16 %v1911
  %v1913 = vunpack.c.h.bf16 %v1911
  %s1914 = scalar_lea.vmem %s1, 1072
  %s1916 = ssub.s32 0, 4
  %s1917 = scalar_lea.vmem %s1914, %s1916
  %v1918 = vpack.c.bf16 %v1912, %v1317
  %1919 = vst [vmem:[%s1917] sm:$0xff] %v1918
  %s1920 = scalar_lea.vmem %s0, 1232
  %v1921 = vld [vmem:[%s1920] sm:$0xf]
  %v1922 = vunpack.c.l.bf16 %v1921
  %v1923 = vunpack.c.h.bf16 %v1921
  %s1924 = scalar_lea.vmem %s1, 272
  %s1926 = ssub.s32 0, 4
  %s1927 = scalar_lea.vmem %s1924, %s1926
  %v1928 = vpack.c.bf16 %v1922, %v1322
  %1929 = vst [vmem:[%s1927] sm:$0xff] %v1928
  %s1930 = scalar_lea.vmem %s0, 752
  %v1931 = vld [vmem:[%s1930] sm:$0xf]
  %v1932 = vunpack.c.l.bf16 %v1931
  %v1933 = vunpack.c.h.bf16 %v1931
  %s1934 = scalar_lea.vmem %s1, 752
  %s1936 = ssub.s32 0, 4
  %s1937 = scalar_lea.vmem %s1934, %s1936
  %v1938 = vpack.c.bf16 %v1932, %v1327
  %1939 = vst [vmem:[%s1937] sm:$0xff] %v1938
  %s1940 = scalar_lea.vmem %s0, 272
  %v1941 = vld [vmem:[%s1940] sm:$0xf]
  %v1942 = vunpack.c.l.bf16 %v1941
  %v1943 = vunpack.c.h.bf16 %v1941
  %s1944 = scalar_lea.vmem %s1, 1232
  %s1946 = ssub.s32 0, 4
  %s1947 = scalar_lea.vmem %s1944, %s1946
  %v1948 = vpack.c.bf16 %v1942, %v1332
  %1949 = vst [vmem:[%s1947] sm:$0xff] %v1948
  %s1950 = scalar_lea.vmem %s0, 1072
  %v1951 = vld [vmem:[%s1950] sm:$0xf]
  %v1952 = vunpack.c.l.bf16 %v1951
  %v1953 = vunpack.c.h.bf16 %v1951
  %s1954 = scalar_lea.vmem %s1, 432
  %s1956 = ssub.s32 0, 4
  %s1957 = scalar_lea.vmem %s1954, %s1956
  %v1958 = vpack.c.bf16 %v1952, %v1337
  %1959 = vst [vmem:[%s1957] sm:$0xff] %v1958
  %s1960 = scalar_lea.vmem %s0, 592
  %v1961 = vld [vmem:[%s1960] sm:$0xf]
  %v1962 = vunpack.c.l.bf16 %v1961
  %v1963 = vunpack.c.h.bf16 %v1961
  %s1964 = scalar_lea.vmem %s1, 912
  %s1966 = ssub.s32 0, 4
  %s1967 = scalar_lea.vmem %s1964, %s1966
  %v1968 = vpack.c.bf16 %v1962, %v1342
  %1969 = vst [vmem:[%s1967] sm:$0xff] %v1968
  %s1970 = scalar_lea.vmem %s0, 112
  %v1971 = vld [vmem:[%s1970] sm:$0xf]
  %v1972 = vunpack.c.l.bf16 %v1971
  %v1973 = vunpack.c.h.bf16 %v1971
  %s1974 = scalar_lea.vmem %s1, 1392
  %s1976 = ssub.s32 0, 4
  %s1977 = scalar_lea.vmem %s1974, %s1976
  %v1978 = vpack.c.bf16 %v1972, %v1347
  %1979 = vst [vmem:[%s1977] sm:$0xff] %v1978
  %s1980 = scalar_lea.vmem %s0, 1412
  %v1981 = vld [vmem:[%s1980] sm:$0xf]
  %v1982 = vunpack.c.l.bf16 %v1981
  %v1983 = vunpack.c.h.bf16 %v1981
  %s1984 = scalar_lea.vmem %s1, 132
  %s1986 = ssub.s32 0, 4
  %s1987 = scalar_lea.vmem %s1984, %s1986
  %v1988 = vpack.c.bf16 %v1982, %v1352
  %1989 = vst [vmem:[%s1987] sm:$0xff] %v1988
  %s1990 = scalar_lea.vmem %s0, 932
  %v1991 = vld [vmem:[%s1990] sm:$0xf]
  %v1992 = vunpack.c.l.bf16 %v1991
  %v1993 = vunpack.c.h.bf16 %v1991
  %s1994 = scalar_lea.vmem %s1, 612
  %s1996 = ssub.s32 0, 4
  %s1997 = scalar_lea.vmem %s1994, %s1996
  %v1998 = vpack.c.bf16 %v1992, %v1357
  %1999 = vst [vmem:[%s1997] sm:$0xff] %v1998
  %s2000 = scalar_lea.vmem %s0, 452
  %v2001 = vld [vmem:[%s2000] sm:$0xf]
  %v2002 = vunpack.c.l.bf16 %v2001
  %v2003 = vunpack.c.h.bf16 %v2001
  %s2004 = scalar_lea.vmem %s1, 1092
  %s2006 = ssub.s32 0, 4
  %s2007 = scalar_lea.vmem %s2004, %s2006
  %v2008 = vpack.c.bf16 %v2002, %v1362
  %2009 = vst [vmem:[%s2007] sm:$0xff] %v2008
  %s2010 = scalar_lea.vmem %s0, 1252
  %v2011 = vld [vmem:[%s2010] sm:$0xf]
  %v2012 = vunpack.c.l.bf16 %v2011
  %v2013 = vunpack.c.h.bf16 %v2011
  %s2014 = scalar_lea.vmem %s1, 292
  %s2016 = ssub.s32 0, 4
  %s2017 = scalar_lea.vmem %s2014, %s2016
  %v2018 = vpack.c.bf16 %v2012, %v1367
  %2019 = vst [vmem:[%s2017] sm:$0xff] %v2018
  %s2020 = scalar_lea.vmem %s0, 772
  %v2021 = vld [vmem:[%s2020] sm:$0xf]
  %v2022 = vunpack.c.l.bf16 %v2021
  %v2023 = vunpack.c.h.bf16 %v2021
  %s2024 = scalar_lea.vmem %s1, 772
  %s2026 = ssub.s32 0, 4
  %s2027 = scalar_lea.vmem %s2024, %s2026
  %v2028 = vpack.c.bf16 %v2022, %v1372
  %2029 = vst [vmem:[%s2027] sm:$0xff] %v2028
  %s2030 = scalar_lea.vmem %s0, 292
  %v2031 = vld [vmem:[%s2030] sm:$0xf]
  %v2032 = vunpack.c.l.bf16 %v2031
  %v2033 = vunpack.c.h.bf16 %v2031
  %s2034 = scalar_lea.vmem %s1, 1252
  %s2036 = ssub.s32 0, 4
  %s2037 = scalar_lea.vmem %s2034, %s2036
  %v2038 = vpack.c.bf16 %v2032, %v1377
  %2039 = vst [vmem:[%s2037] sm:$0xff] %v2038
  %s2040 = scalar_lea.vmem %s0, 1092
  %v2041 = vld [vmem:[%s2040] sm:$0xf]
  %v2042 = vunpack.c.l.bf16 %v2041
  %v2043 = vunpack.c.h.bf16 %v2041
  %s2044 = scalar_lea.vmem %s1, 452
  %s2046 = ssub.s32 0, 4
  %s2047 = scalar_lea.vmem %s2044, %s2046
  %v2048 = vpack.c.bf16 %v2042, %v1382
  %2049 = vst [vmem:[%s2047] sm:$0xff] %v2048
  %s2050 = scalar_lea.vmem %s0, 612
  %v2051 = vld [vmem:[%s2050] sm:$0xf]
  %v2052 = vunpack.c.l.bf16 %v2051
  %v2053 = vunpack.c.h.bf16 %v2051
  %s2054 = scalar_lea.vmem %s1, 932
  %s2056 = ssub.s32 0, 4
  %s2057 = scalar_lea.vmem %s2054, %s2056
  %v2058 = vpack.c.bf16 %v2052, %v1387
  %2059 = vst [vmem:[%s2057] sm:$0xff] %v2058
  %s2060 = scalar_lea.vmem %s0, 132
  %v2061 = vld [vmem:[%s2060] sm:$0xf]
  %v2062 = vunpack.c.l.bf16 %v2061
  %v2063 = vunpack.c.h.bf16 %v2061
  %s2064 = scalar_lea.vmem %s1, 1412
  %s2066 = ssub.s32 0, 4
  %s2067 = scalar_lea.vmem %s2064, %s2066
  %v2068 = vpack.c.bf16 %v2062, %v1392
  %2069 = vst [vmem:[%s2067] sm:$0xff] %v2068
  %s2070 = scalar_lea.vmem %s0, 1432
  %v2071 = vld [vmem:[%s2070] sm:$0xf]
  %v2072 = vunpack.c.l.bf16 %v2071
  %v2073 = vunpack.c.h.bf16 %v2071
  %s2074 = scalar_lea.vmem %s1, 152
  %s2076 = ssub.s32 0, 4
  %s2077 = scalar_lea.vmem %s2074, %s2076
  %v2078 = vpack.c.bf16 %v2072, %v1397
  %2079 = vst [vmem:[%s2077] sm:$0xff] %v2078
  %s2080 = scalar_lea.vmem %s0, 952
  %v2081 = vld [vmem:[%s2080] sm:$0xf]
  %v2082 = vunpack.c.l.bf16 %v2081
  %v2083 = vunpack.c.h.bf16 %v2081
  %s2084 = scalar_lea.vmem %s1, 632
  %s2086 = ssub.s32 0, 4
  %s2087 = scalar_lea.vmem %s2084, %s2086
  %v2088 = vpack.c.bf16 %v2082, %v1402
  %2089 = vst [vmem:[%s2087] sm:$0xff] %v2088
  %s2090 = scalar_lea.vmem %s0, 472
  %v2091 = vld [vmem:[%s2090] sm:$0xf]
  %v2092 = vunpack.c.l.bf16 %v2091
  %v2093 = vunpack.c.h.bf16 %v2091
  %s2094 = scalar_lea.vmem %s1, 1112
  %s2096 = ssub.s32 0, 4
  %s2097 = scalar_lea.vmem %s2094, %s2096
  %v2098 = vpack.c.bf16 %v2092, %v1407
  %2099 = vst [vmem:[%s2097] sm:$0xff] %v2098
  %s2100 = scalar_lea.vmem %s0, 1272
  %v2101 = vld [vmem:[%s2100] sm:$0xf]
  %v2102 = vunpack.c.l.bf16 %v2101
  %v2103 = vunpack.c.h.bf16 %v2101
  %s2104 = scalar_lea.vmem %s1, 312
  %s2106 = ssub.s32 0, 4
  %s2107 = scalar_lea.vmem %s2104, %s2106
  %v2108 = vpack.c.bf16 %v2102, %v1412
  %2109 = vst [vmem:[%s2107] sm:$0xff] %v2108
  %s2110 = scalar_lea.vmem %s0, 792
  %v2111 = vld [vmem:[%s2110] sm:$0xf]
  %v2112 = vunpack.c.l.bf16 %v2111
  %v2113 = vunpack.c.h.bf16 %v2111
  %s2114 = scalar_lea.vmem %s1, 792
  %s2116 = ssub.s32 0, 4
  %s2117 = scalar_lea.vmem %s2114, %s2116
  %v2118 = vpack.c.bf16 %v2112, %v1417
  %2119 = vst [vmem:[%s2117] sm:$0xff] %v2118
  %s2120 = scalar_lea.vmem %s0, 312
  %v2121 = vld [vmem:[%s2120] sm:$0xf]
  %v2122 = vunpack.c.l.bf16 %v2121
  %v2123 = vunpack.c.h.bf16 %v2121
  %s2124 = scalar_lea.vmem %s1, 1272
  %s2126 = ssub.s32 0, 4
  %s2127 = scalar_lea.vmem %s2124, %s2126
  %v2128 = vpack.c.bf16 %v2122, %v1422
  %2129 = vst [vmem:[%s2127] sm:$0xff] %v2128
  %s2130 = scalar_lea.vmem %s0, 1112
  %v2131 = vld [vmem:[%s2130] sm:$0xf]
  %v2132 = vunpack.c.l.bf16 %v2131
  %v2133 = vunpack.c.h.bf16 %v2131
  %s2134 = scalar_lea.vmem %s1, 472
  %s2136 = ssub.s32 0, 4
  %s2137 = scalar_lea.vmem %s2134, %s2136
  %v2138 = vpack.c.bf16 %v2132, %v1427
  %2139 = vst [vmem:[%s2137] sm:$0xff] %v2138
  %s2140 = scalar_lea.vmem %s0, 632
  %v2141 = vld [vmem:[%s2140] sm:$0xf]
  %v2142 = vunpack.c.l.bf16 %v2141
  %v2143 = vunpack.c.h.bf16 %v2141
  %s2144 = scalar_lea.vmem %s1, 952
  %s2146 = ssub.s32 0, 4
  %s2147 = scalar_lea.vmem %s2144, %s2146
  %v2148 = vpack.c.bf16 %v2142, %v1432
  %2149 = vst [vmem:[%s2147] sm:$0xff] %v2148
  %s2150 = scalar_lea.vmem %s0, 152
  %v2151 = vld [vmem:[%s2150] sm:$0xf]
  %v2152 = vunpack.c.l.bf16 %v2151
  %v2153 = vunpack.c.h.bf16 %v2151
  %s2154 = scalar_lea.vmem %s1, 1432
  %s2156 = ssub.s32 0, 4
  %s2157 = scalar_lea.vmem %s2154, %s2156
  %v2158 = vpack.c.bf16 %v2152, %v1437
  %2159 = vst [vmem:[%s2157] sm:$0xff] %v2158
  %s2160 = scalar_lea.vmem %s0, 1296
  %v2161 = vld [vmem:[%s2160] sm:$0xf]
  %v2162 = vunpack.c.l.bf16 %v2161
  %v2163 = vunpack.c.h.bf16 %v2161
  %s2164 = scalar_lea.vmem %s1, 16
  %v2165 = vpack.c.bf16 0.0, %v2162
  %2166 = vst [vmem:[%s2164] sm:$0xf] %v2165
  %s2167 = scalar_lea.vmem %s0, 816
  %v2168 = vld [vmem:[%s2167] sm:$0xf]
  %v2169 = vunpack.c.l.bf16 %v2168
  %v2170 = vunpack.c.h.bf16 %v2168
  %s2171 = scalar_lea.vmem %s1, 496
  %v2172 = vpack.c.bf16 0.0, %v2169
  %2173 = vst [vmem:[%s2171] sm:$0xf] %v2172
  %s2174 = scalar_lea.vmem %s0, 336
  %v2175 = vld [vmem:[%s2174] sm:$0xf]
  %v2176 = vunpack.c.l.bf16 %v2175
  %v2177 = vunpack.c.h.bf16 %v2175
  %s2178 = scalar_lea.vmem %s1, 976
  %v2179 = vpack.c.bf16 0.0, %v2176
  %2180 = vst [vmem:[%s2178] sm:$0xf] %v2179
  %s2181 = scalar_lea.vmem %s0, 1136
  %v2182 = vld [vmem:[%s2181] sm:$0xf]
  %v2183 = vunpack.c.l.bf16 %v2182
  %v2184 = vunpack.c.h.bf16 %v2182
  %s2185 = scalar_lea.vmem %s1, 176
  %v2186 = vpack.c.bf16 0.0, %v2183
  %2187 = vst [vmem:[%s2185] sm:$0xf] %v2186
  %s2188 = scalar_lea.vmem %s0, 656
  %v2189 = vld [vmem:[%s2188] sm:$0xf]
  %v2190 = vunpack.c.l.bf16 %v2189
  %v2191 = vunpack.c.h.bf16 %v2189
  %s2192 = scalar_lea.vmem %s1, 656
  %v2193 = vpack.c.bf16 0.0, %v2190
  %2194 = vst [vmem:[%s2192] sm:$0xf] %v2193
  %s2195 = scalar_lea.vmem %s0, 176
  %v2196 = vld [vmem:[%s2195] sm:$0xf]
  %v2197 = vunpack.c.l.bf16 %v2196
  %v2198 = vunpack.c.h.bf16 %v2196
  %s2199 = scalar_lea.vmem %s1, 1136
  %v2200 = vpack.c.bf16 0.0, %v2197
  %2201 = vst [vmem:[%s2199] sm:$0xf] %v2200
  %s2202 = scalar_lea.vmem %s0, 976
  %v2203 = vld [vmem:[%s2202] sm:$0xf]
  %v2204 = vunpack.c.l.bf16 %v2203
  %v2205 = vunpack.c.h.bf16 %v2203
  %s2206 = scalar_lea.vmem %s1, 336
  %v2207 = vpack.c.bf16 0.0, %v2204
  %2208 = vst [vmem:[%s2206] sm:$0xf] %v2207
  %s2209 = scalar_lea.vmem %s0, 496
  %v2210 = vld [vmem:[%s2209] sm:$0xf]
  %v2211 = vunpack.c.l.bf16 %v2210
  %v2212 = vunpack.c.h.bf16 %v2210
  %s2213 = scalar_lea.vmem %s1, 816
  %v2214 = vpack.c.bf16 0.0, %v2211
  %2215 = vst [vmem:[%s2213] sm:$0xf] %v2214
  %s2216 = scalar_lea.vmem %s0, 16
  %v2217 = vld [vmem:[%s2216] sm:$0xf]
  %v2218 = vunpack.c.l.bf16 %v2217
  %v2219 = vunpack.c.h.bf16 %v2217
  %s2220 = scalar_lea.vmem %s1, 1296
  %v2221 = vpack.c.bf16 0.0, %v2218
  %2222 = vst [vmem:[%s2220] sm:$0xf] %v2221
  %s2223 = scalar_lea.vmem %s0, 1316
  %v2224 = vld [vmem:[%s2223] sm:$0xf]
  %v2225 = vunpack.c.l.bf16 %v2224
  %v2226 = vunpack.c.h.bf16 %v2224
  %s2227 = scalar_lea.vmem %s1, 36
  %v2228 = vpack.c.bf16 0.0, %v2225
  %2229 = vst [vmem:[%s2227] sm:$0xf] %v2228
  %s2230 = scalar_lea.vmem %s0, 836
  %v2231 = vld [vmem:[%s2230] sm:$0xf]
  %v2232 = vunpack.c.l.bf16 %v2231
  %v2233 = vunpack.c.h.bf16 %v2231
  %s2234 = scalar_lea.vmem %s1, 516
  %v2235 = vpack.c.bf16 0.0, %v2232
  %2236 = vst [vmem:[%s2234] sm:$0xf] %v2235
  %s2237 = scalar_lea.vmem %s0, 356
  %v2238 = vld [vmem:[%s2237] sm:$0xf]
  %v2239 = vunpack.c.l.bf16 %v2238
  %v2240 = vunpack.c.h.bf16 %v2238
  %s2241 = scalar_lea.vmem %s1, 996
  %v2242 = vpack.c.bf16 0.0, %v2239
  %2243 = vst [vmem:[%s2241] sm:$0xf] %v2242
  %s2244 = scalar_lea.vmem %s0, 1156
  %v2245 = vld [vmem:[%s2244] sm:$0xf]
  %v2246 = vunpack.c.l.bf16 %v2245
  %v2247 = vunpack.c.h.bf16 %v2245
  %s2248 = scalar_lea.vmem %s1, 196
  %v2249 = vpack.c.bf16 0.0, %v2246
  %2250 = vst [vmem:[%s2248] sm:$0xf] %v2249
  %s2251 = scalar_lea.vmem %s0, 676
  %v2252 = vld [vmem:[%s2251] sm:$0xf]
  %v2253 = vunpack.c.l.bf16 %v2252
  %v2254 = vunpack.c.h.bf16 %v2252
  %s2255 = scalar_lea.vmem %s1, 676
  %v2256 = vpack.c.bf16 0.0, %v2253
  %2257 = vst [vmem:[%s2255] sm:$0xf] %v2256
  %s2258 = scalar_lea.vmem %s0, 196
  %v2259 = vld [vmem:[%s2258] sm:$0xf]
  %v2260 = vunpack.c.l.bf16 %v2259
  %v2261 = vunpack.c.h.bf16 %v2259
  %s2262 = scalar_lea.vmem %s1, 1156
  %v2263 = vpack.c.bf16 0.0, %v2260
  %2264 = vst [vmem:[%s2262] sm:$0xf] %v2263
  %s2265 = scalar_lea.vmem %s0, 996
  %v2266 = vld [vmem:[%s2265] sm:$0xf]
  %v2267 = vunpack.c.l.bf16 %v2266
  %v2268 = vunpack.c.h.bf16 %v2266
  %s2269 = scalar_lea.vmem %s1, 356
  %v2270 = vpack.c.bf16 0.0, %v2267
  %2271 = vst [vmem:[%s2269] sm:$0xf] %v2270
  %s2272 = scalar_lea.vmem %s0, 516
  %v2273 = vld [vmem:[%s2272] sm:$0xf]
  %v2274 = vunpack.c.l.bf16 %v2273
  %v2275 = vunpack.c.h.bf16 %v2273
  %s2276 = scalar_lea.vmem %s1, 836
  %v2277 = vpack.c.bf16 0.0, %v2274
  %2278 = vst [vmem:[%s2276] sm:$0xf] %v2277
  %s2279 = scalar_lea.vmem %s0, 36
  %v2280 = vld [vmem:[%s2279] sm:$0xf]
  %v2281 = vunpack.c.l.bf16 %v2280
  %v2282 = vunpack.c.h.bf16 %v2280
  %s2283 = scalar_lea.vmem %s1, 1316
  %v2284 = vpack.c.bf16 0.0, %v2281
  %2285 = vst [vmem:[%s2283] sm:$0xf] %v2284
  %s2286 = scalar_lea.vmem %s0, 1336
  %v2287 = vld [vmem:[%s2286] sm:$0xf]
  %v2288 = vunpack.c.l.bf16 %v2287
  %v2289 = vunpack.c.h.bf16 %v2287
  %s2290 = scalar_lea.vmem %s1, 56
  %v2291 = vpack.c.bf16 0.0, %v2288
  %2292 = vst [vmem:[%s2290] sm:$0xf] %v2291
  %s2293 = scalar_lea.vmem %s0, 856
  %v2294 = vld [vmem:[%s2293] sm:$0xf]
  %v2295 = vunpack.c.l.bf16 %v2294
  %v2296 = vunpack.c.h.bf16 %v2294
  %s2297 = scalar_lea.vmem %s1, 536
  %v2298 = vpack.c.bf16 0.0, %v2295
  %2299 = vst [vmem:[%s2297] sm:$0xf] %v2298
  %s2300 = scalar_lea.vmem %s0, 376
  %v2301 = vld [vmem:[%s2300] sm:$0xf]
  %v2302 = vunpack.c.l.bf16 %v2301
  %v2303 = vunpack.c.h.bf16 %v2301
  %s2304 = scalar_lea.vmem %s1, 1016
  %v2305 = vpack.c.bf16 0.0, %v2302
  %2306 = vst [vmem:[%s2304] sm:$0xf] %v2305
  %s2307 = scalar_lea.vmem %s0, 1176
  %v2308 = vld [vmem:[%s2307] sm:$0xf]
  %v2309 = vunpack.c.l.bf16 %v2308
  %v2310 = vunpack.c.h.bf16 %v2308
  %s2311 = scalar_lea.vmem %s1, 216
  %v2312 = vpack.c.bf16 0.0, %v2309
  %2313 = vst [vmem:[%s2311] sm:$0xf] %v2312
  %s2314 = scalar_lea.vmem %s0, 696
  %v2315 = vld [vmem:[%s2314] sm:$0xf]
  %v2316 = vunpack.c.l.bf16 %v2315
  %v2317 = vunpack.c.h.bf16 %v2315
  %s2318 = scalar_lea.vmem %s1, 696
  %v2319 = vpack.c.bf16 0.0, %v2316
  %2320 = vst [vmem:[%s2318] sm:$0xf] %v2319
  %s2321 = scalar_lea.vmem %s0, 216
  %v2322 = vld [vmem:[%s2321] sm:$0xf]
  %v2323 = vunpack.c.l.bf16 %v2322
  %v2324 = vunpack.c.h.bf16 %v2322
  %s2325 = scalar_lea.vmem %s1, 1176
  %v2326 = vpack.c.bf16 0.0, %v2323
  %2327 = vst [vmem:[%s2325] sm:$0xf] %v2326
  %s2328 = scalar_lea.vmem %s0, 1016
  %v2329 = vld [vmem:[%s2328] sm:$0xf]
  %v2330 = vunpack.c.l.bf16 %v2329
  %v2331 = vunpack.c.h.bf16 %v2329
  %s2332 = scalar_lea.vmem %s1, 376
  %v2333 = vpack.c.bf16 0.0, %v2330
  %2334 = vst [vmem:[%s2332] sm:$0xf] %v2333
  %s2335 = scalar_lea.vmem %s0, 536
  %v2336 = vld [vmem:[%s2335] sm:$0xf]
  %v2337 = vunpack.c.l.bf16 %v2336
  %v2338 = vunpack.c.h.bf16 %v2336
  %s2339 = scalar_lea.vmem %s1, 856
  %v2340 = vpack.c.bf16 0.0, %v2337
  %2341 = vst [vmem:[%s2339] sm:$0xf] %v2340
  %s2342 = scalar_lea.vmem %s0, 56
  %v2343 = vld [vmem:[%s2342] sm:$0xf]
  %v2344 = vunpack.c.l.bf16 %v2343
  %v2345 = vunpack.c.h.bf16 %v2343
  %s2346 = scalar_lea.vmem %s1, 1336
  %v2347 = vpack.c.bf16 0.0, %v2344
  %2348 = vst [vmem:[%s2346] sm:$0xf] %v2347
  %s2349 = scalar_lea.vmem %s0, 1356
  %v2350 = vld [vmem:[%s2349] sm:$0xf]
  %v2351 = vunpack.c.l.bf16 %v2350
  %v2352 = vunpack.c.h.bf16 %v2350
  %s2353 = scalar_lea.vmem %s1, 76
  %v2354 = vpack.c.bf16 0.0, %v2351
  %2355 = vst [vmem:[%s2353] sm:$0xf] %v2354
  %s2356 = scalar_lea.vmem %s0, 876
  %v2357 = vld [vmem:[%s2356] sm:$0xf]
  %v2358 = vunpack.c.l.bf16 %v2357
  %v2359 = vunpack.c.h.bf16 %v2357
  %s2360 = scalar_lea.vmem %s1, 556
  %v2361 = vpack.c.bf16 0.0, %v2358
  %2362 = vst [vmem:[%s2360] sm:$0xf] %v2361
  %s2363 = scalar_lea.vmem %s0, 396
  %v2364 = vld [vmem:[%s2363] sm:$0xf]
  %v2365 = vunpack.c.l.bf16 %v2364
  %v2366 = vunpack.c.h.bf16 %v2364
  %s2367 = scalar_lea.vmem %s1, 1036
  %v2368 = vpack.c.bf16 0.0, %v2365
  %2369 = vst [vmem:[%s2367] sm:$0xf] %v2368
  %s2370 = scalar_lea.vmem %s0, 1196
  %v2371 = vld [vmem:[%s2370] sm:$0xf]
  %v2372 = vunpack.c.l.bf16 %v2371
  %v2373 = vunpack.c.h.bf16 %v2371
  %s2374 = scalar_lea.vmem %s1, 236
  %v2375 = vpack.c.bf16 0.0, %v2372
  %2376 = vst [vmem:[%s2374] sm:$0xf] %v2375
  %s2377 = scalar_lea.vmem %s0, 716
  %v2378 = vld [vmem:[%s2377] sm:$0xf]
  %v2379 = vunpack.c.l.bf16 %v2378
  %v2380 = vunpack.c.h.bf16 %v2378
  %s2381 = scalar_lea.vmem %s1, 716
  %v2382 = vpack.c.bf16 0.0, %v2379
  %2383 = vst [vmem:[%s2381] sm:$0xf] %v2382
  %s2384 = scalar_lea.vmem %s0, 236
  %v2385 = vld [vmem:[%s2384] sm:$0xf]
  %v2386 = vunpack.c.l.bf16 %v2385
  %v2387 = vunpack.c.h.bf16 %v2385
  %s2388 = scalar_lea.vmem %s1, 1196
  %v2389 = vpack.c.bf16 0.0, %v2386
  %2390 = vst [vmem:[%s2388] sm:$0xf] %v2389
  %s2391 = scalar_lea.vmem %s0, 1036
  %v2392 = vld [vmem:[%s2391] sm:$0xf]
  %v2393 = vunpack.c.l.bf16 %v2392
  %v2394 = vunpack.c.h.bf16 %v2392
  %s2395 = scalar_lea.vmem %s1, 396
  %v2396 = vpack.c.bf16 0.0, %v2393
  %2397 = vst [vmem:[%s2395] sm:$0xf] %v2396
  %s2398 = scalar_lea.vmem %s0, 556
  %v2399 = vld [vmem:[%s2398] sm:$0xf]
  %v2400 = vunpack.c.l.bf16 %v2399
  %v2401 = vunpack.c.h.bf16 %v2399
  %s2402 = scalar_lea.vmem %s1, 876
  %v2403 = vpack.c.bf16 0.0, %v2400
  %2404 = vst [vmem:[%s2402] sm:$0xf] %v2403
  %s2405 = scalar_lea.vmem %s0, 76
  %v2406 = vld [vmem:[%s2405] sm:$0xf]
  %v2407 = vunpack.c.l.bf16 %v2406
  %v2408 = vunpack.c.h.bf16 %v2406
  %s2409 = scalar_lea.vmem %s1, 1356
  %v2410 = vpack.c.bf16 0.0, %v2407
  %2411 = vst [vmem:[%s2409] sm:$0xf] %v2410
  %s2412 = scalar_lea.vmem %s0, 1376
  %v2413 = vld [vmem:[%s2412] sm:$0xf]
  %v2414 = vunpack.c.l.bf16 %v2413
  %v2415 = vunpack.c.h.bf16 %v2413
  %s2416 = scalar_lea.vmem %s1, 96
  %v2417 = vpack.c.bf16 0.0, %v2414
  %2418 = vst [vmem:[%s2416] sm:$0xf] %v2417
  %s2419 = scalar_lea.vmem %s0, 896
  %v2420 = vld [vmem:[%s2419] sm:$0xf]
  %v2421 = vunpack.c.l.bf16 %v2420
  %v2422 = vunpack.c.h.bf16 %v2420
  %s2423 = scalar_lea.vmem %s1, 576
  %v2424 = vpack.c.bf16 0.0, %v2421
  %2425 = vst [vmem:[%s2423] sm:$0xf] %v2424
  %s2426 = scalar_lea.vmem %s0, 416
  %v2427 = vld [vmem:[%s2426] sm:$0xf]
  %v2428 = vunpack.c.l.bf16 %v2427
  %v2429 = vunpack.c.h.bf16 %v2427
  %s2430 = scalar_lea.vmem %s1, 1056
  %v2431 = vpack.c.bf16 0.0, %v2428
  %2432 = vst [vmem:[%s2430] sm:$0xf] %v2431
  %s2433 = scalar_lea.vmem %s0, 1216
  %v2434 = vld [vmem:[%s2433] sm:$0xf]
  %v2435 = vunpack.c.l.bf16 %v2434
  %v2436 = vunpack.c.h.bf16 %v2434
  %s2437 = scalar_lea.vmem %s1, 256
  %v2438 = vpack.c.bf16 0.0, %v2435
  %2439 = vst [vmem:[%s2437] sm:$0xf] %v2438
  %s2440 = scalar_lea.vmem %s0, 736
  %v2441 = vld [vmem:[%s2440] sm:$0xf]
  %v2442 = vunpack.c.l.bf16 %v2441
  %v2443 = vunpack.c.h.bf16 %v2441
  %s2444 = scalar_lea.vmem %s1, 736
  %v2445 = vpack.c.bf16 0.0, %v2442
  %2446 = vst [vmem:[%s2444] sm:$0xf] %v2445
  %s2447 = scalar_lea.vmem %s0, 256
  %v2448 = vld [vmem:[%s2447] sm:$0xf]
  %v2449 = vunpack.c.l.bf16 %v2448
  %v2450 = vunpack.c.h.bf16 %v2448
  %s2451 = scalar_lea.vmem %s1, 1216
  %v2452 = vpack.c.bf16 0.0, %v2449
  %2453 = vst [vmem:[%s2451] sm:$0xf] %v2452
  %s2454 = scalar_lea.vmem %s0, 1056
  %v2455 = vld [vmem:[%s2454] sm:$0xf]
  %v2456 = vunpack.c.l.bf16 %v2455
  %v2457 = vunpack.c.h.bf16 %v2455
  %s2458 = scalar_lea.vmem %s1, 416
  %v2459 = vpack.c.bf16 0.0, %v2456
  %2460 = vst [vmem:[%s2458] sm:$0xf] %v2459
  %s2461 = scalar_lea.vmem %s0, 576
  %v2462 = vld [vmem:[%s2461] sm:$0xf]
  %v2463 = vunpack.c.l.bf16 %v2462
  %v2464 = vunpack.c.h.bf16 %v2462
  %s2465 = scalar_lea.vmem %s1, 896
  %v2466 = vpack.c.bf16 0.0, %v2463
  %2467 = vst [vmem:[%s2465] sm:$0xf] %v2466
  %s2468 = scalar_lea.vmem %s0, 96
  %v2469 = vld [vmem:[%s2468] sm:$0xf]
  %v2470 = vunpack.c.l.bf16 %v2469
  %v2471 = vunpack.c.h.bf16 %v2469
  %s2472 = scalar_lea.vmem %s1, 1376
  %v2473 = vpack.c.bf16 0.0, %v2470
  %2474 = vst [vmem:[%s2472] sm:$0xf] %v2473
  %s2475 = scalar_lea.vmem %s0, 1396
  %v2476 = vld [vmem:[%s2475] sm:$0xf]
  %v2477 = vunpack.c.l.bf16 %v2476
  %v2478 = vunpack.c.h.bf16 %v2476
  %s2479 = scalar_lea.vmem %s1, 116
  %v2480 = vpack.c.bf16 0.0, %v2477
  %2481 = vst [vmem:[%s2479] sm:$0xf] %v2480
  %s2482 = scalar_lea.vmem %s0, 916
  %v2483 = vld [vmem:[%s2482] sm:$0xf]
  %v2484 = vunpack.c.l.bf16 %v2483
  %v2485 = vunpack.c.h.bf16 %v2483
  %s2486 = scalar_lea.vmem %s1, 596
  %v2487 = vpack.c.bf16 0.0, %v2484
  %2488 = vst [vmem:[%s2486] sm:$0xf] %v2487
  %s2489 = scalar_lea.vmem %s0, 436
  %v2490 = vld [vmem:[%s2489] sm:$0xf]
  %v2491 = vunpack.c.l.bf16 %v2490
  %v2492 = vunpack.c.h.bf16 %v2490
  %s2493 = scalar_lea.vmem %s1, 1076
  %v2494 = vpack.c.bf16 0.0, %v2491
  %2495 = vst [vmem:[%s2493] sm:$0xf] %v2494
  %s2496 = scalar_lea.vmem %s0, 1236
  %v2497 = vld [vmem:[%s2496] sm:$0xf]
  %v2498 = vunpack.c.l.bf16 %v2497
  %v2499 = vunpack.c.h.bf16 %v2497
  %s2500 = scalar_lea.vmem %s1, 276
  %v2501 = vpack.c.bf16 0.0, %v2498
  %2502 = vst [vmem:[%s2500] sm:$0xf] %v2501
  %s2503 = scalar_lea.vmem %s0, 756
  %v2504 = vld [vmem:[%s2503] sm:$0xf]
  %v2505 = vunpack.c.l.bf16 %v2504
  %v2506 = vunpack.c.h.bf16 %v2504
  %s2507 = scalar_lea.vmem %s1, 756
  %v2508 = vpack.c.bf16 0.0, %v2505
  %2509 = vst [vmem:[%s2507] sm:$0xf] %v2508
  %s2510 = scalar_lea.vmem %s0, 276
  %v2511 = vld [vmem:[%s2510] sm:$0xf]
  %v2512 = vunpack.c.l.bf16 %v2511
  %v2513 = vunpack.c.h.bf16 %v2511
  %s2514 = scalar_lea.vmem %s1, 1236
  %v2515 = vpack.c.bf16 0.0, %v2512
  %2516 = vst [vmem:[%s2514] sm:$0xf] %v2515
  %s2517 = scalar_lea.vmem %s0, 1076
  %v2518 = vld [vmem:[%s2517] sm:$0xf]
  %v2519 = vunpack.c.l.bf16 %v2518
  %v2520 = vunpack.c.h.bf16 %v2518
  %s2521 = scalar_lea.vmem %s1, 436
  %v2522 = vpack.c.bf16 0.0, %v2519
  %2523 = vst [vmem:[%s2521] sm:$0xf] %v2522
  %s2524 = scalar_lea.vmem %s0, 596
  %v2525 = vld [vmem:[%s2524] sm:$0xf]
  %v2526 = vunpack.c.l.bf16 %v2525
  %v2527 = vunpack.c.h.bf16 %v2525
  %s2528 = scalar_lea.vmem %s1, 916
  %v2529 = vpack.c.bf16 0.0, %v2526
  %2530 = vst [vmem:[%s2528] sm:$0xf] %v2529
  %s2531 = scalar_lea.vmem %s0, 116
  %v2532 = vld [vmem:[%s2531] sm:$0xf]
  %v2533 = vunpack.c.l.bf16 %v2532
  %v2534 = vunpack.c.h.bf16 %v2532
  %s2535 = scalar_lea.vmem %s1, 1396
  %v2536 = vpack.c.bf16 0.0, %v2533
  %2537 = vst [vmem:[%s2535] sm:$0xf] %v2536
  %s2538 = scalar_lea.vmem %s0, 1416
  %v2539 = vld [vmem:[%s2538] sm:$0xf]
  %v2540 = vunpack.c.l.bf16 %v2539
  %v2541 = vunpack.c.h.bf16 %v2539
  %s2542 = scalar_lea.vmem %s1, 136
  %v2543 = vpack.c.bf16 0.0, %v2540
  %2544 = vst [vmem:[%s2542] sm:$0xf] %v2543
  %s2545 = scalar_lea.vmem %s0, 936
  %v2546 = vld [vmem:[%s2545] sm:$0xf]
  %v2547 = vunpack.c.l.bf16 %v2546
  %v2548 = vunpack.c.h.bf16 %v2546
  %s2549 = scalar_lea.vmem %s1, 616
  %v2550 = vpack.c.bf16 0.0, %v2547
  %2551 = vst [vmem:[%s2549] sm:$0xf] %v2550
  %s2552 = scalar_lea.vmem %s0, 456
  %v2553 = vld [vmem:[%s2552] sm:$0xf]
  %v2554 = vunpack.c.l.bf16 %v2553
  %v2555 = vunpack.c.h.bf16 %v2553
  %s2556 = scalar_lea.vmem %s1, 1096
  %v2557 = vpack.c.bf16 0.0, %v2554
  %2558 = vst [vmem:[%s2556] sm:$0xf] %v2557
  %s2559 = scalar_lea.vmem %s0, 1256
  %v2560 = vld [vmem:[%s2559] sm:$0xf]
  %v2561 = vunpack.c.l.bf16 %v2560
  %v2562 = vunpack.c.h.bf16 %v2560
  %s2563 = scalar_lea.vmem %s1, 296
  %v2564 = vpack.c.bf16 0.0, %v2561
  %2565 = vst [vmem:[%s2563] sm:$0xf] %v2564
  %s2566 = scalar_lea.vmem %s0, 776
  %v2567 = vld [vmem:[%s2566] sm:$0xf]
  %v2568 = vunpack.c.l.bf16 %v2567
  %v2569 = vunpack.c.h.bf16 %v2567
  %s2570 = scalar_lea.vmem %s1, 776
  %v2571 = vpack.c.bf16 0.0, %v2568
  %2572 = vst [vmem:[%s2570] sm:$0xf] %v2571
  %s2573 = scalar_lea.vmem %s0, 296
  %v2574 = vld [vmem:[%s2573] sm:$0xf]
  %v2575 = vunpack.c.l.bf16 %v2574
  %v2576 = vunpack.c.h.bf16 %v2574
  %s2577 = scalar_lea.vmem %s1, 1256
  %v2578 = vpack.c.bf16 0.0, %v2575
  %2579 = vst [vmem:[%s2577] sm:$0xf] %v2578
  %s2580 = scalar_lea.vmem %s0, 1096
  %v2581 = vld [vmem:[%s2580] sm:$0xf]
  %v2582 = vunpack.c.l.bf16 %v2581
  %v2583 = vunpack.c.h.bf16 %v2581
  %s2584 = scalar_lea.vmem %s1, 456
  %v2585 = vpack.c.bf16 0.0, %v2582
  %2586 = vst [vmem:[%s2584] sm:$0xf] %v2585
  %s2587 = scalar_lea.vmem %s0, 616
  %v2588 = vld [vmem:[%s2587] sm:$0xf]
  %v2589 = vunpack.c.l.bf16 %v2588
  %v2590 = vunpack.c.h.bf16 %v2588
  %s2591 = scalar_lea.vmem %s1, 936
  %v2592 = vpack.c.bf16 0.0, %v2589
  %2593 = vst [vmem:[%s2591] sm:$0xf] %v2592
  %s2594 = scalar_lea.vmem %s0, 136
  %v2595 = vld [vmem:[%s2594] sm:$0xf]
  %v2596 = vunpack.c.l.bf16 %v2595
  %v2597 = vunpack.c.h.bf16 %v2595
  %s2598 = scalar_lea.vmem %s1, 1416
  %v2599 = vpack.c.bf16 0.0, %v2596
  %2600 = vst [vmem:[%s2598] sm:$0xf] %v2599
  %s2601 = scalar_lea.vmem %s0, 1436
  %v2602 = vld [vmem:[%s2601] sm:$0xf]
  %v2603 = vunpack.c.l.bf16 %v2602
  %v2604 = vunpack.c.h.bf16 %v2602
  %s2605 = scalar_lea.vmem %s1, 156
  %v2606 = vpack.c.bf16 0.0, %v2603
  %2607 = vst [vmem:[%s2605] sm:$0xf] %v2606
  %s2608 = scalar_lea.vmem %s0, 956
  %v2609 = vld [vmem:[%s2608] sm:$0xf]
  %v2610 = vunpack.c.l.bf16 %v2609
  %v2611 = vunpack.c.h.bf16 %v2609
  %s2612 = scalar_lea.vmem %s1, 636
  %v2613 = vpack.c.bf16 0.0, %v2610
  %2614 = vst [vmem:[%s2612] sm:$0xf] %v2613
  %s2615 = scalar_lea.vmem %s0, 476
  %v2616 = vld [vmem:[%s2615] sm:$0xf]
  %v2617 = vunpack.c.l.bf16 %v2616
  %v2618 = vunpack.c.h.bf16 %v2616
  %s2619 = scalar_lea.vmem %s1, 1116
  %v2620 = vpack.c.bf16 0.0, %v2617
  %2621 = vst [vmem:[%s2619] sm:$0xf] %v2620
  %s2622 = scalar_lea.vmem %s0, 1276
  %v2623 = vld [vmem:[%s2622] sm:$0xf]
  %v2624 = vunpack.c.l.bf16 %v2623
  %v2625 = vunpack.c.h.bf16 %v2623
  %s2626 = scalar_lea.vmem %s1, 316
  %v2627 = vpack.c.bf16 0.0, %v2624
  %2628 = vst [vmem:[%s2626] sm:$0xf] %v2627
  %s2629 = scalar_lea.vmem %s0, 796
  %v2630 = vld [vmem:[%s2629] sm:$0xf]
  %v2631 = vunpack.c.l.bf16 %v2630
  %v2632 = vunpack.c.h.bf16 %v2630
  %s2633 = scalar_lea.vmem %s1, 796
  %v2634 = vpack.c.bf16 0.0, %v2631
  %2635 = vst [vmem:[%s2633] sm:$0xf] %v2634
  %s2636 = scalar_lea.vmem %s0, 316
  %v2637 = vld [vmem:[%s2636] sm:$0xf]
  %v2638 = vunpack.c.l.bf16 %v2637
  %v2639 = vunpack.c.h.bf16 %v2637
  %s2640 = scalar_lea.vmem %s1, 1276
  %v2641 = vpack.c.bf16 0.0, %v2638
  %2642 = vst [vmem:[%s2640] sm:$0xf] %v2641
  %s2643 = scalar_lea.vmem %s0, 1116
  %v2644 = vld [vmem:[%s2643] sm:$0xf]
  %v2645 = vunpack.c.l.bf16 %v2644
  %v2646 = vunpack.c.h.bf16 %v2644
  %s2647 = scalar_lea.vmem %s1, 476
  %v2648 = vpack.c.bf16 0.0, %v2645
  %2649 = vst [vmem:[%s2647] sm:$0xf] %v2648
  %s2650 = scalar_lea.vmem %s0, 636
  %v2651 = vld [vmem:[%s2650] sm:$0xf]
  %v2652 = vunpack.c.l.bf16 %v2651
  %v2653 = vunpack.c.h.bf16 %v2651
  %s2654 = scalar_lea.vmem %s1, 956
  %v2655 = vpack.c.bf16 0.0, %v2652
  %2656 = vst [vmem:[%s2654] sm:$0xf] %v2655
  %s2657 = scalar_lea.vmem %s0, 156
  %v2658 = vld [vmem:[%s2657] sm:$0xf]
  %v2659 = vunpack.c.l.bf16 %v2658
  %v2660 = vunpack.c.h.bf16 %v2658
  %s2661 = scalar_lea.vmem %s1, 1436
  %v2662 = vpack.c.bf16 0.0, %v2659
  %2663 = vst [vmem:[%s2661] sm:$0xf] %v2662

// kernel: retinanet_forward.22
$region0: #{retinanet_forward.22}
  #allocation0 [shape = 'u32[]', space=smem, size = 0x4, offset = 0x4, fixed_abs, tag = 'smem constant byte address 0x4 - core index']
  #allocation1 [shape = 'u32[144,128]{1,0:T(1,128)}', space=vmem, size = 0x12000, scoped, tag = 'internal scratch']
  %s0 = inlined_call_operand.vmem [shape: bf16[8,576], index: 0, kind: input, shape index: {}]
  %s1 = inlined_call_operand.vmem [shape: bf16[576,64], index: 1, kind: input, shape index: {}]
  %s2 = inlined_call_operand.vmem [shape: f32[1,64], index: 2, kind: input, shape index: {}]
  %s3 = inlined_call_operand.vmem [shape: bf16[8,64], index: 3, kind: output, shape index: {}]
  %s4 = sld [smem:[#allocation0]]
  $region22: #{retinanet_forward.22} parent=0
    _
  %s6 = ssub.s32 1, %s4
  %s7 = scalar_select 0, %s6, %s4
  // Predicated region
  $region2: #{retinanet_forward.22} parent=0 // pred_check
    _
  $region3: #{retinanet_forward.22} parent=0 // pred_check_branch
    %9 = sbr.rel (0) target = $region5
  $region4: #{retinanet_forward.22} parent=0 // pred_region
    _
  $region5: #{retinanet_forward.22} parent=0 // pred_fallthru
    _
  // Predicated region
  $region6: #{retinanet_forward.22} parent=0 // pred_check
    _
  $region7: #{retinanet_forward.22} parent=0 // pred_check_branch
    %11 = sbr.rel (0) target = $region9
  $region8: #{retinanet_forward.22} parent=0 // pred_region
    _
  $region9: #{retinanet_forward.22} parent=0 // pred_fallthru
    _
  // Predicated region
  $region10: #{retinanet_forward.22} parent=0 // pred_check
    _
  $region11: #{retinanet_forward.22} parent=0 // pred_check_branch
    %13 = sbr.rel (0) target = $region13
  $region12: #{retinanet_forward.22} parent=0 // pred_region
    _
  $region13: #{retinanet_forward.22} parent=0 // pred_fallthru
    _
  %v15 = vld [vmem:[%s0] sm:$0xff]
  %v16 = vld [vmem:[%s0 + $0x8] sm:$0xff]
  %v17 = vld [vmem:[%s0 + $0x10] sm:$0xf]
  %v18 = vld [vmem:[%s1] sm:$0xf]
  %v19 = vld [vmem:[%s1 + $0x4] sm:$0xf]
  %v20 = vld [vmem:[%s1 + $0x8] sm:$0xf]
  %v21 = vld [vmem:[%s1 + $0xc] sm:$0xf]
  %v22 = vld [vmem:[%s1 + $0x10] sm:$0xf]
  %v23 = vld [vmem:[%s1 + $0x14] sm:$0xf]
  %v24 = vld [vmem:[%s1 + $0x18] sm:$0xf]
  %v25 = vld [vmem:[%s1 + $0x1c] sm:$0xf]
  %v26 = vld [vmem:[%s1 + $0x20] sm:$0xf]
  %v27 = vld [vmem:[%s1 + $0x24] sm:$0xf]
  %v28 = vld [vmem:[%s1 + $0x28] sm:$0xf]
  %v29 = vld [vmem:[%s1 + $0x2c] sm:$0xf]
  %v30 = vld [vmem:[%s1 + $0x30] sm:$0xf]
  %v31 = vld [vmem:[%s1 + $0x34] sm:$0xf]
  %v32 = vld [vmem:[%s1 + $0x38] sm:$0xf]
  %v33 = vld [vmem:[%s1 + $0x3c] sm:$0xf]
  %v34 = vld [vmem:[%s1 + $0x40] sm:$0xf]
  %v35 = vld [vmem:[%s1 + $0x44] sm:$0xf]
  %v36 = vld [vmem:[%s1 + $0x48] sm:$0xf]
  %v37 = vld [vmem:[%s1 + $0x4c] sm:$0xf]
  %v38 = vld [vmem:[%s1 + $0x50] sm:$0xf]
  %v39 = vld [vmem:[%s1 + $0x54] sm:$0xf]
  %v40 = vld [vmem:[%s1 + $0x58] sm:$0xf]
  %v41 = vld [vmem:[%s1 + $0x5c] sm:$0xf]
  %v42 = vld [vmem:[%s1 + $0x60] sm:$0xf]
  %v43 = vld [vmem:[%s1 + $0x64] sm:$0xf]
  %v44 = vld [vmem:[%s1 + $0x68] sm:$0xf]
  %v45 = vld [vmem:[%s1 + $0x6c] sm:$0xf]
  %v46 = vld [vmem:[%s1 + $0x70] sm:$0xf]
  %v47 = vld [vmem:[%s1 + $0x74] sm:$0xf]
  %v48 = vld [vmem:[%s1 + $0x78] sm:$0xf]
  %v49 = vld [vmem:[%s1 + $0x7c] sm:$0xf]
  %v50 = vld [vmem:[%s1 + $0x80] sm:$0xf]
  %v51 = vld [vmem:[%s1 + $0x84] sm:$0xf]
  %v52 = vld [vmem:[%s1 + $0x88] sm:$0xf]
  %v53 = vld [vmem:[%s1 + $0x8c] sm:$0xf]
  %v54 = vld [vmem:[%s1 + $0x90] sm:$0xf]
  %v55 = vld [vmem:[%s1 + $0x94] sm:$0xf]
  %v56 = vld [vmem:[%s1 + $0x98] sm:$0xf]
  %v57 = vld [vmem:[%s1 + $0x9c] sm:$0xf]
  %v58 = vld [vmem:[%s1 + $0xa0] sm:$0xf]
  %v59 = vld [vmem:[%s1 + $0xa4] sm:$0xf]
  %v60 = vld [vmem:[%s1 + $0xa8] sm:$0xf]
  %v61 = vld [vmem:[%s1 + $0xac] sm:$0xf]
  %v62 = vld [vmem:[%s1 + $0xb0] sm:$0xf]
  %v63 = vld [vmem:[%s1 + $0xb4] sm:$0xf]
  %v64 = vld [vmem:[%s1 + $0xb8] sm:$0xf]
  %v65 = vld [vmem:[%s1 + $0xbc] sm:$0xf]
  %v66 = vld [vmem:[%s1 + $0xc0] sm:$0xf]
  %v67 = vld [vmem:[%s1 + $0xc4] sm:$0xf]
  %v68 = vld [vmem:[%s1 + $0xc8] sm:$0xf]
  %v69 = vld [vmem:[%s1 + $0xcc] sm:$0xf]
  %v70 = vld [vmem:[%s1 + $0xd0] sm:$0xf]
  %v71 = vld [vmem:[%s1 + $0xd4] sm:$0xf]
  %v72 = vld [vmem:[%s1 + $0xd8] sm:$0xf]
  %v73 = vld [vmem:[%s1 + $0xdc] sm:$0xf]
  %v74 = vld [vmem:[%s1 + $0xe0] sm:$0xf]
  %v75 = vld [vmem:[%s1 + $0xe4] sm:$0xf]
  %v76 = vld [vmem:[%s1 + $0xe8] sm:$0xf]
  %v77 = vld [vmem:[%s1 + $0xec] sm:$0xf]
  %v78 = vld [vmem:[%s1 + $0xf0] sm:$0xf]
  %v79 = vld [vmem:[%s1 + $0xf4] sm:$0xf]
  %v80 = vld [vmem:[%s1 + $0xf8] sm:$0xf]
  %v81 = vld [vmem:[%s1 + $0xfc] sm:$0xf]
  %v82 = vld [vmem:[%s1 + $0x100] sm:$0xf]
  %v83 = vld [vmem:[%s1 + $0x104] sm:$0xf]
  %v84 = vld [vmem:[%s1 + $0x108] sm:$0xf]
  %v85 = vld [vmem:[%s1 + $0x10c] sm:$0xf]
  %v86 = vld [vmem:[%s1 + $0x110] sm:$0xf]
  %v87 = vld [vmem:[%s1 + $0x114] sm:$0xf]
  %v88 = vld [vmem:[%s1 + $0x118] sm:$0xf]
  %v89 = vld [vmem:[%s1 + $0x11c] sm:$0xf]
  %v90 = vld [vmem:[%s2] sm:$0x1]
  %v92 = vlaneseq
  %v93 = vshrl.u32 %v92, 7
  %v94 = vsub.s32 0, %v93
  %v95 = vrot.slane %v90, %v94
  %v100 = vunpack.c.l.b16 %v15
  %v101 = vunpack.c.h.b16 %v15
  %v102 = vunpack.c.l.b16 %v16
  %v103 = vunpack.c.h.b16 %v16
  %v104 = vunpack.c.l.b16 %v17
  %v105 = vpack.c.b16 %v100, %v100
  %v106 = vpack.c.b16 %v101, %v101
  %v107 = vpack.c.b16 %v102, %v102
  %v108 = vpack.c.b16 %v103, %v103
  %v109 = vpack.c.b16 %v104, %v104
  %v186 = vunpack.c.l.b16 %v18
  %v187 = vunpack.c.l.b16 %v19
  %v188 = vunpack.c.l.b16 %v20
  %v189 = vunpack.c.l.b16 %v21
  %v190 = vunpack.c.l.b16 %v22
  %v191 = vunpack.c.l.b16 %v23
  %v192 = vunpack.c.l.b16 %v24
  %v193 = vunpack.c.l.b16 %v25
  %v194 = vunpack.c.l.b16 %v26
  %v195 = vunpack.c.l.b16 %v27
  %v196 = vunpack.c.l.b16 %v28
  %v197 = vunpack.c.l.b16 %v29
  %v198 = vunpack.c.l.b16 %v30
  %v199 = vunpack.c.l.b16 %v31
  %v200 = vunpack.c.l.b16 %v32
  %v201 = vunpack.c.l.b16 %v33
  %v202 = vunpack.c.l.b16 %v34
  %v203 = vunpack.c.l.b16 %v35
  %v204 = vunpack.c.l.b16 %v36
  %v205 = vunpack.c.l.b16 %v37
  %v206 = vunpack.c.l.b16 %v38
  %v207 = vunpack.c.l.b16 %v39
  %v208 = vunpack.c.l.b16 %v40
  %v209 = vunpack.c.l.b16 %v41
  %v210 = vunpack.c.l.b16 %v42
  %v211 = vunpack.c.l.b16 %v43
  %v212 = vunpack.c.l.b16 %v44
  %v213 = vunpack.c.l.b16 %v45
  %v214 = vunpack.c.l.b16 %v46
  %v215 = vunpack.c.l.b16 %v47
  %v216 = vunpack.c.l.b16 %v48
  %v217 = vunpack.c.l.b16 %v49
  %v218 = vunpack.c.l.b16 %v50
  %v219 = vunpack.c.l.b16 %v51
  %v220 = vunpack.c.l.b16 %v52
  %v221 = vunpack.c.l.b16 %v53
  %v222 = vunpack.c.l.b16 %v54
  %v223 = vunpack.c.l.b16 %v55
  %v224 = vunpack.c.l.b16 %v56
  %v225 = vunpack.c.l.b16 %v57
  %v226 = vunpack.c.l.b16 %v58
  %v227 = vunpack.c.l.b16 %v59
  %v228 = vunpack.c.l.b16 %v60
  %v229 = vunpack.c.l.b16 %v61
  %v230 = vunpack.c.l.b16 %v62
  %v231 = vunpack.c.l.b16 %v63
  %v232 = vunpack.c.l.b16 %v64
  %v233 = vunpack.c.l.b16 %v65
  %v234 = vunpack.c.l.b16 %v66
  %v235 = vunpack.c.l.b16 %v67
  %v236 = vunpack.c.l.b16 %v68
  %v237 = vunpack.c.l.b16 %v69
  %v238 = vunpack.c.l.b16 %v70
  %v239 = vunpack.c.l.b16 %v71
  %v240 = vunpack.c.l.b16 %v72
  %v241 = vunpack.c.l.b16 %v73
  %v242 = vunpack.c.l.b16 %v74
  %v243 = vunpack.c.l.b16 %v75
  %v244 = vunpack.c.l.b16 %v76
  %v245 = vunpack.c.l.b16 %v77
  %v246 = vunpack.c.l.b16 %v78
  %v247 = vunpack.c.l.b16 %v79
  %v248 = vunpack.c.l.b16 %v80
  %v249 = vunpack.c.l.b16 %v81
  %v250 = vunpack.c.l.b16 %v82
  %v251 = vunpack.c.l.b16 %v83
  %v252 = vunpack.c.l.b16 %v84
  %v253 = vunpack.c.l.b16 %v85
  %v254 = vunpack.c.l.b16 %v86
  %v255 = vunpack.c.l.b16 %v87
  %v256 = vunpack.c.l.b16 %v88
  %v257 = vunpack.c.l.b16 %v89
  %v258 = vpack.c.b16 %v187, %v186
  %v259 = vpack.c.b16 %v189, %v188
  %v260 = vpack.c.b16 %v191, %v190
  %v261 = vpack.c.b16 %v193, %v192
  %v262 = vpack.c.b16 %v195, %v194
  %v263 = vpack.c.b16 %v197, %v196
  %v264 = vpack.c.b16 %v199, %v198
  %v265 = vpack.c.b16 %v201, %v200
  %v266 = vpack.c.b16 %v203, %v202
  %v267 = vpack.c.b16 %v205, %v204
  %v268 = vpack.c.b16 %v207, %v206
  %v269 = vpack.c.b16 %v209, %v208
  %v270 = vpack.c.b16 %v211, %v210
  %v271 = vpack.c.b16 %v213, %v212
  %v272 = vpack.c.b16 %v215, %v214
  %v273 = vpack.c.b16 %v217, %v216
  %v274 = vpack.c.b16 %v219, %v218
  %v275 = vpack.c.b16 %v221, %v220
  %v276 = vpack.c.b16 %v223, %v222
  %v277 = vpack.c.b16 %v225, %v224
  %v278 = vpack.c.b16 %v227, %v226
  %v279 = vpack.c.b16 %v229, %v228
  %v280 = vpack.c.b16 %v231, %v230
  %v281 = vpack.c.b16 %v233, %v232
  %v282 = vpack.c.b16 %v235, %v234
  %v283 = vpack.c.b16 %v237, %v236
  %v284 = vpack.c.b16 %v239, %v238
  %v285 = vpack.c.b16 %v241, %v240
  %v286 = vpack.c.b16 %v243, %v242
  %v287 = vpack.c.b16 %v245, %v244
  %v288 = vpack.c.b16 %v247, %v246
  %v289 = vpack.c.b16 %v249, %v248
  %v290 = vpack.c.b16 %v251, %v250
  %v291 = vpack.c.b16 %v253, %v252
  %v292 = vpack.c.b16 %v255, %v254
  %v293 = vpack.c.b16 %v257, %v256
  %vm330 = vcmask 523264
  %v332 = vsel %vm330, %v109, 0
  %334 = vmatprep.subr.bf16.mxu0 0
  %335 = vmatpush1.bf16.msra.mxu0 %v258
  %336 = vmatprep.subr.bf16.mxu0 0
  %337 = vmatpush1.bf16.msra.mxu0 %v259
  %338 = vmatprep.subr.bf16.mxu0 0
  %339 = vmatpush1.bf16.msra.mxu0 %v260
  %340 = vmatprep.subr.bf16.mxu0 0
  %341 = vmatpush1.bf16.msra.mxu0 %v261
  %342 = vmatprep.subr.bf16.mxu0 0
  %343 = vmatpush1.bf16.msra.mxu0 %v262
  %344 = vmatprep.subr.bf16.mxu0 0
  %345 = vmatpush1.bf16.msra.mxu0 %v263
  %346 = vmatprep.subr.bf16.mxu0 0
  %347 = vmatpush1.bf16.msra.mxu0 %v264
  %348 = vmatprep.subr.bf16.mxu0 0
  %349 = vmatpush1.bf16.msra.mxu0 %v265
  %350 = vmatprep.subr.bf16.mxu0 0
  %351 = vmatpush1.bf16.msra.mxu0 %v266
  %352 = vmatprep.subr.bf16.mxu0 0
  %353 = vmatpush1.bf16.msra.mxu0 %v267
  %354 = vmatprep.subr.bf16.mxu0 0
  %355 = vmatpush1.bf16.msra.mxu0 %v268
  %356 = vmatprep.subr.bf16.mxu0 0
  %357 = vmatpush1.bf16.msra.mxu0 %v269
  %358 = vmatprep.subr.bf16.mxu0 0
  %359 = vmatpush1.bf16.msra.mxu0 %v270
  %360 = vmatprep.subr.bf16.mxu0 0
  %361 = vmatpush1.bf16.msra.mxu0 %v271
  %362 = vmatprep.subr.bf16.mxu0 0
  %363 = vmatpush1.bf16.msra.mxu0 %v272
  %364 = vmatprep.subr.bf16.mxu0 0
  %365 = vmatpush1.bf16.msra.mxu0 %v273
  %366 = vmatprep.mubr.bf16.mxu0 %v106
  %367 = vmatmul.mubr.bf16.gmra.mrb[0].mxu0 %v105
  %v368 = vpop.f32.mrb[0].mxu0
  %v369 = vadd.f32 %v95, %v368
  %v370 = vpop.f32.mrb[0].mxu0
  %v371 = vpop.f32.mrb[0].mxu0
  %v372 = vpop.f32.mrb[0].mxu0
  %373 = vdwg.mxu0
  %374 = vmatprep.subr.bf16.mxu0 0
  %375 = vmatpush1.bf16.msra.mxu0 %v274
  %376 = vmatprep.subr.bf16.mxu0 0
  %377 = vmatpush1.bf16.msra.mxu0 %v275
  %378 = vmatprep.subr.bf16.mxu0 0
  %379 = vmatpush1.bf16.msra.mxu0 %v276
  %380 = vmatprep.subr.bf16.mxu0 0
  %381 = vmatpush1.bf16.msra.mxu0 %v277
  %382 = vmatprep.subr.bf16.mxu0 0
  %383 = vmatpush1.bf16.msra.mxu0 %v278
  %384 = vmatprep.subr.bf16.mxu0 0
  %385 = vmatpush1.bf16.msra.mxu0 %v279
  %386 = vmatprep.subr.bf16.mxu0 0
  %387 = vmatpush1.bf16.msra.mxu0 %v280
  %388 = vmatprep.subr.bf16.mxu0 0
  %389 = vmatpush1.bf16.msra.mxu0 %v281
  %390 = vmatprep.subr.bf16.mxu0 0
  %391 = vmatpush1.bf16.msra.mxu0 %v282
  %392 = vmatprep.subr.bf16.mxu0 0
  %393 = vmatpush1.bf16.msra.mxu0 %v283
  %394 = vmatprep.subr.bf16.mxu0 0
  %395 = vmatpush1.bf16.msra.mxu0 %v284
  %396 = vmatprep.subr.bf16.mxu0 0
  %397 = vmatpush1.bf16.msra.mxu0 %v285
  %398 = vmatprep.subr.bf16.mxu0 0
  %399 = vmatpush1.bf16.msra.mxu0 %v286
  %400 = vmatprep.subr.bf16.mxu0 0
  %401 = vmatpush1.bf16.msra.mxu0 %v287
  %402 = vmatprep.subr.bf16.mxu0 0
  %403 = vmatpush1.bf16.msra.mxu0 %v288
  %404 = vmatprep.subr.bf16.mxu0 0
  %405 = vmatpush1.bf16.msra.mxu0 %v289
  %406 = vmatprep.mubr.bf16.mxu0 %v108
  %407 = vmatmul.mubr.bf16.gmra.mrb[0].mxu0 %v107
  %v408 = vpop.f32.mrb[0].mxu0
  %v409 = vadd.f32 %v369, %v408
  %v410 = vpop.f32.mrb[0].mxu0
  %v411 = vpop.f32.mrb[0].mxu0
  %v412 = vpop.f32.mrb[0].mxu0
  %413 = vdwg.mxu0
  %414 = vmatprep.subr.bf16.mxu0 0
  %415 = vmatpush1.bf16.msra.mxu0 %v290
  %416 = vmatprep.subr.bf16.mxu0 0
  %417 = vmatpush1.bf16.msra.mxu0 %v291
  %418 = vmatprep.subr.bf16.mxu0 0
  %419 = vmatpush1.bf16.msra.mxu0 %v292
  %420 = vmatprep.subr.bf16.mxu0 0
  %421 = vmatpush1.bf16.msra.mxu0 %v293
  %422 = vmatprep.subr.bf16.mxu0 0
  %423 = vmatpush1.bf16.msra.mxu0 0
  %424 = vmatprep.subr.bf16.mxu0 0
  %425 = vmatpush1.bf16.msra.mxu0 0
  %426 = vmatprep.subr.bf16.mxu0 0
  %427 = vmatpush1.bf16.msra.mxu0 0
  %428 = vmatprep.subr.bf16.mxu0 0
  %429 = vmatpush1.bf16.msra.mxu0 0
  %430 = vmatprep.subr.bf16.mxu0 0
  %431 = vmatpush1.bf16.msra.mxu0 0
  %432 = vmatprep.subr.bf16.mxu0 0
  %433 = vmatpush1.bf16.msra.mxu0 0
  %434 = vmatprep.subr.bf16.mxu0 0
  %435 = vmatpush1.bf16.msra.mxu0 0
  %436 = vmatprep.subr.bf16.mxu0 0
  %437 = vmatpush1.bf16.msra.mxu0 0
  %438 = vmatprep.subr.bf16.mxu0 0
  %439 = vmatpush1.bf16.msra.mxu0 0
  %440 = vmatprep.subr.bf16.mxu0 0
  %441 = vmatpush1.bf16.msra.mxu0 0
  %442 = vmatprep.subr.bf16.mxu0 0
  %443 = vmatpush1.bf16.msra.mxu0 0
  %444 = vmatprep.subr.bf16.mxu0 0
  %445 = vmatpush1.bf16.msra.mxu0 0
  %446 = vmatprep.mubr.bf16.mxu0 0
  %447 = vmatmul.mubr.bf16.gmra.mrb[0].mxu0 %v332
  %v448 = vpop.f32.mrb[0].mxu0
  %v449 = vadd.f32 %v409, %v448
  %v450 = vpop.f32.mrb[0].mxu0
  %v451 = vpop.f32.mrb[0].mxu0
  %v452 = vpop.f32.mrb[0].mxu0
  %453 = vdwg.mxu0
  %v454 = vpack.c.bf16 %v449, %v449
  %vm455 = vcmask 519168
  %456 = vst.msk [vmem:[%s3] sm:$0xf] %vm455, %v454
  // Predicated region
  $region14: #{retinanet_forward.22} parent=0 // pred_check
    _
  $region15: #{retinanet_forward.22} parent=0 // pred_check_branch
    %458 = sbr.rel (0) target = $region17
  $region16: #{retinanet_forward.22} parent=0 // pred_region
    _
  $region17: #{retinanet_forward.22} parent=0 // pred_fallthru
    _
  // Predicated region
  $region18: #{retinanet_forward.22} parent=0 // pred_check
    _
  $region19: #{retinanet_forward.22} parent=0 // pred_check_branch
    %460 = sbr.rel (0) target = $region21
  $region20: #{retinanet_forward.22} parent=0 // pred_region
    _
  $region21: #{retinanet_forward.22} parent=0 // pred_fallthru
    _

// kernel: retinanet_forward.23
$region0: #{retinanet_forward.23}
  #allocation0 [shape = 'u32[]', space=smem, size = 0x4, offset = 0x4, fixed_abs, tag = 'smem constant byte address 0x4 - core index']
  #allocation1 [shape = 'u32[144,128]{1,0:T(1,128)}', space=vmem, size = 0x12000, scoped, tag = 'internal scratch']
  %s0 = inlined_call_operand.vmem [shape: bf16[168,576], index: 0, kind: input, shape index: {}]
  %s1 = inlined_call_operand.vmem [shape: bf16[576,128], index: 1, kind: input, shape index: {}]
  %s2 = inlined_call_operand.vmem [shape: f32[1,128], index: 2, kind: input, shape index: {}]
  %s3 = inlined_call_operand.vmem [shape: bf16[168,128], index: 3, kind: output, shape index: {}]
  %s4 = sld [smem:[#allocation0]]
  $region22: #{retinanet_forward.23} parent=0
    _
  %s6 = ssub.s32 1, %s4
  %s7 = scalar_select 0, %s6, %s4
  // Predicated region
  $region2: #{retinanet_forward.23} parent=0 // pred_check
    _
  $region3: #{retinanet_forward.23} parent=0 // pred_check_branch
    %9 = sbr.rel (0) target = $region5
  $region4: #{retinanet_forward.23} parent=0 // pred_region
    _
  $region5: #{retinanet_forward.23} parent=0 // pred_fallthru
    _
  // Predicated region
  $region6: #{retinanet_forward.23} parent=0 // pred_check
    _
  $region7: #{retinanet_forward.23} parent=0 // pred_check_branch
    %11 = sbr.rel (0) target = $region9
  $region8: #{retinanet_forward.23} parent=0 // pred_region
    _
  $region9: #{retinanet_forward.23} parent=0 // pred_fallthru
    _
  // Predicated region
  $region10: #{retinanet_forward.23} parent=0 // pred_check
    _
  $region11: #{retinanet_forward.23} parent=0 // pred_check_branch
    %13 = sbr.rel (0) target = $region13
  $region12: #{retinanet_forward.23} parent=0 // pred_region
    _
  $region13: #{retinanet_forward.23} parent=0 // pred_fallthru
    _
  %v15 = vld [vmem:[%s0] sm:$0xff]
  %v16 = vld [vmem:[%s0 + $0x8] sm:$0xff]
  %v17 = vld [vmem:[%s0 + $0x10] sm:$0xf]
  %v18 = vld [vmem:[%s0 + $0x14] sm:$0xff]
  %v19 = vld [vmem:[%s0 + $0x1c] sm:$0xff]
  %v20 = vld [vmem:[%s0 + $0x24] sm:$0xf]
  %v21 = vld [vmem:[%s0 + $0x28] sm:$0xff]
  %v22 = vld [vmem:[%s0 + $0x30] sm:$0xff]
  %v23 = vld [vmem:[%s0 + $0x38] sm:$0xf]
  %v24 = vld [vmem:[%s0 + $0x3c] sm:$0xff]
  %v25 = vld [vmem:[%s0 + $0x44] sm:$0xff]
  %v26 = vld [vmem:[%s0 + $0x4c] sm:$0xf]
  %v27 = vld [vmem:[%s0 + $0x50] sm:$0xff]
  %v28 = vld [vmem:[%s0 + $0x58] sm:$0xff]
  %v29 = vld [vmem:[%s0 + $0x60] sm:$0xf]
  %v30 = vld [vmem:[%s0 + $0x64] sm:$0xff]
  %v31 = vld [vmem:[%s0 + $0x6c] sm:$0xff]
  %v32 = vld [vmem:[%s0 + $0x74] sm:$0xf]
  %v33 = vld [vmem:[%s0 + $0x78] sm:$0xff]
  %v34 = vld [vmem:[%s0 + $0x80] sm:$0xff]
  %v35 = vld [vmem:[%s0 + $0x88] sm:$0xf]
  %v36 = vld [vmem:[%s0 + $0x8c] sm:$0xff]
  %v37 = vld [vmem:[%s0 + $0x94] sm:$0xff]
  %v38 = vld [vmem:[%s0 + $0x9c] sm:$0xf]
  %v39 = vld [vmem:[%s0 + $0xa0] sm:$0xff]
  %v40 = vld [vmem:[%s0 + $0xa8] sm:$0xff]
  %v41 = vld [vmem:[%s0 + $0xb0] sm:$0xf]
  %v42 = vld [vmem:[%s0 + $0xb4] sm:$0xff]
  %v43 = vld [vmem:[%s0 + $0xbc] sm:$0xff]
  %v44 = vld [vmem:[%s0 + $0xc4] sm:$0xf]
  %v45 = vld [vmem:[%s0 + $0xc8] sm:$0xff]
  %v46 = vld [vmem:[%s0 + $0xd0] sm:$0xff]
  %v47 = vld [vmem:[%s0 + $0xd8] sm:$0xf]
  %v48 = vld [vmem:[%s0 + $0xdc] sm:$0xff]
  %v49 = vld [vmem:[%s0 + $0xe4] sm:$0xff]
  %v50 = vld [vmem:[%s0 + $0xec] sm:$0xf]
  %v51 = vld [vmem:[%s0 + $0xf0] sm:$0xff]
  %v52 = vld [vmem:[%s0 + $0xf8] sm:$0xff]
  %v53 = vld [vmem:[%s0 + $0x100] sm:$0xf]
  %v54 = vld [vmem:[%s0 + $0x104] sm:$0xff]
  %v55 = vld [vmem:[%s0 + $0x10c] sm:$0xff]
  %v56 = vld [vmem:[%s0 + $0x114] sm:$0xf]
  %v57 = vld [vmem:[%s0 + $0x118] sm:$0xff]
  %v58 = vld [vmem:[%s0 + $0x120] sm:$0xff]
  %v59 = vld [vmem:[%s0 + $0x128] sm:$0xf]
  %v60 = vld [vmem:[%s0 + $0x12c] sm:$0xff]
  %v61 = vld [vmem:[%s0 + $0x134] sm:$0xff]
  %v62 = vld [vmem:[%s0 + $0x13c] sm:$0xf]
  %v63 = vld [vmem:[%s0 + $0x140] sm:$0xff]
  %v64 = vld [vmem:[%s0 + $0x148] sm:$0xff]
  %v65 = vld [vmem:[%s0 + $0x150] sm:$0xf]
  %v66 = vld [vmem:[%s0 + $0x154] sm:$0xff]
  %v67 = vld [vmem:[%s0 + $0x15c] sm:$0xff]
  %v68 = vld [vmem:[%s0 + $0x164] sm:$0xf]
  %v69 = vld [vmem:[%s0 + $0x168] sm:$0xff]
  %v70 = vld [vmem:[%s0 + $0x170] sm:$0xff]
  %v71 = vld [vmem:[%s0 + $0x178] sm:$0xf]
  %v72 = vld [vmem:[%s0 + $0x17c] sm:$0xff]
  %v73 = vld [vmem:[%s0 + $0x184] sm:$0xff]
  %v74 = vld [vmem:[%s0 + $0x18c] sm:$0xf]
  %v75 = vld [vmem:[%s0 + $0x190] sm:$0xff]
  %v76 = vld [vmem:[%s0 + $0x198] sm:$0xff]
  %v77 = vld [vmem:[%s0 + $0x1a0] sm:$0xf]
  %v78 = vld [vmem:[%s1] sm:$0xf]
  %v79 = vld [vmem:[%s1 + $0x4] sm:$0xf]
  %v80 = vld [vmem:[%s1 + $0x8] sm:$0xf]
  %v81 = vld [vmem:[%s1 + $0xc] sm:$0xf]
  %v82 = vld [vmem:[%s1 + $0x10] sm:$0xf]
  %v83 = vld [vmem:[%s1 + $0x14] sm:$0xf]
  %v84 = vld [vmem:[%s1 + $0x18] sm:$0xf]
  %v85 = vld [vmem:[%s1 + $0x1c] sm:$0xf]
  %v86 = vld [vmem:[%s1 + $0x20] sm:$0xf]
  %v87 = vld [vmem:[%s1 + $0x24] sm:$0xf]
  %v88 = vld [vmem:[%s1 + $0x28] sm:$0xf]
  %v89 = vld [vmem:[%s1 + $0x2c] sm:$0xf]
  %v90 = vld [vmem:[%s1 + $0x30] sm:$0xf]
  %v91 = vld [vmem:[%s1 + $0x34] sm:$0xf]
  %v92 = vld [vmem:[%s1 + $0x38] sm:$0xf]
  %v93 = vld [vmem:[%s1 + $0x3c] sm:$0xf]
  %v94 = vld [vmem:[%s1 + $0x40] sm:$0xf]
  %v95 = vld [vmem:[%s1 + $0x44] sm:$0xf]
  %v96 = vld [vmem:[%s1 + $0x48] sm:$0xf]
  %v97 = vld [vmem:[%s1 + $0x4c] sm:$0xf]
  %v98 = vld [vmem:[%s1 + $0x50] sm:$0xf]
  %v99 = vld [vmem:[%s1 + $0x54] sm:$0xf]
  %v100 = vld [vmem:[%s1 + $0x58] sm:$0xf]
  %v101 = vld [vmem:[%s1 + $0x5c] sm:$0xf]
  %v102 = vld [vmem:[%s1 + $0x60] sm:$0xf]
  %v103 = vld [vmem:[%s1 + $0x64] sm:$0xf]
  %v104 = vld [vmem:[%s1 + $0x68] sm:$0xf]
  %v105 = vld [vmem:[%s1 + $0x6c] sm:$0xf]
  %v106 = vld [vmem:[%s1 + $0x70] sm:$0xf]
  %v107 = vld [vmem:[%s1 + $0x74] sm:$0xf]
  %v108 = vld [vmem:[%s1 + $0x78] sm:$0xf]
  %v109 = vld [vmem:[%s1 + $0x7c] sm:$0xf]
  %v110 = vld [vmem:[%s1 + $0x80] sm:$0xf]
  %v111 = vld [vmem:[%s1 + $0x84] sm:$0xf]
  %v112 = vld [vmem:[%s1 + $0x88] sm:$0xf]
  %v113 = vld [vmem:[%s1 + $0x8c] sm:$0xf]
  %v114 = vld [vmem:[%s1 + $0x90] sm:$0xf]
  %v115 = vld [vmem:[%s1 + $0x94] sm:$0xf]
  %v116 = vld [vmem:[%s1 + $0x98] sm:$0xf]
  %v117 = vld [vmem:[%s1 + $0x9c] sm:$0xf]
  %v118 = vld [vmem:[%s1 + $0xa0] sm:$0xf]
  %v119 = vld [vmem:[%s1 + $0xa4] sm:$0xf]
  %v120 = vld [vmem:[%s1 + $0xa8] sm:$0xf]
  %v121 = vld [vmem:[%s1 + $0xac] sm:$0xf]
  %v122 = vld [vmem:[%s1 + $0xb0] sm:$0xf]
  %v123 = vld [vmem:[%s1 + $0xb4] sm:$0xf]
  %v124 = vld [vmem:[%s1 + $0xb8] sm:$0xf]
  %v125 = vld [vmem:[%s1 + $0xbc] sm:$0xf]
  %v126 = vld [vmem:[%s1 + $0xc0] sm:$0xf]
  %v127 = vld [vmem:[%s1 + $0xc4] sm:$0xf]
  %v128 = vld [vmem:[%s1 + $0xc8] sm:$0xf]
  %v129 = vld [vmem:[%s1 + $0xcc] sm:$0xf]
  %v130 = vld [vmem:[%s1 + $0xd0] sm:$0xf]
  %v131 = vld [vmem:[%s1 + $0xd4] sm:$0xf]
  %v132 = vld [vmem:[%s1 + $0xd8] sm:$0xf]
  %v133 = vld [vmem:[%s1 + $0xdc] sm:$0xf]
  %v134 = vld [vmem:[%s1 + $0xe0] sm:$0xf]
  %v135 = vld [vmem:[%s1 + $0xe4] sm:$0xf]
  %v136 = vld [vmem:[%s1 + $0xe8] sm:$0xf]
  %v137 = vld [vmem:[%s1 + $0xec] sm:$0xf]
  %v138 = vld [vmem:[%s1 + $0xf0] sm:$0xf]
  %v139 = vld [vmem:[%s1 + $0xf4] sm:$0xf]
  %v140 = vld [vmem:[%s1 + $0xf8] sm:$0xf]
  %v141 = vld [vmem:[%s1 + $0xfc] sm:$0xf]
  %v142 = vld [vmem:[%s1 + $0x100] sm:$0xf]
  %v143 = vld [vmem:[%s1 + $0x104] sm:$0xf]
  %v144 = vld [vmem:[%s1 + $0x108] sm:$0xf]
  %v145 = vld [vmem:[%s1 + $0x10c] sm:$0xf]
  %v146 = vld [vmem:[%s1 + $0x110] sm:$0xf]
  %v147 = vld [vmem:[%s1 + $0x114] sm:$0xf]
  %v148 = vld [vmem:[%s1 + $0x118] sm:$0xf]
  %v149 = vld [vmem:[%s1 + $0x11c] sm:$0xf]
  %v150 = vld [vmem:[%s2] sm:$0x1]
  %v152 = vlaneseq
  %v153 = vshrl.u32 %v152, 7
  %v154 = vsub.s32 0, %v153
  %v155 = vrot.slane %v150, %v154
  %v220 = vunpack.c.l.b16 %v15
  %v221 = vunpack.c.h.b16 %v15
  %v222 = vunpack.c.l.b16 %v16
  %v223 = vunpack.c.h.b16 %v16
  %v224 = vunpack.c.l.b16 %v17
  %v225 = vunpack.c.l.b16 %v18
  %v226 = vunpack.c.h.b16 %v18
  %v227 = vunpack.c.l.b16 %v19
  %v228 = vunpack.c.h.b16 %v19
  %v229 = vunpack.c.l.b16 %v20
  %v230 = vunpack.c.l.b16 %v21
  %v231 = vunpack.c.h.b16 %v21
  %v232 = vunpack.c.l.b16 %v22
  %v233 = vunpack.c.h.b16 %v22
  %v234 = vunpack.c.l.b16 %v23
  %v235 = vunpack.c.l.b16 %v24
  %v236 = vunpack.c.h.b16 %v24
  %v237 = vunpack.c.l.b16 %v25
  %v238 = vunpack.c.h.b16 %v25
  %v239 = vunpack.c.l.b16 %v26
  %v240 = vunpack.c.l.b16 %v27
  %v241 = vunpack.c.h.b16 %v27
  %v242 = vunpack.c.l.b16 %v28
  %v243 = vunpack.c.h.b16 %v28
  %v244 = vunpack.c.l.b16 %v29
  %v245 = vunpack.c.l.b16 %v30
  %v246 = vunpack.c.h.b16 %v30
  %v247 = vunpack.c.l.b16 %v31
  %v248 = vunpack.c.h.b16 %v31
  %v249 = vunpack.c.l.b16 %v32
  %v250 = vunpack.c.l.b16 %v33
  %v251 = vunpack.c.h.b16 %v33
  %v252 = vunpack.c.l.b16 %v34
  %v253 = vunpack.c.h.b16 %v34
  %v254 = vunpack.c.l.b16 %v35
  %v255 = vunpack.c.l.b16 %v36
  %v256 = vunpack.c.h.b16 %v36
  %v257 = vunpack.c.l.b16 %v37
  %v258 = vunpack.c.h.b16 %v37
  %v259 = vunpack.c.l.b16 %v38
  %v260 = vunpack.c.l.b16 %v39
  %v261 = vunpack.c.h.b16 %v39
  %v262 = vunpack.c.l.b16 %v40
  %v263 = vunpack.c.h.b16 %v40
  %v264 = vunpack.c.l.b16 %v41
  %v265 = vunpack.c.l.b16 %v42
  %v266 = vunpack.c.h.b16 %v42
  %v267 = vunpack.c.l.b16 %v43
  %v268 = vunpack.c.h.b16 %v43
  %v269 = vunpack.c.l.b16 %v44
  %v270 = vunpack.c.l.b16 %v45
  %v271 = vunpack.c.h.b16 %v45
  %v272 = vunpack.c.l.b16 %v46
  %v273 = vunpack.c.h.b16 %v46
  %v274 = vunpack.c.l.b16 %v47
  %v275 = vunpack.c.l.b16 %v48
  %v276 = vunpack.c.h.b16 %v48
  %v277 = vunpack.c.l.b16 %v49
  %v278 = vunpack.c.h.b16 %v49
  %v279 = vunpack.c.l.b16 %v50
  %v280 = vunpack.c.l.b16 %v51
  %v281 = vunpack.c.h.b16 %v51
  %v282 = vunpack.c.l.b16 %v52
  %v283 = vunpack.c.h.b16 %v52
  %v284 = vunpack.c.l.b16 %v53
  %v285 = vunpack.c.l.b16 %v54
  %v286 = vunpack.c.h.b16 %v54
  %v287 = vunpack.c.l.b16 %v55
  %v288 = vunpack.c.h.b16 %v55
  %v289 = vunpack.c.l.b16 %v56
  %v290 = vunpack.c.l.b16 %v57
  %v291 = vunpack.c.h.b16 %v57
  %v292 = vunpack.c.l.b16 %v58
  %v293 = vunpack.c.h.b16 %v58
  %v294 = vunpack.c.l.b16 %v59
  %v295 = vunpack.c.l.b16 %v60
  %v296 = vunpack.c.h.b16 %v60
  %v297 = vunpack.c.l.b16 %v61
  %v298 = vunpack.c.h.b16 %v61
  %v299 = vunpack.c.l.b16 %v62
  %v300 = vunpack.c.l.b16 %v63
  %v301 = vunpack.c.h.b16 %v63
  %v302 = vunpack.c.l.b16 %v64
  %v303 = vunpack.c.h.b16 %v64
  %v304 = vunpack.c.l.b16 %v65
  %v305 = vunpack.c.l.b16 %v66
  %v306 = vunpack.c.h.b16 %v66
  %v307 = vunpack.c.l.b16 %v67
  %v308 = vunpack.c.h.b16 %v67
  %v309 = vunpack.c.l.b16 %v68
  %v310 = vunpack.c.l.b16 %v69
  %v311 = vunpack.c.h.b16 %v69
  %v312 = vunpack.c.l.b16 %v70
  %v313 = vunpack.c.h.b16 %v70
  %v314 = vunpack.c.l.b16 %v71
  %v315 = vunpack.c.l.b16 %v72
  %v316 = vunpack.c.h.b16 %v72
  %v317 = vunpack.c.l.b16 %v73
  %v318 = vunpack.c.h.b16 %v73
  %v319 = vunpack.c.l.b16 %v74
  %v320 = vunpack.c.l.b16 %v75
  %v321 = vunpack.c.h.b16 %v75
  %v322 = vunpack.c.l.b16 %v76
  %v323 = vunpack.c.h.b16 %v76
  %v324 = vunpack.c.l.b16 %v77
  %v325 = vpack.c.b16 %v225, %v220
  %v326 = vpack.c.b16 %v226, %v221
  %v327 = vpack.c.b16 %v227, %v222
  %v328 = vpack.c.b16 %v228, %v223
  %v329 = vpack.c.b16 %v229, %v224
  %v330 = vpack.c.b16 %v235, %v230
  %v331 = vpack.c.b16 %v236, %v231
  %v332 = vpack.c.b16 %v237, %v232
  %v333 = vpack.c.b16 %v238, %v233
  %v334 = vpack.c.b16 %v239, %v234
  %v335 = vpack.c.b16 %v245, %v240
  %v336 = vpack.c.b16 %v246, %v241
  %v337 = vpack.c.b16 %v247, %v242
  %v338 = vpack.c.b16 %v248, %v243
  %v339 = vpack.c.b16 %v249, %v244
  %v340 = vpack.c.b16 %v255, %v250
  %v341 = vpack.c.b16 %v256, %v251
  %v342 = vpack.c.b16 %v257, %v252
  %v343 = vpack.c.b16 %v258, %v253
  %v344 = vpack.c.b16 %v259, %v254
  %v345 = vpack.c.b16 %v265, %v260
  %v346 = vpack.c.b16 %v266, %v261
  %v347 = vpack.c.b16 %v267, %v262
  %v348 = vpack.c.b16 %v268, %v263
  %v349 = vpack.c.b16 %v269, %v264
  %v350 = vpack.c.b16 %v275, %v270
  %v351 = vpack.c.b16 %v276, %v271
  %v352 = vpack.c.b16 %v277, %v272
  %v353 = vpack.c.b16 %v278, %v273
  %v354 = vpack.c.b16 %v279, %v274
  %v355 = vpack.c.b16 %v285, %v280
  %v356 = vpack.c.b16 %v286, %v281
  %v357 = vpack.c.b16 %v287, %v282
  %v358 = vpack.c.b16 %v288, %v283
  %v359 = vpack.c.b16 %v289, %v284
  %v360 = vpack.c.b16 %v295, %v290
  %v361 = vpack.c.b16 %v296, %v291
  %v362 = vpack.c.b16 %v297, %v292
  %v363 = vpack.c.b16 %v298, %v293
  %v364 = vpack.c.b16 %v299, %v294
  %v365 = vpack.c.b16 %v305, %v300
  %v366 = vpack.c.b16 %v306, %v301
  %v367 = vpack.c.b16 %v307, %v302
  %v368 = vpack.c.b16 %v308, %v303
  %v369 = vpack.c.b16 %v309, %v304
  %v370 = vpack.c.b16 %v315, %v310
  %v371 = vpack.c.b16 %v316, %v311
  %v372 = vpack.c.b16 %v317, %v312
  %v373 = vpack.c.b16 %v318, %v313
  %v374 = vpack.c.b16 %v319, %v314
  %v375 = vpack.c.b16 %v320, %v320
  %v376 = vpack.c.b16 %v321, %v321
  %v377 = vpack.c.b16 %v322, %v322
  %v378 = vpack.c.b16 %v323, %v323
  %v379 = vpack.c.b16 %v324, %v324
  %v496 = vunpack.c.l.b16 %v78
  %v497 = vunpack.c.l.b16 %v79
  %v498 = vunpack.c.l.b16 %v80
  %v499 = vunpack.c.l.b16 %v81
  %v500 = vunpack.c.l.b16 %v82
  %v501 = vunpack.c.l.b16 %v83
  %v502 = vunpack.c.l.b16 %v84
  %v503 = vunpack.c.l.b16 %v85
  %v504 = vunpack.c.l.b16 %v86
  %v505 = vunpack.c.l.b16 %v87
  %v506 = vunpack.c.l.b16 %v88
  %v507 = vunpack.c.l.b16 %v89
  %v508 = vunpack.c.l.b16 %v90
  %v509 = vunpack.c.l.b16 %v91
  %v510 = vunpack.c.l.b16 %v92
  %v511 = vunpack.c.l.b16 %v93
  %v512 = vunpack.c.l.b16 %v94
  %v513 = vunpack.c.l.b16 %v95
  %v514 = vunpack.c.l.b16 %v96
  %v515 = vunpack.c.l.b16 %v97
  %v516 = vunpack.c.l.b16 %v98
  %v517 = vunpack.c.l.b16 %v99
  %v518 = vunpack.c.l.b16 %v100
  %v519 = vunpack.c.l.b16 %v101
  %v520 = vunpack.c.l.b16 %v102
  %v521 = vunpack.c.l.b16 %v103
  %v522 = vunpack.c.l.b16 %v104
  %v523 = vunpack.c.l.b16 %v105
  %v524 = vunpack.c.l.b16 %v106
  %v525 = vunpack.c.l.b16 %v107
  %v526 = vunpack.c.l.b16 %v108
  %v527 = vunpack.c.l.b16 %v109
  %v528 = vunpack.c.l.b16 %v110
  %v529 = vunpack.c.l.b16 %v111
  %v530 = vunpack.c.l.b16 %v112
  %v531 = vunpack.c.l.b16 %v113
  %v532 = vunpack.c.l.b16 %v114
  %v533 = vunpack.c.l.b16 %v115
  %v534 = vunpack.c.l.b16 %v116
  %v535 = vunpack.c.l.b16 %v117
  %v536 = vunpack.c.l.b16 %v118
  %v537 = vunpack.c.l.b16 %v119
  %v538 = vunpack.c.l.b16 %v120
  %v539 = vunpack.c.l.b16 %v121
  %v540 = vunpack.c.l.b16 %v122
  %v541 = vunpack.c.l.b16 %v123
  %v542 = vunpack.c.l.b16 %v124
  %v543 = vunpack.c.l.b16 %v125
  %v544 = vunpack.c.l.b16 %v126
  %v545 = vunpack.c.l.b16 %v127
  %v546 = vunpack.c.l.b16 %v128
  %v547 = vunpack.c.l.b16 %v129
  %v548 = vunpack.c.l.b16 %v130
  %v549 = vunpack.c.l.b16 %v131
  %v550 = vunpack.c.l.b16 %v132
  %v551 = vunpack.c.l.b16 %v133
  %v552 = vunpack.c.l.b16 %v134
  %v553 = vunpack.c.l.b16 %v135
  %v554 = vunpack.c.l.b16 %v136
  %v555 = vunpack.c.l.b16 %v137
  %v556 = vunpack.c.l.b16 %v138
  %v557 = vunpack.c.l.b16 %v139
  %v558 = vunpack.c.l.b16 %v140
  %v559 = vunpack.c.l.b16 %v141
  %v560 = vunpack.c.l.b16 %v142
  %v561 = vunpack.c.l.b16 %v143
  %v562 = vunpack.c.l.b16 %v144
  %v563 = vunpack.c.l.b16 %v145
  %v564 = vunpack.c.l.b16 %v146
  %v565 = vunpack.c.l.b16 %v147
  %v566 = vunpack.c.l.b16 %v148
  %v567 = vunpack.c.l.b16 %v149
  %v568 = vpack.c.b16 %v497, %v496
  %v569 = vpack.c.b16 %v499, %v498
  %v570 = vpack.c.b16 %v501, %v500
  %v571 = vpack.c.b16 %v503, %v502
  %v572 = vpack.c.b16 %v505, %v504
  %v573 = vpack.c.b16 %v507, %v506
  %v574 = vpack.c.b16 %v509, %v508
  %v575 = vpack.c.b16 %v511, %v510
  %v576 = vpack.c.b16 %v513, %v512
  %v577 = vpack.c.b16 %v515, %v514
  %v578 = vpack.c.b16 %v517, %v516
  %v579 = vpack.c.b16 %v519, %v518
  %v580 = vpack.c.b16 %v521, %v520
  %v581 = vpack.c.b16 %v523, %v522
  %v582 = vpack.c.b16 %v525, %v524
  %v583 = vpack.c.b16 %v527, %v526
  %v584 = vpack.c.b16 %v529, %v528
  %v585 = vpack.c.b16 %v531, %v530
  %v586 = vpack.c.b16 %v533, %v532
  %v587 = vpack.c.b16 %v535, %v534
  %v588 = vpack.c.b16 %v537, %v536
  %v589 = vpack.c.b16 %v539, %v538
  %v590 = vpack.c.b16 %v541, %v540
  %v591 = vpack.c.b16 %v543, %v542
  %v592 = vpack.c.b16 %v545, %v544
  %v593 = vpack.c.b16 %v547, %v546
  %v594 = vpack.c.b16 %v549, %v548
  %v595 = vpack.c.b16 %v551, %v550
  %v596 = vpack.c.b16 %v553, %v552
  %v597 = vpack.c.b16 %v555, %v554
  %v598 = vpack.c.b16 %v557, %v556
  %v599 = vpack.c.b16 %v559, %v558
  %v600 = vpack.c.b16 %v561, %v560
  %v601 = vpack.c.b16 %v563, %v562
  %v602 = vpack.c.b16 %v565, %v564
  %v603 = vpack.c.b16 %v567, %v566
  %vm640 = vcmask 523264
  %v642 = vsel %vm640, %v329, 0
  %v645 = vsel %vm640, %v334, 0
  %v648 = vsel %vm640, %v339, 0
  %v651 = vsel %vm640, %v344, 0
  %v654 = vsel %vm640, %v349, 0
  %v657 = vsel %vm640, %v354, 0
  %v660 = vsel %vm640, %v359, 0
  %v663 = vsel %vm640, %v364, 0
  %v666 = vsel %vm640, %v369, 0
  %v669 = vsel %vm640, %v374, 0
  %v672 = vsel %vm640, %v379, 0
  %674 = vmatprep.subr.bf16.mxu0 0
  %675 = vmatpush1.bf16.msra.mxu0 %v568
  %676 = vmatprep.subr.bf16.mxu0 0
  %677 = vmatpush1.bf16.msra.mxu0 %v569
  %678 = vmatprep.subr.bf16.mxu0 0
  %679 = vmatpush1.bf16.msra.mxu0 %v570
  %680 = vmatprep.subr.bf16.mxu0 0
  %681 = vmatpush1.bf16.msra.mxu0 %v571
  %682 = vmatprep.subr.bf16.mxu0 0
  %683 = vmatpush1.bf16.msra.mxu0 %v572
  %684 = vmatprep.subr.bf16.mxu0 0
  %685 = vmatpush1.bf16.msra.mxu0 %v573
  %686 = vmatprep.subr.bf16.mxu0 0
  %687 = vmatpush1.bf16.msra.mxu0 %v574
  %688 = vmatprep.subr.bf16.mxu0 0
  %689 = vmatpush1.bf16.msra.mxu0 %v575
  %690 = vmatprep.subr.bf16.mxu0 0
  %691 = vmatpush1.bf16.msra.mxu0 %v576
  %692 = vmatprep.subr.bf16.mxu0 0
  %693 = vmatpush1.bf16.msra.mxu0 %v577
  %694 = vmatprep.subr.bf16.mxu0 0
  %695 = vmatpush1.bf16.msra.mxu0 %v578
  %696 = vmatprep.subr.bf16.mxu0 0
  %697 = vmatpush1.bf16.msra.mxu0 %v579
  %698 = vmatprep.subr.bf16.mxu0 0
  %699 = vmatpush1.bf16.msra.mxu0 %v580
  %700 = vmatprep.subr.bf16.mxu0 0
  %701 = vmatpush1.bf16.msra.mxu0 %v581
  %702 = vmatprep.subr.bf16.mxu0 0
  %703 = vmatpush1.bf16.msra.mxu0 %v582
  %704 = vmatprep.subr.bf16.mxu0 0
  %705 = vmatpush1.bf16.msra.mxu0 %v583
  %706 = vmatprep.mubr.bf16.mxu0 %v326
  %707 = vmatmul.mubr.bf16.gmra.mrb[0].mxu0 %v325
  %v708 = vpop.f32.mrb[0].mxu0
  %v709 = vadd.f32 %v155, %v708
  %v710 = vpop.f32.mrb[0].mxu0
  %v711 = vpop.f32.mrb[0].mxu0
  %v712 = vadd.f32 %v155, %v711
  %v713 = vpop.f32.mrb[0].mxu0
  %714 = vmatprep.mubr.bf16.mxu0 %v331
  %715 = vmatmul.mubr.bf16.gmra.mrb[0].mxu0 %v330
  %v716 = vpop.f32.mrb[0].mxu0
  %v717 = vadd.f32 %v155, %v716
  %v718 = vpop.f32.mrb[0].mxu0
  %v719 = vpop.f32.mrb[0].mxu0
  %v720 = vadd.f32 %v155, %v719
  %v721 = vpop.f32.mrb[0].mxu0
  %722 = vmatprep.mubr.bf16.mxu0 %v336
  %723 = vmatmul.mubr.bf16.gmra.mrb[0].mxu0 %v335
  %v724 = vpop.f32.mrb[0].mxu0
  %v725 = vadd.f32 %v155, %v724
  %v726 = vpop.f32.mrb[0].mxu0
  %v727 = vpop.f32.mrb[0].mxu0
  %v728 = vadd.f32 %v155, %v727
  %v729 = vpop.f32.mrb[0].mxu0
  %730 = vmatprep.mubr.bf16.mxu0 %v341
  %731 = vmatmul.mubr.bf16.gmra.mrb[0].mxu0 %v340
  %v732 = vpop.f32.mrb[0].mxu0
  %v733 = vadd.f32 %v155, %v732
  %v734 = vpop.f32.mrb[0].mxu0
  %v735 = vpop.f32.mrb[0].mxu0
  %v736 = vadd.f32 %v155, %v735
  %v737 = vpop.f32.mrb[0].mxu0
  %738 = vmatprep.mubr.bf16.mxu0 %v346
  %739 = vmatmul.mubr.bf16.gmra.mrb[0].mxu0 %v345
  %v740 = vpop.f32.mrb[0].mxu0
  %v741 = vadd.f32 %v155, %v740
  %v742 = vpop.f32.mrb[0].mxu0
  %v743 = vpop.f32.mrb[0].mxu0
  %v744 = vadd.f32 %v155, %v743
  %v745 = vpop.f32.mrb[0].mxu0
  %746 = vmatprep.mubr.bf16.mxu0 %v351
  %747 = vmatmul.mubr.bf16.gmra.mrb[0].mxu0 %v350
  %v748 = vpop.f32.mrb[0].mxu0
  %v749 = vadd.f32 %v155, %v748
  %v750 = vpop.f32.mrb[0].mxu0
  %v751 = vpop.f32.mrb[0].mxu0
  %v752 = vadd.f32 %v155, %v751
  %v753 = vpop.f32.mrb[0].mxu0
  %754 = vmatprep.mubr.bf16.mxu0 %v356
  %755 = vmatmul.mubr.bf16.gmra.mrb[0].mxu0 %v355
  %v756 = vpop.f32.mrb[0].mxu0
  %v757 = vadd.f32 %v155, %v756
  %v758 = vpop.f32.mrb[0].mxu0
  %v759 = vpop.f32.mrb[0].mxu0
  %v760 = vadd.f32 %v155, %v759
  %v761 = vpop.f32.mrb[0].mxu0
  %762 = vmatprep.mubr.bf16.mxu0 %v361
  %763 = vmatmul.mubr.bf16.gmra.mrb[0].mxu0 %v360
  %v764 = vpop.f32.mrb[0].mxu0
  %v765 = vadd.f32 %v155, %v764
  %v766 = vpop.f32.mrb[0].mxu0
  %v767 = vpop.f32.mrb[0].mxu0
  %v768 = vadd.f32 %v155, %v767
  %v769 = vpop.f32.mrb[0].mxu0
  %770 = vmatprep.mubr.bf16.mxu0 %v366
  %771 = vmatmul.mubr.bf16.gmra.mrb[0].mxu0 %v365
  %v772 = vpop.f32.mrb[0].mxu0
  %v773 = vadd.f32 %v155, %v772
  %v774 = vpop.f32.mrb[0].mxu0
  %v775 = vpop.f32.mrb[0].mxu0
  %v776 = vadd.f32 %v155, %v775
  %v777 = vpop.f32.mrb[0].mxu0
  %778 = vmatprep.mubr.bf16.mxu0 %v371
  %779 = vmatmul.mubr.bf16.gmra.mrb[0].mxu0 %v370
  %v780 = vpop.f32.mrb[0].mxu0
  %v781 = vadd.f32 %v155, %v780
  %v782 = vpop.f32.mrb[0].mxu0
  %v783 = vpop.f32.mrb[0].mxu0
  %v784 = vadd.f32 %v155, %v783
  %v785 = vpop.f32.mrb[0].mxu0
  %786 = vmatprep.mubr.bf16.mxu0 %v376
  %787 = vmatmul.mubr.bf16.gmra.mrb[0].mxu0 %v375
  %v788 = vpop.f32.mrb[0].mxu0
  %v789 = vadd.f32 %v155, %v788
  %v790 = vpop.f32.mrb[0].mxu0
  %v791 = vpop.f32.mrb[0].mxu0
  %v792 = vpop.f32.mrb[0].mxu0
  %793 = vdwg.mxu0
  %794 = vmatprep.subr.bf16.mxu0 0
  %795 = vmatpush1.bf16.msra.mxu0 %v584
  %796 = vmatprep.subr.bf16.mxu0 0
  %797 = vmatpush1.bf16.msra.mxu0 %v585
  %798 = vmatprep.subr.bf16.mxu0 0
  %799 = vmatpush1.bf16.msra.mxu0 %v586
  %800 = vmatprep.subr.bf16.mxu0 0
  %801 = vmatpush1.bf16.msra.mxu0 %v587
  %802 = vmatprep.subr.bf16.mxu0 0
  %803 = vmatpush1.bf16.msra.mxu0 %v588
  %804 = vmatprep.subr.bf16.mxu0 0
  %805 = vmatpush1.bf16.msra.mxu0 %v589
  %806 = vmatprep.subr.bf16.mxu0 0
  %807 = vmatpush1.bf16.msra.mxu0 %v590
  %808 = vmatprep.subr.bf16.mxu0 0
  %809 = vmatpush1.bf16.msra.mxu0 %v591
  %810 = vmatprep.subr.bf16.mxu0 0
  %811 = vmatpush1.bf16.msra.mxu0 %v592
  %812 = vmatprep.subr.bf16.mxu0 0
  %813 = vmatpush1.bf16.msra.mxu0 %v593
  %814 = vmatprep.subr.bf16.mxu0 0
  %815 = vmatpush1.bf16.msra.mxu0 %v594
  %816 = vmatprep.subr.bf16.mxu0 0
  %817 = vmatpush1.bf16.msra.mxu0 %v595
  %818 = vmatprep.subr.bf16.mxu0 0
  %819 = vmatpush1.bf16.msra.mxu0 %v596
  %820 = vmatprep.subr.bf16.mxu0 0
  %821 = vmatpush1.bf16.msra.mxu0 %v597
  %822 = vmatprep.subr.bf16.mxu0 0
  %823 = vmatpush1.bf16.msra.mxu0 %v598
  %824 = vmatprep.subr.bf16.mxu0 0
  %825 = vmatpush1.bf16.msra.mxu0 %v599
  %826 = vmatprep.mubr.bf16.mxu0 %v328
  %827 = vmatmul.mubr.bf16.gmra.mrb[0].mxu0 %v327
  %v828 = vpop.f32.mrb[0].mxu0
  %v829 = vadd.f32 %v709, %v828
  %v830 = vpop.f32.mrb[0].mxu0
  %v831 = vpop.f32.mrb[0].mxu0
  %v832 = vadd.f32 %v712, %v831
  %v833 = vpop.f32.mrb[0].mxu0
  %834 = vmatprep.mubr.bf16.mxu0 %v333
  %835 = vmatmul.mubr.bf16.gmra.mrb[0].mxu0 %v332
  %v836 = vpop.f32.mrb[0].mxu0
  %v837 = vadd.f32 %v717, %v836
  %v838 = vpop.f32.mrb[0].mxu0
  %v839 = vpop.f32.mrb[0].mxu0
  %v840 = vadd.f32 %v720, %v839
  %v841 = vpop.f32.mrb[0].mxu0
  %842 = vmatprep.mubr.bf16.mxu0 %v338
  %843 = vmatmul.mubr.bf16.gmra.mrb[0].mxu0 %v337
  %v844 = vpop.f32.mrb[0].mxu0
  %v845 = vadd.f32 %v725, %v844
  %v846 = vpop.f32.mrb[0].mxu0
  %v847 = vpop.f32.mrb[0].mxu0
  %v848 = vadd.f32 %v728, %v847
  %v849 = vpop.f32.mrb[0].mxu0
  %850 = vmatprep.mubr.bf16.mxu0 %v343
  %851 = vmatmul.mubr.bf16.gmra.mrb[0].mxu0 %v342
  %v852 = vpop.f32.mrb[0].mxu0
  %v853 = vadd.f32 %v733, %v852
  %v854 = vpop.f32.mrb[0].mxu0
  %v855 = vpop.f32.mrb[0].mxu0
  %v856 = vadd.f32 %v736, %v855
  %v857 = vpop.f32.mrb[0].mxu0
  %858 = vmatprep.mubr.bf16.mxu0 %v348
  %859 = vmatmul.mubr.bf16.gmra.mrb[0].mxu0 %v347
  %v860 = vpop.f32.mrb[0].mxu0
  %v861 = vadd.f32 %v741, %v860
  %v862 = vpop.f32.mrb[0].mxu0
  %v863 = vpop.f32.mrb[0].mxu0
  %v864 = vadd.f32 %v744, %v863
  %v865 = vpop.f32.mrb[0].mxu0
  %866 = vmatprep.mubr.bf16.mxu0 %v353
  %867 = vmatmul.mubr.bf16.gmra.mrb[0].mxu0 %v352
  %v868 = vpop.f32.mrb[0].mxu0
  %v869 = vadd.f32 %v749, %v868
  %v870 = vpop.f32.mrb[0].mxu0
  %v871 = vpop.f32.mrb[0].mxu0
  %v872 = vadd.f32 %v752, %v871
  %v873 = vpop.f32.mrb[0].mxu0
  %874 = vmatprep.mubr.bf16.mxu0 %v358
  %875 = vmatmul.mubr.bf16.gmra.mrb[0].mxu0 %v357
  %v876 = vpop.f32.mrb[0].mxu0
  %v877 = vadd.f32 %v757, %v876
  %v878 = vpop.f32.mrb[0].mxu0
  %v879 = vpop.f32.mrb[0].mxu0
  %v880 = vadd.f32 %v760, %v879
  %v881 = vpop.f32.mrb[0].mxu0
  %882 = vmatprep.mubr.bf16.mxu0 %v363
  %883 = vmatmul.mubr.bf16.gmra.mrb[0].mxu0 %v362
  %v884 = vpop.f32.mrb[0].mxu0
  %v885 = vadd.f32 %v765, %v884
  %v886 = vpop.f32.mrb[0].mxu0
  %v887 = vpop.f32.mrb[0].mxu0
  %v888 = vadd.f32 %v768, %v887
  %v889 = vpop.f32.mrb[0].mxu0
  %890 = vmatprep.mubr.bf16.mxu0 %v368
  %891 = vmatmul.mubr.bf16.gmra.mrb[0].mxu0 %v367
  %v892 = vpop.f32.mrb[0].mxu0
  %v893 = vadd.f32 %v773, %v892
  %v894 = vpop.f32.mrb[0].mxu0
  %v895 = vpop.f32.mrb[0].mxu0
  %v896 = vadd.f32 %v776, %v895
  %v897 = vpop.f32.mrb[0].mxu0
  %898 = vmatprep.mubr.bf16.mxu0 %v373
  %899 = vmatmul.mubr.bf16.gmra.mrb[0].mxu0 %v372
  %v900 = vpop.f32.mrb[0].mxu0
  %v901 = vadd.f32 %v781, %v900
  %v902 = vpop.f32.mrb[0].mxu0
  %v903 = vpop.f32.mrb[0].mxu0
  %v904 = vadd.f32 %v784, %v903
  %v905 = vpop.f32.mrb[0].mxu0
  %906 = vmatprep.mubr.bf16.mxu0 %v378
  %907 = vmatmul.mubr.bf16.gmra.mrb[0].mxu0 %v377
  %v908 = vpop.f32.mrb[0].mxu0
  %v909 = vadd.f32 %v789, %v908
  %v910 = vpop.f32.mrb[0].mxu0
  %v911 = vpop.f32.mrb[0].mxu0
  %v912 = vpop.f32.mrb[0].mxu0
  %913 = vdwg.mxu0
  %914 = vmatprep.subr.bf16.mxu0 0
  %915 = vmatpush1.bf16.msra.mxu0 %v600
  %916 = vmatprep.subr.bf16.mxu0 0
  %917 = vmatpush1.bf16.msra.mxu0 %v601
  %918 = vmatprep.subr.bf16.mxu0 0
  %919 = vmatpush1.bf16.msra.mxu0 %v602
  %920 = vmatprep.subr.bf16.mxu0 0
  %921 = vmatpush1.bf16.msra.mxu0 %v603
  %922 = vmatprep.subr.bf16.mxu0 0
  %923 = vmatpush1.bf16.msra.mxu0 0
  %924 = vmatprep.subr.bf16.mxu0 0
  %925 = vmatpush1.bf16.msra.mxu0 0
  %926 = vmatprep.subr.bf16.mxu0 0
  %927 = vmatpush1.bf16.msra.mxu0 0
  %928 = vmatprep.subr.bf16.mxu0 0
  %929 = vmatpush1.bf16.msra.mxu0 0
  %930 = vmatprep.subr.bf16.mxu0 0
  %931 = vmatpush1.bf16.msra.mxu0 0
  %932 = vmatprep.subr.bf16.mxu0 0
  %933 = vmatpush1.bf16.msra.mxu0 0
  %934 = vmatprep.subr.bf16.mxu0 0
  %935 = vmatpush1.bf16.msra.mxu0 0
  %936 = vmatprep.subr.bf16.mxu0 0
  %937 = vmatpush1.bf16.msra.mxu0 0
  %938 = vmatprep.subr.bf16.mxu0 0
  %939 = vmatpush1.bf16.msra.mxu0 0
  %940 = vmatprep.subr.bf16.mxu0 0
  %941 = vmatpush1.bf16.msra.mxu0 0
  %942 = vmatprep.subr.bf16.mxu0 0
  %943 = vmatpush1.bf16.msra.mxu0 0
  %944 = vmatprep.subr.bf16.mxu0 0
  %945 = vmatpush1.bf16.msra.mxu0 0
  %946 = vmatprep.mubr.bf16.mxu0 0
  %947 = vmatmul.mubr.bf16.gmra.mrb[0].mxu0 %v642
  %v948 = vpop.f32.mrb[0].mxu0
  %v949 = vadd.f32 %v829, %v948
  %v950 = vpop.f32.mrb[0].mxu0
  %v951 = vpop.f32.mrb[0].mxu0
  %v952 = vadd.f32 %v832, %v951
  %v953 = vpop.f32.mrb[0].mxu0
  %954 = vmatprep.mubr.bf16.mxu0 0
  %955 = vmatmul.mubr.bf16.gmra.mrb[0].mxu0 %v645
  %v956 = vpop.f32.mrb[0].mxu0
  %v957 = vadd.f32 %v837, %v956
  %v958 = vpop.f32.mrb[0].mxu0
  %v959 = vpop.f32.mrb[0].mxu0
  %v960 = vadd.f32 %v840, %v959
  %v961 = vpop.f32.mrb[0].mxu0
  %962 = vmatprep.mubr.bf16.mxu0 0
  %963 = vmatmul.mubr.bf16.gmra.mrb[0].mxu0 %v648
  %v964 = vpop.f32.mrb[0].mxu0
  %v965 = vadd.f32 %v845, %v964
  %v966 = vpop.f32.mrb[0].mxu0
  %v967 = vpop.f32.mrb[0].mxu0
  %v968 = vadd.f32 %v848, %v967
  %v969 = vpop.f32.mrb[0].mxu0
  %970 = vmatprep.mubr.bf16.mxu0 0
  %971 = vmatmul.mubr.bf16.gmra.mrb[0].mxu0 %v651
  %v972 = vpop.f32.mrb[0].mxu0
  %v973 = vadd.f32 %v853, %v972
  %v974 = vpop.f32.mrb[0].mxu0
  %v975 = vpop.f32.mrb[0].mxu0
  %v976 = vadd.f32 %v856, %v975
  %v977 = vpop.f32.mrb[0].mxu0
  %978 = vmatprep.mubr.bf16.mxu0 0
  %979 = vmatmul.mubr.bf16.gmra.mrb[0].mxu0 %v654
  %v980 = vpop.f32.mrb[0].mxu0
  %v981 = vadd.f32 %v861, %v980
  %v982 = vpop.f32.mrb[0].mxu0
  %v983 = vpop.f32.mrb[0].mxu0
  %v984 = vadd.f32 %v864, %v983
  %v985 = vpop.f32.mrb[0].mxu0
  %986 = vmatprep.mubr.bf16.mxu0 0
  %987 = vmatmul.mubr.bf16.gmra.mrb[0].mxu0 %v657
  %v988 = vpop.f32.mrb[0].mxu0
  %v989 = vadd.f32 %v869, %v988
  %v990 = vpop.f32.mrb[0].mxu0
  %v991 = vpop.f32.mrb[0].mxu0
  %v992 = vadd.f32 %v872, %v991
  %v993 = vpop.f32.mrb[0].mxu0
  %994 = vmatprep.mubr.bf16.mxu0 0
  %995 = vmatmul.mubr.bf16.gmra.mrb[0].mxu0 %v660
  %v996 = vpop.f32.mrb[0].mxu0
  %v997 = vadd.f32 %v877, %v996
  %v998 = vpop.f32.mrb[0].mxu0
  %v999 = vpop.f32.mrb[0].mxu0
  %v1000 = vadd.f32 %v880, %v999
  %v1001 = vpop.f32.mrb[0].mxu0
  %1002 = vmatprep.mubr.bf16.mxu0 0
  %1003 = vmatmul.mubr.bf16.gmra.mrb[0].mxu0 %v663
  %v1004 = vpop.f32.mrb[0].mxu0
  %v1005 = vadd.f32 %v885, %v1004
  %v1006 = vpop.f32.mrb[0].mxu0
  %v1007 = vpop.f32.mrb[0].mxu0
  %v1008 = vadd.f32 %v888, %v1007
  %v1009 = vpop.f32.mrb[0].mxu0
  %1010 = vmatprep.mubr.bf16.mxu0 0
  %1011 = vmatmul.mubr.bf16.gmra.mrb[0].mxu0 %v666
  %v1012 = vpop.f32.mrb[0].mxu0
  %v1013 = vadd.f32 %v893, %v1012
  %v1014 = vpop.f32.mrb[0].mxu0
  %v1015 = vpop.f32.mrb[0].mxu0
  %v1016 = vadd.f32 %v896, %v1015
  %v1017 = vpop.f32.mrb[0].mxu0
  %1018 = vmatprep.mubr.bf16.mxu0 0
  %1019 = vmatmul.mubr.bf16.gmra.mrb[0].mxu0 %v669
  %v1020 = vpop.f32.mrb[0].mxu0
  %v1021 = vadd.f32 %v901, %v1020
  %v1022 = vpop.f32.mrb[0].mxu0
  %v1023 = vpop.f32.mrb[0].mxu0
  %v1024 = vadd.f32 %v904, %v1023
  %v1025 = vpop.f32.mrb[0].mxu0
  %1026 = vmatprep.mubr.bf16.mxu0 0
  %1027 = vmatmul.mubr.bf16.gmra.mrb[0].mxu0 %v672
  %v1028 = vpop.f32.mrb[0].mxu0
  %v1029 = vadd.f32 %v909, %v1028
  %v1030 = vpop.f32.mrb[0].mxu0
  %v1031 = vpop.f32.mrb[0].mxu0
  %v1032 = vpop.f32.mrb[0].mxu0
  %1033 = vdwg.mxu0
  %v1034 = vmax.f32 %v949, 0.0
  %v1035 = vmax.f32 %v952, 0.0
  %v1036 = vmax.f32 %v957, 0.0
  %v1037 = vmax.f32 %v960, 0.0
  %v1038 = vmax.f32 %v965, 0.0
  %v1039 = vmax.f32 %v968, 0.0
  %v1040 = vmax.f32 %v973, 0.0
  %v1041 = vmax.f32 %v976, 0.0
  %v1042 = vmax.f32 %v981, 0.0
  %v1043 = vmax.f32 %v984, 0.0
  %v1044 = vmax.f32 %v989, 0.0
  %v1045 = vmax.f32 %v992, 0.0
  %v1046 = vmax.f32 %v997, 0.0
  %v1047 = vmax.f32 %v1000, 0.0
  %v1048 = vmax.f32 %v1005, 0.0
  %v1049 = vmax.f32 %v1008, 0.0
  %v1050 = vmax.f32 %v1013, 0.0
  %v1051 = vmax.f32 %v1016, 0.0
  %v1052 = vmax.f32 %v1021, 0.0
  %v1053 = vmax.f32 %v1024, 0.0
  %v1054 = vmax.f32 %v1029, 0.0
  %v1055 = vpack.c.bf16 %v1035, %v1034
  %v1056 = vpack.c.bf16 %v1037, %v1036
  %v1057 = vpack.c.bf16 %v1039, %v1038
  %v1058 = vpack.c.bf16 %v1041, %v1040
  %v1059 = vpack.c.bf16 %v1043, %v1042
  %v1060 = vpack.c.bf16 %v1045, %v1044
  %v1061 = vpack.c.bf16 %v1047, %v1046
  %v1062 = vpack.c.bf16 %v1049, %v1048
  %v1063 = vpack.c.bf16 %v1051, %v1050
  %v1064 = vpack.c.bf16 %v1053, %v1052
  %v1065 = vpack.c.bf16 %v1054, %v1054
  %v1077 = vunpack.c.l.b16 %v1055
  %v1078 = vunpack.c.h.b16 %v1055
  %v1079 = vunpack.c.l.b16 %v1056
  %v1080 = vunpack.c.h.b16 %v1056
  %v1081 = vunpack.c.l.b16 %v1057
  %v1082 = vunpack.c.h.b16 %v1057
  %v1083 = vunpack.c.l.b16 %v1058
  %v1084 = vunpack.c.h.b16 %v1058
  %v1085 = vunpack.c.l.b16 %v1059
  %v1086 = vunpack.c.h.b16 %v1059
  %v1087 = vunpack.c.l.b16 %v1060
  %v1088 = vunpack.c.h.b16 %v1060
  %v1089 = vunpack.c.l.b16 %v1061
  %v1090 = vunpack.c.h.b16 %v1061
  %v1091 = vunpack.c.l.b16 %v1062
  %v1092 = vunpack.c.h.b16 %v1062
  %v1093 = vunpack.c.l.b16 %v1063
  %v1094 = vunpack.c.h.b16 %v1063
  %v1095 = vunpack.c.l.b16 %v1064
  %v1096 = vunpack.c.h.b16 %v1064
  %v1097 = vunpack.c.l.b16 %v1065
  %v1098 = vpack.c.b16 %v1077, %v1077
  %v1099 = vpack.c.b16 %v1078, %v1078
  %v1100 = vpack.c.b16 %v1079, %v1079
  %v1101 = vpack.c.b16 %v1080, %v1080
  %v1102 = vpack.c.b16 %v1081, %v1081
  %v1103 = vpack.c.b16 %v1082, %v1082
  %v1104 = vpack.c.b16 %v1083, %v1083
  %v1105 = vpack.c.b16 %v1084, %v1084
  %v1106 = vpack.c.b16 %v1085, %v1085
  %v1107 = vpack.c.b16 %v1086, %v1086
  %v1108 = vpack.c.b16 %v1087, %v1087
  %v1109 = vpack.c.b16 %v1088, %v1088
  %v1110 = vpack.c.b16 %v1089, %v1089
  %v1111 = vpack.c.b16 %v1090, %v1090
  %v1112 = vpack.c.b16 %v1091, %v1091
  %v1113 = vpack.c.b16 %v1092, %v1092
  %v1114 = vpack.c.b16 %v1093, %v1093
  %v1115 = vpack.c.b16 %v1094, %v1094
  %v1116 = vpack.c.b16 %v1095, %v1095
  %v1117 = vpack.c.b16 %v1096, %v1096
  %v1118 = vpack.c.b16 %v1097, %v1097
  %1140 = vst [vmem:[%s3] sm:$0xf] %v1098
  %1141 = vst [vmem:[%s3 + $0x4] sm:$0xf] %v1099
  %1142 = vst [vmem:[%s3 + $0x8] sm:$0xf] %v1100
  %1143 = vst [vmem:[%s3 + $0xc] sm:$0xf] %v1101
  %1144 = vst [vmem:[%s3 + $0x10] sm:$0xf] %v1102
  %1145 = vst [vmem:[%s3 + $0x14] sm:$0xf] %v1103
  %1146 = vst [vmem:[%s3 + $0x18] sm:$0xf] %v1104
  %1147 = vst [vmem:[%s3 + $0x1c] sm:$0xf] %v1105
  %1148 = vst [vmem:[%s3 + $0x20] sm:$0xf] %v1106
  %1149 = vst [vmem:[%s3 + $0x24] sm:$0xf] %v1107
  %1150 = vst [vmem:[%s3 + $0x28] sm:$0xf] %v1108
  %1151 = vst [vmem:[%s3 + $0x2c] sm:$0xf] %v1109
  %1152 = vst [vmem:[%s3 + $0x30] sm:$0xf] %v1110
  %1153 = vst [vmem:[%s3 + $0x34] sm:$0xf] %v1111
  %1154 = vst [vmem:[%s3 + $0x38] sm:$0xf] %v1112
  %1155 = vst [vmem:[%s3 + $0x3c] sm:$0xf] %v1113
  %1156 = vst [vmem:[%s3 + $0x40] sm:$0xf] %v1114
  %1157 = vst [vmem:[%s3 + $0x44] sm:$0xf] %v1115
  %1158 = vst [vmem:[%s3 + $0x48] sm:$0xf] %v1116
  %1159 = vst [vmem:[%s3 + $0x4c] sm:$0xf] %v1117
  %1160 = vst [vmem:[%s3 + $0x50] sm:$0xf] %v1118
  // Predicated region
  $region14: #{retinanet_forward.23} parent=0 // pred_check
    _
  $region15: #{retinanet_forward.23} parent=0 // pred_check_branch
    %1162 = sbr.rel (0) target = $region17
  $region16: #{retinanet_forward.23} parent=0 // pred_region
    _
  $region17: #{retinanet_forward.23} parent=0 // pred_fallthru
    _
  // Predicated region
  $region18: #{retinanet_forward.23} parent=0 // pred_check
    _
  $region19: #{retinanet_forward.23} parent=0 // pred_check_branch
    %1164 = sbr.rel (0) target = $region21
  $region20: #{retinanet_forward.23} parent=0 // pred_region
    _
  $region21: #{retinanet_forward.23} parent=0 // pred_fallthru
    _

// kernel: retinanet_forward.24
$region0: #{retinanet_forward.24}
  #allocation0 [shape = 'u32[]', space=smem, size = 0x4, offset = 0x4, fixed_abs, tag = 'smem constant byte address 0x4 - core index']
  #allocation1 [shape = 'u32[144,128]{1,0:T(1,128)}', space=vmem, size = 0x12000, scoped, tag = 'internal scratch']
  %s0 = inlined_call_operand.vmem [shape: bf16[168,1152], index: 0, kind: input, shape index: {}]
  %s1 = inlined_call_operand.vmem [shape: bf16[1152,128], index: 1, kind: input, shape index: {}]
  %s2 = inlined_call_operand.vmem [shape: f32[1,128], index: 2, kind: input, shape index: {}]
  %s3 = inlined_call_operand.vmem [shape: bf16[168,128], index: 3, kind: output, shape index: {}]
  %s4 = sld [smem:[#allocation0]]
  $region22: #{retinanet_forward.24} parent=0
    _
  %s6 = ssub.s32 1, %s4
  %s7 = scalar_select 0, %s6, %s4
  // Predicated region
  $region2: #{retinanet_forward.24} parent=0 // pred_check
    _
  $region3: #{retinanet_forward.24} parent=0 // pred_check_branch
    %9 = sbr.rel (0) target = $region5
  $region4: #{retinanet_forward.24} parent=0 // pred_region
    _
  $region5: #{retinanet_forward.24} parent=0 // pred_fallthru
    _
  // Predicated region
  $region6: #{retinanet_forward.24} parent=0 // pred_check
    _
  $region7: #{retinanet_forward.24} parent=0 // pred_check_branch
    %11 = sbr.rel (0) target = $region9
  $region8: #{retinanet_forward.24} parent=0 // pred_region
    _
  $region9: #{retinanet_forward.24} parent=0 // pred_fallthru
    _
  // Predicated region
  $region10: #{retinanet_forward.24} parent=0 // pred_check
    _
  $region11: #{retinanet_forward.24} parent=0 // pred_check_branch
    %13 = sbr.rel (0) target = $region13
  $region12: #{retinanet_forward.24} parent=0 // pred_region
    _
  $region13: #{retinanet_forward.24} parent=0 // pred_fallthru
    _
  %v15 = vld [vmem:[%s0] sm:$0xff]
  %v16 = vld [vmem:[%s0 + $0x8] sm:$0xff]
  %v17 = vld [vmem:[%s0 + $0x10] sm:$0xff]
  %v18 = vld [vmem:[%s0 + $0x18] sm:$0xff]
  %v19 = vld [vmem:[%s0 + $0x20] sm:$0xf]
  %v20 = vld [vmem:[%s0 + $0x24] sm:$0xff]
  %v21 = vld [vmem:[%s0 + $0x2c] sm:$0xff]
  %v22 = vld [vmem:[%s0 + $0x34] sm:$0xff]
  %v23 = vld [vmem:[%s0 + $0x3c] sm:$0xff]
  %v24 = vld [vmem:[%s0 + $0x44] sm:$0xf]
  %v25 = vld [vmem:[%s0 + $0x48] sm:$0xff]
  %v26 = vld [vmem:[%s0 + $0x50] sm:$0xff]
  %v27 = vld [vmem:[%s0 + $0x58] sm:$0xff]
  %v28 = vld [vmem:[%s0 + $0x60] sm:$0xff]
  %v29 = vld [vmem:[%s0 + $0x68] sm:$0xf]
  %v30 = vld [vmem:[%s0 + $0x6c] sm:$0xff]
  %v31 = vld [vmem:[%s0 + $0x74] sm:$0xff]
  %v32 = vld [vmem:[%s0 + $0x7c] sm:$0xff]
  %v33 = vld [vmem:[%s0 + $0x84] sm:$0xff]
  %v34 = vld [vmem:[%s0 + $0x8c] sm:$0xf]
  %v35 = vld [vmem:[%s0 + $0x90] sm:$0xff]
  %v36 = vld [vmem:[%s0 + $0x98] sm:$0xff]
  %v37 = vld [vmem:[%s0 + $0xa0] sm:$0xff]
  %v38 = vld [vmem:[%s0 + $0xa8] sm:$0xff]
  %v39 = vld [vmem:[%s0 + $0xb0] sm:$0xf]
  %v40 = vld [vmem:[%s0 + $0xb4] sm:$0xff]
  %v41 = vld [vmem:[%s0 + $0xbc] sm:$0xff]
  %v42 = vld [vmem:[%s0 + $0xc4] sm:$0xff]
  %v43 = vld [vmem:[%s0 + $0xcc] sm:$0xff]
  %v44 = vld [vmem:[%s0 + $0xd4] sm:$0xf]
  %v45 = vld [vmem:[%s0 + $0xd8] sm:$0xff]
  %v46 = vld [vmem:[%s0 + $0xe0] sm:$0xff]
  %v47 = vld [vmem:[%s0 + $0xe8] sm:$0xff]
  %v48 = vld [vmem:[%s0 + $0xf0] sm:$0xff]
  %v49 = vld [vmem:[%s0 + $0xf8] sm:$0xf]
  %v50 = vld [vmem:[%s0 + $0xfc] sm:$0xff]
  %v51 = vld [vmem:[%s0 + $0x104] sm:$0xff]
  %v52 = vld [vmem:[%s0 + $0x10c] sm:$0xff]
  %v53 = vld [vmem:[%s0 + $0x114] sm:$0xff]
  %v54 = vld [vmem:[%s0 + $0x11c] sm:$0xf]
  %v55 = vld [vmem:[%s0 + $0x120] sm:$0xff]
  %v56 = vld [vmem:[%s0 + $0x128] sm:$0xff]
  %v57 = vld [vmem:[%s0 + $0x130] sm:$0xff]
  %v58 = vld [vmem:[%s0 + $0x138] sm:$0xff]
  %v59 = vld [vmem:[%s0 + $0x140] sm:$0xf]
  %v60 = vld [vmem:[%s0 + $0x144] sm:$0xff]
  %v61 = vld [vmem:[%s0 + $0x14c] sm:$0xff]
  %v62 = vld [vmem:[%s0 + $0x154] sm:$0xff]
  %v63 = vld [vmem:[%s0 + $0x15c] sm:$0xff]
  %v64 = vld [vmem:[%s0 + $0x164] sm:$0xf]
  %v65 = vld [vmem:[%s0 + $0x168] sm:$0xff]
  %v66 = vld [vmem:[%s0 + $0x170] sm:$0xff]
  %v67 = vld [vmem:[%s0 + $0x178] sm:$0xff]
  %v68 = vld [vmem:[%s0 + $0x180] sm:$0xff]
  %v69 = vld [vmem:[%s0 + $0x188] sm:$0xf]
  %v70 = vld [vmem:[%s0 + $0x18c] sm:$0xff]
  %v71 = vld [vmem:[%s0 + $0x194] sm:$0xff]
  %v72 = vld [vmem:[%s0 + $0x19c] sm:$0xff]
  %v73 = vld [vmem:[%s0 + $0x1a4] sm:$0xff]
  %v74 = vld [vmem:[%s0 + $0x1ac] sm:$0xf]
  %v75 = vld [vmem:[%s0 + $0x1b0] sm:$0xff]
  %v76 = vld [vmem:[%s0 + $0x1b8] sm:$0xff]
  %v77 = vld [vmem:[%s0 + $0x1c0] sm:$0xff]
  %v78 = vld [vmem:[%s0 + $0x1c8] sm:$0xff]
  %v79 = vld [vmem:[%s0 + $0x1d0] sm:$0xf]
  %v80 = vld [vmem:[%s0 + $0x1d4] sm:$0xff]
  %v81 = vld [vmem:[%s0 + $0x1dc] sm:$0xff]
  %v82 = vld [vmem:[%s0 + $0x1e4] sm:$0xff]
  %v83 = vld [vmem:[%s0 + $0x1ec] sm:$0xff]
  %v84 = vld [vmem:[%s0 + $0x1f4] sm:$0xf]
  %v85 = vld [vmem:[%s0 + $0x1f8] sm:$0xff]
  %v86 = vld [vmem:[%s0 + $0x200] sm:$0xff]
  %v87 = vld [vmem:[%s0 + $0x208] sm:$0xff]
  %v88 = vld [vmem:[%s0 + $0x210] sm:$0xff]
  %v89 = vld [vmem:[%s0 + $0x218] sm:$0xf]
  %v90 = vld [vmem:[%s0 + $0x21c] sm:$0xff]
  %v91 = vld [vmem:[%s0 + $0x224] sm:$0xff]
  %v92 = vld [vmem:[%s0 + $0x22c] sm:$0xff]
  %v93 = vld [vmem:[%s0 + $0x234] sm:$0xff]
  %v94 = vld [vmem:[%s0 + $0x23c] sm:$0xf]
  %v95 = vld [vmem:[%s0 + $0x240] sm:$0xff]
  %v96 = vld [vmem:[%s0 + $0x248] sm:$0xff]
  %v97 = vld [vmem:[%s0 + $0x250] sm:$0xff]
  %v98 = vld [vmem:[%s0 + $0x258] sm:$0xff]
  %v99 = vld [vmem:[%s0 + $0x260] sm:$0xf]
  %v100 = vld [vmem:[%s0 + $0x264] sm:$0xff]
  %v101 = vld [vmem:[%s0 + $0x26c] sm:$0xff]
  %v102 = vld [vmem:[%s0 + $0x274] sm:$0xff]
  %v103 = vld [vmem:[%s0 + $0x27c] sm:$0xff]
  %v104 = vld [vmem:[%s0 + $0x284] sm:$0xf]
  %v105 = vld [vmem:[%s0 + $0x288] sm:$0xff]
  %v106 = vld [vmem:[%s0 + $0x290] sm:$0xff]
  %v107 = vld [vmem:[%s0 + $0x298] sm:$0xff]
  %v108 = vld [vmem:[%s0 + $0x2a0] sm:$0xff]
  %v109 = vld [vmem:[%s0 + $0x2a8] sm:$0xf]
  %v110 = vld [vmem:[%s0 + $0x2ac] sm:$0xff]
  %v111 = vld [vmem:[%s0 + $0x2b4] sm:$0xff]
  %v112 = vld [vmem:[%s0 + $0x2bc] sm:$0xff]
  %v113 = vld [vmem:[%s0 + $0x2c4] sm:$0xff]
  %v114 = vld [vmem:[%s0 + $0x2cc] sm:$0xf]
  %v115 = vld [vmem:[%s0 + $0x2d0] sm:$0xff]
  %v116 = vld [vmem:[%s0 + $0x2d8] sm:$0xff]
  %v117 = vld [vmem:[%s0 + $0x2e0] sm:$0xff]
  %v118 = vld [vmem:[%s0 + $0x2e8] sm:$0xff]
  %v119 = vld [vmem:[%s0 + $0x2f0] sm:$0xf]
  %v120 = vld [vmem:[%s1] sm:$0xf]
  %v121 = vld [vmem:[%s1 + $0x4] sm:$0xf]
  %v122 = vld [vmem:[%s1 + $0x8] sm:$0xf]
  %v123 = vld [vmem:[%s1 + $0xc] sm:$0xf]
  %v124 = vld [vmem:[%s1 + $0x10] sm:$0xf]
  %v125 = vld [vmem:[%s1 + $0x14] sm:$0xf]
  %v126 = vld [vmem:[%s1 + $0x18] sm:$0xf]
  %v127 = vld [vmem:[%s1 + $0x1c] sm:$0xf]
  %v128 = vld [vmem:[%s1 + $0x20] sm:$0xf]
  %v129 = vld [vmem:[%s1 + $0x24] sm:$0xf]
  %v130 = vld [vmem:[%s1 + $0x28] sm:$0xf]
  %v131 = vld [vmem:[%s1 + $0x2c] sm:$0xf]
  %v132 = vld [vmem:[%s1 + $0x30] sm:$0xf]
  %v133 = vld [vmem:[%s1 + $0x34] sm:$0xf]
  %v134 = vld [vmem:[%s1 + $0x38] sm:$0xf]
  %v135 = vld [vmem:[%s1 + $0x3c] sm:$0xf]
  %v136 = vld [vmem:[%s1 + $0x40] sm:$0xf]
  %v137 = vld [vmem:[%s1 + $0x44] sm:$0xf]
  %v138 = vld [vmem:[%s1 + $0x48] sm:$0xf]
  %v139 = vld [vmem:[%s1 + $0x4c] sm:$0xf]
  %v140 = vld [vmem:[%s1 + $0x50] sm:$0xf]
  %v141 = vld [vmem:[%s1 + $0x54] sm:$0xf]
  %v142 = vld [vmem:[%s1 + $0x58] sm:$0xf]
  %v143 = vld [vmem:[%s1 + $0x5c] sm:$0xf]
  %v144 = vld [vmem:[%s1 + $0x60] sm:$0xf]
  %v145 = vld [vmem:[%s1 + $0x64] sm:$0xf]
  %v146 = vld [vmem:[%s1 + $0x68] sm:$0xf]
  %v147 = vld [vmem:[%s1 + $0x6c] sm:$0xf]
  %v148 = vld [vmem:[%s1 + $0x70] sm:$0xf]
  %v149 = vld [vmem:[%s1 + $0x74] sm:$0xf]
  %v150 = vld [vmem:[%s1 + $0x78] sm:$0xf]
  %v151 = vld [vmem:[%s1 + $0x7c] sm:$0xf]
  %v152 = vld [vmem:[%s1 + $0x80] sm:$0xf]
  %v153 = vld [vmem:[%s1 + $0x84] sm:$0xf]
  %v154 = vld [vmem:[%s1 + $0x88] sm:$0xf]
  %v155 = vld [vmem:[%s1 + $0x8c] sm:$0xf]
  %v156 = vld [vmem:[%s1 + $0x90] sm:$0xf]
  %v157 = vld [vmem:[%s1 + $0x94] sm:$0xf]
  %v158 = vld [vmem:[%s1 + $0x98] sm:$0xf]
  %v159 = vld [vmem:[%s1 + $0x9c] sm:$0xf]
  %v160 = vld [vmem:[%s1 + $0xa0] sm:$0xf]
  %v161 = vld [vmem:[%s1 + $0xa4] sm:$0xf]
  %v162 = vld [vmem:[%s1 + $0xa8] sm:$0xf]
  %v163 = vld [vmem:[%s1 + $0xac] sm:$0xf]
  %v164 = vld [vmem:[%s1 + $0xb0] sm:$0xf]
  %v165 = vld [vmem:[%s1 + $0xb4] sm:$0xf]
  %v166 = vld [vmem:[%s1 + $0xb8] sm:$0xf]
  %v167 = vld [vmem:[%s1 + $0xbc] sm:$0xf]
  %v168 = vld [vmem:[%s1 + $0xc0] sm:$0xf]
  %v169 = vld [vmem:[%s1 + $0xc4] sm:$0xf]
  %v170 = vld [vmem:[%s1 + $0xc8] sm:$0xf]
  %v171 = vld [vmem:[%s1 + $0xcc] sm:$0xf]
  %v172 = vld [vmem:[%s1 + $0xd0] sm:$0xf]
  %v173 = vld [vmem:[%s1 + $0xd4] sm:$0xf]
  %v174 = vld [vmem:[%s1 + $0xd8] sm:$0xf]
  %v175 = vld [vmem:[%s1 + $0xdc] sm:$0xf]
  %v176 = vld [vmem:[%s1 + $0xe0] sm:$0xf]
  %v177 = vld [vmem:[%s1 + $0xe4] sm:$0xf]
  %v178 = vld [vmem:[%s1 + $0xe8] sm:$0xf]
  %v179 = vld [vmem:[%s1 + $0xec] sm:$0xf]
  %v180 = vld [vmem:[%s1 + $0xf0] sm:$0xf]
  %v181 = vld [vmem:[%s1 + $0xf4] sm:$0xf]
  %v182 = vld [vmem:[%s1 + $0xf8] sm:$0xf]
  %v183 = vld [vmem:[%s1 + $0xfc] sm:$0xf]
  %v184 = vld [vmem:[%s1 + $0x100] sm:$0xf]
  %v185 = vld [vmem:[%s1 + $0x104] sm:$0xf]
  %v186 = vld [vmem:[%s1 + $0x108] sm:$0xf]
  %v187 = vld [vmem:[%s1 + $0x10c] sm:$0xf]
  %v188 = vld [vmem:[%s1 + $0x110] sm:$0xf]
  %v189 = vld [vmem:[%s1 + $0x114] sm:$0xf]
  %v190 = vld [vmem:[%s1 + $0x118] sm:$0xf]
  %v191 = vld [vmem:[%s1 + $0x11c] sm:$0xf]
  %v192 = vld [vmem:[%s1 + $0x120] sm:$0xf]
  %v193 = vld [vmem:[%s1 + $0x124] sm:$0xf]
  %v194 = vld [vmem:[%s1 + $0x128] sm:$0xf]
  %v195 = vld [vmem:[%s1 + $0x12c] sm:$0xf]
  %v196 = vld [vmem:[%s1 + $0x130] sm:$0xf]
  %v197 = vld [vmem:[%s1 + $0x134] sm:$0xf]
  %v198 = vld [vmem:[%s1 + $0x138] sm:$0xf]
  %v199 = vld [vmem:[%s1 + $0x13c] sm:$0xf]
  %v200 = vld [vmem:[%s1 + $0x140] sm:$0xf]
  %v201 = vld [vmem:[%s1 + $0x144] sm:$0xf]
  %v202 = vld [vmem:[%s1 + $0x148] sm:$0xf]
  %v203 = vld [vmem:[%s1 + $0x14c] sm:$0xf]
  %v204 = vld [vmem:[%s1 + $0x150] sm:$0xf]
  %v205 = vld [vmem:[%s1 + $0x154] sm:$0xf]
  %v206 = vld [vmem:[%s1 + $0x158] sm:$0xf]
  %v207 = vld [vmem:[%s1 + $0x15c] sm:$0xf]
  %v208 = vld [vmem:[%s1 + $0x160] sm:$0xf]
  %v209 = vld [vmem:[%s1 + $0x164] sm:$0xf]
  %v210 = vld [vmem:[%s1 + $0x168] sm:$0xf]
  %v211 = vld [vmem:[%s1 + $0x16c] sm:$0xf]
  %v212 = vld [vmem:[%s1 + $0x170] sm:$0xf]
  %v213 = vld [vmem:[%s1 + $0x174] sm:$0xf]
  %v214 = vld [vmem:[%s1 + $0x178] sm:$0xf]
  %v215 = vld [vmem:[%s1 + $0x17c] sm:$0xf]
  %v216 = vld [vmem:[%s1 + $0x180] sm:$0xf]
  %v217 = vld [vmem:[%s1 + $0x184] sm:$0xf]
  %v218 = vld [vmem:[%s1 + $0x188] sm:$0xf]
  %v219 = vld [vmem:[%s1 + $0x18c] sm:$0xf]
  %v220 = vld [vmem:[%s1 + $0x190] sm:$0xf]
  %v221 = vld [vmem:[%s1 + $0x194] sm:$0xf]
  %v222 = vld [vmem:[%s1 + $0x198] sm:$0xf]
  %v223 = vld [vmem:[%s1 + $0x19c] sm:$0xf]
  %v224 = vld [vmem:[%s1 + $0x1a0] sm:$0xf]
  %v225 = vld [vmem:[%s1 + $0x1a4] sm:$0xf]
  %v226 = vld [vmem:[%s1 + $0x1a8] sm:$0xf]
  %v227 = vld [vmem:[%s1 + $0x1ac] sm:$0xf]
  %v228 = vld [vmem:[%s1 + $0x1b0] sm:$0xf]
  %v229 = vld [vmem:[%s1 + $0x1b4] sm:$0xf]
  %v230 = vld [vmem:[%s1 + $0x1b8] sm:$0xf]
  %v231 = vld [vmem:[%s1 + $0x1bc] sm:$0xf]
  %v232 = vld [vmem:[%s1 + $0x1c0] sm:$0xf]
  %v233 = vld [vmem:[%s1 + $0x1c4] sm:$0xf]
  %v234 = vld [vmem:[%s1 + $0x1c8] sm:$0xf]
  %v235 = vld [vmem:[%s1 + $0x1cc] sm:$0xf]
  %v236 = vld [vmem:[%s1 + $0x1d0] sm:$0xf]
  %v237 = vld [vmem:[%s1 + $0x1d4] sm:$0xf]
  %v238 = vld [vmem:[%s1 + $0x1d8] sm:$0xf]
  %v239 = vld [vmem:[%s1 + $0x1dc] sm:$0xf]
  %v240 = vld [vmem:[%s1 + $0x1e0] sm:$0xf]
  %v241 = vld [vmem:[%s1 + $0x1e4] sm:$0xf]
  %v242 = vld [vmem:[%s1 + $0x1e8] sm:$0xf]
  %v243 = vld [vmem:[%s1 + $0x1ec] sm:$0xf]
  %v244 = vld [vmem:[%s1 + $0x1f0] sm:$0xf]
  %v245 = vld [vmem:[%s1 + $0x1f4] sm:$0xf]
  %v246 = vld [vmem:[%s1 + $0x1f8] sm:$0xf]
  %v247 = vld [vmem:[%s1 + $0x1fc] sm:$0xf]
  %v248 = vld [vmem:[%s1 + $0x200] sm:$0xf]
  %v249 = vld [vmem:[%s1 + $0x204] sm:$0xf]
  %v250 = vld [vmem:[%s1 + $0x208] sm:$0xf]
  %v251 = vld [vmem:[%s1 + $0x20c] sm:$0xf]
  %v252 = vld [vmem:[%s1 + $0x210] sm:$0xf]
  %v253 = vld [vmem:[%s1 + $0x214] sm:$0xf]
  %v254 = vld [vmem:[%s1 + $0x218] sm:$0xf]
  %v255 = vld [vmem:[%s1 + $0x21c] sm:$0xf]
  %v256 = vld [vmem:[%s1 + $0x220] sm:$0xf]
  %v257 = vld [vmem:[%s1 + $0x224] sm:$0xf]
  %v258 = vld [vmem:[%s1 + $0x228] sm:$0xf]
  %v259 = vld [vmem:[%s1 + $0x22c] sm:$0xf]
  %v260 = vld [vmem:[%s1 + $0x230] sm:$0xf]
  %v261 = vld [vmem:[%s1 + $0x234] sm:$0xf]
  %v262 = vld [vmem:[%s1 + $0x238] sm:$0xf]
  %v263 = vld [vmem:[%s1 + $0x23c] sm:$0xf]
  %v264 = vld [vmem:[%s2] sm:$0x1]
  %v266 = vlaneseq
  %v267 = vshrl.u32 %v266, 7
  %v268 = vsub.s32 0, %v267
  %v269 = vrot.slane %v264, %v268
  %v376 = vunpack.c.l.b16 %v15
  %v377 = vunpack.c.h.b16 %v15
  %v378 = vunpack.c.l.b16 %v16
  %v379 = vunpack.c.h.b16 %v16
  %v380 = vunpack.c.l.b16 %v17
  %v381 = vunpack.c.h.b16 %v17
  %v382 = vunpack.c.l.b16 %v18
  %v383 = vunpack.c.h.b16 %v18
  %v384 = vunpack.c.l.b16 %v19
  %v385 = vunpack.c.l.b16 %v20
  %v386 = vunpack.c.h.b16 %v20
  %v387 = vunpack.c.l.b16 %v21
  %v388 = vunpack.c.h.b16 %v21
  %v389 = vunpack.c.l.b16 %v22
  %v390 = vunpack.c.h.b16 %v22
  %v391 = vunpack.c.l.b16 %v23
  %v392 = vunpack.c.h.b16 %v23
  %v393 = vunpack.c.l.b16 %v24
  %v394 = vunpack.c.l.b16 %v25
  %v395 = vunpack.c.h.b16 %v25
  %v396 = vunpack.c.l.b16 %v26
  %v397 = vunpack.c.h.b16 %v26
  %v398 = vunpack.c.l.b16 %v27
  %v399 = vunpack.c.h.b16 %v27
  %v400 = vunpack.c.l.b16 %v28
  %v401 = vunpack.c.h.b16 %v28
  %v402 = vunpack.c.l.b16 %v29
  %v403 = vunpack.c.l.b16 %v30
  %v404 = vunpack.c.h.b16 %v30
  %v405 = vunpack.c.l.b16 %v31
  %v406 = vunpack.c.h.b16 %v31
  %v407 = vunpack.c.l.b16 %v32
  %v408 = vunpack.c.h.b16 %v32
  %v409 = vunpack.c.l.b16 %v33
  %v410 = vunpack.c.h.b16 %v33
  %v411 = vunpack.c.l.b16 %v34
  %v412 = vunpack.c.l.b16 %v35
  %v413 = vunpack.c.h.b16 %v35
  %v414 = vunpack.c.l.b16 %v36
  %v415 = vunpack.c.h.b16 %v36
  %v416 = vunpack.c.l.b16 %v37
  %v417 = vunpack.c.h.b16 %v37
  %v418 = vunpack.c.l.b16 %v38
  %v419 = vunpack.c.h.b16 %v38
  %v420 = vunpack.c.l.b16 %v39
  %v421 = vunpack.c.l.b16 %v40
  %v422 = vunpack.c.h.b16 %v40
  %v423 = vunpack.c.l.b16 %v41
  %v424 = vunpack.c.h.b16 %v41
  %v425 = vunpack.c.l.b16 %v42
  %v426 = vunpack.c.h.b16 %v42
  %v427 = vunpack.c.l.b16 %v43
  %v428 = vunpack.c.h.b16 %v43
  %v429 = vunpack.c.l.b16 %v44
  %v430 = vunpack.c.l.b16 %v45
  %v431 = vunpack.c.h.b16 %v45
  %v432 = vunpack.c.l.b16 %v46
  %v433 = vunpack.c.h.b16 %v46
  %v434 = vunpack.c.l.b16 %v47
  %v435 = vunpack.c.h.b16 %v47
  %v436 = vunpack.c.l.b16 %v48
  %v437 = vunpack.c.h.b16 %v48
  %v438 = vunpack.c.l.b16 %v49
  %v439 = vunpack.c.l.b16 %v50
  %v440 = vunpack.c.h.b16 %v50
  %v441 = vunpack.c.l.b16 %v51
  %v442 = vunpack.c.h.b16 %v51
  %v443 = vunpack.c.l.b16 %v52
  %v444 = vunpack.c.h.b16 %v52
  %v445 = vunpack.c.l.b16 %v53
  %v446 = vunpack.c.h.b16 %v53
  %v447 = vunpack.c.l.b16 %v54
  %v448 = vunpack.c.l.b16 %v55
  %v449 = vunpack.c.h.b16 %v55
  %v450 = vunpack.c.l.b16 %v56
  %v451 = vunpack.c.h.b16 %v56
  %v452 = vunpack.c.l.b16 %v57
  %v453 = vunpack.c.h.b16 %v57
  %v454 = vunpack.c.l.b16 %v58
  %v455 = vunpack.c.h.b16 %v58
  %v456 = vunpack.c.l.b16 %v59
  %v457 = vunpack.c.l.b16 %v60
  %v458 = vunpack.c.h.b16 %v60
  %v459 = vunpack.c.l.b16 %v61
  %v460 = vunpack.c.h.b16 %v61
  %v461 = vunpack.c.l.b16 %v62
  %v462 = vunpack.c.h.b16 %v62
  %v463 = vunpack.c.l.b16 %v63
  %v464 = vunpack.c.h.b16 %v63
  %v465 = vunpack.c.l.b16 %v64
  %v466 = vunpack.c.l.b16 %v65
  %v467 = vunpack.c.h.b16 %v65
  %v468 = vunpack.c.l.b16 %v66
  %v469 = vunpack.c.h.b16 %v66
  %v470 = vunpack.c.l.b16 %v67
  %v471 = vunpack.c.h.b16 %v67
  %v472 = vunpack.c.l.b16 %v68
  %v473 = vunpack.c.h.b16 %v68
  %v474 = vunpack.c.l.b16 %v69
  %v475 = vunpack.c.l.b16 %v70
  %v476 = vunpack.c.h.b16 %v70
  %v477 = vunpack.c.l.b16 %v71
  %v478 = vunpack.c.h.b16 %v71
  %v479 = vunpack.c.l.b16 %v72
  %v480 = vunpack.c.h.b16 %v72
  %v481 = vunpack.c.l.b16 %v73
  %v482 = vunpack.c.h.b16 %v73
  %v483 = vunpack.c.l.b16 %v74
  %v484 = vunpack.c.l.b16 %v75
  %v485 = vunpack.c.h.b16 %v75
  %v486 = vunpack.c.l.b16 %v76
  %v487 = vunpack.c.h.b16 %v76
  %v488 = vunpack.c.l.b16 %v77
  %v489 = vunpack.c.h.b16 %v77
  %v490 = vunpack.c.l.b16 %v78
  %v491 = vunpack.c.h.b16 %v78
  %v492 = vunpack.c.l.b16 %v79
  %v493 = vunpack.c.l.b16 %v80
  %v494 = vunpack.c.h.b16 %v80
  %v495 = vunpack.c.l.b16 %v81
  %v496 = vunpack.c.h.b16 %v81
  %v497 = vunpack.c.l.b16 %v82
  %v498 = vunpack.c.h.b16 %v82
  %v499 = vunpack.c.l.b16 %v83
  %v500 = vunpack.c.h.b16 %v83
  %v501 = vunpack.c.l.b16 %v84
  %v502 = vunpack.c.l.b16 %v85
  %v503 = vunpack.c.h.b16 %v85
  %v504 = vunpack.c.l.b16 %v86
  %v505 = vunpack.c.h.b16 %v86
  %v506 = vunpack.c.l.b16 %v87
  %v507 = vunpack.c.h.b16 %v87
  %v508 = vunpack.c.l.b16 %v88
  %v509 = vunpack.c.h.b16 %v88
  %v510 = vunpack.c.l.b16 %v89
  %v511 = vunpack.c.l.b16 %v90
  %v512 = vunpack.c.h.b16 %v90
  %v513 = vunpack.c.l.b16 %v91
  %v514 = vunpack.c.h.b16 %v91
  %v515 = vunpack.c.l.b16 %v92
  %v516 = vunpack.c.h.b16 %v92
  %v517 = vunpack.c.l.b16 %v93
  %v518 = vunpack.c.h.b16 %v93
  %v519 = vunpack.c.l.b16 %v94
  %v520 = vunpack.c.l.b16 %v95
  %v521 = vunpack.c.h.b16 %v95
  %v522 = vunpack.c.l.b16 %v96
  %v523 = vunpack.c.h.b16 %v96
  %v524 = vunpack.c.l.b16 %v97
  %v525 = vunpack.c.h.b16 %v97
  %v526 = vunpack.c.l.b16 %v98
  %v527 = vunpack.c.h.b16 %v98
  %v528 = vunpack.c.l.b16 %v99
  %v529 = vunpack.c.l.b16 %v100
  %v530 = vunpack.c.h.b16 %v100
  %v531 = vunpack.c.l.b16 %v101
  %v532 = vunpack.c.h.b16 %v101
  %v533 = vunpack.c.l.b16 %v102
  %v534 = vunpack.c.h.b16 %v102
  %v535 = vunpack.c.l.b16 %v103
  %v536 = vunpack.c.h.b16 %v103
  %v537 = vunpack.c.l.b16 %v104
  %v538 = vunpack.c.l.b16 %v105
  %v539 = vunpack.c.h.b16 %v105
  %v540 = vunpack.c.l.b16 %v106
  %v541 = vunpack.c.h.b16 %v106
  %v542 = vunpack.c.l.b16 %v107
  %v543 = vunpack.c.h.b16 %v107
  %v544 = vunpack.c.l.b16 %v108
  %v545 = vunpack.c.h.b16 %v108
  %v546 = vunpack.c.l.b16 %v109
  %v547 = vunpack.c.l.b16 %v110
  %v548 = vunpack.c.h.b16 %v110
  %v549 = vunpack.c.l.b16 %v111
  %v550 = vunpack.c.h.b16 %v111
  %v551 = vunpack.c.l.b16 %v112
  %v552 = vunpack.c.h.b16 %v112
  %v553 = vunpack.c.l.b16 %v113
  %v554 = vunpack.c.h.b16 %v113
  %v555 = vunpack.c.l.b16 %v114
  %v556 = vunpack.c.l.b16 %v115
  %v557 = vunpack.c.h.b16 %v115
  %v558 = vunpack.c.l.b16 %v116
  %v559 = vunpack.c.h.b16 %v116
  %v560 = vunpack.c.l.b16 %v117
  %v561 = vunpack.c.h.b16 %v117
  %v562 = vunpack.c.l.b16 %v118
  %v563 = vunpack.c.h.b16 %v118
  %v564 = vunpack.c.l.b16 %v119
  %v565 = vpack.c.b16 %v385, %v376
  %v566 = vpack.c.b16 %v386, %v377
  %v567 = vpack.c.b16 %v387, %v378
  %v568 = vpack.c.b16 %v388, %v379
  %v569 = vpack.c.b16 %v389, %v380
  %v570 = vpack.c.b16 %v390, %v381
  %v571 = vpack.c.b16 %v391, %v382
  %v572 = vpack.c.b16 %v392, %v383
  %v573 = vpack.c.b16 %v393, %v384
  %v574 = vpack.c.b16 %v403, %v394
  %v575 = vpack.c.b16 %v404, %v395
  %v576 = vpack.c.b16 %v405, %v396
  %v577 = vpack.c.b16 %v406, %v397
  %v578 = vpack.c.b16 %v407, %v398
  %v579 = vpack.c.b16 %v408, %v399
  %v580 = vpack.c.b16 %v409, %v400
  %v581 = vpack.c.b16 %v410, %v401
  %v582 = vpack.c.b16 %v411, %v402
  %v583 = vpack.c.b16 %v421, %v412
  %v584 = vpack.c.b16 %v422, %v413
  %v585 = vpack.c.b16 %v423, %v414
  %v586 = vpack.c.b16 %v424, %v415
  %v587 = vpack.c.b16 %v425, %v416
  %v588 = vpack.c.b16 %v426, %v417
  %v589 = vpack.c.b16 %v427, %v418
  %v590 = vpack.c.b16 %v428, %v419
  %v591 = vpack.c.b16 %v429, %v420
  %v592 = vpack.c.b16 %v439, %v430
  %v593 = vpack.c.b16 %v440, %v431
  %v594 = vpack.c.b16 %v441, %v432
  %v595 = vpack.c.b16 %v442, %v433
  %v596 = vpack.c.b16 %v443, %v434
  %v597 = vpack.c.b16 %v444, %v435
  %v598 = vpack.c.b16 %v445, %v436
  %v599 = vpack.c.b16 %v446, %v437
  %v600 = vpack.c.b16 %v447, %v438
  %v601 = vpack.c.b16 %v457, %v448
  %v602 = vpack.c.b16 %v458, %v449
  %v603 = vpack.c.b16 %v459, %v450
  %v604 = vpack.c.b16 %v460, %v451
  %v605 = vpack.c.b16 %v461, %v452
  %v606 = vpack.c.b16 %v462, %v453
  %v607 = vpack.c.b16 %v463, %v454
  %v608 = vpack.c.b16 %v464, %v455
  %v609 = vpack.c.b16 %v465, %v456
  %v610 = vpack.c.b16 %v475, %v466
  %v611 = vpack.c.b16 %v476, %v467
  %v612 = vpack.c.b16 %v477, %v468
  %v613 = vpack.c.b16 %v478, %v469
  %v614 = vpack.c.b16 %v479, %v470
  %v615 = vpack.c.b16 %v480, %v471
  %v616 = vpack.c.b16 %v481, %v472
  %v617 = vpack.c.b16 %v482, %v473
  %v618 = vpack.c.b16 %v483, %v474
  %v619 = vpack.c.b16 %v493, %v484
  %v620 = vpack.c.b16 %v494, %v485
  %v621 = vpack.c.b16 %v495, %v486
  %v622 = vpack.c.b16 %v496, %v487
  %v623 = vpack.c.b16 %v497, %v488
  %v624 = vpack.c.b16 %v498, %v489
  %v625 = vpack.c.b16 %v499, %v490
  %v626 = vpack.c.b16 %v500, %v491
  %v627 = vpack.c.b16 %v501, %v492
  %v628 = vpack.c.b16 %v511, %v502
  %v629 = vpack.c.b16 %v512, %v503
  %v630 = vpack.c.b16 %v513, %v504
  %v631 = vpack.c.b16 %v514, %v505
  %v632 = vpack.c.b16 %v515, %v506
  %v633 = vpack.c.b16 %v516, %v507
  %v634 = vpack.c.b16 %v517, %v508
  %v635 = vpack.c.b16 %v518, %v509
  %v636 = vpack.c.b16 %v519, %v510
  %v637 = vpack.c.b16 %v529, %v520
  %v638 = vpack.c.b16 %v530, %v521
  %v639 = vpack.c.b16 %v531, %v522
  %v640 = vpack.c.b16 %v532, %v523
  %v641 = vpack.c.b16 %v533, %v524
  %v642 = vpack.c.b16 %v534, %v525
  %v643 = vpack.c.b16 %v535, %v526
  %v644 = vpack.c.b16 %v536, %v527
  %v645 = vpack.c.b16 %v537, %v528
  %v646 = vpack.c.b16 %v547, %v538
  %v647 = vpack.c.b16 %v548, %v539
  %v648 = vpack.c.b16 %v549, %v540
  %v649 = vpack.c.b16 %v550, %v541
  %v650 = vpack.c.b16 %v551, %v542
  %v651 = vpack.c.b16 %v552, %v543
  %v652 = vpack.c.b16 %v553, %v544
  %v653 = vpack.c.b16 %v554, %v545
  %v654 = vpack.c.b16 %v555, %v546
  %v655 = vpack.c.b16 %v556, %v556
  %v656 = vpack.c.b16 %v557, %v557
  %v657 = vpack.c.b16 %v558, %v558
  %v658 = vpack.c.b16 %v559, %v559
  %v659 = vpack.c.b16 %v560, %v560
  %v660 = vpack.c.b16 %v561, %v561
  %v661 = vpack.c.b16 %v562, %v562
  %v662 = vpack.c.b16 %v563, %v563
  %v663 = vpack.c.b16 %v564, %v564
  %v907 = vunpack.c.l.b16 %v120
  %v908 = vunpack.c.l.b16 %v121
  %v909 = vunpack.c.l.b16 %v122
  %v910 = vunpack.c.l.b16 %v123
  %v911 = vunpack.c.l.b16 %v124
  %v912 = vunpack.c.l.b16 %v125
  %v913 = vunpack.c.l.b16 %v126
  %v914 = vunpack.c.l.b16 %v127
  %v915 = vunpack.c.l.b16 %v128
  %v916 = vunpack.c.l.b16 %v129
  %v917 = vunpack.c.l.b16 %v130
  %v918 = vunpack.c.l.b16 %v131
  %v919 = vunpack.c.l.b16 %v132
  %v920 = vunpack.c.l.b16 %v133
  %v921 = vunpack.c.l.b16 %v134
  %v922 = vunpack.c.l.b16 %v135
  %v923 = vunpack.c.l.b16 %v136
  %v924 = vunpack.c.l.b16 %v137
  %v925 = vunpack.c.l.b16 %v138
  %v926 = vunpack.c.l.b16 %v139
  %v927 = vunpack.c.l.b16 %v140
  %v928 = vunpack.c.l.b16 %v141
  %v929 = vunpack.c.l.b16 %v142
  %v930 = vunpack.c.l.b16 %v143
  %v931 = vunpack.c.l.b16 %v144
  %v932 = vunpack.c.l.b16 %v145
  %v933 = vunpack.c.l.b16 %v146
  %v934 = vunpack.c.l.b16 %v147
  %v935 = vunpack.c.l.b16 %v148
  %v936 = vunpack.c.l.b16 %v149
  %v937 = vunpack.c.l.b16 %v150
  %v938 = vunpack.c.l.b16 %v151
  %v939 = vunpack.c.l.b16 %v152
  %v940 = vunpack.c.l.b16 %v153
  %v941 = vunpack.c.l.b16 %v154
  %v942 = vunpack.c.l.b16 %v155
  %v943 = vunpack.c.l.b16 %v156
  %v944 = vunpack.c.l.b16 %v157
  %v945 = vunpack.c.l.b16 %v158
  %v946 = vunpack.c.l.b16 %v159
  %v947 = vunpack.c.l.b16 %v160
  %v948 = vunpack.c.l.b16 %v161
  %v949 = vunpack.c.l.b16 %v162
  %v950 = vunpack.c.l.b16 %v163
  %v951 = vunpack.c.l.b16 %v164
  %v952 = vunpack.c.l.b16 %v165
  %v953 = vunpack.c.l.b16 %v166
  %v954 = vunpack.c.l.b16 %v167
  %v955 = vunpack.c.l.b16 %v168
  %v956 = vunpack.c.l.b16 %v169
  %v957 = vunpack.c.l.b16 %v170
  %v958 = vunpack.c.l.b16 %v171
  %v959 = vunpack.c.l.b16 %v172
  %v960 = vunpack.c.l.b16 %v173
  %v961 = vunpack.c.l.b16 %v174
  %v962 = vunpack.c.l.b16 %v175
  %v963 = vunpack.c.l.b16 %v176
  %v964 = vunpack.c.l.b16 %v177
  %v965 = vunpack.c.l.b16 %v178
  %v966 = vunpack.c.l.b16 %v179
  %v967 = vunpack.c.l.b16 %v180
  %v968 = vunpack.c.l.b16 %v181
  %v969 = vunpack.c.l.b16 %v182
  %v970 = vunpack.c.l.b16 %v183
  %v971 = vunpack.c.l.b16 %v184
  %v972 = vunpack.c.l.b16 %v185
  %v973 = vunpack.c.l.b16 %v186
  %v974 = vunpack.c.l.b16 %v187
  %v975 = vunpack.c.l.b16 %v188
  %v976 = vunpack.c.l.b16 %v189
  %v977 = vunpack.c.l.b16 %v190
  %v978 = vunpack.c.l.b16 %v191
  %v979 = vunpack.c.l.b16 %v192
  %v980 = vunpack.c.l.b16 %v193
  %v981 = vunpack.c.l.b16 %v194
  %v982 = vunpack.c.l.b16 %v195
  %v983 = vunpack.c.l.b16 %v196
  %v984 = vunpack.c.l.b16 %v197
  %v985 = vunpack.c.l.b16 %v198
  %v986 = vunpack.c.l.b16 %v199
  %v987 = vunpack.c.l.b16 %v200
  %v988 = vunpack.c.l.b16 %v201
  %v989 = vunpack.c.l.b16 %v202
  %v990 = vunpack.c.l.b16 %v203
  %v991 = vunpack.c.l.b16 %v204
  %v992 = vunpack.c.l.b16 %v205
  %v993 = vunpack.c.l.b16 %v206
  %v994 = vunpack.c.l.b16 %v207
  %v995 = vunpack.c.l.b16 %v208
  %v996 = vunpack.c.l.b16 %v209
  %v997 = vunpack.c.l.b16 %v210
  %v998 = vunpack.c.l.b16 %v211
  %v999 = vunpack.c.l.b16 %v212
  %v1000 = vunpack.c.l.b16 %v213
  %v1001 = vunpack.c.l.b16 %v214
  %v1002 = vunpack.c.l.b16 %v215
  %v1003 = vunpack.c.l.b16 %v216
  %v1004 = vunpack.c.l.b16 %v217
  %v1005 = vunpack.c.l.b16 %v218
  %v1006 = vunpack.c.l.b16 %v219
  %v1007 = vunpack.c.l.b16 %v220
  %v1008 = vunpack.c.l.b16 %v221
  %v1009 = vunpack.c.l.b16 %v222
  %v1010 = vunpack.c.l.b16 %v223
  %v1011 = vunpack.c.l.b16 %v224
  %v1012 = vunpack.c.l.b16 %v225
  %v1013 = vunpack.c.l.b16 %v226
  %v1014 = vunpack.c.l.b16 %v227
  %v1015 = vunpack.c.l.b16 %v228
  %v1016 = vunpack.c.l.b16 %v229
  %v1017 = vunpack.c.l.b16 %v230
  %v1018 = vunpack.c.l.b16 %v231
  %v1019 = vunpack.c.l.b16 %v232
  %v1020 = vunpack.c.l.b16 %v233
  %v1021 = vunpack.c.l.b16 %v234
  %v1022 = vunpack.c.l.b16 %v235
  %v1023 = vunpack.c.l.b16 %v236
  %v1024 = vunpack.c.l.b16 %v237
  %v1025 = vunpack.c.l.b16 %v238
  %v1026 = vunpack.c.l.b16 %v239
  %v1027 = vunpack.c.l.b16 %v240
  %v1028 = vunpack.c.l.b16 %v241
  %v1029 = vunpack.c.l.b16 %v242
  %v1030 = vunpack.c.l.b16 %v243
  %v1031 = vunpack.c.l.b16 %v244
  %v1032 = vunpack.c.l.b16 %v245
  %v1033 = vunpack.c.l.b16 %v246
  %v1034 = vunpack.c.l.b16 %v247
  %v1035 = vunpack.c.l.b16 %v248
  %v1036 = vunpack.c.l.b16 %v249
  %v1037 = vunpack.c.l.b16 %v250
  %v1038 = vunpack.c.l.b16 %v251
  %v1039 = vunpack.c.l.b16 %v252
  %v1040 = vunpack.c.l.b16 %v253
  %v1041 = vunpack.c.l.b16 %v254
  %v1042 = vunpack.c.l.b16 %v255
  %v1043 = vunpack.c.l.b16 %v256
  %v1044 = vunpack.c.l.b16 %v257
  %v1045 = vunpack.c.l.b16 %v258
  %v1046 = vunpack.c.l.b16 %v259
  %v1047 = vunpack.c.l.b16 %v260
  %v1048 = vunpack.c.l.b16 %v261
  %v1049 = vunpack.c.l.b16 %v262
  %v1050 = vunpack.c.l.b16 %v263
  %v1051 = vpack.c.b16 %v908, %v907
  %v1052 = vpack.c.b16 %v910, %v909
  %v1053 = vpack.c.b16 %v912, %v911
  %v1054 = vpack.c.b16 %v914, %v913
  %v1055 = vpack.c.b16 %v916, %v915
  %v1056 = vpack.c.b16 %v918, %v917
  %v1057 = vpack.c.b16 %v920, %v919
  %v1058 = vpack.c.b16 %v922, %v921
  %v1059 = vpack.c.b16 %v924, %v923
  %v1060 = vpack.c.b16 %v926, %v925
  %v1061 = vpack.c.b16 %v928, %v927
  %v1062 = vpack.c.b16 %v930, %v929
  %v1063 = vpack.c.b16 %v932, %v931
  %v1064 = vpack.c.b16 %v934, %v933
  %v1065 = vpack.c.b16 %v936, %v935
  %v1066 = vpack.c.b16 %v938, %v937
  %v1067 = vpack.c.b16 %v940, %v939
  %v1068 = vpack.c.b16 %v942, %v941
  %v1069 = vpack.c.b16 %v944, %v943
  %v1070 = vpack.c.b16 %v946, %v945
  %v1071 = vpack.c.b16 %v948, %v947
  %v1072 = vpack.c.b16 %v950, %v949
  %v1073 = vpack.c.b16 %v952, %v951
  %v1074 = vpack.c.b16 %v954, %v953
  %v1075 = vpack.c.b16 %v956, %v955
  %v1076 = vpack.c.b16 %v958, %v957
  %v1077 = vpack.c.b16 %v960, %v959
  %v1078 = vpack.c.b16 %v962, %v961
  %v1079 = vpack.c.b16 %v964, %v963
  %v1080 = vpack.c.b16 %v966, %v965
  %v1081 = vpack.c.b16 %v968, %v967
  %v1082 = vpack.c.b16 %v970, %v969
  %v1083 = vpack.c.b16 %v972, %v971
  %v1084 = vpack.c.b16 %v974, %v973
  %v1085 = vpack.c.b16 %v976, %v975
  %v1086 = vpack.c.b16 %v978, %v977
  %v1087 = vpack.c.b16 %v980, %v979
  %v1088 = vpack.c.b16 %v982, %v981
  %v1089 = vpack.c.b16 %v984, %v983
  %v1090 = vpack.c.b16 %v986, %v985
  %v1091 = vpack.c.b16 %v988, %v987
  %v1092 = vpack.c.b16 %v990, %v989
  %v1093 = vpack.c.b16 %v992, %v991
  %v1094 = vpack.c.b16 %v994, %v993
  %v1095 = vpack.c.b16 %v996, %v995
  %v1096 = vpack.c.b16 %v998, %v997
  %v1097 = vpack.c.b16 %v1000, %v999
  %v1098 = vpack.c.b16 %v1002, %v1001
  %v1099 = vpack.c.b16 %v1004, %v1003
  %v1100 = vpack.c.b16 %v1006, %v1005
  %v1101 = vpack.c.b16 %v1008, %v1007
  %v1102 = vpack.c.b16 %v1010, %v1009
  %v1103 = vpack.c.b16 %v1012, %v1011
  %v1104 = vpack.c.b16 %v1014, %v1013
  %v1105 = vpack.c.b16 %v1016, %v1015
  %v1106 = vpack.c.b16 %v1018, %v1017
  %v1107 = vpack.c.b16 %v1020, %v1019
  %v1108 = vpack.c.b16 %v1022, %v1021
  %v1109 = vpack.c.b16 %v1024, %v1023
  %v1110 = vpack.c.b16 %v1026, %v1025
  %v1111 = vpack.c.b16 %v1028, %v1027
  %v1112 = vpack.c.b16 %v1030, %v1029
  %v1113 = vpack.c.b16 %v1032, %v1031
  %v1114 = vpack.c.b16 %v1034, %v1033
  %v1115 = vpack.c.b16 %v1036, %v1035
  %v1116 = vpack.c.b16 %v1038, %v1037
  %v1117 = vpack.c.b16 %v1040, %v1039
  %v1118 = vpack.c.b16 %v1042, %v1041
  %v1119 = vpack.c.b16 %v1044, %v1043
  %v1120 = vpack.c.b16 %v1046, %v1045
  %v1121 = vpack.c.b16 %v1048, %v1047
  %v1122 = vpack.c.b16 %v1050, %v1049
  %1195 = vmatprep.subr.bf16.mxu0 0
  %1196 = vmatpush1.bf16.msra.mxu0 %v1051
  %1197 = vmatprep.subr.bf16.mxu0 0
  %1198 = vmatpush1.bf16.msra.mxu0 %v1052
  %1199 = vmatprep.subr.bf16.mxu0 0
  %1200 = vmatpush1.bf16.msra.mxu0 %v1053
  %1201 = vmatprep.subr.bf16.mxu0 0
  %1202 = vmatpush1.bf16.msra.mxu0 %v1054
  %1203 = vmatprep.subr.bf16.mxu0 0
  %1204 = vmatpush1.bf16.msra.mxu0 %v1055
  %1205 = vmatprep.subr.bf16.mxu0 0
  %1206 = vmatpush1.bf16.msra.mxu0 %v1056
  %1207 = vmatprep.subr.bf16.mxu0 0
  %1208 = vmatpush1.bf16.msra.mxu0 %v1057
  %1209 = vmatprep.subr.bf16.mxu0 0
  %1210 = vmatpush1.bf16.msra.mxu0 %v1058
  %1211 = vmatprep.subr.bf16.mxu0 0
  %1212 = vmatpush1.bf16.msra.mxu0 %v1059
  %1213 = vmatprep.subr.bf16.mxu0 0
  %1214 = vmatpush1.bf16.msra.mxu0 %v1060
  %1215 = vmatprep.subr.bf16.mxu0 0
  %1216 = vmatpush1.bf16.msra.mxu0 %v1061
  %1217 = vmatprep.subr.bf16.mxu0 0
  %1218 = vmatpush1.bf16.msra.mxu0 %v1062
  %1219 = vmatprep.subr.bf16.mxu0 0
  %1220 = vmatpush1.bf16.msra.mxu0 %v1063
  %1221 = vmatprep.subr.bf16.mxu0 0
  %1222 = vmatpush1.bf16.msra.mxu0 %v1064
  %1223 = vmatprep.subr.bf16.mxu0 0
  %1224 = vmatpush1.bf16.msra.mxu0 %v1065
  %1225 = vmatprep.subr.bf16.mxu0 0
  %1226 = vmatpush1.bf16.msra.mxu0 %v1066
  %1227 = vmatprep.mubr.bf16.mxu0 %v566
  %1228 = vmatmul.mubr.bf16.gmra.mrb[0].mxu0 %v565
  %v1229 = vpop.f32.mrb[0].mxu0
  %v1230 = vadd.f32 %v269, %v1229
  %v1231 = vpop.f32.mrb[0].mxu0
  %v1232 = vpop.f32.mrb[0].mxu0
  %v1233 = vadd.f32 %v269, %v1232
  %v1234 = vpop.f32.mrb[0].mxu0
  %1235 = vmatprep.mubr.bf16.mxu0 %v575
  %1236 = vmatmul.mubr.bf16.gmra.mrb[0].mxu0 %v574
  %v1237 = vpop.f32.mrb[0].mxu0
  %v1238 = vadd.f32 %v269, %v1237
  %v1239 = vpop.f32.mrb[0].mxu0
  %v1240 = vpop.f32.mrb[0].mxu0
  %v1241 = vadd.f32 %v269, %v1240
  %v1242 = vpop.f32.mrb[0].mxu0
  %1243 = vmatprep.mubr.bf16.mxu0 %v584
  %1244 = vmatmul.mubr.bf16.gmra.mrb[0].mxu0 %v583
  %v1245 = vpop.f32.mrb[0].mxu0
  %v1246 = vadd.f32 %v269, %v1245
  %v1247 = vpop.f32.mrb[0].mxu0
  %v1248 = vpop.f32.mrb[0].mxu0
  %v1249 = vadd.f32 %v269, %v1248
  %v1250 = vpop.f32.mrb[0].mxu0
  %1251 = vmatprep.mubr.bf16.mxu0 %v593
  %1252 = vmatmul.mubr.bf16.gmra.mrb[0].mxu0 %v592
  %v1253 = vpop.f32.mrb[0].mxu0
  %v1254 = vadd.f32 %v269, %v1253
  %v1255 = vpop.f32.mrb[0].mxu0
  %v1256 = vpop.f32.mrb[0].mxu0
  %v1257 = vadd.f32 %v269, %v1256
  %v1258 = vpop.f32.mrb[0].mxu0
  %1259 = vmatprep.mubr.bf16.mxu0 %v602
  %1260 = vmatmul.mubr.bf16.gmra.mrb[0].mxu0 %v601
  %v1261 = vpop.f32.mrb[0].mxu0
  %v1262 = vadd.f32 %v269, %v1261
  %v1263 = vpop.f32.mrb[0].mxu0
  %v1264 = vpop.f32.mrb[0].mxu0
  %v1265 = vadd.f32 %v269, %v1264
  %v1266 = vpop.f32.mrb[0].mxu0
  %1267 = vmatprep.mubr.bf16.mxu0 %v611
  %1268 = vmatmul.mubr.bf16.gmra.mrb[0].mxu0 %v610
  %v1269 = vpop.f32.mrb[0].mxu0
  %v1270 = vadd.f32 %v269, %v1269
  %v1271 = vpop.f32.mrb[0].mxu0
  %v1272 = vpop.f32.mrb[0].mxu0
  %v1273 = vadd.f32 %v269, %v1272
  %v1274 = vpop.f32.mrb[0].mxu0
  %1275 = vmatprep.mubr.bf16.mxu0 %v620
  %1276 = vmatmul.mubr.bf16.gmra.mrb[0].mxu0 %v619
  %v1277 = vpop.f32.mrb[0].mxu0
  %v1278 = vadd.f32 %v269, %v1277
  %v1279 = vpop.f32.mrb[0].mxu0
  %v1280 = vpop.f32.mrb[0].mxu0
  %v1281 = vadd.f32 %v269, %v1280
  %v1282 = vpop.f32.mrb[0].mxu0
  %1283 = vmatprep.mubr.bf16.mxu0 %v629
  %1284 = vmatmul.mubr.bf16.gmra.mrb[0].mxu0 %v628
  %v1285 = vpop.f32.mrb[0].mxu0
  %v1286 = vadd.f32 %v269, %v1285
  %v1287 = vpop.f32.mrb[0].mxu0
  %v1288 = vpop.f32.mrb[0].mxu0
  %v1289 = vadd.f32 %v269, %v1288
  %v1290 = vpop.f32.mrb[0].mxu0
  %1291 = vmatprep.mubr.bf16.mxu0 %v638
  %1292 = vmatmul.mubr.bf16.gmra.mrb[0].mxu0 %v637
  %v1293 = vpop.f32.mrb[0].mxu0
  %v1294 = vadd.f32 %v269, %v1293
  %v1295 = vpop.f32.mrb[0].mxu0
  %v1296 = vpop.f32.mrb[0].mxu0
  %v1297 = vadd.f32 %v269, %v1296
  %v1298 = vpop.f32.mrb[0].mxu0
  %1299 = vmatprep.mubr.bf16.mxu0 %v647
  %1300 = vmatmul.mubr.bf16.gmra.mrb[0].mxu0 %v646
  %v1301 = vpop.f32.mrb[0].mxu0
  %v1302 = vadd.f32 %v269, %v1301
  %v1303 = vpop.f32.mrb[0].mxu0
  %v1304 = vpop.f32.mrb[0].mxu0
  %v1305 = vadd.f32 %v269, %v1304
  %v1306 = vpop.f32.mrb[0].mxu0
  %1307 = vmatprep.mubr.bf16.mxu0 %v656
  %1308 = vmatmul.mubr.bf16.gmra.mrb[0].mxu0 %v655
  %v1309 = vpop.f32.mrb[0].mxu0
  %v1310 = vadd.f32 %v269, %v1309
  %v1311 = vpop.f32.mrb[0].mxu0
  %v1312 = vpop.f32.mrb[0].mxu0
  %v1313 = vpop.f32.mrb[0].mxu0
  %1314 = vdwg.mxu0
  %1315 = vmatprep.subr.bf16.mxu0 0
  %1316 = vmatpush1.bf16.msra.mxu0 %v1067
  %1317 = vmatprep.subr.bf16.mxu0 0
  %1318 = vmatpush1.bf16.msra.mxu0 %v1068
  %1319 = vmatprep.subr.bf16.mxu0 0
  %1320 = vmatpush1.bf16.msra.mxu0 %v1069
  %1321 = vmatprep.subr.bf16.mxu0 0
  %1322 = vmatpush1.bf16.msra.mxu0 %v1070
  %1323 = vmatprep.subr.bf16.mxu0 0
  %1324 = vmatpush1.bf16.msra.mxu0 %v1071
  %1325 = vmatprep.subr.bf16.mxu0 0
  %1326 = vmatpush1.bf16.msra.mxu0 %v1072
  %1327 = vmatprep.subr.bf16.mxu0 0
  %1328 = vmatpush1.bf16.msra.mxu0 %v1073
  %1329 = vmatprep.subr.bf16.mxu0 0
  %1330 = vmatpush1.bf16.msra.mxu0 %v1074
  %1331 = vmatprep.subr.bf16.mxu0 0
  %1332 = vmatpush1.bf16.msra.mxu0 %v1075
  %1333 = vmatprep.subr.bf16.mxu0 0
  %1334 = vmatpush1.bf16.msra.mxu0 %v1076
  %1335 = vmatprep.subr.bf16.mxu0 0
  %1336 = vmatpush1.bf16.msra.mxu0 %v1077
  %1337 = vmatprep.subr.bf16.mxu0 0
  %1338 = vmatpush1.bf16.msra.mxu0 %v1078
  %1339 = vmatprep.subr.bf16.mxu0 0
  %1340 = vmatpush1.bf16.msra.mxu0 %v1079
  %1341 = vmatprep.subr.bf16.mxu0 0
  %1342 = vmatpush1.bf16.msra.mxu0 %v1080
  %1343 = vmatprep.subr.bf16.mxu0 0
  %1344 = vmatpush1.bf16.msra.mxu0 %v1081
  %1345 = vmatprep.subr.bf16.mxu0 0
  %1346 = vmatpush1.bf16.msra.mxu0 %v1082
  %1347 = vmatprep.mubr.bf16.mxu0 %v568
  %1348 = vmatmul.mubr.bf16.gmra.mrb[0].mxu0 %v567
  %v1349 = vpop.f32.mrb[0].mxu0
  %v1350 = vadd.f32 %v1230, %v1349
  %v1351 = vpop.f32.mrb[0].mxu0
  %v1352 = vpop.f32.mrb[0].mxu0
  %v1353 = vadd.f32 %v1233, %v1352
  %v1354 = vpop.f32.mrb[0].mxu0
  %1355 = vmatprep.mubr.bf16.mxu0 %v577
  %1356 = vmatmul.mubr.bf16.gmra.mrb[0].mxu0 %v576
  %v1357 = vpop.f32.mrb[0].mxu0
  %v1358 = vadd.f32 %v1238, %v1357
  %v1359 = vpop.f32.mrb[0].mxu0
  %v1360 = vpop.f32.mrb[0].mxu0
  %v1361 = vadd.f32 %v1241, %v1360
  %v1362 = vpop.f32.mrb[0].mxu0
  %1363 = vmatprep.mubr.bf16.mxu0 %v586
  %1364 = vmatmul.mubr.bf16.gmra.mrb[0].mxu0 %v585
  %v1365 = vpop.f32.mrb[0].mxu0
  %v1366 = vadd.f32 %v1246, %v1365
  %v1367 = vpop.f32.mrb[0].mxu0
  %v1368 = vpop.f32.mrb[0].mxu0
  %v1369 = vadd.f32 %v1249, %v1368
  %v1370 = vpop.f32.mrb[0].mxu0
  %1371 = vmatprep.mubr.bf16.mxu0 %v595
  %1372 = vmatmul.mubr.bf16.gmra.mrb[0].mxu0 %v594
  %v1373 = vpop.f32.mrb[0].mxu0
  %v1374 = vadd.f32 %v1254, %v1373
  %v1375 = vpop.f32.mrb[0].mxu0
  %v1376 = vpop.f32.mrb[0].mxu0
  %v1377 = vadd.f32 %v1257, %v1376
  %v1378 = vpop.f32.mrb[0].mxu0
  %1379 = vmatprep.mubr.bf16.mxu0 %v604
  %1380 = vmatmul.mubr.bf16.gmra.mrb[0].mxu0 %v603
  %v1381 = vpop.f32.mrb[0].mxu0
  %v1382 = vadd.f32 %v1262, %v1381
  %v1383 = vpop.f32.mrb[0].mxu0
  %v1384 = vpop.f32.mrb[0].mxu0
  %v1385 = vadd.f32 %v1265, %v1384
  %v1386 = vpop.f32.mrb[0].mxu0
  %1387 = vmatprep.mubr.bf16.mxu0 %v613
  %1388 = vmatmul.mubr.bf16.gmra.mrb[0].mxu0 %v612
  %v1389 = vpop.f32.mrb[0].mxu0
  %v1390 = vadd.f32 %v1270, %v1389
  %v1391 = vpop.f32.mrb[0].mxu0
  %v1392 = vpop.f32.mrb[0].mxu0
  %v1393 = vadd.f32 %v1273, %v1392
  %v1394 = vpop.f32.mrb[0].mxu0
  %1395 = vmatprep.mubr.bf16.mxu0 %v622
  %1396 = vmatmul.mubr.bf16.gmra.mrb[0].mxu0 %v621
  %v1397 = vpop.f32.mrb[0].mxu0
  %v1398 = vadd.f32 %v1278, %v1397
  %v1399 = vpop.f32.mrb[0].mxu0
  %v1400 = vpop.f32.mrb[0].mxu0
  %v1401 = vadd.f32 %v1281, %v1400
  %v1402 = vpop.f32.mrb[0].mxu0
  %1403 = vmatprep.mubr.bf16.mxu0 %v631
  %1404 = vmatmul.mubr.bf16.gmra.mrb[0].mxu0 %v630
  %v1405 = vpop.f32.mrb[0].mxu0
  %v1406 = vadd.f32 %v1286, %v1405
  %v1407 = vpop.f32.mrb[0].mxu0
  %v1408 = vpop.f32.mrb[0].mxu0
  %v1409 = vadd.f32 %v1289, %v1408
  %v1410 = vpop.f32.mrb[0].mxu0
  %1411 = vmatprep.mubr.bf16.mxu0 %v640
  %1412 = vmatmul.mubr.bf16.gmra.mrb[0].mxu0 %v639
  %v1413 = vpop.f32.mrb[0].mxu0
  %v1414 = vadd.f32 %v1294, %v1413
  %v1415 = vpop.f32.mrb[0].mxu0
  %v1416 = vpop.f32.mrb[0].mxu0
  %v1417 = vadd.f32 %v1297, %v1416
  %v1418 = vpop.f32.mrb[0].mxu0
  %1419 = vmatprep.mubr.bf16.mxu0 %v649
  %1420 = vmatmul.mubr.bf16.gmra.mrb[0].mxu0 %v648
  %v1421 = vpop.f32.mrb[0].mxu0
  %v1422 = vadd.f32 %v1302, %v1421
  %v1423 = vpop.f32.mrb[0].mxu0
  %v1424 = vpop.f32.mrb[0].mxu0
  %v1425 = vadd.f32 %v1305, %v1424
  %v1426 = vpop.f32.mrb[0].mxu0
  %1427 = vmatprep.mubr.bf16.mxu0 %v658
  %1428 = vmatmul.mubr.bf16.gmra.mrb[0].mxu0 %v657
  %v1429 = vpop.f32.mrb[0].mxu0
  %v1430 = vadd.f32 %v1310, %v1429
  %v1431 = vpop.f32.mrb[0].mxu0
  %v1432 = vpop.f32.mrb[0].mxu0
  %v1433 = vpop.f32.mrb[0].mxu0
  %1434 = vdwg.mxu0
  %1435 = vmatprep.subr.bf16.mxu0 0
  %1436 = vmatpush1.bf16.msra.mxu0 %v1083
  %1437 = vmatprep.subr.bf16.mxu0 0
  %1438 = vmatpush1.bf16.msra.mxu0 %v1084
  %1439 = vmatprep.subr.bf16.mxu0 0
  %1440 = vmatpush1.bf16.msra.mxu0 %v1085
  %1441 = vmatprep.subr.bf16.mxu0 0
  %1442 = vmatpush1.bf16.msra.mxu0 %v1086
  %1443 = vmatprep.subr.bf16.mxu0 0
  %1444 = vmatpush1.bf16.msra.mxu0 %v1087
  %1445 = vmatprep.subr.bf16.mxu0 0
  %1446 = vmatpush1.bf16.msra.mxu0 %v1088
  %1447 = vmatprep.subr.bf16.mxu0 0
  %1448 = vmatpush1.bf16.msra.mxu0 %v1089
  %1449 = vmatprep.subr.bf16.mxu0 0
  %1450 = vmatpush1.bf16.msra.mxu0 %v1090
  %1451 = vmatprep.subr.bf16.mxu0 0
  %1452 = vmatpush1.bf16.msra.mxu0 %v1091
  %1453 = vmatprep.subr.bf16.mxu0 0
  %1454 = vmatpush1.bf16.msra.mxu0 %v1092
  %1455 = vmatprep.subr.bf16.mxu0 0
  %1456 = vmatpush1.bf16.msra.mxu0 %v1093
  %1457 = vmatprep.subr.bf16.mxu0 0
  %1458 = vmatpush1.bf16.msra.mxu0 %v1094
  %1459 = vmatprep.subr.bf16.mxu0 0
  %1460 = vmatpush1.bf16.msra.mxu0 %v1095
  %1461 = vmatprep.subr.bf16.mxu0 0
  %1462 = vmatpush1.bf16.msra.mxu0 %v1096
  %1463 = vmatprep.subr.bf16.mxu0 0
  %1464 = vmatpush1.bf16.msra.mxu0 %v1097
  %1465 = vmatprep.subr.bf16.mxu0 0
  %1466 = vmatpush1.bf16.msra.mxu0 %v1098
  %1467 = vmatprep.mubr.bf16.mxu0 %v570
  %1468 = vmatmul.mubr.bf16.gmra.mrb[0].mxu0 %v569
  %v1469 = vpop.f32.mrb[0].mxu0
  %v1470 = vadd.f32 %v1350, %v1469
  %v1471 = vpop.f32.mrb[0].mxu0
  %v1472 = vpop.f32.mrb[0].mxu0
  %v1473 = vadd.f32 %v1353, %v1472
  %v1474 = vpop.f32.mrb[0].mxu0
  %1475 = vmatprep.mubr.bf16.mxu0 %v579
  %1476 = vmatmul.mubr.bf16.gmra.mrb[0].mxu0 %v578
  %v1477 = vpop.f32.mrb[0].mxu0
  %v1478 = vadd.f32 %v1358, %v1477
  %v1479 = vpop.f32.mrb[0].mxu0
  %v1480 = vpop.f32.mrb[0].mxu0
  %v1481 = vadd.f32 %v1361, %v1480
  %v1482 = vpop.f32.mrb[0].mxu0
  %1483 = vmatprep.mubr.bf16.mxu0 %v588
  %1484 = vmatmul.mubr.bf16.gmra.mrb[0].mxu0 %v587
  %v1485 = vpop.f32.mrb[0].mxu0
  %v1486 = vadd.f32 %v1366, %v1485
  %v1487 = vpop.f32.mrb[0].mxu0
  %v1488 = vpop.f32.mrb[0].mxu0
  %v1489 = vadd.f32 %v1369, %v1488
  %v1490 = vpop.f32.mrb[0].mxu0
  %1491 = vmatprep.mubr.bf16.mxu0 %v597
  %1492 = vmatmul.mubr.bf16.gmra.mrb[0].mxu0 %v596
  %v1493 = vpop.f32.mrb[0].mxu0
  %v1494 = vadd.f32 %v1374, %v1493
  %v1495 = vpop.f32.mrb[0].mxu0
  %v1496 = vpop.f32.mrb[0].mxu0
  %v1497 = vadd.f32 %v1377, %v1496
  %v1498 = vpop.f32.mrb[0].mxu0
  %1499 = vmatprep.mubr.bf16.mxu0 %v606
  %1500 = vmatmul.mubr.bf16.gmra.mrb[0].mxu0 %v605
  %v1501 = vpop.f32.mrb[0].mxu0
  %v1502 = vadd.f32 %v1382, %v1501
  %v1503 = vpop.f32.mrb[0].mxu0
  %v1504 = vpop.f32.mrb[0].mxu0
  %v1505 = vadd.f32 %v1385, %v1504
  %v1506 = vpop.f32.mrb[0].mxu0
  %1507 = vmatprep.mubr.bf16.mxu0 %v615
  %1508 = vmatmul.mubr.bf16.gmra.mrb[0].mxu0 %v614
  %v1509 = vpop.f32.mrb[0].mxu0
  %v1510 = vadd.f32 %v1390, %v1509
  %v1511 = vpop.f32.mrb[0].mxu0
  %v1512 = vpop.f32.mrb[0].mxu0
  %v1513 = vadd.f32 %v1393, %v1512
  %v1514 = vpop.f32.mrb[0].mxu0
  %1515 = vmatprep.mubr.bf16.mxu0 %v624
  %1516 = vmatmul.mubr.bf16.gmra.mrb[0].mxu0 %v623
  %v1517 = vpop.f32.mrb[0].mxu0
  %v1518 = vadd.f32 %v1398, %v1517
  %v1519 = vpop.f32.mrb[0].mxu0
  %v1520 = vpop.f32.mrb[0].mxu0
  %v1521 = vadd.f32 %v1401, %v1520
  %v1522 = vpop.f32.mrb[0].mxu0
  %1523 = vmatprep.mubr.bf16.mxu0 %v633
  %1524 = vmatmul.mubr.bf16.gmra.mrb[0].mxu0 %v632
  %v1525 = vpop.f32.mrb[0].mxu0
  %v1526 = vadd.f32 %v1406, %v1525
  %v1527 = vpop.f32.mrb[0].mxu0
  %v1528 = vpop.f32.mrb[0].mxu0
  %v1529 = vadd.f32 %v1409, %v1528
  %v1530 = vpop.f32.mrb[0].mxu0
  %1531 = vmatprep.mubr.bf16.mxu0 %v642
  %1532 = vmatmul.mubr.bf16.gmra.mrb[0].mxu0 %v641
  %v1533 = vpop.f32.mrb[0].mxu0
  %v1534 = vadd.f32 %v1414, %v1533
  %v1535 = vpop.f32.mrb[0].mxu0
  %v1536 = vpop.f32.mrb[0].mxu0
  %v1537 = vadd.f32 %v1417, %v1536
  %v1538 = vpop.f32.mrb[0].mxu0
  %1539 = vmatprep.mubr.bf16.mxu0 %v651
  %1540 = vmatmul.mubr.bf16.gmra.mrb[0].mxu0 %v650
  %v1541 = vpop.f32.mrb[0].mxu0
  %v1542 = vadd.f32 %v1422, %v1541
  %v1543 = vpop.f32.mrb[0].mxu0
  %v1544 = vpop.f32.mrb[0].mxu0
  %v1545 = vadd.f32 %v1425, %v1544
  %v1546 = vpop.f32.mrb[0].mxu0
  %1547 = vmatprep.mubr.bf16.mxu0 %v660
  %1548 = vmatmul.mubr.bf16.gmra.mrb[0].mxu0 %v659
  %v1549 = vpop.f32.mrb[0].mxu0
  %v1550 = vadd.f32 %v1430, %v1549
  %v1551 = vpop.f32.mrb[0].mxu0
  %v1552 = vpop.f32.mrb[0].mxu0
  %v1553 = vpop.f32.mrb[0].mxu0
  %1554 = vdwg.mxu0
  %1555 = vmatprep.subr.bf16.mxu0 0
  %1556 = vmatpush1.bf16.msra.mxu0 %v1099
  %1557 = vmatprep.subr.bf16.mxu0 0
  %1558 = vmatpush1.bf16.msra.mxu0 %v1100
  %1559 = vmatprep.subr.bf16.mxu0 0
  %1560 = vmatpush1.bf16.msra.mxu0 %v1101
  %1561 = vmatprep.subr.bf16.mxu0 0
  %1562 = vmatpush1.bf16.msra.mxu0 %v1102
  %1563 = vmatprep.subr.bf16.mxu0 0
  %1564 = vmatpush1.bf16.msra.mxu0 %v1103
  %1565 = vmatprep.subr.bf16.mxu0 0
  %1566 = vmatpush1.bf16.msra.mxu0 %v1104
  %1567 = vmatprep.subr.bf16.mxu0 0
  %1568 = vmatpush1.bf16.msra.mxu0 %v1105
  %1569 = vmatprep.subr.bf16.mxu0 0
  %1570 = vmatpush1.bf16.msra.mxu0 %v1106
  %1571 = vmatprep.subr.bf16.mxu0 0
  %1572 = vmatpush1.bf16.msra.mxu0 %v1107
  %1573 = vmatprep.subr.bf16.mxu0 0
  %1574 = vmatpush1.bf16.msra.mxu0 %v1108
  %1575 = vmatprep.subr.bf16.mxu0 0
  %1576 = vmatpush1.bf16.msra.mxu0 %v1109
  %1577 = vmatprep.subr.bf16.mxu0 0
  %1578 = vmatpush1.bf16.msra.mxu0 %v1110
  %1579 = vmatprep.subr.bf16.mxu0 0
  %1580 = vmatpush1.bf16.msra.mxu0 %v1111
  %1581 = vmatprep.subr.bf16.mxu0 0
  %1582 = vmatpush1.bf16.msra.mxu0 %v1112
  %1583 = vmatprep.subr.bf16.mxu0 0
  %1584 = vmatpush1.bf16.msra.mxu0 %v1113
  %1585 = vmatprep.subr.bf16.mxu0 0
  %1586 = vmatpush1.bf16.msra.mxu0 %v1114
  %1587 = vmatprep.mubr.bf16.mxu0 %v572
  %1588 = vmatmul.mubr.bf16.gmra.mrb[0].mxu0 %v571
  %v1589 = vpop.f32.mrb[0].mxu0
  %v1590 = vadd.f32 %v1470, %v1589
  %v1591 = vpop.f32.mrb[0].mxu0
  %v1592 = vpop.f32.mrb[0].mxu0
  %v1593 = vadd.f32 %v1473, %v1592
  %v1594 = vpop.f32.mrb[0].mxu0
  %1595 = vmatprep.mubr.bf16.mxu0 %v581
  %1596 = vmatmul.mubr.bf16.gmra.mrb[0].mxu0 %v580
  %v1597 = vpop.f32.mrb[0].mxu0
  %v1598 = vadd.f32 %v1478, %v1597
  %v1599 = vpop.f32.mrb[0].mxu0
  %v1600 = vpop.f32.mrb[0].mxu0
  %v1601 = vadd.f32 %v1481, %v1600
  %v1602 = vpop.f32.mrb[0].mxu0
  %1603 = vmatprep.mubr.bf16.mxu0 %v590
  %1604 = vmatmul.mubr.bf16.gmra.mrb[0].mxu0 %v589
  %v1605 = vpop.f32.mrb[0].mxu0
  %v1606 = vadd.f32 %v1486, %v1605
  %v1607 = vpop.f32.mrb[0].mxu0
  %v1608 = vpop.f32.mrb[0].mxu0
  %v1609 = vadd.f32 %v1489, %v1608
  %v1610 = vpop.f32.mrb[0].mxu0
  %1611 = vmatprep.mubr.bf16.mxu0 %v599
  %1612 = vmatmul.mubr.bf16.gmra.mrb[0].mxu0 %v598
  %v1613 = vpop.f32.mrb[0].mxu0
  %v1614 = vadd.f32 %v1494, %v1613
  %v1615 = vpop.f32.mrb[0].mxu0
  %v1616 = vpop.f32.mrb[0].mxu0
  %v1617 = vadd.f32 %v1497, %v1616
  %v1618 = vpop.f32.mrb[0].mxu0
  %1619 = vmatprep.mubr.bf16.mxu0 %v608
  %1620 = vmatmul.mubr.bf16.gmra.mrb[0].mxu0 %v607
  %v1621 = vpop.f32.mrb[0].mxu0
  %v1622 = vadd.f32 %v1502, %v1621
  %v1623 = vpop.f32.mrb[0].mxu0
  %v1624 = vpop.f32.mrb[0].mxu0
  %v1625 = vadd.f32 %v1505, %v1624
  %v1626 = vpop.f32.mrb[0].mxu0
  %1627 = vmatprep.mubr.bf16.mxu0 %v617
  %1628 = vmatmul.mubr.bf16.gmra.mrb[0].mxu0 %v616
  %v1629 = vpop.f32.mrb[0].mxu0
  %v1630 = vadd.f32 %v1510, %v1629
  %v1631 = vpop.f32.mrb[0].mxu0
  %v1632 = vpop.f32.mrb[0].mxu0
  %v1633 = vadd.f32 %v1513, %v1632
  %v1634 = vpop.f32.mrb[0].mxu0
  %1635 = vmatprep.mubr.bf16.mxu0 %v626
  %1636 = vmatmul.mubr.bf16.gmra.mrb[0].mxu0 %v625
  %v1637 = vpop.f32.mrb[0].mxu0
  %v1638 = vadd.f32 %v1518, %v1637
  %v1639 = vpop.f32.mrb[0].mxu0
  %v1640 = vpop.f32.mrb[0].mxu0
  %v1641 = vadd.f32 %v1521, %v1640
  %v1642 = vpop.f32.mrb[0].mxu0
  %1643 = vmatprep.mubr.bf16.mxu0 %v635
  %1644 = vmatmul.mubr.bf16.gmra.mrb[0].mxu0 %v634
  %v1645 = vpop.f32.mrb[0].mxu0
  %v1646 = vadd.f32 %v1526, %v1645
  %v1647 = vpop.f32.mrb[0].mxu0
  %v1648 = vpop.f32.mrb[0].mxu0
  %v1649 = vadd.f32 %v1529, %v1648
  %v1650 = vpop.f32.mrb[0].mxu0
  %1651 = vmatprep.mubr.bf16.mxu0 %v644
  %1652 = vmatmul.mubr.bf16.gmra.mrb[0].mxu0 %v643
  %v1653 = vpop.f32.mrb[0].mxu0
  %v1654 = vadd.f32 %v1534, %v1653
  %v1655 = vpop.f32.mrb[0].mxu0
  %v1656 = vpop.f32.mrb[0].mxu0
  %v1657 = vadd.f32 %v1537, %v1656
  %v1658 = vpop.f32.mrb[0].mxu0
  %1659 = vmatprep.mubr.bf16.mxu0 %v653
  %1660 = vmatmul.mubr.bf16.gmra.mrb[0].mxu0 %v652
  %v1661 = vpop.f32.mrb[0].mxu0
  %v1662 = vadd.f32 %v1542, %v1661
  %v1663 = vpop.f32.mrb[0].mxu0
  %v1664 = vpop.f32.mrb[0].mxu0
  %v1665 = vadd.f32 %v1545, %v1664
  %v1666 = vpop.f32.mrb[0].mxu0
  %1667 = vmatprep.mubr.bf16.mxu0 %v662
  %1668 = vmatmul.mubr.bf16.gmra.mrb[0].mxu0 %v661
  %v1669 = vpop.f32.mrb[0].mxu0
  %v1670 = vadd.f32 %v1550, %v1669
  %v1671 = vpop.f32.mrb[0].mxu0
  %v1672 = vpop.f32.mrb[0].mxu0
  %v1673 = vpop.f32.mrb[0].mxu0
  %1674 = vdwg.mxu0
  %1675 = vmatprep.subr.bf16.mxu0 0
  %1676 = vmatpush1.bf16.msra.mxu0 %v1115
  %1677 = vmatprep.subr.bf16.mxu0 0
  %1678 = vmatpush1.bf16.msra.mxu0 %v1116
  %1679 = vmatprep.subr.bf16.mxu0 0
  %1680 = vmatpush1.bf16.msra.mxu0 %v1117
  %1681 = vmatprep.subr.bf16.mxu0 0
  %1682 = vmatpush1.bf16.msra.mxu0 %v1118
  %1683 = vmatprep.subr.bf16.mxu0 0
  %1684 = vmatpush1.bf16.msra.mxu0 %v1119
  %1685 = vmatprep.subr.bf16.mxu0 0
  %1686 = vmatpush1.bf16.msra.mxu0 %v1120
  %1687 = vmatprep.subr.bf16.mxu0 0
  %1688 = vmatpush1.bf16.msra.mxu0 %v1121
  %1689 = vmatprep.subr.bf16.mxu0 0
  %1690 = vmatpush1.bf16.msra.mxu0 %v1122
  %1691 = vmatprep.subr.bf16.mxu0 0
  %1692 = vmatpush1.bf16.msra.mxu0 0
  %1693 = vmatprep.subr.bf16.mxu0 0
  %1694 = vmatpush1.bf16.msra.mxu0 0
  %1695 = vmatprep.subr.bf16.mxu0 0
  %1696 = vmatpush1.bf16.msra.mxu0 0
  %1697 = vmatprep.subr.bf16.mxu0 0
  %1698 = vmatpush1.bf16.msra.mxu0 0
  %1699 = vmatprep.subr.bf16.mxu0 0
  %1700 = vmatpush1.bf16.msra.mxu0 0
  %1701 = vmatprep.subr.bf16.mxu0 0
  %1702 = vmatpush1.bf16.msra.mxu0 0
  %1703 = vmatprep.subr.bf16.mxu0 0
  %1704 = vmatpush1.bf16.msra.mxu0 0
  %1705 = vmatprep.subr.bf16.mxu0 0
  %1706 = vmatpush1.bf16.msra.mxu0 0
  %1707 = vmatprep.mubr.bf16.mxu0 0
  %1708 = vmatmul.mubr.bf16.gmra.mrb[0].mxu0 %v573
  %v1709 = vpop.f32.mrb[0].mxu0
  %v1710 = vadd.f32 %v1590, %v1709
  %v1711 = vpop.f32.mrb[0].mxu0
  %v1712 = vpop.f32.mrb[0].mxu0
  %v1713 = vadd.f32 %v1593, %v1712
  %v1714 = vpop.f32.mrb[0].mxu0
  %1715 = vmatprep.mubr.bf16.mxu0 0
  %1716 = vmatmul.mubr.bf16.gmra.mrb[0].mxu0 %v582
  %v1717 = vpop.f32.mrb[0].mxu0
  %v1718 = vadd.f32 %v1598, %v1717
  %v1719 = vpop.f32.mrb[0].mxu0
  %v1720 = vpop.f32.mrb[0].mxu0
  %v1721 = vadd.f32 %v1601, %v1720
  %v1722 = vpop.f32.mrb[0].mxu0
  %1723 = vmatprep.mubr.bf16.mxu0 0
  %1724 = vmatmul.mubr.bf16.gmra.mrb[0].mxu0 %v591
  %v1725 = vpop.f32.mrb[0].mxu0
  %v1726 = vadd.f32 %v1606, %v1725
  %v1727 = vpop.f32.mrb[0].mxu0
  %v1728 = vpop.f32.mrb[0].mxu0
  %v1729 = vadd.f32 %v1609, %v1728
  %v1730 = vpop.f32.mrb[0].mxu0
  %1731 = vmatprep.mubr.bf16.mxu0 0
  %1732 = vmatmul.mubr.bf16.gmra.mrb[0].mxu0 %v600
  %v1733 = vpop.f32.mrb[0].mxu0
  %v1734 = vadd.f32 %v1614, %v1733
  %v1735 = vpop.f32.mrb[0].mxu0
  %v1736 = vpop.f32.mrb[0].mxu0
  %v1737 = vadd.f32 %v1617, %v1736
  %v1738 = vpop.f32.mrb[0].mxu0
  %1739 = vmatprep.mubr.bf16.mxu0 0
  %1740 = vmatmul.mubr.bf16.gmra.mrb[0].mxu0 %v609
  %v1741 = vpop.f32.mrb[0].mxu0
  %v1742 = vadd.f32 %v1622, %v1741
  %v1743 = vpop.f32.mrb[0].mxu0
  %v1744 = vpop.f32.mrb[0].mxu0
  %v1745 = vadd.f32 %v1625, %v1744
  %v1746 = vpop.f32.mrb[0].mxu0
  %1747 = vmatprep.mubr.bf16.mxu0 0
  %1748 = vmatmul.mubr.bf16.gmra.mrb[0].mxu0 %v618
  %v1749 = vpop.f32.mrb[0].mxu0
  %v1750 = vadd.f32 %v1630, %v1749
  %v1751 = vpop.f32.mrb[0].mxu0
  %v1752 = vpop.f32.mrb[0].mxu0
  %v1753 = vadd.f32 %v1633, %v1752
  %v1754 = vpop.f32.mrb[0].mxu0
  %1755 = vmatprep.mubr.bf16.mxu0 0
  %1756 = vmatmul.mubr.bf16.gmra.mrb[0].mxu0 %v627
  %v1757 = vpop.f32.mrb[0].mxu0
  %v1758 = vadd.f32 %v1638, %v1757
  %v1759 = vpop.f32.mrb[0].mxu0
  %v1760 = vpop.f32.mrb[0].mxu0
  %v1761 = vadd.f32 %v1641, %v1760
  %v1762 = vpop.f32.mrb[0].mxu0
  %1763 = vmatprep.mubr.bf16.mxu0 0
  %1764 = vmatmul.mubr.bf16.gmra.mrb[0].mxu0 %v636
  %v1765 = vpop.f32.mrb[0].mxu0
  %v1766 = vadd.f32 %v1646, %v1765
  %v1767 = vpop.f32.mrb[0].mxu0
  %v1768 = vpop.f32.mrb[0].mxu0
  %v1769 = vadd.f32 %v1649, %v1768
  %v1770 = vpop.f32.mrb[0].mxu0
  %1771 = vmatprep.mubr.bf16.mxu0 0
  %1772 = vmatmul.mubr.bf16.gmra.mrb[0].mxu0 %v645
  %v1773 = vpop.f32.mrb[0].mxu0
  %v1774 = vadd.f32 %v1654, %v1773
  %v1775 = vpop.f32.mrb[0].mxu0
  %v1776 = vpop.f32.mrb[0].mxu0
  %v1777 = vadd.f32 %v1657, %v1776
  %v1778 = vpop.f32.mrb[0].mxu0
  %1779 = vmatprep.mubr.bf16.mxu0 0
  %1780 = vmatmul.mubr.bf16.gmra.mrb[0].mxu0 %v654
  %v1781 = vpop.f32.mrb[0].mxu0
  %v1782 = vadd.f32 %v1662, %v1781
  %v1783 = vpop.f32.mrb[0].mxu0
  %v1784 = vpop.f32.mrb[0].mxu0
  %v1785 = vadd.f32 %v1665, %v1784
  %v1786 = vpop.f32.mrb[0].mxu0
  %1787 = vmatprep.mubr.bf16.mxu0 0
  %1788 = vmatmul.mubr.bf16.gmra.mrb[0].mxu0 %v663
  %v1789 = vpop.f32.mrb[0].mxu0
  %v1790 = vadd.f32 %v1670, %v1789
  %v1791 = vpop.f32.mrb[0].mxu0
  %v1792 = vpop.f32.mrb[0].mxu0
  %v1793 = vpop.f32.mrb[0].mxu0
  %1794 = vdwg.mxu0
  %v1795 = vmax.f32 %v1710, 0.0
  %v1796 = vmax.f32 %v1713, 0.0
  %v1797 = vmax.f32 %v1718, 0.0
  %v1798 = vmax.f32 %v1721, 0.0
  %v1799 = vmax.f32 %v1726, 0.0
  %v1800 = vmax.f32 %v1729, 0.0
  %v1801 = vmax.f32 %v1734, 0.0
  %v1802 = vmax.f32 %v1737, 0.0
  %v1803 = vmax.f32 %v1742, 0.0
  %v1804 = vmax.f32 %v1745, 0.0
  %v1805 = vmax.f32 %v1750, 0.0
  %v1806 = vmax.f32 %v1753, 0.0
  %v1807 = vmax.f32 %v1758, 0.0
  %v1808 = vmax.f32 %v1761, 0.0
  %v1809 = vmax.f32 %v1766, 0.0
  %v1810 = vmax.f32 %v1769, 0.0
  %v1811 = vmax.f32 %v1774, 0.0
  %v1812 = vmax.f32 %v1777, 0.0
  %v1813 = vmax.f32 %v1782, 0.0
  %v1814 = vmax.f32 %v1785, 0.0
  %v1815 = vmax.f32 %v1790, 0.0
  %v1816 = vpack.c.bf16 %v1796, %v1795
  %v1817 = vpack.c.bf16 %v1798, %v1797
  %v1818 = vpack.c.bf16 %v1800, %v1799
  %v1819 = vpack.c.bf16 %v1802, %v1801
  %v1820 = vpack.c.bf16 %v1804, %v1803
  %v1821 = vpack.c.bf16 %v1806, %v1805
  %v1822 = vpack.c.bf16 %v1808, %v1807
  %v1823 = vpack.c.bf16 %v1810, %v1809
  %v1824 = vpack.c.bf16 %v1812, %v1811
  %v1825 = vpack.c.bf16 %v1814, %v1813
  %v1826 = vpack.c.bf16 %v1815, %v1815
  %v1838 = vunpack.c.l.b16 %v1816
  %v1839 = vunpack.c.h.b16 %v1816
  %v1840 = vunpack.c.l.b16 %v1817
  %v1841 = vunpack.c.h.b16 %v1817
  %v1842 = vunpack.c.l.b16 %v1818
  %v1843 = vunpack.c.h.b16 %v1818
  %v1844 = vunpack.c.l.b16 %v1819
  %v1845 = vunpack.c.h.b16 %v1819
  %v1846 = vunpack.c.l.b16 %v1820
  %v1847 = vunpack.c.h.b16 %v1820
  %v1848 = vunpack.c.l.b16 %v1821
  %v1849 = vunpack.c.h.b16 %v1821
  %v1850 = vunpack.c.l.b16 %v1822
  %v1851 = vunpack.c.h.b16 %v1822
  %v1852 = vunpack.c.l.b16 %v1823
  %v1853 = vunpack.c.h.b16 %v1823
  %v1854 = vunpack.c.l.b16 %v1824
  %v1855 = vunpack.c.h.b16 %v1824
  %v1856 = vunpack.c.l.b16 %v1825
  %v1857 = vunpack.c.h.b16 %v1825
  %v1858 = vunpack.c.l.b16 %v1826
  %v1859 = vpack.c.b16 %v1838, %v1838
  %v1860 = vpack.c.b16 %v1839, %v1839
  %v1861 = vpack.c.b16 %v1840, %v1840
  %v1862 = vpack.c.b16 %v1841, %v1841
  %v1863 = vpack.c.b16 %v1842, %v1842
  %v1864 = vpack.c.b16 %v1843, %v1843
  %v1865 = vpack.c.b16 %v1844, %v1844
  %v1866 = vpack.c.b16 %v1845, %v1845
  %v1867 = vpack.c.b16 %v1846, %v1846
  %v1868 = vpack.c.b16 %v1847, %v1847
  %v1869 = vpack.c.b16 %v1848, %v1848
  %v1870 = vpack.c.b16 %v1849, %v1849
  %v1871 = vpack.c.b16 %v1850, %v1850
  %v1872 = vpack.c.b16 %v1851, %v1851
  %v1873 = vpack.c.b16 %v1852, %v1852
  %v1874 = vpack.c.b16 %v1853, %v1853
  %v1875 = vpack.c.b16 %v1854, %v1854
  %v1876 = vpack.c.b16 %v1855, %v1855
  %v1877 = vpack.c.b16 %v1856, %v1856
  %v1878 = vpack.c.b16 %v1857, %v1857
  %v1879 = vpack.c.b16 %v1858, %v1858
  %1901 = vst [vmem:[%s3] sm:$0xf] %v1859
  %1902 = vst [vmem:[%s3 + $0x4] sm:$0xf] %v1860
  %1903 = vst [vmem:[%s3 + $0x8] sm:$0xf] %v1861
  %1904 = vst [vmem:[%s3 + $0xc] sm:$0xf] %v1862
  %1905 = vst [vmem:[%s3 + $0x10] sm:$0xf] %v1863
  %1906 = vst [vmem:[%s3 + $0x14] sm:$0xf] %v1864
  %1907 = vst [vmem:[%s3 + $0x18] sm:$0xf] %v1865
  %1908 = vst [vmem:[%s3 + $0x1c] sm:$0xf] %v1866
  %1909 = vst [vmem:[%s3 + $0x20] sm:$0xf] %v1867
  %1910 = vst [vmem:[%s3 + $0x24] sm:$0xf] %v1868
  %1911 = vst [vmem:[%s3 + $0x28] sm:$0xf] %v1869
  %1912 = vst [vmem:[%s3 + $0x2c] sm:$0xf] %v1870
  %1913 = vst [vmem:[%s3 + $0x30] sm:$0xf] %v1871
  %1914 = vst [vmem:[%s3 + $0x34] sm:$0xf] %v1872
  %1915 = vst [vmem:[%s3 + $0x38] sm:$0xf] %v1873
  %1916 = vst [vmem:[%s3 + $0x3c] sm:$0xf] %v1874
  %1917 = vst [vmem:[%s3 + $0x40] sm:$0xf] %v1875
  %1918 = vst [vmem:[%s3 + $0x44] sm:$0xf] %v1876
  %1919 = vst [vmem:[%s3 + $0x48] sm:$0xf] %v1877
  %1920 = vst [vmem:[%s3 + $0x4c] sm:$0xf] %v1878
  %1921 = vst [vmem:[%s3 + $0x50] sm:$0xf] %v1879
  // Predicated region
  $region14: #{retinanet_forward.24} parent=0 // pred_check
    _
  $region15: #{retinanet_forward.24} parent=0 // pred_check_branch
    %1923 = sbr.rel (0) target = $region17
  $region16: #{retinanet_forward.24} parent=0 // pred_region
    _
  $region17: #{retinanet_forward.24} parent=0 // pred_fallthru
    _
  // Predicated region
  $region18: #{retinanet_forward.24} parent=0 // pred_check
    _
  $region19: #{retinanet_forward.24} parent=0 // pred_check_branch
    %1925 = sbr.rel (0) target = $region21
  $region20: #{retinanet_forward.24} parent=0 // pred_region
    _
  $region21: #{retinanet_forward.24} parent=0 // pred_fallthru
    _

// kernel: retinanet_forward.25
$region0: #{retinanet_forward.25}
  #allocation0 [shape = 'u32[]', space=smem, size = 0x4, offset = 0x4, fixed_abs, tag = 'smem constant byte address 0x4 - core index']
  #allocation1 [shape = 'u32[144,128]{1,0:T(1,128)}', space=vmem, size = 0x12000, scoped, tag = 'internal scratch']
  %s0 = inlined_call_operand.vmem [shape: bf16[168,1152], index: 0, kind: input, shape index: {}]
  %s1 = inlined_call_operand.vmem [shape: bf16[1152,128], index: 1, kind: input, shape index: {}]
  %s2 = inlined_call_operand.vmem [shape: f32[1,128], index: 2, kind: input, shape index: {}]
  %s3 = inlined_call_operand.vmem [shape: f32[168,128], index: 3, kind: output, shape index: {}]
  %s4 = sld [smem:[#allocation0]]
  $region22: #{retinanet_forward.25} parent=0
    _
  %s6 = ssub.s32 1, %s4
  %s7 = scalar_select 0, %s6, %s4
  // Predicated region
  $region2: #{retinanet_forward.25} parent=0 // pred_check
    _
  $region3: #{retinanet_forward.25} parent=0 // pred_check_branch
    %9 = sbr.rel (0) target = $region5
  $region4: #{retinanet_forward.25} parent=0 // pred_region
    _
  $region5: #{retinanet_forward.25} parent=0 // pred_fallthru
    _
  // Predicated region
  $region6: #{retinanet_forward.25} parent=0 // pred_check
    _
  $region7: #{retinanet_forward.25} parent=0 // pred_check_branch
    %11 = sbr.rel (0) target = $region9
  $region8: #{retinanet_forward.25} parent=0 // pred_region
    _
  $region9: #{retinanet_forward.25} parent=0 // pred_fallthru
    _
  // Predicated region
  $region10: #{retinanet_forward.25} parent=0 // pred_check
    _
  $region11: #{retinanet_forward.25} parent=0 // pred_check_branch
    %13 = sbr.rel (0) target = $region13
  $region12: #{retinanet_forward.25} parent=0 // pred_region
    _
  $region13: #{retinanet_forward.25} parent=0 // pred_fallthru
    _
  %v15 = vld [vmem:[%s0] sm:$0xff]
  %v16 = vld [vmem:[%s0 + $0x8] sm:$0xff]
  %v17 = vld [vmem:[%s0 + $0x10] sm:$0xff]
  %v18 = vld [vmem:[%s0 + $0x18] sm:$0xff]
  %v19 = vld [vmem:[%s0 + $0x20] sm:$0xf]
  %v20 = vld [vmem:[%s0 + $0x24] sm:$0xff]
  %v21 = vld [vmem:[%s0 + $0x2c] sm:$0xff]
  %v22 = vld [vmem:[%s0 + $0x34] sm:$0xff]
  %v23 = vld [vmem:[%s0 + $0x3c] sm:$0xff]
  %v24 = vld [vmem:[%s0 + $0x44] sm:$0xf]
  %v25 = vld [vmem:[%s0 + $0x48] sm:$0xff]
  %v26 = vld [vmem:[%s0 + $0x50] sm:$0xff]
  %v27 = vld [vmem:[%s0 + $0x58] sm:$0xff]
  %v28 = vld [vmem:[%s0 + $0x60] sm:$0xff]
  %v29 = vld [vmem:[%s0 + $0x68] sm:$0xf]
  %v30 = vld [vmem:[%s0 + $0x6c] sm:$0xff]
  %v31 = vld [vmem:[%s0 + $0x74] sm:$0xff]
  %v32 = vld [vmem:[%s0 + $0x7c] sm:$0xff]
  %v33 = vld [vmem:[%s0 + $0x84] sm:$0xff]
  %v34 = vld [vmem:[%s0 + $0x8c] sm:$0xf]
  %v35 = vld [vmem:[%s0 + $0x90] sm:$0xff]
  %v36 = vld [vmem:[%s0 + $0x98] sm:$0xff]
  %v37 = vld [vmem:[%s0 + $0xa0] sm:$0xff]
  %v38 = vld [vmem:[%s0 + $0xa8] sm:$0xff]
  %v39 = vld [vmem:[%s0 + $0xb0] sm:$0xf]
  %v40 = vld [vmem:[%s0 + $0xb4] sm:$0xff]
  %v41 = vld [vmem:[%s0 + $0xbc] sm:$0xff]
  %v42 = vld [vmem:[%s0 + $0xc4] sm:$0xff]
  %v43 = vld [vmem:[%s0 + $0xcc] sm:$0xff]
  %v44 = vld [vmem:[%s0 + $0xd4] sm:$0xf]
  %v45 = vld [vmem:[%s0 + $0xd8] sm:$0xff]
  %v46 = vld [vmem:[%s0 + $0xe0] sm:$0xff]
  %v47 = vld [vmem:[%s0 + $0xe8] sm:$0xff]
  %v48 = vld [vmem:[%s0 + $0xf0] sm:$0xff]
  %v49 = vld [vmem:[%s0 + $0xf8] sm:$0xf]
  %v50 = vld [vmem:[%s0 + $0xfc] sm:$0xff]
  %v51 = vld [vmem:[%s0 + $0x104] sm:$0xff]
  %v52 = vld [vmem:[%s0 + $0x10c] sm:$0xff]
  %v53 = vld [vmem:[%s0 + $0x114] sm:$0xff]
  %v54 = vld [vmem:[%s0 + $0x11c] sm:$0xf]
  %v55 = vld [vmem:[%s0 + $0x120] sm:$0xff]
  %v56 = vld [vmem:[%s0 + $0x128] sm:$0xff]
  %v57 = vld [vmem:[%s0 + $0x130] sm:$0xff]
  %v58 = vld [vmem:[%s0 + $0x138] sm:$0xff]
  %v59 = vld [vmem:[%s0 + $0x140] sm:$0xf]
  %v60 = vld [vmem:[%s0 + $0x144] sm:$0xff]
  %v61 = vld [vmem:[%s0 + $0x14c] sm:$0xff]
  %v62 = vld [vmem:[%s0 + $0x154] sm:$0xff]
  %v63 = vld [vmem:[%s0 + $0x15c] sm:$0xff]
  %v64 = vld [vmem:[%s0 + $0x164] sm:$0xf]
  %v65 = vld [vmem:[%s0 + $0x168] sm:$0xff]
  %v66 = vld [vmem:[%s0 + $0x170] sm:$0xff]
  %v67 = vld [vmem:[%s0 + $0x178] sm:$0xff]
  %v68 = vld [vmem:[%s0 + $0x180] sm:$0xff]
  %v69 = vld [vmem:[%s0 + $0x188] sm:$0xf]
  %v70 = vld [vmem:[%s0 + $0x18c] sm:$0xff]
  %v71 = vld [vmem:[%s0 + $0x194] sm:$0xff]
  %v72 = vld [vmem:[%s0 + $0x19c] sm:$0xff]
  %v73 = vld [vmem:[%s0 + $0x1a4] sm:$0xff]
  %v74 = vld [vmem:[%s0 + $0x1ac] sm:$0xf]
  %v75 = vld [vmem:[%s0 + $0x1b0] sm:$0xff]
  %v76 = vld [vmem:[%s0 + $0x1b8] sm:$0xff]
  %v77 = vld [vmem:[%s0 + $0x1c0] sm:$0xff]
  %v78 = vld [vmem:[%s0 + $0x1c8] sm:$0xff]
  %v79 = vld [vmem:[%s0 + $0x1d0] sm:$0xf]
  %v80 = vld [vmem:[%s0 + $0x1d4] sm:$0xff]
  %v81 = vld [vmem:[%s0 + $0x1dc] sm:$0xff]
  %v82 = vld [vmem:[%s0 + $0x1e4] sm:$0xff]
  %v83 = vld [vmem:[%s0 + $0x1ec] sm:$0xff]
  %v84 = vld [vmem:[%s0 + $0x1f4] sm:$0xf]
  %v85 = vld [vmem:[%s0 + $0x1f8] sm:$0xff]
  %v86 = vld [vmem:[%s0 + $0x200] sm:$0xff]
  %v87 = vld [vmem:[%s0 + $0x208] sm:$0xff]
  %v88 = vld [vmem:[%s0 + $0x210] sm:$0xff]
  %v89 = vld [vmem:[%s0 + $0x218] sm:$0xf]
  %v90 = vld [vmem:[%s0 + $0x21c] sm:$0xff]
  %v91 = vld [vmem:[%s0 + $0x224] sm:$0xff]
  %v92 = vld [vmem:[%s0 + $0x22c] sm:$0xff]
  %v93 = vld [vmem:[%s0 + $0x234] sm:$0xff]
  %v94 = vld [vmem:[%s0 + $0x23c] sm:$0xf]
  %v95 = vld [vmem:[%s0 + $0x240] sm:$0xff]
  %v96 = vld [vmem:[%s0 + $0x248] sm:$0xff]
  %v97 = vld [vmem:[%s0 + $0x250] sm:$0xff]
  %v98 = vld [vmem:[%s0 + $0x258] sm:$0xff]
  %v99 = vld [vmem:[%s0 + $0x260] sm:$0xf]
  %v100 = vld [vmem:[%s0 + $0x264] sm:$0xff]
  %v101 = vld [vmem:[%s0 + $0x26c] sm:$0xff]
  %v102 = vld [vmem:[%s0 + $0x274] sm:$0xff]
  %v103 = vld [vmem:[%s0 + $0x27c] sm:$0xff]
  %v104 = vld [vmem:[%s0 + $0x284] sm:$0xf]
  %v105 = vld [vmem:[%s0 + $0x288] sm:$0xff]
  %v106 = vld [vmem:[%s0 + $0x290] sm:$0xff]
  %v107 = vld [vmem:[%s0 + $0x298] sm:$0xff]
  %v108 = vld [vmem:[%s0 + $0x2a0] sm:$0xff]
  %v109 = vld [vmem:[%s0 + $0x2a8] sm:$0xf]
  %v110 = vld [vmem:[%s0 + $0x2ac] sm:$0xff]
  %v111 = vld [vmem:[%s0 + $0x2b4] sm:$0xff]
  %v112 = vld [vmem:[%s0 + $0x2bc] sm:$0xff]
  %v113 = vld [vmem:[%s0 + $0x2c4] sm:$0xff]
  %v114 = vld [vmem:[%s0 + $0x2cc] sm:$0xf]
  %v115 = vld [vmem:[%s0 + $0x2d0] sm:$0xff]
  %v116 = vld [vmem:[%s0 + $0x2d8] sm:$0xff]
  %v117 = vld [vmem:[%s0 + $0x2e0] sm:$0xff]
  %v118 = vld [vmem:[%s0 + $0x2e8] sm:$0xff]
  %v119 = vld [vmem:[%s0 + $0x2f0] sm:$0xf]
  %v120 = vld [vmem:[%s1] sm:$0xf]
  %v121 = vld [vmem:[%s1 + $0x4] sm:$0xf]
  %v122 = vld [vmem:[%s1 + $0x8] sm:$0xf]
  %v123 = vld [vmem:[%s1 + $0xc] sm:$0xf]
  %v124 = vld [vmem:[%s1 + $0x10] sm:$0xf]
  %v125 = vld [vmem:[%s1 + $0x14] sm:$0xf]
  %v126 = vld [vmem:[%s1 + $0x18] sm:$0xf]
  %v127 = vld [vmem:[%s1 + $0x1c] sm:$0xf]
  %v128 = vld [vmem:[%s1 + $0x20] sm:$0xf]
  %v129 = vld [vmem:[%s1 + $0x24] sm:$0xf]
  %v130 = vld [vmem:[%s1 + $0x28] sm:$0xf]
  %v131 = vld [vmem:[%s1 + $0x2c] sm:$0xf]
  %v132 = vld [vmem:[%s1 + $0x30] sm:$0xf]
  %v133 = vld [vmem:[%s1 + $0x34] sm:$0xf]
  %v134 = vld [vmem:[%s1 + $0x38] sm:$0xf]
  %v135 = vld [vmem:[%s1 + $0x3c] sm:$0xf]
  %v136 = vld [vmem:[%s1 + $0x40] sm:$0xf]
  %v137 = vld [vmem:[%s1 + $0x44] sm:$0xf]
  %v138 = vld [vmem:[%s1 + $0x48] sm:$0xf]
  %v139 = vld [vmem:[%s1 + $0x4c] sm:$0xf]
  %v140 = vld [vmem:[%s1 + $0x50] sm:$0xf]
  %v141 = vld [vmem:[%s1 + $0x54] sm:$0xf]
  %v142 = vld [vmem:[%s1 + $0x58] sm:$0xf]
  %v143 = vld [vmem:[%s1 + $0x5c] sm:$0xf]
  %v144 = vld [vmem:[%s1 + $0x60] sm:$0xf]
  %v145 = vld [vmem:[%s1 + $0x64] sm:$0xf]
  %v146 = vld [vmem:[%s1 + $0x68] sm:$0xf]
  %v147 = vld [vmem:[%s1 + $0x6c] sm:$0xf]
  %v148 = vld [vmem:[%s1 + $0x70] sm:$0xf]
  %v149 = vld [vmem:[%s1 + $0x74] sm:$0xf]
  %v150 = vld [vmem:[%s1 + $0x78] sm:$0xf]
  %v151 = vld [vmem:[%s1 + $0x7c] sm:$0xf]
  %v152 = vld [vmem:[%s1 + $0x80] sm:$0xf]
  %v153 = vld [vmem:[%s1 + $0x84] sm:$0xf]
  %v154 = vld [vmem:[%s1 + $0x88] sm:$0xf]
  %v155 = vld [vmem:[%s1 + $0x8c] sm:$0xf]
  %v156 = vld [vmem:[%s1 + $0x90] sm:$0xf]
  %v157 = vld [vmem:[%s1 + $0x94] sm:$0xf]
  %v158 = vld [vmem:[%s1 + $0x98] sm:$0xf]
  %v159 = vld [vmem:[%s1 + $0x9c] sm:$0xf]
  %v160 = vld [vmem:[%s1 + $0xa0] sm:$0xf]
  %v161 = vld [vmem:[%s1 + $0xa4] sm:$0xf]
  %v162 = vld [vmem:[%s1 + $0xa8] sm:$0xf]
  %v163 = vld [vmem:[%s1 + $0xac] sm:$0xf]
  %v164 = vld [vmem:[%s1 + $0xb0] sm:$0xf]
  %v165 = vld [vmem:[%s1 + $0xb4] sm:$0xf]
  %v166 = vld [vmem:[%s1 + $0xb8] sm:$0xf]
  %v167 = vld [vmem:[%s1 + $0xbc] sm:$0xf]
  %v168 = vld [vmem:[%s1 + $0xc0] sm:$0xf]
  %v169 = vld [vmem:[%s1 + $0xc4] sm:$0xf]
  %v170 = vld [vmem:[%s1 + $0xc8] sm:$0xf]
  %v171 = vld [vmem:[%s1 + $0xcc] sm:$0xf]
  %v172 = vld [vmem:[%s1 + $0xd0] sm:$0xf]
  %v173 = vld [vmem:[%s1 + $0xd4] sm:$0xf]
  %v174 = vld [vmem:[%s1 + $0xd8] sm:$0xf]
  %v175 = vld [vmem:[%s1 + $0xdc] sm:$0xf]
  %v176 = vld [vmem:[%s1 + $0xe0] sm:$0xf]
  %v177 = vld [vmem:[%s1 + $0xe4] sm:$0xf]
  %v178 = vld [vmem:[%s1 + $0xe8] sm:$0xf]
  %v179 = vld [vmem:[%s1 + $0xec] sm:$0xf]
  %v180 = vld [vmem:[%s1 + $0xf0] sm:$0xf]
  %v181 = vld [vmem:[%s1 + $0xf4] sm:$0xf]
  %v182 = vld [vmem:[%s1 + $0xf8] sm:$0xf]
  %v183 = vld [vmem:[%s1 + $0xfc] sm:$0xf]
  %v184 = vld [vmem:[%s1 + $0x100] sm:$0xf]
  %v185 = vld [vmem:[%s1 + $0x104] sm:$0xf]
  %v186 = vld [vmem:[%s1 + $0x108] sm:$0xf]
  %v187 = vld [vmem:[%s1 + $0x10c] sm:$0xf]
  %v188 = vld [vmem:[%s1 + $0x110] sm:$0xf]
  %v189 = vld [vmem:[%s1 + $0x114] sm:$0xf]
  %v190 = vld [vmem:[%s1 + $0x118] sm:$0xf]
  %v191 = vld [vmem:[%s1 + $0x11c] sm:$0xf]
  %v192 = vld [vmem:[%s1 + $0x120] sm:$0xf]
  %v193 = vld [vmem:[%s1 + $0x124] sm:$0xf]
  %v194 = vld [vmem:[%s1 + $0x128] sm:$0xf]
  %v195 = vld [vmem:[%s1 + $0x12c] sm:$0xf]
  %v196 = vld [vmem:[%s1 + $0x130] sm:$0xf]
  %v197 = vld [vmem:[%s1 + $0x134] sm:$0xf]
  %v198 = vld [vmem:[%s1 + $0x138] sm:$0xf]
  %v199 = vld [vmem:[%s1 + $0x13c] sm:$0xf]
  %v200 = vld [vmem:[%s1 + $0x140] sm:$0xf]
  %v201 = vld [vmem:[%s1 + $0x144] sm:$0xf]
  %v202 = vld [vmem:[%s1 + $0x148] sm:$0xf]
  %v203 = vld [vmem:[%s1 + $0x14c] sm:$0xf]
  %v204 = vld [vmem:[%s1 + $0x150] sm:$0xf]
  %v205 = vld [vmem:[%s1 + $0x154] sm:$0xf]
  %v206 = vld [vmem:[%s1 + $0x158] sm:$0xf]
  %v207 = vld [vmem:[%s1 + $0x15c] sm:$0xf]
  %v208 = vld [vmem:[%s1 + $0x160] sm:$0xf]
  %v209 = vld [vmem:[%s1 + $0x164] sm:$0xf]
  %v210 = vld [vmem:[%s1 + $0x168] sm:$0xf]
  %v211 = vld [vmem:[%s1 + $0x16c] sm:$0xf]
  %v212 = vld [vmem:[%s1 + $0x170] sm:$0xf]
  %v213 = vld [vmem:[%s1 + $0x174] sm:$0xf]
  %v214 = vld [vmem:[%s1 + $0x178] sm:$0xf]
  %v215 = vld [vmem:[%s1 + $0x17c] sm:$0xf]
  %v216 = vld [vmem:[%s1 + $0x180] sm:$0xf]
  %v217 = vld [vmem:[%s1 + $0x184] sm:$0xf]
  %v218 = vld [vmem:[%s1 + $0x188] sm:$0xf]
  %v219 = vld [vmem:[%s1 + $0x18c] sm:$0xf]
  %v220 = vld [vmem:[%s1 + $0x190] sm:$0xf]
  %v221 = vld [vmem:[%s1 + $0x194] sm:$0xf]
  %v222 = vld [vmem:[%s1 + $0x198] sm:$0xf]
  %v223 = vld [vmem:[%s1 + $0x19c] sm:$0xf]
  %v224 = vld [vmem:[%s1 + $0x1a0] sm:$0xf]
  %v225 = vld [vmem:[%s1 + $0x1a4] sm:$0xf]
  %v226 = vld [vmem:[%s1 + $0x1a8] sm:$0xf]
  %v227 = vld [vmem:[%s1 + $0x1ac] sm:$0xf]
  %v228 = vld [vmem:[%s1 + $0x1b0] sm:$0xf]
  %v229 = vld [vmem:[%s1 + $0x1b4] sm:$0xf]
  %v230 = vld [vmem:[%s1 + $0x1b8] sm:$0xf]
  %v231 = vld [vmem:[%s1 + $0x1bc] sm:$0xf]
  %v232 = vld [vmem:[%s1 + $0x1c0] sm:$0xf]
  %v233 = vld [vmem:[%s1 + $0x1c4] sm:$0xf]
  %v234 = vld [vmem:[%s1 + $0x1c8] sm:$0xf]
  %v235 = vld [vmem:[%s1 + $0x1cc] sm:$0xf]
  %v236 = vld [vmem:[%s1 + $0x1d0] sm:$0xf]
  %v237 = vld [vmem:[%s1 + $0x1d4] sm:$0xf]
  %v238 = vld [vmem:[%s1 + $0x1d8] sm:$0xf]
  %v239 = vld [vmem:[%s1 + $0x1dc] sm:$0xf]
  %v240 = vld [vmem:[%s1 + $0x1e0] sm:$0xf]
  %v241 = vld [vmem:[%s1 + $0x1e4] sm:$0xf]
  %v242 = vld [vmem:[%s1 + $0x1e8] sm:$0xf]
  %v243 = vld [vmem:[%s1 + $0x1ec] sm:$0xf]
  %v244 = vld [vmem:[%s1 + $0x1f0] sm:$0xf]
  %v245 = vld [vmem:[%s1 + $0x1f4] sm:$0xf]
  %v246 = vld [vmem:[%s1 + $0x1f8] sm:$0xf]
  %v247 = vld [vmem:[%s1 + $0x1fc] sm:$0xf]
  %v248 = vld [vmem:[%s1 + $0x200] sm:$0xf]
  %v249 = vld [vmem:[%s1 + $0x204] sm:$0xf]
  %v250 = vld [vmem:[%s1 + $0x208] sm:$0xf]
  %v251 = vld [vmem:[%s1 + $0x20c] sm:$0xf]
  %v252 = vld [vmem:[%s1 + $0x210] sm:$0xf]
  %v253 = vld [vmem:[%s1 + $0x214] sm:$0xf]
  %v254 = vld [vmem:[%s1 + $0x218] sm:$0xf]
  %v255 = vld [vmem:[%s1 + $0x21c] sm:$0xf]
  %v256 = vld [vmem:[%s1 + $0x220] sm:$0xf]
  %v257 = vld [vmem:[%s1 + $0x224] sm:$0xf]
  %v258 = vld [vmem:[%s1 + $0x228] sm:$0xf]
  %v259 = vld [vmem:[%s1 + $0x22c] sm:$0xf]
  %v260 = vld [vmem:[%s1 + $0x230] sm:$0xf]
  %v261 = vld [vmem:[%s1 + $0x234] sm:$0xf]
  %v262 = vld [vmem:[%s1 + $0x238] sm:$0xf]
  %v263 = vld [vmem:[%s1 + $0x23c] sm:$0xf]
  %v264 = vld [vmem:[%s2] sm:$0x1]
  %v266 = vlaneseq
  %v267 = vshrl.u32 %v266, 7
  %v268 = vsub.s32 0, %v267
  %v269 = vrot.slane %v264, %v268
  %v376 = vunpack.c.l.b16 %v15
  %v377 = vunpack.c.h.b16 %v15
  %v378 = vunpack.c.l.b16 %v16
  %v379 = vunpack.c.h.b16 %v16
  %v380 = vunpack.c.l.b16 %v17
  %v381 = vunpack.c.h.b16 %v17
  %v382 = vunpack.c.l.b16 %v18
  %v383 = vunpack.c.h.b16 %v18
  %v384 = vunpack.c.l.b16 %v19
  %v385 = vunpack.c.l.b16 %v20
  %v386 = vunpack.c.h.b16 %v20
  %v387 = vunpack.c.l.b16 %v21
  %v388 = vunpack.c.h.b16 %v21
  %v389 = vunpack.c.l.b16 %v22
  %v390 = vunpack.c.h.b16 %v22
  %v391 = vunpack.c.l.b16 %v23
  %v392 = vunpack.c.h.b16 %v23
  %v393 = vunpack.c.l.b16 %v24
  %v394 = vunpack.c.l.b16 %v25
  %v395 = vunpack.c.h.b16 %v25
  %v396 = vunpack.c.l.b16 %v26
  %v397 = vunpack.c.h.b16 %v26
  %v398 = vunpack.c.l.b16 %v27
  %v399 = vunpack.c.h.b16 %v27
  %v400 = vunpack.c.l.b16 %v28
  %v401 = vunpack.c.h.b16 %v28
  %v402 = vunpack.c.l.b16 %v29
  %v403 = vunpack.c.l.b16 %v30
  %v404 = vunpack.c.h.b16 %v30
  %v405 = vunpack.c.l.b16 %v31
  %v406 = vunpack.c.h.b16 %v31
  %v407 = vunpack.c.l.b16 %v32
  %v408 = vunpack.c.h.b16 %v32
  %v409 = vunpack.c.l.b16 %v33
  %v410 = vunpack.c.h.b16 %v33
  %v411 = vunpack.c.l.b16 %v34
  %v412 = vunpack.c.l.b16 %v35
  %v413 = vunpack.c.h.b16 %v35
  %v414 = vunpack.c.l.b16 %v36
  %v415 = vunpack.c.h.b16 %v36
  %v416 = vunpack.c.l.b16 %v37
  %v417 = vunpack.c.h.b16 %v37
  %v418 = vunpack.c.l.b16 %v38
  %v419 = vunpack.c.h.b16 %v38
  %v420 = vunpack.c.l.b16 %v39
  %v421 = vunpack.c.l.b16 %v40
  %v422 = vunpack.c.h.b16 %v40
  %v423 = vunpack.c.l.b16 %v41
  %v424 = vunpack.c.h.b16 %v41
  %v425 = vunpack.c.l.b16 %v42
  %v426 = vunpack.c.h.b16 %v42
  %v427 = vunpack.c.l.b16 %v43
  %v428 = vunpack.c.h.b16 %v43
  %v429 = vunpack.c.l.b16 %v44
  %v430 = vunpack.c.l.b16 %v45
  %v431 = vunpack.c.h.b16 %v45
  %v432 = vunpack.c.l.b16 %v46
  %v433 = vunpack.c.h.b16 %v46
  %v434 = vunpack.c.l.b16 %v47
  %v435 = vunpack.c.h.b16 %v47
  %v436 = vunpack.c.l.b16 %v48
  %v437 = vunpack.c.h.b16 %v48
  %v438 = vunpack.c.l.b16 %v49
  %v439 = vunpack.c.l.b16 %v50
  %v440 = vunpack.c.h.b16 %v50
  %v441 = vunpack.c.l.b16 %v51
  %v442 = vunpack.c.h.b16 %v51
  %v443 = vunpack.c.l.b16 %v52
  %v444 = vunpack.c.h.b16 %v52
  %v445 = vunpack.c.l.b16 %v53
  %v446 = vunpack.c.h.b16 %v53
  %v447 = vunpack.c.l.b16 %v54
  %v448 = vunpack.c.l.b16 %v55
  %v449 = vunpack.c.h.b16 %v55
  %v450 = vunpack.c.l.b16 %v56
  %v451 = vunpack.c.h.b16 %v56
  %v452 = vunpack.c.l.b16 %v57
  %v453 = vunpack.c.h.b16 %v57
  %v454 = vunpack.c.l.b16 %v58
  %v455 = vunpack.c.h.b16 %v58
  %v456 = vunpack.c.l.b16 %v59
  %v457 = vunpack.c.l.b16 %v60
  %v458 = vunpack.c.h.b16 %v60
  %v459 = vunpack.c.l.b16 %v61
  %v460 = vunpack.c.h.b16 %v61
  %v461 = vunpack.c.l.b16 %v62
  %v462 = vunpack.c.h.b16 %v62
  %v463 = vunpack.c.l.b16 %v63
  %v464 = vunpack.c.h.b16 %v63
  %v465 = vunpack.c.l.b16 %v64
  %v466 = vunpack.c.l.b16 %v65
  %v467 = vunpack.c.h.b16 %v65
  %v468 = vunpack.c.l.b16 %v66
  %v469 = vunpack.c.h.b16 %v66
  %v470 = vunpack.c.l.b16 %v67
  %v471 = vunpack.c.h.b16 %v67
  %v472 = vunpack.c.l.b16 %v68
  %v473 = vunpack.c.h.b16 %v68
  %v474 = vunpack.c.l.b16 %v69
  %v475 = vunpack.c.l.b16 %v70
  %v476 = vunpack.c.h.b16 %v70
  %v477 = vunpack.c.l.b16 %v71
  %v478 = vunpack.c.h.b16 %v71
  %v479 = vunpack.c.l.b16 %v72
  %v480 = vunpack.c.h.b16 %v72
  %v481 = vunpack.c.l.b16 %v73
  %v482 = vunpack.c.h.b16 %v73
  %v483 = vunpack.c.l.b16 %v74
  %v484 = vunpack.c.l.b16 %v75
  %v485 = vunpack.c.h.b16 %v75
  %v486 = vunpack.c.l.b16 %v76
  %v487 = vunpack.c.h.b16 %v76
  %v488 = vunpack.c.l.b16 %v77
  %v489 = vunpack.c.h.b16 %v77
  %v490 = vunpack.c.l.b16 %v78
  %v491 = vunpack.c.h.b16 %v78
  %v492 = vunpack.c.l.b16 %v79
  %v493 = vunpack.c.l.b16 %v80
  %v494 = vunpack.c.h.b16 %v80
  %v495 = vunpack.c.l.b16 %v81
  %v496 = vunpack.c.h.b16 %v81
  %v497 = vunpack.c.l.b16 %v82
  %v498 = vunpack.c.h.b16 %v82
  %v499 = vunpack.c.l.b16 %v83
  %v500 = vunpack.c.h.b16 %v83
  %v501 = vunpack.c.l.b16 %v84
  %v502 = vunpack.c.l.b16 %v85
  %v503 = vunpack.c.h.b16 %v85
  %v504 = vunpack.c.l.b16 %v86
  %v505 = vunpack.c.h.b16 %v86
  %v506 = vunpack.c.l.b16 %v87
  %v507 = vunpack.c.h.b16 %v87
  %v508 = vunpack.c.l.b16 %v88
  %v509 = vunpack.c.h.b16 %v88
  %v510 = vunpack.c.l.b16 %v89
  %v511 = vunpack.c.l.b16 %v90
  %v512 = vunpack.c.h.b16 %v90
  %v513 = vunpack.c.l.b16 %v91
  %v514 = vunpack.c.h.b16 %v91
  %v515 = vunpack.c.l.b16 %v92
  %v516 = vunpack.c.h.b16 %v92
  %v517 = vunpack.c.l.b16 %v93
  %v518 = vunpack.c.h.b16 %v93
  %v519 = vunpack.c.l.b16 %v94
  %v520 = vunpack.c.l.b16 %v95
  %v521 = vunpack.c.h.b16 %v95
  %v522 = vunpack.c.l.b16 %v96
  %v523 = vunpack.c.h.b16 %v96
  %v524 = vunpack.c.l.b16 %v97
  %v525 = vunpack.c.h.b16 %v97
  %v526 = vunpack.c.l.b16 %v98
  %v527 = vunpack.c.h.b16 %v98
  %v528 = vunpack.c.l.b16 %v99
  %v529 = vunpack.c.l.b16 %v100
  %v530 = vunpack.c.h.b16 %v100
  %v531 = vunpack.c.l.b16 %v101
  %v532 = vunpack.c.h.b16 %v101
  %v533 = vunpack.c.l.b16 %v102
  %v534 = vunpack.c.h.b16 %v102
  %v535 = vunpack.c.l.b16 %v103
  %v536 = vunpack.c.h.b16 %v103
  %v537 = vunpack.c.l.b16 %v104
  %v538 = vunpack.c.l.b16 %v105
  %v539 = vunpack.c.h.b16 %v105
  %v540 = vunpack.c.l.b16 %v106
  %v541 = vunpack.c.h.b16 %v106
  %v542 = vunpack.c.l.b16 %v107
  %v543 = vunpack.c.h.b16 %v107
  %v544 = vunpack.c.l.b16 %v108
  %v545 = vunpack.c.h.b16 %v108
  %v546 = vunpack.c.l.b16 %v109
  %v547 = vunpack.c.l.b16 %v110
  %v548 = vunpack.c.h.b16 %v110
  %v549 = vunpack.c.l.b16 %v111
  %v550 = vunpack.c.h.b16 %v111
  %v551 = vunpack.c.l.b16 %v112
  %v552 = vunpack.c.h.b16 %v112
  %v553 = vunpack.c.l.b16 %v113
  %v554 = vunpack.c.h.b16 %v113
  %v555 = vunpack.c.l.b16 %v114
  %v556 = vunpack.c.l.b16 %v115
  %v557 = vunpack.c.h.b16 %v115
  %v558 = vunpack.c.l.b16 %v116
  %v559 = vunpack.c.h.b16 %v116
  %v560 = vunpack.c.l.b16 %v117
  %v561 = vunpack.c.h.b16 %v117
  %v562 = vunpack.c.l.b16 %v118
  %v563 = vunpack.c.h.b16 %v118
  %v564 = vunpack.c.l.b16 %v119
  %v565 = vpack.c.b16 %v385, %v376
  %v566 = vpack.c.b16 %v386, %v377
  %v567 = vpack.c.b16 %v387, %v378
  %v568 = vpack.c.b16 %v388, %v379
  %v569 = vpack.c.b16 %v389, %v380
  %v570 = vpack.c.b16 %v390, %v381
  %v571 = vpack.c.b16 %v391, %v382
  %v572 = vpack.c.b16 %v392, %v383
  %v573 = vpack.c.b16 %v393, %v384
  %v574 = vpack.c.b16 %v403, %v394
  %v575 = vpack.c.b16 %v404, %v395
  %v576 = vpack.c.b16 %v405, %v396
  %v577 = vpack.c.b16 %v406, %v397
  %v578 = vpack.c.b16 %v407, %v398
  %v579 = vpack.c.b16 %v408, %v399
  %v580 = vpack.c.b16 %v409, %v400
  %v581 = vpack.c.b16 %v410, %v401
  %v582 = vpack.c.b16 %v411, %v402
  %v583 = vpack.c.b16 %v421, %v412
  %v584 = vpack.c.b16 %v422, %v413
  %v585 = vpack.c.b16 %v423, %v414
  %v586 = vpack.c.b16 %v424, %v415
  %v587 = vpack.c.b16 %v425, %v416
  %v588 = vpack.c.b16 %v426, %v417
  %v589 = vpack.c.b16 %v427, %v418
  %v590 = vpack.c.b16 %v428, %v419
  %v591 = vpack.c.b16 %v429, %v420
  %v592 = vpack.c.b16 %v439, %v430
  %v593 = vpack.c.b16 %v440, %v431
  %v594 = vpack.c.b16 %v441, %v432
  %v595 = vpack.c.b16 %v442, %v433
  %v596 = vpack.c.b16 %v443, %v434
  %v597 = vpack.c.b16 %v444, %v435
  %v598 = vpack.c.b16 %v445, %v436
  %v599 = vpack.c.b16 %v446, %v437
  %v600 = vpack.c.b16 %v447, %v438
  %v601 = vpack.c.b16 %v457, %v448
  %v602 = vpack.c.b16 %v458, %v449
  %v603 = vpack.c.b16 %v459, %v450
  %v604 = vpack.c.b16 %v460, %v451
  %v605 = vpack.c.b16 %v461, %v452
  %v606 = vpack.c.b16 %v462, %v453
  %v607 = vpack.c.b16 %v463, %v454
  %v608 = vpack.c.b16 %v464, %v455
  %v609 = vpack.c.b16 %v465, %v456
  %v610 = vpack.c.b16 %v475, %v466
  %v611 = vpack.c.b16 %v476, %v467
  %v612 = vpack.c.b16 %v477, %v468
  %v613 = vpack.c.b16 %v478, %v469
  %v614 = vpack.c.b16 %v479, %v470
  %v615 = vpack.c.b16 %v480, %v471
  %v616 = vpack.c.b16 %v481, %v472
  %v617 = vpack.c.b16 %v482, %v473
  %v618 = vpack.c.b16 %v483, %v474
  %v619 = vpack.c.b16 %v493, %v484
  %v620 = vpack.c.b16 %v494, %v485
  %v621 = vpack.c.b16 %v495, %v486
  %v622 = vpack.c.b16 %v496, %v487
  %v623 = vpack.c.b16 %v497, %v488
  %v624 = vpack.c.b16 %v498, %v489
  %v625 = vpack.c.b16 %v499, %v490
  %v626 = vpack.c.b16 %v500, %v491
  %v627 = vpack.c.b16 %v501, %v492
  %v628 = vpack.c.b16 %v511, %v502
  %v629 = vpack.c.b16 %v512, %v503
  %v630 = vpack.c.b16 %v513, %v504
  %v631 = vpack.c.b16 %v514, %v505
  %v632 = vpack.c.b16 %v515, %v506
  %v633 = vpack.c.b16 %v516, %v507
  %v634 = vpack.c.b16 %v517, %v508
  %v635 = vpack.c.b16 %v518, %v509
  %v636 = vpack.c.b16 %v519, %v510
  %v637 = vpack.c.b16 %v529, %v520
  %v638 = vpack.c.b16 %v530, %v521
  %v639 = vpack.c.b16 %v531, %v522
  %v640 = vpack.c.b16 %v532, %v523
  %v641 = vpack.c.b16 %v533, %v524
  %v642 = vpack.c.b16 %v534, %v525
  %v643 = vpack.c.b16 %v535, %v526
  %v644 = vpack.c.b16 %v536, %v527
  %v645 = vpack.c.b16 %v537, %v528
  %v646 = vpack.c.b16 %v547, %v538
  %v647 = vpack.c.b16 %v548, %v539
  %v648 = vpack.c.b16 %v549, %v540
  %v649 = vpack.c.b16 %v550, %v541
  %v650 = vpack.c.b16 %v551, %v542
  %v651 = vpack.c.b16 %v552, %v543
  %v652 = vpack.c.b16 %v553, %v544
  %v653 = vpack.c.b16 %v554, %v545
  %v654 = vpack.c.b16 %v555, %v546
  %v655 = vpack.c.b16 %v556, %v556
  %v656 = vpack.c.b16 %v557, %v557
  %v657 = vpack.c.b16 %v558, %v558
  %v658 = vpack.c.b16 %v559, %v559
  %v659 = vpack.c.b16 %v560, %v560
  %v660 = vpack.c.b16 %v561, %v561
  %v661 = vpack.c.b16 %v562, %v562
  %v662 = vpack.c.b16 %v563, %v563
  %v663 = vpack.c.b16 %v564, %v564
  %v907 = vunpack.c.l.b16 %v120
  %v908 = vunpack.c.l.b16 %v121
  %v909 = vunpack.c.l.b16 %v122
  %v910 = vunpack.c.l.b16 %v123
  %v911 = vunpack.c.l.b16 %v124
  %v912 = vunpack.c.l.b16 %v125
  %v913 = vunpack.c.l.b16 %v126
  %v914 = vunpack.c.l.b16 %v127
  %v915 = vunpack.c.l.b16 %v128
  %v916 = vunpack.c.l.b16 %v129
  %v917 = vunpack.c.l.b16 %v130
  %v918 = vunpack.c.l.b16 %v131
  %v919 = vunpack.c.l.b16 %v132
  %v920 = vunpack.c.l.b16 %v133
  %v921 = vunpack.c.l.b16 %v134
  %v922 = vunpack.c.l.b16 %v135
  %v923 = vunpack.c.l.b16 %v136
  %v924 = vunpack.c.l.b16 %v137
  %v925 = vunpack.c.l.b16 %v138
  %v926 = vunpack.c.l.b16 %v139
  %v927 = vunpack.c.l.b16 %v140
  %v928 = vunpack.c.l.b16 %v141
  %v929 = vunpack.c.l.b16 %v142
  %v930 = vunpack.c.l.b16 %v143
  %v931 = vunpack.c.l.b16 %v144
  %v932 = vunpack.c.l.b16 %v145
  %v933 = vunpack.c.l.b16 %v146
  %v934 = vunpack.c.l.b16 %v147
  %v935 = vunpack.c.l.b16 %v148
  %v936 = vunpack.c.l.b16 %v149
  %v937 = vunpack.c.l.b16 %v150
  %v938 = vunpack.c.l.b16 %v151
  %v939 = vunpack.c.l.b16 %v152
  %v940 = vunpack.c.l.b16 %v153
  %v941 = vunpack.c.l.b16 %v154
  %v942 = vunpack.c.l.b16 %v155
  %v943 = vunpack.c.l.b16 %v156
  %v944 = vunpack.c.l.b16 %v157
  %v945 = vunpack.c.l.b16 %v158
  %v946 = vunpack.c.l.b16 %v159
  %v947 = vunpack.c.l.b16 %v160
  %v948 = vunpack.c.l.b16 %v161
  %v949 = vunpack.c.l.b16 %v162
  %v950 = vunpack.c.l.b16 %v163
  %v951 = vunpack.c.l.b16 %v164
  %v952 = vunpack.c.l.b16 %v165
  %v953 = vunpack.c.l.b16 %v166
  %v954 = vunpack.c.l.b16 %v167
  %v955 = vunpack.c.l.b16 %v168
  %v956 = vunpack.c.l.b16 %v169
  %v957 = vunpack.c.l.b16 %v170
  %v958 = vunpack.c.l.b16 %v171
  %v959 = vunpack.c.l.b16 %v172
  %v960 = vunpack.c.l.b16 %v173
  %v961 = vunpack.c.l.b16 %v174
  %v962 = vunpack.c.l.b16 %v175
  %v963 = vunpack.c.l.b16 %v176
  %v964 = vunpack.c.l.b16 %v177
  %v965 = vunpack.c.l.b16 %v178
  %v966 = vunpack.c.l.b16 %v179
  %v967 = vunpack.c.l.b16 %v180
  %v968 = vunpack.c.l.b16 %v181
  %v969 = vunpack.c.l.b16 %v182
  %v970 = vunpack.c.l.b16 %v183
  %v971 = vunpack.c.l.b16 %v184
  %v972 = vunpack.c.l.b16 %v185
  %v973 = vunpack.c.l.b16 %v186
  %v974 = vunpack.c.l.b16 %v187
  %v975 = vunpack.c.l.b16 %v188
  %v976 = vunpack.c.l.b16 %v189
  %v977 = vunpack.c.l.b16 %v190
  %v978 = vunpack.c.l.b16 %v191
  %v979 = vunpack.c.l.b16 %v192
  %v980 = vunpack.c.l.b16 %v193
  %v981 = vunpack.c.l.b16 %v194
  %v982 = vunpack.c.l.b16 %v195
  %v983 = vunpack.c.l.b16 %v196
  %v984 = vunpack.c.l.b16 %v197
  %v985 = vunpack.c.l.b16 %v198
  %v986 = vunpack.c.l.b16 %v199
  %v987 = vunpack.c.l.b16 %v200
  %v988 = vunpack.c.l.b16 %v201
  %v989 = vunpack.c.l.b16 %v202
  %v990 = vunpack.c.l.b16 %v203
  %v991 = vunpack.c.l.b16 %v204
  %v992 = vunpack.c.l.b16 %v205
  %v993 = vunpack.c.l.b16 %v206
  %v994 = vunpack.c.l.b16 %v207
  %v995 = vunpack.c.l.b16 %v208
  %v996 = vunpack.c.l.b16 %v209
  %v997 = vunpack.c.l.b16 %v210
  %v998 = vunpack.c.l.b16 %v211
  %v999 = vunpack.c.l.b16 %v212
  %v1000 = vunpack.c.l.b16 %v213
  %v1001 = vunpack.c.l.b16 %v214
  %v1002 = vunpack.c.l.b16 %v215
  %v1003 = vunpack.c.l.b16 %v216
  %v1004 = vunpack.c.l.b16 %v217
  %v1005 = vunpack.c.l.b16 %v218
  %v1006 = vunpack.c.l.b16 %v219
  %v1007 = vunpack.c.l.b16 %v220
  %v1008 = vunpack.c.l.b16 %v221
  %v1009 = vunpack.c.l.b16 %v222
  %v1010 = vunpack.c.l.b16 %v223
  %v1011 = vunpack.c.l.b16 %v224
  %v1012 = vunpack.c.l.b16 %v225
  %v1013 = vunpack.c.l.b16 %v226
  %v1014 = vunpack.c.l.b16 %v227
  %v1015 = vunpack.c.l.b16 %v228
  %v1016 = vunpack.c.l.b16 %v229
  %v1017 = vunpack.c.l.b16 %v230
  %v1018 = vunpack.c.l.b16 %v231
  %v1019 = vunpack.c.l.b16 %v232
  %v1020 = vunpack.c.l.b16 %v233
  %v1021 = vunpack.c.l.b16 %v234
  %v1022 = vunpack.c.l.b16 %v235
  %v1023 = vunpack.c.l.b16 %v236
  %v1024 = vunpack.c.l.b16 %v237
  %v1025 = vunpack.c.l.b16 %v238
  %v1026 = vunpack.c.l.b16 %v239
  %v1027 = vunpack.c.l.b16 %v240
  %v1028 = vunpack.c.l.b16 %v241
  %v1029 = vunpack.c.l.b16 %v242
  %v1030 = vunpack.c.l.b16 %v243
  %v1031 = vunpack.c.l.b16 %v244
  %v1032 = vunpack.c.l.b16 %v245
  %v1033 = vunpack.c.l.b16 %v246
  %v1034 = vunpack.c.l.b16 %v247
  %v1035 = vunpack.c.l.b16 %v248
  %v1036 = vunpack.c.l.b16 %v249
  %v1037 = vunpack.c.l.b16 %v250
  %v1038 = vunpack.c.l.b16 %v251
  %v1039 = vunpack.c.l.b16 %v252
  %v1040 = vunpack.c.l.b16 %v253
  %v1041 = vunpack.c.l.b16 %v254
  %v1042 = vunpack.c.l.b16 %v255
  %v1043 = vunpack.c.l.b16 %v256
  %v1044 = vunpack.c.l.b16 %v257
  %v1045 = vunpack.c.l.b16 %v258
  %v1046 = vunpack.c.l.b16 %v259
  %v1047 = vunpack.c.l.b16 %v260
  %v1048 = vunpack.c.l.b16 %v261
  %v1049 = vunpack.c.l.b16 %v262
  %v1050 = vunpack.c.l.b16 %v263
  %v1051 = vpack.c.b16 %v908, %v907
  %v1052 = vpack.c.b16 %v910, %v909
  %v1053 = vpack.c.b16 %v912, %v911
  %v1054 = vpack.c.b16 %v914, %v913
  %v1055 = vpack.c.b16 %v916, %v915
  %v1056 = vpack.c.b16 %v918, %v917
  %v1057 = vpack.c.b16 %v920, %v919
  %v1058 = vpack.c.b16 %v922, %v921
  %v1059 = vpack.c.b16 %v924, %v923
  %v1060 = vpack.c.b16 %v926, %v925
  %v1061 = vpack.c.b16 %v928, %v927
  %v1062 = vpack.c.b16 %v930, %v929
  %v1063 = vpack.c.b16 %v932, %v931
  %v1064 = vpack.c.b16 %v934, %v933
  %v1065 = vpack.c.b16 %v936, %v935
  %v1066 = vpack.c.b16 %v938, %v937
  %v1067 = vpack.c.b16 %v940, %v939
  %v1068 = vpack.c.b16 %v942, %v941
  %v1069 = vpack.c.b16 %v944, %v943
  %v1070 = vpack.c.b16 %v946, %v945
  %v1071 = vpack.c.b16 %v948, %v947
  %v1072 = vpack.c.b16 %v950, %v949
  %v1073 = vpack.c.b16 %v952, %v951
  %v1074 = vpack.c.b16 %v954, %v953
  %v1075 = vpack.c.b16 %v956, %v955
  %v1076 = vpack.c.b16 %v958, %v957
  %v1077 = vpack.c.b16 %v960, %v959
  %v1078 = vpack.c.b16 %v962, %v961
  %v1079 = vpack.c.b16 %v964, %v963
  %v1080 = vpack.c.b16 %v966, %v965
  %v1081 = vpack.c.b16 %v968, %v967
  %v1082 = vpack.c.b16 %v970, %v969
  %v1083 = vpack.c.b16 %v972, %v971
  %v1084 = vpack.c.b16 %v974, %v973
  %v1085 = vpack.c.b16 %v976, %v975
  %v1086 = vpack.c.b16 %v978, %v977
  %v1087 = vpack.c.b16 %v980, %v979
  %v1088 = vpack.c.b16 %v982, %v981
  %v1089 = vpack.c.b16 %v984, %v983
  %v1090 = vpack.c.b16 %v986, %v985
  %v1091 = vpack.c.b16 %v988, %v987
  %v1092 = vpack.c.b16 %v990, %v989
  %v1093 = vpack.c.b16 %v992, %v991
  %v1094 = vpack.c.b16 %v994, %v993
  %v1095 = vpack.c.b16 %v996, %v995
  %v1096 = vpack.c.b16 %v998, %v997
  %v1097 = vpack.c.b16 %v1000, %v999
  %v1098 = vpack.c.b16 %v1002, %v1001
  %v1099 = vpack.c.b16 %v1004, %v1003
  %v1100 = vpack.c.b16 %v1006, %v1005
  %v1101 = vpack.c.b16 %v1008, %v1007
  %v1102 = vpack.c.b16 %v1010, %v1009
  %v1103 = vpack.c.b16 %v1012, %v1011
  %v1104 = vpack.c.b16 %v1014, %v1013
  %v1105 = vpack.c.b16 %v1016, %v1015
  %v1106 = vpack.c.b16 %v1018, %v1017
  %v1107 = vpack.c.b16 %v1020, %v1019
  %v1108 = vpack.c.b16 %v1022, %v1021
  %v1109 = vpack.c.b16 %v1024, %v1023
  %v1110 = vpack.c.b16 %v1026, %v1025
  %v1111 = vpack.c.b16 %v1028, %v1027
  %v1112 = vpack.c.b16 %v1030, %v1029
  %v1113 = vpack.c.b16 %v1032, %v1031
  %v1114 = vpack.c.b16 %v1034, %v1033
  %v1115 = vpack.c.b16 %v1036, %v1035
  %v1116 = vpack.c.b16 %v1038, %v1037
  %v1117 = vpack.c.b16 %v1040, %v1039
  %v1118 = vpack.c.b16 %v1042, %v1041
  %v1119 = vpack.c.b16 %v1044, %v1043
  %v1120 = vpack.c.b16 %v1046, %v1045
  %v1121 = vpack.c.b16 %v1048, %v1047
  %v1122 = vpack.c.b16 %v1050, %v1049
  %1195 = vmatprep.subr.bf16.mxu0 0
  %1196 = vmatpush1.bf16.msra.mxu0 %v1051
  %1197 = vmatprep.subr.bf16.mxu0 0
  %1198 = vmatpush1.bf16.msra.mxu0 %v1052
  %1199 = vmatprep.subr.bf16.mxu0 0
  %1200 = vmatpush1.bf16.msra.mxu0 %v1053
  %1201 = vmatprep.subr.bf16.mxu0 0
  %1202 = vmatpush1.bf16.msra.mxu0 %v1054
  %1203 = vmatprep.subr.bf16.mxu0 0
  %1204 = vmatpush1.bf16.msra.mxu0 %v1055
  %1205 = vmatprep.subr.bf16.mxu0 0
  %1206 = vmatpush1.bf16.msra.mxu0 %v1056
  %1207 = vmatprep.subr.bf16.mxu0 0
  %1208 = vmatpush1.bf16.msra.mxu0 %v1057
  %1209 = vmatprep.subr.bf16.mxu0 0
  %1210 = vmatpush1.bf16.msra.mxu0 %v1058
  %1211 = vmatprep.subr.bf16.mxu0 0
  %1212 = vmatpush1.bf16.msra.mxu0 %v1059
  %1213 = vmatprep.subr.bf16.mxu0 0
  %1214 = vmatpush1.bf16.msra.mxu0 %v1060
  %1215 = vmatprep.subr.bf16.mxu0 0
  %1216 = vmatpush1.bf16.msra.mxu0 %v1061
  %1217 = vmatprep.subr.bf16.mxu0 0
  %1218 = vmatpush1.bf16.msra.mxu0 %v1062
  %1219 = vmatprep.subr.bf16.mxu0 0
  %1220 = vmatpush1.bf16.msra.mxu0 %v1063
  %1221 = vmatprep.subr.bf16.mxu0 0
  %1222 = vmatpush1.bf16.msra.mxu0 %v1064
  %1223 = vmatprep.subr.bf16.mxu0 0
  %1224 = vmatpush1.bf16.msra.mxu0 %v1065
  %1225 = vmatprep.subr.bf16.mxu0 0
  %1226 = vmatpush1.bf16.msra.mxu0 %v1066
  %1227 = vmatprep.mubr.bf16.mxu0 %v566
  %1228 = vmatmul.mubr.bf16.gmra.mrb[0].mxu0 %v565
  %v1229 = vpop.f32.mrb[0].mxu0
  %v1230 = vadd.f32 %v269, %v1229
  %v1231 = vpop.f32.mrb[0].mxu0
  %v1232 = vpop.f32.mrb[0].mxu0
  %v1233 = vadd.f32 %v269, %v1232
  %v1234 = vpop.f32.mrb[0].mxu0
  %1235 = vmatprep.mubr.bf16.mxu0 %v575
  %1236 = vmatmul.mubr.bf16.gmra.mrb[0].mxu0 %v574
  %v1237 = vpop.f32.mrb[0].mxu0
  %v1238 = vadd.f32 %v269, %v1237
  %v1239 = vpop.f32.mrb[0].mxu0
  %v1240 = vpop.f32.mrb[0].mxu0
  %v1241 = vadd.f32 %v269, %v1240
  %v1242 = vpop.f32.mrb[0].mxu0
  %1243 = vmatprep.mubr.bf16.mxu0 %v584
  %1244 = vmatmul.mubr.bf16.gmra.mrb[0].mxu0 %v583
  %v1245 = vpop.f32.mrb[0].mxu0
  %v1246 = vadd.f32 %v269, %v1245
  %v1247 = vpop.f32.mrb[0].mxu0
  %v1248 = vpop.f32.mrb[0].mxu0
  %v1249 = vadd.f32 %v269, %v1248
  %v1250 = vpop.f32.mrb[0].mxu0
  %1251 = vmatprep.mubr.bf16.mxu0 %v593
  %1252 = vmatmul.mubr.bf16.gmra.mrb[0].mxu0 %v592
  %v1253 = vpop.f32.mrb[0].mxu0
  %v1254 = vadd.f32 %v269, %v1253
  %v1255 = vpop.f32.mrb[0].mxu0
  %v1256 = vpop.f32.mrb[0].mxu0
  %v1257 = vadd.f32 %v269, %v1256
  %v1258 = vpop.f32.mrb[0].mxu0
  %1259 = vmatprep.mubr.bf16.mxu0 %v602
  %1260 = vmatmul.mubr.bf16.gmra.mrb[0].mxu0 %v601
  %v1261 = vpop.f32.mrb[0].mxu0
  %v1262 = vadd.f32 %v269, %v1261
  %v1263 = vpop.f32.mrb[0].mxu0
  %v1264 = vpop.f32.mrb[0].mxu0
  %v1265 = vadd.f32 %v269, %v1264
  %v1266 = vpop.f32.mrb[0].mxu0
  %1267 = vmatprep.mubr.bf16.mxu0 %v611
  %1268 = vmatmul.mubr.bf16.gmra.mrb[0].mxu0 %v610
  %v1269 = vpop.f32.mrb[0].mxu0
  %v1270 = vadd.f32 %v269, %v1269
  %v1271 = vpop.f32.mrb[0].mxu0
  %v1272 = vpop.f32.mrb[0].mxu0
  %v1273 = vadd.f32 %v269, %v1272
  %v1274 = vpop.f32.mrb[0].mxu0
  %1275 = vmatprep.mubr.bf16.mxu0 %v620
  %1276 = vmatmul.mubr.bf16.gmra.mrb[0].mxu0 %v619
  %v1277 = vpop.f32.mrb[0].mxu0
  %v1278 = vadd.f32 %v269, %v1277
  %v1279 = vpop.f32.mrb[0].mxu0
  %v1280 = vpop.f32.mrb[0].mxu0
  %v1281 = vadd.f32 %v269, %v1280
  %v1282 = vpop.f32.mrb[0].mxu0
  %1283 = vmatprep.mubr.bf16.mxu0 %v629
  %1284 = vmatmul.mubr.bf16.gmra.mrb[0].mxu0 %v628
  %v1285 = vpop.f32.mrb[0].mxu0
  %v1286 = vadd.f32 %v269, %v1285
  %v1287 = vpop.f32.mrb[0].mxu0
  %v1288 = vpop.f32.mrb[0].mxu0
  %v1289 = vadd.f32 %v269, %v1288
  %v1290 = vpop.f32.mrb[0].mxu0
  %1291 = vmatprep.mubr.bf16.mxu0 %v638
  %1292 = vmatmul.mubr.bf16.gmra.mrb[0].mxu0 %v637
  %v1293 = vpop.f32.mrb[0].mxu0
  %v1294 = vadd.f32 %v269, %v1293
  %v1295 = vpop.f32.mrb[0].mxu0
  %v1296 = vpop.f32.mrb[0].mxu0
  %v1297 = vadd.f32 %v269, %v1296
  %v1298 = vpop.f32.mrb[0].mxu0
  %1299 = vmatprep.mubr.bf16.mxu0 %v647
  %1300 = vmatmul.mubr.bf16.gmra.mrb[0].mxu0 %v646
  %v1301 = vpop.f32.mrb[0].mxu0
  %v1302 = vadd.f32 %v269, %v1301
  %v1303 = vpop.f32.mrb[0].mxu0
  %v1304 = vpop.f32.mrb[0].mxu0
  %v1305 = vadd.f32 %v269, %v1304
  %v1306 = vpop.f32.mrb[0].mxu0
  %1307 = vmatprep.mubr.bf16.mxu0 %v656
  %1308 = vmatmul.mubr.bf16.gmra.mrb[0].mxu0 %v655
  %v1309 = vpop.f32.mrb[0].mxu0
  %v1310 = vadd.f32 %v269, %v1309
  %v1311 = vpop.f32.mrb[0].mxu0
  %v1312 = vpop.f32.mrb[0].mxu0
  %v1313 = vpop.f32.mrb[0].mxu0
  %1314 = vdwg.mxu0
  %1315 = vmatprep.subr.bf16.mxu0 0
  %1316 = vmatpush1.bf16.msra.mxu0 %v1067
  %1317 = vmatprep.subr.bf16.mxu0 0
  %1318 = vmatpush1.bf16.msra.mxu0 %v1068
  %1319 = vmatprep.subr.bf16.mxu0 0
  %1320 = vmatpush1.bf16.msra.mxu0 %v1069
  %1321 = vmatprep.subr.bf16.mxu0 0
  %1322 = vmatpush1.bf16.msra.mxu0 %v1070
  %1323 = vmatprep.subr.bf16.mxu0 0
  %1324 = vmatpush1.bf16.msra.mxu0 %v1071
  %1325 = vmatprep.subr.bf16.mxu0 0
  %1326 = vmatpush1.bf16.msra.mxu0 %v1072
  %1327 = vmatprep.subr.bf16.mxu0 0
  %1328 = vmatpush1.bf16.msra.mxu0 %v1073
  %1329 = vmatprep.subr.bf16.mxu0 0
  %1330 = vmatpush1.bf16.msra.mxu0 %v1074
  %1331 = vmatprep.subr.bf16.mxu0 0
  %1332 = vmatpush1.bf16.msra.mxu0 %v1075
  %1333 = vmatprep.subr.bf16.mxu0 0
  %1334 = vmatpush1.bf16.msra.mxu0 %v1076
  %1335 = vmatprep.subr.bf16.mxu0 0
  %1336 = vmatpush1.bf16.msra.mxu0 %v1077
  %1337 = vmatprep.subr.bf16.mxu0 0
  %1338 = vmatpush1.bf16.msra.mxu0 %v1078
  %1339 = vmatprep.subr.bf16.mxu0 0
  %1340 = vmatpush1.bf16.msra.mxu0 %v1079
  %1341 = vmatprep.subr.bf16.mxu0 0
  %1342 = vmatpush1.bf16.msra.mxu0 %v1080
  %1343 = vmatprep.subr.bf16.mxu0 0
  %1344 = vmatpush1.bf16.msra.mxu0 %v1081
  %1345 = vmatprep.subr.bf16.mxu0 0
  %1346 = vmatpush1.bf16.msra.mxu0 %v1082
  %1347 = vmatprep.mubr.bf16.mxu0 %v568
  %1348 = vmatmul.mubr.bf16.gmra.mrb[0].mxu0 %v567
  %v1349 = vpop.f32.mrb[0].mxu0
  %v1350 = vadd.f32 %v1230, %v1349
  %v1351 = vpop.f32.mrb[0].mxu0
  %v1352 = vpop.f32.mrb[0].mxu0
  %v1353 = vadd.f32 %v1233, %v1352
  %v1354 = vpop.f32.mrb[0].mxu0
  %1355 = vmatprep.mubr.bf16.mxu0 %v577
  %1356 = vmatmul.mubr.bf16.gmra.mrb[0].mxu0 %v576
  %v1357 = vpop.f32.mrb[0].mxu0
  %v1358 = vadd.f32 %v1238, %v1357
  %v1359 = vpop.f32.mrb[0].mxu0
  %v1360 = vpop.f32.mrb[0].mxu0
  %v1361 = vadd.f32 %v1241, %v1360
  %v1362 = vpop.f32.mrb[0].mxu0
  %1363 = vmatprep.mubr.bf16.mxu0 %v586
  %1364 = vmatmul.mubr.bf16.gmra.mrb[0].mxu0 %v585
  %v1365 = vpop.f32.mrb[0].mxu0
  %v1366 = vadd.f32 %v1246, %v1365
  %v1367 = vpop.f32.mrb[0].mxu0
  %v1368 = vpop.f32.mrb[0].mxu0
  %v1369 = vadd.f32 %v1249, %v1368
  %v1370 = vpop.f32.mrb[0].mxu0
  %1371 = vmatprep.mubr.bf16.mxu0 %v595
  %1372 = vmatmul.mubr.bf16.gmra.mrb[0].mxu0 %v594
  %v1373 = vpop.f32.mrb[0].mxu0
  %v1374 = vadd.f32 %v1254, %v1373
  %v1375 = vpop.f32.mrb[0].mxu0
  %v1376 = vpop.f32.mrb[0].mxu0
  %v1377 = vadd.f32 %v1257, %v1376
  %v1378 = vpop.f32.mrb[0].mxu0
  %1379 = vmatprep.mubr.bf16.mxu0 %v604
  %1380 = vmatmul.mubr.bf16.gmra.mrb[0].mxu0 %v603
  %v1381 = vpop.f32.mrb[0].mxu0
  %v1382 = vadd.f32 %v1262, %v1381
  %v1383 = vpop.f32.mrb[0].mxu0
  %v1384 = vpop.f32.mrb[0].mxu0
  %v1385 = vadd.f32 %v1265, %v1384
  %v1386 = vpop.f32.mrb[0].mxu0
  %1387 = vmatprep.mubr.bf16.mxu0 %v613
  %1388 = vmatmul.mubr.bf16.gmra.mrb[0].mxu0 %v612
  %v1389 = vpop.f32.mrb[0].mxu0
  %v1390 = vadd.f32 %v1270, %v1389
  %v1391 = vpop.f32.mrb[0].mxu0
  %v1392 = vpop.f32.mrb[0].mxu0
  %v1393 = vadd.f32 %v1273, %v1392
  %v1394 = vpop.f32.mrb[0].mxu0
  %1395 = vmatprep.mubr.bf16.mxu0 %v622
  %1396 = vmatmul.mubr.bf16.gmra.mrb[0].mxu0 %v621
  %v1397 = vpop.f32.mrb[0].mxu0
  %v1398 = vadd.f32 %v1278, %v1397
  %v1399 = vpop.f32.mrb[0].mxu0
  %v1400 = vpop.f32.mrb[0].mxu0
  %v1401 = vadd.f32 %v1281, %v1400
  %v1402 = vpop.f32.mrb[0].mxu0
  %1403 = vmatprep.mubr.bf16.mxu0 %v631
  %1404 = vmatmul.mubr.bf16.gmra.mrb[0].mxu0 %v630
  %v1405 = vpop.f32.mrb[0].mxu0
  %v1406 = vadd.f32 %v1286, %v1405
  %v1407 = vpop.f32.mrb[0].mxu0
  %v1408 = vpop.f32.mrb[0].mxu0
  %v1409 = vadd.f32 %v1289, %v1408
  %v1410 = vpop.f32.mrb[0].mxu0
  %1411 = vmatprep.mubr.bf16.mxu0 %v640
  %1412 = vmatmul.mubr.bf16.gmra.mrb[0].mxu0 %v639
  %v1413 = vpop.f32.mrb[0].mxu0
  %v1414 = vadd.f32 %v1294, %v1413
  %v1415 = vpop.f32.mrb[0].mxu0
  %v1416 = vpop.f32.mrb[0].mxu0
  %v1417 = vadd.f32 %v1297, %v1416
  %v1418 = vpop.f32.mrb[0].mxu0
  %1419 = vmatprep.mubr.bf16.mxu0 %v649
  %1420 = vmatmul.mubr.bf16.gmra.mrb[0].mxu0 %v648
  %v1421 = vpop.f32.mrb[0].mxu0
  %v1422 = vadd.f32 %v1302, %v1421
  %v1423 = vpop.f32.mrb[0].mxu0
  %v1424 = vpop.f32.mrb[0].mxu0
  %v1425 = vadd.f32 %v1305, %v1424
  %v1426 = vpop.f32.mrb[0].mxu0
  %1427 = vmatprep.mubr.bf16.mxu0 %v658
  %1428 = vmatmul.mubr.bf16.gmra.mrb[0].mxu0 %v657
  %v1429 = vpop.f32.mrb[0].mxu0
  %v1430 = vadd.f32 %v1310, %v1429
  %v1431 = vpop.f32.mrb[0].mxu0
  %v1432 = vpop.f32.mrb[0].mxu0
  %v1433 = vpop.f32.mrb[0].mxu0
  %1434 = vdwg.mxu0
  %1435 = vmatprep.subr.bf16.mxu0 0
  %1436 = vmatpush1.bf16.msra.mxu0 %v1083
  %1437 = vmatprep.subr.bf16.mxu0 0
  %1438 = vmatpush1.bf16.msra.mxu0 %v1084
  %1439 = vmatprep.subr.bf16.mxu0 0
  %1440 = vmatpush1.bf16.msra.mxu0 %v1085
  %1441 = vmatprep.subr.bf16.mxu0 0
  %1442 = vmatpush1.bf16.msra.mxu0 %v1086
  %1443 = vmatprep.subr.bf16.mxu0 0
  %1444 = vmatpush1.bf16.msra.mxu0 %v1087
  %1445 = vmatprep.subr.bf16.mxu0 0
  %1446 = vmatpush1.bf16.msra.mxu0 %v1088
  %1447 = vmatprep.subr.bf16.mxu0 0
  %1448 = vmatpush1.bf16.msra.mxu0 %v1089
  %1449 = vmatprep.subr.bf16.mxu0 0
  %1450 = vmatpush1.bf16.msra.mxu0 %v1090
  %1451 = vmatprep.subr.bf16.mxu0 0
  %1452 = vmatpush1.bf16.msra.mxu0 %v1091
  %1453 = vmatprep.subr.bf16.mxu0 0
  %1454 = vmatpush1.bf16.msra.mxu0 %v1092
  %1455 = vmatprep.subr.bf16.mxu0 0
  %1456 = vmatpush1.bf16.msra.mxu0 %v1093
  %1457 = vmatprep.subr.bf16.mxu0 0
  %1458 = vmatpush1.bf16.msra.mxu0 %v1094
  %1459 = vmatprep.subr.bf16.mxu0 0
  %1460 = vmatpush1.bf16.msra.mxu0 %v1095
  %1461 = vmatprep.subr.bf16.mxu0 0
  %1462 = vmatpush1.bf16.msra.mxu0 %v1096
  %1463 = vmatprep.subr.bf16.mxu0 0
  %1464 = vmatpush1.bf16.msra.mxu0 %v1097
  %1465 = vmatprep.subr.bf16.mxu0 0
  %1466 = vmatpush1.bf16.msra.mxu0 %v1098
  %1467 = vmatprep.mubr.bf16.mxu0 %v570
  %1468 = vmatmul.mubr.bf16.gmra.mrb[0].mxu0 %v569
  %v1469 = vpop.f32.mrb[0].mxu0
  %v1470 = vadd.f32 %v1350, %v1469
  %v1471 = vpop.f32.mrb[0].mxu0
  %v1472 = vpop.f32.mrb[0].mxu0
  %v1473 = vadd.f32 %v1353, %v1472
  %v1474 = vpop.f32.mrb[0].mxu0
  %1475 = vmatprep.mubr.bf16.mxu0 %v579
  %1476 = vmatmul.mubr.bf16.gmra.mrb[0].mxu0 %v578
  %v1477 = vpop.f32.mrb[0].mxu0
  %v1478 = vadd.f32 %v1358, %v1477
  %v1479 = vpop.f32.mrb[0].mxu0
  %v1480 = vpop.f32.mrb[0].mxu0
  %v1481 = vadd.f32 %v1361, %v1480
  %v1482 = vpop.f32.mrb[0].mxu0
  %1483 = vmatprep.mubr.bf16.mxu0 %v588
  %1484 = vmatmul.mubr.bf16.gmra.mrb[0].mxu0 %v587
  %v1485 = vpop.f32.mrb[0].mxu0
  %v1486 = vadd.f32 %v1366, %v1485
  %v1487 = vpop.f32.mrb[0].mxu0
  %v1488 = vpop.f32.mrb[0].mxu0
  %v1489 = vadd.f32 %v1369, %v1488
  %v1490 = vpop.f32.mrb[0].mxu0
  %1491 = vmatprep.mubr.bf16.mxu0 %v597
  %1492 = vmatmul.mubr.bf16.gmra.mrb[0].mxu0 %v596
  %v1493 = vpop.f32.mrb[0].mxu0
  %v1494 = vadd.f32 %v1374, %v1493
  %v1495 = vpop.f32.mrb[0].mxu0
  %v1496 = vpop.f32.mrb[0].mxu0
  %v1497 = vadd.f32 %v1377, %v1496
  %v1498 = vpop.f32.mrb[0].mxu0
  %1499 = vmatprep.mubr.bf16.mxu0 %v606
  %1500 = vmatmul.mubr.bf16.gmra.mrb[0].mxu0 %v605
  %v1501 = vpop.f32.mrb[0].mxu0
  %v1502 = vadd.f32 %v1382, %v1501
  %v1503 = vpop.f32.mrb[0].mxu0
  %v1504 = vpop.f32.mrb[0].mxu0
  %v1505 = vadd.f32 %v1385, %v1504
  %v1506 = vpop.f32.mrb[0].mxu0
  %1507 = vmatprep.mubr.bf16.mxu0 %v615
  %1508 = vmatmul.mubr.bf16.gmra.mrb[0].mxu0 %v614
  %v1509 = vpop.f32.mrb[0].mxu0
  %v1510 = vadd.f32 %v1390, %v1509
  %v1511 = vpop.f32.mrb[0].mxu0
  %v1512 = vpop.f32.mrb[0].mxu0
  %v1513 = vadd.f32 %v1393, %v1512
  %v1514 = vpop.f32.mrb[0].mxu0
  %1515 = vmatprep.mubr.bf16.mxu0 %v624
  %1516 = vmatmul.mubr.bf16.gmra.mrb[0].mxu0 %v623
  %v1517 = vpop.f32.mrb[0].mxu0
  %v1518 = vadd.f32 %v1398, %v1517
  %v1519 = vpop.f32.mrb[0].mxu0
  %v1520 = vpop.f32.mrb[0].mxu0
  %v1521 = vadd.f32 %v1401, %v1520
  %v1522 = vpop.f32.mrb[0].mxu0
  %1523 = vmatprep.mubr.bf16.mxu0 %v633
  %1524 = vmatmul.mubr.bf16.gmra.mrb[0].mxu0 %v632
  %v1525 = vpop.f32.mrb[0].mxu0
  %v1526 = vadd.f32 %v1406, %v1525
  %v1527 = vpop.f32.mrb[0].mxu0
  %v1528 = vpop.f32.mrb[0].mxu0
  %v1529 = vadd.f32 %v1409, %v1528
  %v1530 = vpop.f32.mrb[0].mxu0
  %1531 = vmatprep.mubr.bf16.mxu0 %v642
  %1532 = vmatmul.mubr.bf16.gmra.mrb[0].mxu0 %v641
  %v1533 = vpop.f32.mrb[0].mxu0
  %v1534 = vadd.f32 %v1414, %v1533
  %v1535 = vpop.f32.mrb[0].mxu0
  %v1536 = vpop.f32.mrb[0].mxu0
  %v1537 = vadd.f32 %v1417, %v1536
  %v1538 = vpop.f32.mrb[0].mxu0
  %1539 = vmatprep.mubr.bf16.mxu0 %v651
  %1540 = vmatmul.mubr.bf16.gmra.mrb[0].mxu0 %v650
  %v1541 = vpop.f32.mrb[0].mxu0
  %v1542 = vadd.f32 %v1422, %v1541
  %v1543 = vpop.f32.mrb[0].mxu0
  %v1544 = vpop.f32.mrb[0].mxu0
  %v1545 = vadd.f32 %v1425, %v1544
  %v1546 = vpop.f32.mrb[0].mxu0
  %1547 = vmatprep.mubr.bf16.mxu0 %v660
  %1548 = vmatmul.mubr.bf16.gmra.mrb[0].mxu0 %v659
  %v1549 = vpop.f32.mrb[0].mxu0
  %v1550 = vadd.f32 %v1430, %v1549
  %v1551 = vpop.f32.mrb[0].mxu0
  %v1552 = vpop.f32.mrb[0].mxu0
  %v1553 = vpop.f32.mrb[0].mxu0
  %1554 = vdwg.mxu0
  %1555 = vmatprep.subr.bf16.mxu0 0
  %1556 = vmatpush1.bf16.msra.mxu0 %v1099
  %1557 = vmatprep.subr.bf16.mxu0 0
  %1558 = vmatpush1.bf16.msra.mxu0 %v1100
  %1559 = vmatprep.subr.bf16.mxu0 0
  %1560 = vmatpush1.bf16.msra.mxu0 %v1101
  %1561 = vmatprep.subr.bf16.mxu0 0
  %1562 = vmatpush1.bf16.msra.mxu0 %v1102
  %1563 = vmatprep.subr.bf16.mxu0 0
  %1564 = vmatpush1.bf16.msra.mxu0 %v1103
  %1565 = vmatprep.subr.bf16.mxu0 0
  %1566 = vmatpush1.bf16.msra.mxu0 %v1104
  %1567 = vmatprep.subr.bf16.mxu0 0
  %1568 = vmatpush1.bf16.msra.mxu0 %v1105
  %1569 = vmatprep.subr.bf16.mxu0 0
  %1570 = vmatpush1.bf16.msra.mxu0 %v1106
  %1571 = vmatprep.subr.bf16.mxu0 0
  %1572 = vmatpush1.bf16.msra.mxu0 %v1107
  %1573 = vmatprep.subr.bf16.mxu0 0
  %1574 = vmatpush1.bf16.msra.mxu0 %v1108
  %1575 = vmatprep.subr.bf16.mxu0 0
  %1576 = vmatpush1.bf16.msra.mxu0 %v1109
  %1577 = vmatprep.subr.bf16.mxu0 0
  %1578 = vmatpush1.bf16.msra.mxu0 %v1110
  %1579 = vmatprep.subr.bf16.mxu0 0
  %1580 = vmatpush1.bf16.msra.mxu0 %v1111
  %1581 = vmatprep.subr.bf16.mxu0 0
  %1582 = vmatpush1.bf16.msra.mxu0 %v1112
  %1583 = vmatprep.subr.bf16.mxu0 0
  %1584 = vmatpush1.bf16.msra.mxu0 %v1113
  %1585 = vmatprep.subr.bf16.mxu0 0
  %1586 = vmatpush1.bf16.msra.mxu0 %v1114
  %1587 = vmatprep.mubr.bf16.mxu0 %v572
  %1588 = vmatmul.mubr.bf16.gmra.mrb[0].mxu0 %v571
  %v1589 = vpop.f32.mrb[0].mxu0
  %v1590 = vadd.f32 %v1470, %v1589
  %v1591 = vpop.f32.mrb[0].mxu0
  %v1592 = vpop.f32.mrb[0].mxu0
  %v1593 = vadd.f32 %v1473, %v1592
  %v1594 = vpop.f32.mrb[0].mxu0
  %1595 = vmatprep.mubr.bf16.mxu0 %v581
  %1596 = vmatmul.mubr.bf16.gmra.mrb[0].mxu0 %v580
  %v1597 = vpop.f32.mrb[0].mxu0
  %v1598 = vadd.f32 %v1478, %v1597
  %v1599 = vpop.f32.mrb[0].mxu0
  %v1600 = vpop.f32.mrb[0].mxu0
  %v1601 = vadd.f32 %v1481, %v1600
  %v1602 = vpop.f32.mrb[0].mxu0
  %1603 = vmatprep.mubr.bf16.mxu0 %v590
  %1604 = vmatmul.mubr.bf16.gmra.mrb[0].mxu0 %v589
  %v1605 = vpop.f32.mrb[0].mxu0
  %v1606 = vadd.f32 %v1486, %v1605
  %v1607 = vpop.f32.mrb[0].mxu0
  %v1608 = vpop.f32.mrb[0].mxu0
  %v1609 = vadd.f32 %v1489, %v1608
  %v1610 = vpop.f32.mrb[0].mxu0
  %1611 = vmatprep.mubr.bf16.mxu0 %v599
  %1612 = vmatmul.mubr.bf16.gmra.mrb[0].mxu0 %v598
  %v1613 = vpop.f32.mrb[0].mxu0
  %v1614 = vadd.f32 %v1494, %v1613
  %v1615 = vpop.f32.mrb[0].mxu0
  %v1616 = vpop.f32.mrb[0].mxu0
  %v1617 = vadd.f32 %v1497, %v1616
  %v1618 = vpop.f32.mrb[0].mxu0
  %1619 = vmatprep.mubr.bf16.mxu0 %v608
  %1620 = vmatmul.mubr.bf16.gmra.mrb[0].mxu0 %v607
  %v1621 = vpop.f32.mrb[0].mxu0
  %v1622 = vadd.f32 %v1502, %v1621
  %v1623 = vpop.f32.mrb[0].mxu0
  %v1624 = vpop.f32.mrb[0].mxu0
  %v1625 = vadd.f32 %v1505, %v1624
  %v1626 = vpop.f32.mrb[0].mxu0
  %1627 = vmatprep.mubr.bf16.mxu0 %v617
  %1628 = vmatmul.mubr.bf16.gmra.mrb[0].mxu0 %v616
  %v1629 = vpop.f32.mrb[0].mxu0
  %v1630 = vadd.f32 %v1510, %v1629
  %v1631 = vpop.f32.mrb[0].mxu0
  %v1632 = vpop.f32.mrb[0].mxu0
  %v1633 = vadd.f32 %v1513, %v1632
  %v1634 = vpop.f32.mrb[0].mxu0
  %1635 = vmatprep.mubr.bf16.mxu0 %v626
  %1636 = vmatmul.mubr.bf16.gmra.mrb[0].mxu0 %v625
  %v1637 = vpop.f32.mrb[0].mxu0
  %v1638 = vadd.f32 %v1518, %v1637
  %v1639 = vpop.f32.mrb[0].mxu0
  %v1640 = vpop.f32.mrb[0].mxu0
  %v1641 = vadd.f32 %v1521, %v1640
  %v1642 = vpop.f32.mrb[0].mxu0
  %1643 = vmatprep.mubr.bf16.mxu0 %v635
  %1644 = vmatmul.mubr.bf16.gmra.mrb[0].mxu0 %v634
  %v1645 = vpop.f32.mrb[0].mxu0
  %v1646 = vadd.f32 %v1526, %v1645
  %v1647 = vpop.f32.mrb[0].mxu0
  %v1648 = vpop.f32.mrb[0].mxu0
  %v1649 = vadd.f32 %v1529, %v1648
  %v1650 = vpop.f32.mrb[0].mxu0
  %1651 = vmatprep.mubr.bf16.mxu0 %v644
  %1652 = vmatmul.mubr.bf16.gmra.mrb[0].mxu0 %v643
  %v1653 = vpop.f32.mrb[0].mxu0
  %v1654 = vadd.f32 %v1534, %v1653
  %v1655 = vpop.f32.mrb[0].mxu0
  %v1656 = vpop.f32.mrb[0].mxu0
  %v1657 = vadd.f32 %v1537, %v1656
  %v1658 = vpop.f32.mrb[0].mxu0
  %1659 = vmatprep.mubr.bf16.mxu0 %v653
  %1660 = vmatmul.mubr.bf16.gmra.mrb[0].mxu0 %v652
  %v1661 = vpop.f32.mrb[0].mxu0
  %v1662 = vadd.f32 %v1542, %v1661
  %v1663 = vpop.f32.mrb[0].mxu0
  %v1664 = vpop.f32.mrb[0].mxu0
  %v1665 = vadd.f32 %v1545, %v1664
  %v1666 = vpop.f32.mrb[0].mxu0
  %1667 = vmatprep.mubr.bf16.mxu0 %v662
  %1668 = vmatmul.mubr.bf16.gmra.mrb[0].mxu0 %v661
  %v1669 = vpop.f32.mrb[0].mxu0
  %v1670 = vadd.f32 %v1550, %v1669
  %v1671 = vpop.f32.mrb[0].mxu0
  %v1672 = vpop.f32.mrb[0].mxu0
  %v1673 = vpop.f32.mrb[0].mxu0
  %1674 = vdwg.mxu0
  %1675 = vmatprep.subr.bf16.mxu0 0
  %1676 = vmatpush1.bf16.msra.mxu0 %v1115
  %1677 = vmatprep.subr.bf16.mxu0 0
  %1678 = vmatpush1.bf16.msra.mxu0 %v1116
  %1679 = vmatprep.subr.bf16.mxu0 0
  %1680 = vmatpush1.bf16.msra.mxu0 %v1117
  %1681 = vmatprep.subr.bf16.mxu0 0
  %1682 = vmatpush1.bf16.msra.mxu0 %v1118
  %1683 = vmatprep.subr.bf16.mxu0 0
  %1684 = vmatpush1.bf16.msra.mxu0 %v1119
  %1685 = vmatprep.subr.bf16.mxu0 0
  %1686 = vmatpush1.bf16.msra.mxu0 %v1120
  %1687 = vmatprep.subr.bf16.mxu0 0
  %1688 = vmatpush1.bf16.msra.mxu0 %v1121
  %1689 = vmatprep.subr.bf16.mxu0 0
  %1690 = vmatpush1.bf16.msra.mxu0 %v1122
  %1691 = vmatprep.subr.bf16.mxu0 0
  %1692 = vmatpush1.bf16.msra.mxu0 0
  %1693 = vmatprep.subr.bf16.mxu0 0
  %1694 = vmatpush1.bf16.msra.mxu0 0
  %1695 = vmatprep.subr.bf16.mxu0 0
  %1696 = vmatpush1.bf16.msra.mxu0 0
  %1697 = vmatprep.subr.bf16.mxu0 0
  %1698 = vmatpush1.bf16.msra.mxu0 0
  %1699 = vmatprep.subr.bf16.mxu0 0
  %1700 = vmatpush1.bf16.msra.mxu0 0
  %1701 = vmatprep.subr.bf16.mxu0 0
  %1702 = vmatpush1.bf16.msra.mxu0 0
  %1703 = vmatprep.subr.bf16.mxu0 0
  %1704 = vmatpush1.bf16.msra.mxu0 0
  %1705 = vmatprep.subr.bf16.mxu0 0
  %1706 = vmatpush1.bf16.msra.mxu0 0
  %1707 = vmatprep.mubr.bf16.mxu0 0
  %1708 = vmatmul.mubr.bf16.gmra.mrb[0].mxu0 %v573
  %v1709 = vpop.f32.mrb[0].mxu0
  %v1710 = vadd.f32 %v1590, %v1709
  %v1711 = vpop.f32.mrb[0].mxu0
  %v1712 = vpop.f32.mrb[0].mxu0
  %v1713 = vadd.f32 %v1593, %v1712
  %v1714 = vpop.f32.mrb[0].mxu0
  %1715 = vmatprep.mubr.bf16.mxu0 0
  %1716 = vmatmul.mubr.bf16.gmra.mrb[0].mxu0 %v582
  %v1717 = vpop.f32.mrb[0].mxu0
  %v1718 = vadd.f32 %v1598, %v1717
  %v1719 = vpop.f32.mrb[0].mxu0
  %v1720 = vpop.f32.mrb[0].mxu0
  %v1721 = vadd.f32 %v1601, %v1720
  %v1722 = vpop.f32.mrb[0].mxu0
  %1723 = vmatprep.mubr.bf16.mxu0 0
  %1724 = vmatmul.mubr.bf16.gmra.mrb[0].mxu0 %v591
  %v1725 = vpop.f32.mrb[0].mxu0
  %v1726 = vadd.f32 %v1606, %v1725
  %v1727 = vpop.f32.mrb[0].mxu0
  %v1728 = vpop.f32.mrb[0].mxu0
  %v1729 = vadd.f32 %v1609, %v1728
  %v1730 = vpop.f32.mrb[0].mxu0
  %1731 = vmatprep.mubr.bf16.mxu0 0
  %1732 = vmatmul.mubr.bf16.gmra.mrb[0].mxu0 %v600
  %v1733 = vpop.f32.mrb[0].mxu0
  %v1734 = vadd.f32 %v1614, %v1733
  %v1735 = vpop.f32.mrb[0].mxu0
  %v1736 = vpop.f32.mrb[0].mxu0
  %v1737 = vadd.f32 %v1617, %v1736
  %v1738 = vpop.f32.mrb[0].mxu0
  %1739 = vmatprep.mubr.bf16.mxu0 0
  %1740 = vmatmul.mubr.bf16.gmra.mrb[0].mxu0 %v609
  %v1741 = vpop.f32.mrb[0].mxu0
  %v1742 = vadd.f32 %v1622, %v1741
  %v1743 = vpop.f32.mrb[0].mxu0
  %v1744 = vpop.f32.mrb[0].mxu0
  %v1745 = vadd.f32 %v1625, %v1744
  %v1746 = vpop.f32.mrb[0].mxu0
  %1747 = vmatprep.mubr.bf16.mxu0 0
  %1748 = vmatmul.mubr.bf16.gmra.mrb[0].mxu0 %v618
  %v1749 = vpop.f32.mrb[0].mxu0
  %v1750 = vadd.f32 %v1630, %v1749
  %v1751 = vpop.f32.mrb[0].mxu0
  %v1752 = vpop.f32.mrb[0].mxu0
  %v1753 = vadd.f32 %v1633, %v1752
  %v1754 = vpop.f32.mrb[0].mxu0
  %1755 = vmatprep.mubr.bf16.mxu0 0
  %1756 = vmatmul.mubr.bf16.gmra.mrb[0].mxu0 %v627
  %v1757 = vpop.f32.mrb[0].mxu0
  %v1758 = vadd.f32 %v1638, %v1757
  %v1759 = vpop.f32.mrb[0].mxu0
  %v1760 = vpop.f32.mrb[0].mxu0
  %v1761 = vadd.f32 %v1641, %v1760
  %v1762 = vpop.f32.mrb[0].mxu0
  %1763 = vmatprep.mubr.bf16.mxu0 0
  %1764 = vmatmul.mubr.bf16.gmra.mrb[0].mxu0 %v636
  %v1765 = vpop.f32.mrb[0].mxu0
  %v1766 = vadd.f32 %v1646, %v1765
  %v1767 = vpop.f32.mrb[0].mxu0
  %v1768 = vpop.f32.mrb[0].mxu0
  %v1769 = vadd.f32 %v1649, %v1768
  %v1770 = vpop.f32.mrb[0].mxu0
  %1771 = vmatprep.mubr.bf16.mxu0 0
  %1772 = vmatmul.mubr.bf16.gmra.mrb[0].mxu0 %v645
  %v1773 = vpop.f32.mrb[0].mxu0
  %v1774 = vadd.f32 %v1654, %v1773
  %v1775 = vpop.f32.mrb[0].mxu0
  %v1776 = vpop.f32.mrb[0].mxu0
  %v1777 = vadd.f32 %v1657, %v1776
  %v1778 = vpop.f32.mrb[0].mxu0
  %1779 = vmatprep.mubr.bf16.mxu0 0
  %1780 = vmatmul.mubr.bf16.gmra.mrb[0].mxu0 %v654
  %v1781 = vpop.f32.mrb[0].mxu0
  %v1782 = vadd.f32 %v1662, %v1781
  %v1783 = vpop.f32.mrb[0].mxu0
  %v1784 = vpop.f32.mrb[0].mxu0
  %v1785 = vadd.f32 %v1665, %v1784
  %v1786 = vpop.f32.mrb[0].mxu0
  %1787 = vmatprep.mubr.bf16.mxu0 0
  %1788 = vmatmul.mubr.bf16.gmra.mrb[0].mxu0 %v663
  %v1789 = vpop.f32.mrb[0].mxu0
  %v1790 = vadd.f32 %v1670, %v1789
  %v1791 = vpop.f32.mrb[0].mxu0
  %v1792 = vpop.f32.mrb[0].mxu0
  %v1793 = vpop.f32.mrb[0].mxu0
  %1794 = vdwg.mxu0
  %1795 = vst [vmem:[%s3] sm:$0xff] %v1710
  %1796 = vst [vmem:[%s3 + $0x8] sm:$0xff] %v1713
  %1797 = vst [vmem:[%s3 + $0x10] sm:$0xff] %v1718
  %1798 = vst [vmem:[%s3 + $0x18] sm:$0xff] %v1721
  %1799 = vst [vmem:[%s3 + $0x20] sm:$0xff] %v1726
  %1800 = vst [vmem:[%s3 + $0x28] sm:$0xff] %v1729
  %1801 = vst [vmem:[%s3 + $0x30] sm:$0xff] %v1734
  %1802 = vst [vmem:[%s3 + $0x38] sm:$0xff] %v1737
  %1803 = vst [vmem:[%s3 + $0x40] sm:$0xff] %v1742
  %1804 = vst [vmem:[%s3 + $0x48] sm:$0xff] %v1745
  %1805 = vst [vmem:[%s3 + $0x50] sm:$0xff] %v1750
  %1806 = vst [vmem:[%s3 + $0x58] sm:$0xff] %v1753
  %1807 = vst [vmem:[%s3 + $0x60] sm:$0xff] %v1758
  %1808 = vst [vmem:[%s3 + $0x68] sm:$0xff] %v1761
  %1809 = vst [vmem:[%s3 + $0x70] sm:$0xff] %v1766
  %1810 = vst [vmem:[%s3 + $0x78] sm:$0xff] %v1769
  %1811 = vst [vmem:[%s3 + $0x80] sm:$0xff] %v1774
  %1812 = vst [vmem:[%s3 + $0x88] sm:$0xff] %v1777
  %1813 = vst [vmem:[%s3 + $0x90] sm:$0xff] %v1782
  %1814 = vst [vmem:[%s3 + $0x98] sm:$0xff] %v1785
  %1815 = vst [vmem:[%s3 + $0xa0] sm:$0xff] %v1790
  // Predicated region
  $region14: #{retinanet_forward.25} parent=0 // pred_check
    _
  $region15: #{retinanet_forward.25} parent=0 // pred_check_branch
    %1817 = sbr.rel (0) target = $region17
  $region16: #{retinanet_forward.25} parent=0 // pred_region
    _
  $region17: #{retinanet_forward.25} parent=0 // pred_fallthru
    _
  // Predicated region
  $region18: #{retinanet_forward.25} parent=0 // pred_check
    _
  $region19: #{retinanet_forward.25} parent=0 // pred_check_branch
    %1819 = sbr.rel (0) target = $region21
  $region20: #{retinanet_forward.25} parent=0 // pred_region
    _
  $region21: #{retinanet_forward.25} parent=0 // pred_fallthru
    _

</llo_original>
